<compile_context>
chip_gen: v7x
topology: tpu7x:2x2x1
jax: 0.10.0
libtpu: 0.0.40
codegen_flags: <defaults>
</compile_context>

<pallas_src>
import functools

import jax
import jax.numpy as jnp
from jax.experimental import pallas as pl
from jax.experimental.pallas import tpu as pltpu


# ----------------------------------------------------------------------------
# Parameter construction (deterministic, mirrors Classify.__init__ shapes).
# Linear weights are stored pre-transposed to (in, out) so y = x @ W + b.
# ----------------------------------------------------------------------------
def _linear_params(key, fan_in, fan_out):
    kw, kb = jax.random.split(key)
    bound = 1.0 / (fan_in ** 0.5)
    w = jax.random.uniform(kw, (fan_in, fan_out), jnp.float32, -bound, bound)
    b = jax.random.uniform(kb, (1, fan_out), jnp.float32, -bound, bound)
    return w, b


def build_classify_params(key, input_dim, target_dim):
    """Returns (layer_kinds, flat_param_list) mirroring Classify's Sequential."""
    kinds, params = [], []
    keys = iter(jax.random.split(key, 64))

    def add_attention(i, o):
        kinds.append("attention")
        for fi, fo in ((i, o), (i, o // 4), (i, o // 4)):
            w, b = _linear_params(next(keys), fi, fo)
            params.extend([w, b])
        params.append(jnp.zeros((1, 1), jnp.float32))  # gamma, init 0.0 as in torch

    def add_block(i, o):
        kinds.append("block")
        for fi, fo in ((i, o), (o, o // 2), (o // 2, o)):
            w, b = _linear_params(next(keys), fi, fo)
            params.extend([w, b])

    def add_linear(i, o):
        kinds.append("linear")
        w, b = _linear_params(next(keys), i, o)
        params.extend([w, b])

    dim = input_dim
    if input_dim >= 256:
        add_attention(dim, dim); add_block(dim, 256); add_block(256, 128); add_block(128, 64)
    elif input_dim >= 128:
        add_attention(dim, dim); add_block(dim, 128); add_block(128, 64)
    else:
        add_attention(dim, dim); add_block(dim, 64)
    dim = 64
    if target_dim >= 16:
        add_linear(dim, 32); dim = 32
    elif target_dim >= 8:
        add_block(dim, 32); add_linear(32, 16); dim = 16
    else:
        add_block(dim, 32); add_block(32, 16); add_linear(16, 8); dim = 8
    add_linear(dim, target_dim)
    return kinds, params


# ----------------------------------------------------------------------------
# Fused Pallas kernel: whole Classify forward, gridded over batch tiles.
# Weights live as full VMEM blocks with a constant block index (DMA'd once),
# activations are software-pipelined HBM<->VMEM per batch tile, gamma is an
# SMEM scalar, and the output is stored lane-dense (padded to a 128 multiple).
# ----------------------------------------------------------------------------
def _classify_kernel(layout, approx_recip, x_ref, *refs):
    out_ref = refs[-1]
    prm = refs[:-1]
    h = x_ref[...]                      # f32 running activation
    i = 0
    for entry in layout:
        kind = entry[0]
        if kind == "attention":
            wqkv_ref, bqkv_ref, gamma = prm[i:i + 3]
            i += 3
            o_dim, oq = entry[1], entry[2]
            # Single fused projection: one MXU push with N = 1.5*O instead of
            # three small pushes (q | k | v are lane slices of the result).
            wv = wqkv_ref[...]
            qkv = jnp.dot(h.astype(wv.dtype), wv,
                          preferred_element_type=jnp.float32) + bqkv_ref[...]
            q = qkv[:, :o_dim]                              # (TB, O)
            k = qkv[:, o_dim:o_dim + oq]                    # (TB, O/4)
            v = qkv[:, o_dim + oq:o_dim + 2 * oq]           # (TB, O/4)
            # torch: w = softmax(bmm(q^T, k), -1); scores are rank-1 per row:
            #   s[b, j, m] = q[b, j] * k[b, m]
            # Analytic row max (exact): max_m q*k = q*kmax if q>=0 else q*kmin,
            # so the (TB, O, O/4) score tensor is never materialized for the max.
            kmax = jnp.max(k, axis=-1, keepdims=True)       # (TB, 1)
            kmin = jnp.min(k, axis=-1, keepdims=True)
            smax = jnp.where(q >= 0, q * kmax, q * kmin)    # (TB, O), true row max
            # Transposed intermediate (TB, chunk, O): O on lanes (full vreg fill),
            # reduction over sublanes. Chunk the O/4 axis so per-chunk scratch is
            # bounded regardless of input_dim (keeps v7x's 64 MiB VMEM safe).
            tb = h.shape[0]
            chunk = max(8, min(oq, (4 << 20) // max(1, tb * o_dim * 4)))
            q_b = q[:, None, :]                             # hoisted broadcasts
            smax_b = smax[:, None, :]
            num = jnp.zeros_like(q)
            den = jnp.zeros_like(q)
            for m0 in range(0, oq, chunk):
                kc = k[:, m0:m0 + chunk]                    # (TB, c)
                vc = v[:, m0:m0 + chunk]
                e = jnp.exp(kc[:, :, None] * q_b - smax_b)  # (TB, c, O)
                num = num + jnp.sum(vc[:, :, None] * e, axis=1)
                den = den + jnp.sum(e, axis=1)
            # max-subtraction guarantees den >= 1, so approx reciprocal is safe.
            att = num * pl.reciprocal(den, approx=approx_recip)
            h = gamma[0, 0] * att + h                       # gamma is an SMEM scalar
        elif kind == "block":
            w1, b1, w2, b2, w3, b3 = prm[i:i + 6]
            i += 6
            wv1, wv2, wv3 = w1[...], w2[...], w3[...]
            out1 = jnp.dot(h.astype(wv1.dtype), wv1,
                           preferred_element_type=jnp.float32) + b1[...]
            out2 = jnp.dot(out1.astype(wv2.dtype), wv2,
                           preferred_element_type=jnp.float32) + b2[...]
            out3 = jnp.dot(out2.astype(wv3.dtype), wv3,
                           preferred_element_type=jnp.float32) + b3[...]
            z = out1 + out3
            h = jnp.where(z >= 0, z, 0.2 * z)               # LeakyReLU(0.2), f32
            # TODO(synk): Dropout(0.5) implemented as eval-mode identity (no training RNG mask).
        else:  # "linear"
            w, b = prm[i:i + 2]
            i += 2
            wv = w[...]
            h = jnp.dot(h.astype(wv.dtype), wv,
                        preferred_element_type=jnp.float32) + b[...]
    out_ref[...] = h.astype(out_ref.dtype)                  # lane-dense full-block store


def _cost_estimate(layout, kparams, batch, x_size, out_pad):
    flops, trans = 0, 0
    i = 0
    for entry in layout:
        if entry[0] == "attention":
            wqkv = kparams[i]
            i += 3
            o_dim, oq = entry[1], entry[2]
            flops += 2 * batch * wqkv.shape[0] * wqkv.shape[1]
            flops += 4 * batch * o_dim * oq                 # outer prod + softmax + weighted sum
            trans += batch * o_dim * oq                     # exp
        elif entry[0] == "block":
            for j in range(3):
                w = kparams[i + 2 * j]
                flops += 2 * batch * w.shape[0] * w.shape[1]
            i += 6
        else:
            w = kparams[i]
            i += 2
            flops += 2 * batch * w.shape[0] * w.shape[1]
    bytes_accessed = (sum(int(p.size) * p.dtype.itemsize for p in kparams)
                      + 4 * (x_size + batch * out_pad))
    return pl.CostEstimate(flops=int(flops), transcendentals=int(trans),
                           bytes_accessed=int(bytes_accessed))


def classify_forward(x, kinds, params, target_dim, *, block_b=512,
                     approx_recip=True, matmul_dtype=jnp.bfloat16,
                     single_buffer_weights=True):
    B, d_in = x.shape

    # Lane-dense output: pad the final Linear's columns to a multiple of 128 so the
    # per-step output store is an unmasked full-vreg store; slice outside.
    out_pad = max(128, pl.cdiv(target_dim, 128) * 128)

    # --- pack parameters for the kernel -------------------------------------
    # attention -> [wqkv (fused w1|w2|w3, matmul_dtype), bqkv (f32), gamma (SMEM)]
    # block     -> [w1,b1,w2,b2,w3,b3]  (weights matmul_dtype, biases f32)
    # linear    -> [w,b]
    layout, kparams, smem_idx = [], [], set()
    i = 0
    for kind in kinds:
        if kind == "attention":
            w1, b1, w2, b2, w3, b3, gamma = params[i:i + 7]
            i += 7
            o_dim, oq = w1.shape[1], w2.shape[1]
            wqkv = jnp.concatenate([w1, w2, w3], axis=1).astype(matmul_dtype)
            bqkv = jnp.concatenate([b1, b2, b3], axis=1)
            layout.append(("attention", int(o_dim), int(oq)))
            kparams += [wqkv, bqkv]
            smem_idx.add(len(kparams))
            kparams.append(gamma)
        elif kind == "block":
            w1, b1, w2, b2, w3, b3 = params[i:i + 6]
            i += 6
            layout.append(("block",))
            kparams += [w1.astype(matmul_dtype), b1,
                        w2.astype(matmul_dtype), b2,
                        w3.astype(matmul_dtype), b3]
        else:
            w, b = params[i:i + 2]
            i += 2
            layout.append(("linear",))
            kparams += [w.astype(matmul_dtype), b]
    # pad the final Linear to the lane-dense output width (zero columns -> sliced off)
    w_last, b_last = kparams[-2], kparams[-1]
    kparams[-2] = jnp.pad(w_last, ((0, 0), (0, out_pad - w_last.shape[1])))
    kparams[-1] = jnp.pad(b_last, ((0, 0), (0, out_pad - b_last.shape[1])))

    # --- batch tile ----------------------------------------------------------
    # Large tile to feed the 256-row MXU / amortize per-step overhead, but capped
    # so the grid keeps >= 2 steps (v7x megacore shards batch tiles across 2 TCs).
    tb = min(block_b, B)
    if B > 8:
        half = ((pl.cdiv(B, 2) + 7) // 8) * 8
        tb = min(tb, max(8, half))
    if tb < B:
        tb = max(8, (tb // 8) * 8)
    grid = (pl.cdiv(B, tb),)

    out_specs = pl.BlockSpec((tb, out_pad), lambda b: (b, 0))
    kernel = functools.partial(_classify_kernel, tuple(layout), approx_recip)
    cost = _cost_estimate(layout, kparams, B, int(x.size), out_pad)

    def run(weight_buffer_count):
        in_specs = [pl.BlockSpec((tb, d_in), lambda b: (b, 0))]
        for idx, p in enumerate(kparams):
            if idx in smem_idx:
                # attention gamma -> scalar in SMEM (no vector load / vreg broadcast)
                in_specs.append(pl.BlockSpec(memory_space=pltpu.MemorySpace.SMEM))
            elif weight_buffer_count == 1:
                # weights/biases: constant block index -> DMA'd once; single buffer
                # avoids allocating a useless second VMEM copy.
                in_specs.append(pl.BlockSpec(p.shape, lambda b: (0, 0),
                                             pipeline_mode=pl.Buffered(1)))
            else:
                in_specs.append(pl.BlockSpec(p.shape, lambda b: (0, 0)))
        return pl.pallas_call(
            kernel,
            out_shape=jax.ShapeDtypeStruct((B, out_pad), jnp.float32),
            grid=grid,
            in_specs=in_specs,
            out_specs=out_specs,
            compiler_params=pltpu.CompilerParams(
                # Batch tiles are independent -> megacore sharding on v7x (2 TCs).
                dimension_semantics=("parallel",),
                # v5e's default scoped VMEM is only 16 MiB; 48 MiB is safe on all of
                # v5e/v6e (128 MiB physical) and v7x (64 MiB physical, leave headroom).
                vmem_limit_bytes=48 * 1024 * 1024,
            ),
            cost_estimate=cost,
        )(x, *kparams)

    if single_buffer_weights:
        try:
            out = jax.block_until_ready(run(1))
        except Exception:
            out = run(2)   # fallback if this JAX build rejects Buffered(1)
    else:
        out = run(2)
    return out[:, :target_dim]


# ----------------------------------------------------------------------------
# Pure-JAX reference (same math) for a correctness check. matmul_dtype lets us
# validate the bf16-weight production path against an equivalently-cast reference.
# ----------------------------------------------------------------------------
def classify_reference(x, kinds, params, matmul_dtype=jnp.float32):
    def mm(a, w):
        return jnp.dot(a.astype(matmul_dtype), w.astype(matmul_dtype),
                       preferred_element_type=jnp.float32)

    h = x.astype(jnp.float32)
    i = 0
    for kind in kinds:
        if kind == "attention":
            w1, b1, w2, b2, w3, b3, gamma = params[i:i + 7]
            i += 7
            q = mm(h, w1) + b1
            k = mm(h, w2) + b2
            v = mm(h, w3) + b3
            s = q[:, :, None] * k[:, None, :]
            w_att = jax.nn.softmax(s, axis=-1)
            o = jnp.sum(v[:, None, :] * w_att, axis=-1)
            h = gamma[0, 0] * o + h
        elif kind == "block":
            w1, b1, w2, b2, w3, b3 = params[i:i + 6]
            i += 6
            out1 = mm(h, w1) + b1
            out2 = mm(out1, w2) + b2
            out3 = mm(out2, w3) + b3
            z = out1 + out3
            h = jnp.where(z >= 0, z, 0.2 * z)
        else:
            w, b = params[i:i + 2]
            i += 2
            h = mm(h, w) + b
    return h


if __name__ == "__main__":
    input_dim = 32     # < 128 branch: Attention(32,32) + Block(32,64)
    target_dim = 4     # < 8 branch: Block(64,32), Block(32,16), Linear(16,8), Linear(8,4)
    batch = 64

    root = jax.random.PRNGKey(0)
    k_param, k_x = jax.random.split(root)
    kinds, params = build_classify_params(k_param, input_dim, target_dim)
    # Override gamma (torch-init 0.0) to a nonzero value so the attention branch
    # actually contributes to the output and is exercised by the check.
    params[6] = jnp.full((1, 1), 0.5, jnp.float32)
    x = jax.random.normal(k_x, (batch, input_dim), jnp.float32)

    # Exact path: f32 matmuls + exact reciprocal, must match the f32 reference tightly.
    ref_f32 = classify_reference(x, kinds, params)
    out_exact = classify_forward(x, kinds, params, target_dim, block_b=16,
                                 approx_recip=False, matmul_dtype=jnp.float32)
    out_exact = jax.block_until_ready(out_exact)
    assert out_exact.shape == (batch, target_dim), out_exact.shape
    assert jnp.allclose(out_exact, ref_f32, atol=1e-4, rtol=1e-4), (
        f"max abs err (exact) = {jnp.max(jnp.abs(out_exact - ref_f32))}")

    # Production path: bf16 matmul inputs (f32 accumulate) + approx EUP reciprocal,
    # larger batch tile (grid of 2 batch tiles -> exercises megacore sharding).
    ref_bf16 = classify_reference(x, kinds, params, matmul_dtype=jnp.bfloat16)
    out = classify_forward(x, kinds, params, target_dim)
    out = jax.block_until_ready(out)
    assert out.shape == (batch, target_dim), out.shape
    assert bool(jnp.all(jnp.isfinite(out)))
    assert jnp.allclose(out, ref_bf16, atol=2e-2, rtol=2e-2), (
        f"max abs err (prod vs bf16 ref) = {jnp.max(jnp.abs(out - ref_bf16))}")

    print("KERNEL_OK")
</pallas_src>

<mosaic_0001>
module attributes {stable_mosaic.version = 11 : i64} {
  func.func @_classify_kernel(%arg0: i32, %arg1: memref<16x32xf32, #tpu.memory_space<vmem>>, %arg2: memref<32x48xf32, #tpu.memory_space<vmem>>, %arg3: memref<1x48xf32, #tpu.memory_space<vmem>>, %arg4: memref<1x1xf32, #tpu.memory_space<smem>>, %arg5: memref<32x64xf32, #tpu.memory_space<vmem>>, %arg6: memref<1x64xf32, #tpu.memory_space<vmem>>, %arg7: memref<64x32xf32, #tpu.memory_space<vmem>>, %arg8: memref<1x32xf32, #tpu.memory_space<vmem>>, %arg9: memref<32x64xf32, #tpu.memory_space<vmem>>, %arg10: memref<1x64xf32, #tpu.memory_space<vmem>>, %arg11: memref<64x32xf32, #tpu.memory_space<vmem>>, %arg12: memref<1x32xf32, #tpu.memory_space<vmem>>, %arg13: memref<32x16xf32, #tpu.memory_space<vmem>>, %arg14: memref<1x16xf32, #tpu.memory_space<vmem>>, %arg15: memref<16x32xf32, #tpu.memory_space<vmem>>, %arg16: memref<1x32xf32, #tpu.memory_space<vmem>>, %arg17: memref<32x16xf32, #tpu.memory_space<vmem>>, %arg18: memref<1x16xf32, #tpu.memory_space<vmem>>, %arg19: memref<16x8xf32, #tpu.memory_space<vmem>>, %arg20: memref<1x8xf32, #tpu.memory_space<vmem>>, %arg21: memref<8x16xf32, #tpu.memory_space<vmem>>, %arg22: memref<1x16xf32, #tpu.memory_space<vmem>>, %arg23: memref<16x8xf32, #tpu.memory_space<vmem>>, %arg24: memref<1x8xf32, #tpu.memory_space<vmem>>, %arg25: memref<8x128xf32, #tpu.memory_space<vmem>>, %arg26: memref<1x128xf32, #tpu.memory_space<vmem>>, %arg27: memref<16x128xf32, #tpu.memory_space<vmem>>) attributes {dimension_semantics = [#tpu.dimension_semantics<parallel>], iteration_bounds = array<i64: 4>, scalar_prefetch = 0 : i64, scratch_operands = 0 : i64, tpu.core_type = #tpu.core_type<tc>, window_params = [{transform_indices = @transform_0, window_bounds = array<i64: 16, 32>}, {pipeline_mode = #tpu.pipeline_mode<synchronous>, transform_indices = @transform_1, window_bounds = array<i64: 32, 48>}, {pipeline_mode = #tpu.pipeline_mode<synchronous>, transform_indices = @transform_2, window_bounds = array<i64: 1, 48>}, {transform_indices = @transform_3, window_bounds = array<i64: 1, 1>}, {pipeline_mode = #tpu.pipeline_mode<synchronous>, transform_indices = @transform_4, window_bounds = array<i64: 32, 64>}, {pipeline_mode = #tpu.pipeline_mode<synchronous>, transform_indices = @transform_5, window_bounds = array<i64: 1, 64>}, {pipeline_mode = #tpu.pipeline_mode<synchronous>, transform_indices = @transform_6, window_bounds = array<i64: 64, 32>}, {pipeline_mode = #tpu.pipeline_mode<synchronous>, transform_indices = @transform_7, window_bounds = array<i64: 1, 32>}, {pipeline_mode = #tpu.pipeline_mode<synchronous>, transform_indices = @transform_8, window_bounds = array<i64: 32, 64>}, {pipeline_mode = #tpu.pipeline_mode<synchronous>, transform_indices = @transform_9, window_bounds = array<i64: 1, 64>}, {pipeline_mode = #tpu.pipeline_mode<synchronous>, transform_indices = @transform_10, window_bounds = array<i64: 64, 32>}, {pipeline_mode = #tpu.pipeline_mode<synchronous>, transform_indices = @transform_11, window_bounds = array<i64: 1, 32>}, {pipeline_mode = #tpu.pipeline_mode<synchronous>, transform_indices = @transform_12, window_bounds = array<i64: 32, 16>}, {pipeline_mode = #tpu.pipeline_mode<synchronous>, transform_indices = @transform_13, window_bounds = array<i64: 1, 16>}, {pipeline_mode = #tpu.pipeline_mode<synchronous>, transform_indices = @transform_14, window_bounds = array<i64: 16, 32>}, {pipeline_mode = #tpu.pipeline_mode<synchronous>, transform_indices = @transform_15, window_bounds = array<i64: 1, 32>}, {pipeline_mode = #tpu.pipeline_mode<synchronous>, transform_indices = @transform_16, window_bounds = array<i64: 32, 16>}, {pipeline_mode = #tpu.pipeline_mode<synchronous>, transform_indices = @transform_17, window_bounds = array<i64: 1, 16>}, {pipeline_mode = #tpu.pipeline_mode<synchronous>, transform_indices = @transform_18, window_bounds = array<i64: 16, 8>}, {pipeline_mode = #tpu.pipeline_mode<synchronous>, transform_indices = @transform_19, window_bounds = array<i64: 1, 8>}, {pipeline_mode = #tpu.pipeline_mode<synchronous>, transform_indices = @transform_20, window_bounds = array<i64: 8, 16>}, {pipeline_mode = #tpu.pipeline_mode<synchronous>, transform_indices = @transform_21, window_bounds = array<i64: 1, 16>}, {pipeline_mode = #tpu.pipeline_mode<synchronous>, transform_indices = @transform_22, window_bounds = array<i64: 16, 8>}, {pipeline_mode = #tpu.pipeline_mode<synchronous>, transform_indices = @transform_23, window_bounds = array<i64: 1, 8>}, {pipeline_mode = #tpu.pipeline_mode<synchronous>, transform_indices = @transform_24, window_bounds = array<i64: 8, 128>}, {pipeline_mode = #tpu.pipeline_mode<synchronous>, transform_indices = @transform_25, window_bounds = array<i64: 1, 128>}, {transform_indices = @transform_26, window_bounds = array<i64: 16, 128>}]} {
    %c0 = arith.constant 0 : index
    %c0_0 = arith.constant 0 : index
    %0 = vector.load %arg1[%c0, %c0_0] : memref<16x32xf32, #tpu.memory_space<vmem>>, vector<16x32xf32>
    %c0_1 = arith.constant 0 : index
    %c0_2 = arith.constant 0 : index
    %1 = vector.load %arg2[%c0_1, %c0_2] : memref<32x48xf32, #tpu.memory_space<vmem>>, vector<32x48xf32>
    %cst = arith.constant dense<0.000000e+00> : vector<16x48xf32>
    %2 = tpu.matmul %0, %1, %cst {dimension_numbers = #tpu.dot_dimension_numbers<[1], [0], [0], [1], [0, 0, 1, 1], [], []>} : vector<16x32xf32>, vector<32x48xf32>, vector<16x48xf32> -> vector<16x48xf32>
    %c0_3 = arith.constant 0 : index
    %c0_4 = arith.constant 0 : index
    %3 = vector.load %arg3[%c0_3, %c0_4] : memref<1x48xf32, #tpu.memory_space<vmem>>, vector<1x48xf32>
    %4 = vector.broadcast %3 : vector<1x48xf32> to vector<16x48xf32>
    %5 = arith.addf %2, %4 : vector<16x48xf32>
    %6 = vector.extract_strided_slice %5 {offsets = [0, 0], sizes = [16, 32], strides = [1, 1]} : vector<16x48xf32> to vector<16x32xf32>
    %7 = vector.extract_strided_slice %5 {offsets = [0, 32], sizes = [16, 8], strides = [1, 1]} : vector<16x48xf32> to vector<16x8xf32>
    %8 = vector.extract_strided_slice %5 {offsets = [0, 40], sizes = [16, 8], strides = [1, 1]} : vector<16x48xf32> to vector<16x8xf32>
    %cst_5 = arith.constant dense<0xFF800000> : vector<16xf32>
    %9 = vector.multi_reduction <maximumf>, %7, %cst_5 [1] : vector<16x8xf32> to vector<16xf32>
    %10 = vector.shape_cast %9 : vector<16xf32> to vector<16x1xf32>
    %cst_6 = arith.constant dense<0x7F800000> : vector<16xf32>
    %11 = vector.multi_reduction <minimumf>, %7, %cst_6 [1] : vector<16x8xf32> to vector<16xf32>
    %12 = vector.shape_cast %11 : vector<16xf32> to vector<16x1xf32>
    %cst_7 = arith.constant 0.000000e+00 : f32
    %13 = vector.broadcast %cst_7 : f32 to vector<16x32xf32>
    %14 = arith.cmpf oge, %6, %13 : vector<16x32xf32>
    %15 = vector.broadcast %10 : vector<16x1xf32> to vector<16x32xf32>
    %16 = arith.mulf %6, %15 : vector<16x32xf32>
    %17 = vector.broadcast %12 : vector<16x1xf32> to vector<16x32xf32>
    %18 = arith.mulf %6, %17 : vector<16x32xf32>
    %19 = arith.select %14, %16, %18 : vector<16x32xi1>, vector<16x32xf32>
    %20 = vector.shape_cast %6 : vector<16x32xf32> to vector<16x1x32xf32>
    %21 = vector.shape_cast %19 : vector<16x32xf32> to vector<16x1x32xf32>
    %cst_8 = arith.constant 0.000000e+00 : f32
    %22 = vector.broadcast %cst_8 : f32 to vector<16x32xf32>
    %cst_9 = arith.constant 0.000000e+00 : f32
    %23 = vector.broadcast %cst_9 : f32 to vector<16x32xf32>
    %24 = vector.shape_cast %7 : vector<16x8xf32> to vector<16x8x1xf32>
    %25 = vector.broadcast %24 : vector<16x8x1xf32> to vector<16x8x32xf32>
    %26 = vector.broadcast %20 : vector<16x1x32xf32> to vector<16x8x32xf32>
    %27 = arith.mulf %25, %26 : vector<16x8x32xf32>
    %28 = vector.broadcast %21 : vector<16x1x32xf32> to vector<16x8x32xf32>
    %29 = arith.subf %27, %28 : vector<16x8x32xf32>
    %30 = math.exp %29 : vector<16x8x32xf32>
    %31 = vector.shape_cast %8 : vector<16x8xf32> to vector<16x8x1xf32>
    %32 = vector.broadcast %31 : vector<16x8x1xf32> to vector<16x8x32xf32>
    %33 = arith.mulf %32, %30 : vector<16x8x32xf32>
    %cst_10 = arith.constant dense<0.000000e+00> : vector<16x32xf32>
    %34 = vector.multi_reduction <add>, %33, %cst_10 [1] : vector<16x8x32xf32> to vector<16x32xf32>
    %35 = arith.addf %22, %34 : vector<16x32xf32>
    %cst_11 = arith.constant dense<0.000000e+00> : vector<16x32xf32>
    %36 = vector.multi_reduction <add>, %30, %cst_11 [1] : vector<16x8x32xf32> to vector<16x32xf32>
    %37 = arith.addf %23, %36 : vector<16x32xf32>
    %38 = tpu.reciprocal %37 : vector<16x32xf32> -> vector<16x32xf32>
    %39 = arith.mulf %35, %38 : vector<16x32xf32>
    %c0_12 = arith.constant 0 : index
    %c0_13 = arith.constant 0 : index
    %40 = memref.load %arg4[%c0_12, %c0_13] : memref<1x1xf32, #tpu.memory_space<smem>>
    %41 = vector.broadcast %40 : f32 to vector<16x32xf32>
    %42 = arith.mulf %41, %39 : vector<16x32xf32>
    %43 = arith.addf %42, %0 : vector<16x32xf32>
    %c0_14 = arith.constant 0 : index
    %c0_15 = arith.constant 0 : index
    %44 = vector.load %arg5[%c0_14, %c0_15] : memref<32x64xf32, #tpu.memory_space<vmem>>, vector<32x64xf32>
    %c0_16 = arith.constant 0 : index
    %c0_17 = arith.constant 0 : index
    %45 = vector.load %arg7[%c0_16, %c0_17] : memref<64x32xf32, #tpu.memory_space<vmem>>, vector<64x32xf32>
    %c0_18 = arith.constant 0 : index
    %c0_19 = arith.constant 0 : index
    %46 = vector.load %arg9[%c0_18, %c0_19] : memref<32x64xf32, #tpu.memory_space<vmem>>, vector<32x64xf32>
    %cst_20 = arith.constant dense<0.000000e+00> : vector<16x64xf32>
    %47 = tpu.matmul %43, %44, %cst_20 {dimension_numbers = #tpu.dot_dimension_numbers<[1], [0], [0], [1], [0, 0, 1, 1], [], []>} : vector<16x32xf32>, vector<32x64xf32>, vector<16x64xf32> -> vector<16x64xf32>
    %c0_21 = arith.constant 0 : index
    %c0_22 = arith.constant 0 : index
    %48 = vector.load %arg6[%c0_21, %c0_22] : memref<1x64xf32, #tpu.memory_space<vmem>>, vector<1x64xf32>
    %49 = vector.broadcast %48 : vector<1x64xf32> to vector<16x64xf32>
    %50 = arith.addf %47, %49 : vector<16x64xf32>
    %cst_23 = arith.constant dense<0.000000e+00> : vector<16x32xf32>
    %51 = tpu.matmul %50, %45, %cst_23 {dimension_numbers = #tpu.dot_dimension_numbers<[1], [0], [0], [1], [0, 0, 1, 1], [], []>} : vector<16x64xf32>, vector<64x32xf32>, vector<16x32xf32> -> vector<16x32xf32>
    %c0_24 = arith.constant 0 : index
    %c0_25 = arith.constant 0 : index
    %52 = vector.load %arg8[%c0_24, %c0_25] : memref<1x32xf32, #tpu.memory_space<vmem>>, vector<1x32xf32>
    %53 = vector.broadcast %52 : vector<1x32xf32> to vector<16x32xf32>
    %54 = arith.addf %51, %53 : vector<16x32xf32>
    %cst_26 = arith.constant dense<0.000000e+00> : vector<16x64xf32>
    %55 = tpu.matmul %54, %46, %cst_26 {dimension_numbers = #tpu.dot_dimension_numbers<[1], [0], [0], [1], [0, 0, 1, 1], [], []>} : vector<16x32xf32>, vector<32x64xf32>, vector<16x64xf32> -> vector<16x64xf32>
    %c0_27 = arith.constant 0 : index
    %c0_28 = arith.constant 0 : index
    %56 = vector.load %arg10[%c0_27, %c0_28] : memref<1x64xf32, #tpu.memory_space<vmem>>, vector<1x64xf32>
    %57 = vector.broadcast %56 : vector<1x64xf32> to vector<16x64xf32>
    %58 = arith.addf %55, %57 : vector<16x64xf32>
    %59 = arith.addf %50, %58 : vector<16x64xf32>
    %cst_29 = arith.constant 0.000000e+00 : f32
    %60 = vector.broadcast %cst_29 : f32 to vector<16x64xf32>
    %61 = arith.cmpf oge, %59, %60 : vector<16x64xf32>
    %cst_30 = arith.constant 2.000000e-01 : f32
    %62 = vector.broadcast %cst_30 : f32 to vector<16x64xf32>
    %63 = arith.mulf %62, %59 : vector<16x64xf32>
    %64 = arith.select %61, %59, %63 : vector<16x64xi1>, vector<16x64xf32>
    %c0_31 = arith.constant 0 : index
    %c0_32 = arith.constant 0 : index
    %65 = vector.load %arg11[%c0_31, %c0_32] : memref<64x32xf32, #tpu.memory_space<vmem>>, vector<64x32xf32>
    %c0_33 = arith.constant 0 : index
    %c0_34 = arith.constant 0 : index
    %66 = vector.load %arg13[%c0_33, %c0_34] : memref<32x16xf32, #tpu.memory_space<vmem>>, vector<32x16xf32>
    %c0_35 = arith.constant 0 : index
    %c0_36 = arith.constant 0 : index
    %67 = vector.load %arg15[%c0_35, %c0_36] : memref<16x32xf32, #tpu.memory_space<vmem>>, vector<16x32xf32>
    %cst_37 = arith.constant dense<0.000000e+00> : vector<16x32xf32>
    %68 = tpu.matmul %64, %65, %cst_37 {dimension_numbers = #tpu.dot_dimension_numbers<[1], [0], [0], [1], [0, 0, 1, 1], [], []>} : vector<16x64xf32>, vector<64x32xf32>, vector<16x32xf32> -> vector<16x32xf32>
    %c0_38 = arith.constant 0 : index
    %c0_39 = arith.constant 0 : index
    %69 = vector.load %arg12[%c0_38, %c0_39] : memref<1x32xf32, #tpu.memory_space<vmem>>, vector<1x32xf32>
    %70 = vector.broadcast %69 : vector<1x32xf32> to vector<16x32xf32>
    %71 = arith.addf %68, %70 : vector<16x32xf32>
    %cst_40 = arith.constant dense<0.000000e+00> : vector<16x16xf32>
    %72 = tpu.matmul %71, %66, %cst_40 {dimension_numbers = #tpu.dot_dimension_numbers<[1], [0], [0], [1], [0, 0, 1, 1], [], []>} : vector<16x32xf32>, vector<32x16xf32>, vector<16x16xf32> -> vector<16x16xf32>
    %c0_41 = arith.constant 0 : index
    %c0_42 = arith.constant 0 : index
    %73 = vector.load %arg14[%c0_41, %c0_42] : memref<1x16xf32, #tpu.memory_space<vmem>>, vector<1x16xf32>
    %74 = vector.broadcast %73 : vector<1x16xf32> to vector<16x16xf32>
    %75 = arith.addf %72, %74 : vector<16x16xf32>
    %cst_43 = arith.constant dense<0.000000e+00> : vector<16x32xf32>
    %76 = tpu.matmul %75, %67, %cst_43 {dimension_numbers = #tpu.dot_dimension_numbers<[1], [0], [0], [1], [0, 0, 1, 1], [], []>} : vector<16x16xf32>, vector<16x32xf32>, vector<16x32xf32> -> vector<16x32xf32>
    %c0_44 = arith.constant 0 : index
    %c0_45 = arith.constant 0 : index
    %77 = vector.load %arg16[%c0_44, %c0_45] : memref<1x32xf32, #tpu.memory_space<vmem>>, vector<1x32xf32>
    %78 = vector.broadcast %77 : vector<1x32xf32> to vector<16x32xf32>
    %79 = arith.addf %76, %78 : vector<16x32xf32>
    %80 = arith.addf %71, %79 : vector<16x32xf32>
    %cst_46 = arith.constant 0.000000e+00 : f32
    %81 = vector.broadcast %cst_46 : f32 to vector<16x32xf32>
    %82 = arith.cmpf oge, %80, %81 : vector<16x32xf32>
    %cst_47 = arith.constant 2.000000e-01 : f32
    %83 = vector.broadcast %cst_47 : f32 to vector<16x32xf32>
    %84 = arith.mulf %83, %80 : vector<16x32xf32>
    %85 = arith.select %82, %80, %84 : vector<16x32xi1>, vector<16x32xf32>
    %c0_48 = arith.constant 0 : index
    %c0_49 = arith.constant 0 : index
    %86 = vector.load %arg17[%c0_48, %c0_49] : memref<32x16xf32, #tpu.memory_space<vmem>>, vector<32x16xf32>
    %c0_50 = arith.constant 0 : index
    %c0_51 = arith.constant 0 : index
    %87 = vector.load %arg19[%c0_50, %c0_51] : memref<16x8xf32, #tpu.memory_space<vmem>>, vector<16x8xf32>
    %c0_52 = arith.constant 0 : index
    %c0_53 = arith.constant 0 : index
    %88 = vector.load %arg21[%c0_52, %c0_53] : memref<8x16xf32, #tpu.memory_space<vmem>>, vector<8x16xf32>
    %cst_54 = arith.constant dense<0.000000e+00> : vector<16x16xf32>
    %89 = tpu.matmul %85, %86, %cst_54 {dimension_numbers = #tpu.dot_dimension_numbers<[1], [0], [0], [1], [0, 0, 1, 1], [], []>} : vector<16x32xf32>, vector<32x16xf32>, vector<16x16xf32> -> vector<16x16xf32>
    %c0_55 = arith.constant 0 : index
    %c0_56 = arith.constant 0 : index
    %90 = vector.load %arg18[%c0_55, %c0_56] : memref<1x16xf32, #tpu.memory_space<vmem>>, vector<1x16xf32>
    %91 = vector.broadcast %90 : vector<1x16xf32> to vector<16x16xf32>
    %92 = arith.addf %89, %91 : vector<16x16xf32>
    %cst_57 = arith.constant dense<0.000000e+00> : vector<16x8xf32>
    %93 = tpu.matmul %92, %87, %cst_57 {dimension_numbers = #tpu.dot_dimension_numbers<[1], [0], [0], [1], [0, 0, 1, 1], [], []>} : vector<16x16xf32>, vector<16x8xf32>, vector<16x8xf32> -> vector<16x8xf32>
    %c0_58 = arith.constant 0 : index
    %c0_59 = arith.constant 0 : index
    %94 = vector.load %arg20[%c0_58, %c0_59] : memref<1x8xf32, #tpu.memory_space<vmem>>, vector<1x8xf32>
    %95 = vector.broadcast %94 : vector<1x8xf32> to vector<16x8xf32>
    %96 = arith.addf %93, %95 : vector<16x8xf32>
    %cst_60 = arith.constant dense<0.000000e+00> : vector<16x16xf32>
    %97 = tpu.matmul %96, %88, %cst_60 {dimension_numbers = #tpu.dot_dimension_numbers<[1], [0], [0], [1], [0, 0, 1, 1], [], []>} : vector<16x8xf32>, vector<8x16xf32>, vector<16x16xf32> -> vector<16x16xf32>
    %c0_61 = arith.constant 0 : index
    %c0_62 = arith.constant 0 : index
    %98 = vector.load %arg22[%c0_61, %c0_62] : memref<1x16xf32, #tpu.memory_space<vmem>>, vector<1x16xf32>
    %99 = vector.broadcast %98 : vector<1x16xf32> to vector<16x16xf32>
    %100 = arith.addf %97, %99 : vector<16x16xf32>
    %101 = arith.addf %92, %100 : vector<16x16xf32>
    %cst_63 = arith.constant 0.000000e+00 : f32
    %102 = vector.broadcast %cst_63 : f32 to vector<16x16xf32>
    %103 = arith.cmpf oge, %101, %102 : vector<16x16xf32>
    %cst_64 = arith.constant 2.000000e-01 : f32
    %104 = vector.broadcast %cst_64 : f32 to vector<16x16xf32>
    %105 = arith.mulf %104, %101 : vector<16x16xf32>
    %106 = arith.select %103, %101, %105 : vector<16x16xi1>, vector<16x16xf32>
    %c0_65 = arith.constant 0 : index
    %c0_66 = arith.constant 0 : index
    %107 = vector.load %arg23[%c0_65, %c0_66] : memref<16x8xf32, #tpu.memory_space<vmem>>, vector<16x8xf32>
    %cst_67 = arith.constant dense<0.000000e+00> : vector<16x8xf32>
    %108 = tpu.matmul %106, %107, %cst_67 {dimension_numbers = #tpu.dot_dimension_numbers<[1], [0], [0], [1], [0, 0, 1, 1], [], []>} : vector<16x16xf32>, vector<16x8xf32>, vector<16x8xf32> -> vector<16x8xf32>
    %c0_68 = arith.constant 0 : index
    %c0_69 = arith.constant 0 : index
    %109 = vector.load %arg24[%c0_68, %c0_69] : memref<1x8xf32, #tpu.memory_space<vmem>>, vector<1x8xf32>
    %110 = vector.broadcast %109 : vector<1x8xf32> to vector<16x8xf32>
    %111 = arith.addf %108, %110 : vector<16x8xf32>
    %c0_70 = arith.constant 0 : index
    %c0_71 = arith.constant 0 : index
    %112 = vector.load %arg25[%c0_70, %c0_71] : memref<8x128xf32, #tpu.memory_space<vmem>>, vector<8x128xf32>
    %cst_72 = arith.constant dense<0.000000e+00> : vector<16x128xf32>
    %113 = tpu.matmul %111, %112, %cst_72 {dimension_numbers = #tpu.dot_dimension_numbers<[1], [0], [0], [1], [0, 0, 1, 1], [], []>} : vector<16x8xf32>, vector<8x128xf32>, vector<16x128xf32> -> vector<16x128xf32>
    %c0_73 = arith.constant 0 : index
    %c0_74 = arith.constant 0 : index
    %114 = vector.load %arg26[%c0_73, %c0_74] : memref<1x128xf32, #tpu.memory_space<vmem>>, vector<1x128xf32>
    %115 = vector.broadcast %114 : vector<1x128xf32> to vector<16x128xf32>
    %116 = arith.addf %113, %115 : vector<16x128xf32>
    %c0_75 = arith.constant 0 : index
    %c0_76 = arith.constant 0 : index
    %117 = vector.load %arg27[%c0_75, %c0_76] : memref<16x128xf32, #tpu.memory_space<vmem>>, vector<16x128xf32>
    tpu.vector_store %arg27[%c0_75, %c0_76], %116 {strides = array<i32>} : memref<16x128xf32, #tpu.memory_space<vmem>>, vector<16x128xf32>,
    return
  }
  func.func @transform_0(%arg0: i32) -> (i32, i32) {
    %c0_i32 = arith.constant 0 : i32
    %c0_i32_0 = arith.constant 0 : i32
    return %arg0, %c0_i32 : i32, i32
  }
  func.func @transform_1(%arg0: i32) -> (i32, i32) {
    %c0_i32 = arith.constant 0 : i32
    %c0_i32_0 = arith.constant 0 : i32
    %c0_i32_1 = arith.constant 0 : i32
    return %c0_i32, %c0_i32_0 : i32, i32
  }
  func.func @transform_2(%arg0: i32) -> (i32, i32) {
    %c0_i32 = arith.constant 0 : i32
    %c0_i32_0 = arith.constant 0 : i32
    %c0_i32_1 = arith.constant 0 : i32
    return %c0_i32, %c0_i32_0 : i32, i32
  }
  func.func @transform_3(%arg0: i32) -> (i32, i32) {
    %c0_i32 = arith.constant 0 : i32
    %c0_i32_0 = arith.constant 0 : i32
    %c0_i32_1 = arith.constant 0 : i32
    return %c0_i32, %c0_i32_0 : i32, i32
  }
  func.func @transform_4(%arg0: i32) -> (i32, i32) {
    %c0_i32 = arith.constant 0 : i32
    %c0_i32_0 = arith.constant 0 : i32
    %c0_i32_1 = arith.constant 0 : i32
    return %c0_i32, %c0_i32_0 : i32, i32
  }
  func.func @transform_5(%arg0: i32) -> (i32, i32) {
    %c0_i32 = arith.constant 0 : i32
    %c0_i32_0 = arith.constant 0 : i32
    %c0_i32_1 = arith.constant 0 : i32
    return %c0_i32, %c0_i32_0 : i32, i32
  }
  func.func @transform_6(%arg0: i32) -> (i32, i32) {
    %c0_i32 = arith.constant 0 : i32
    %c0_i32_0 = arith.constant 0 : i32
    %c0_i32_1 = arith.constant 0 : i32
    return %c0_i32, %c0_i32_0 : i32, i32
  }
  func.func @transform_7(%arg0: i32) -> (i32, i32) {
    %c0_i32 = arith.constant 0 : i32
    %c0_i32_0 = arith.constant 0 : i32
    %c0_i32_1 = arith.constant 0 : i32
    return %c0_i32, %c0_i32_0 : i32, i32
  }
  func.func @transform_8(%arg0: i32) -> (i32, i32) {
    %c0_i32 = arith.constant 0 : i32
    %c0_i32_0 = arith.constant 0 : i32
    %c0_i32_1 = arith.constant 0 : i32
    return %c0_i32, %c0_i32_0 : i32, i32
  }
  func.func @transform_9(%arg0: i32) -> (i32, i32) {
    %c0_i32 = arith.constant 0 : i32
    %c0_i32_0 = arith.constant 0 : i32
    %c0_i32_1 = arith.constant 0 : i32
    return %c0_i32, %c0_i32_0 : i32, i32
  }
  func.func @transform_10(%arg0: i32) -> (i32, i32) {
    %c0_i32 = arith.constant 0 : i32
    %c0_i32_0 = arith.constant 0 : i32
    %c0_i32_1 = arith.constant 0 : i32
    return %c0_i32, %c0_i32_0 : i32, i32
  }
  func.func @transform_11(%arg0: i32) -> (i32, i32) {
    %c0_i32 = arith.constant 0 : i32
    %c0_i32_0 = arith.constant 0 : i32
    %c0_i32_1 = arith.constant 0 : i32
    return %c0_i32, %c0_i32_0 : i32, i32
  }
  func.func @transform_12(%arg0: i32) -> (i32, i32) {
    %c0_i32 = arith.constant 0 : i32
    %c0_i32_0 = arith.constant 0 : i32
    %c0_i32_1 = arith.constant 0 : i32
    return %c0_i32, %c0_i32_0 : i32, i32
  }
  func.func @transform_13(%arg0: i32) -> (i32, i32) {
    %c0_i32 = arith.constant 0 : i32
    %c0_i32_0 = arith.constant 0 : i32
    %c0_i32_1 = arith.constant 0 : i32
    return %c0_i32, %c0_i32_0 : i32, i32
  }
  func.func @transform_14(%arg0: i32) -> (i32, i32) {
    %c0_i32 = arith.constant 0 : i32
    %c0_i32_0 = arith.constant 0 : i32
    %c0_i32_1 = arith.constant 0 : i32
    return %c0_i32, %c0_i32_0 : i32, i32
  }
  func.func @transform_15(%arg0: i32) -> (i32, i32) {
    %c0_i32 = arith.constant 0 : i32
    %c0_i32_0 = arith.constant 0 : i32
    %c0_i32_1 = arith.constant 0 : i32
    return %c0_i32, %c0_i32_0 : i32, i32
  }
  func.func @transform_16(%arg0: i32) -> (i32, i32) {
    %c0_i32 = arith.constant 0 : i32
    %c0_i32_0 = arith.constant 0 : i32
    %c0_i32_1 = arith.constant 0 : i32
    return %c0_i32, %c0_i32_0 : i32, i32
  }
  func.func @transform_17(%arg0: i32) -> (i32, i32) {
    %c0_i32 = arith.constant 0 : i32
    %c0_i32_0 = arith.constant 0 : i32
    %c0_i32_1 = arith.constant 0 : i32
    return %c0_i32, %c0_i32_0 : i32, i32
  }
  func.func @transform_18(%arg0: i32) -> (i32, i32) {
    %c0_i32 = arith.constant 0 : i32
    %c0_i32_0 = arith.constant 0 : i32
    %c0_i32_1 = arith.constant 0 : i32
    return %c0_i32, %c0_i32_0 : i32, i32
  }
  func.func @transform_19(%arg0: i32) -> (i32, i32) {
    %c0_i32 = arith.constant 0 : i32
    %c0_i32_0 = arith.constant 0 : i32
    %c0_i32_1 = arith.constant 0 : i32
    return %c0_i32, %c0_i32_0 : i32, i32
  }
  func.func @transform_20(%arg0: i32) -> (i32, i32) {
    %c0_i32 = arith.constant 0 : i32
    %c0_i32_0 = arith.constant 0 : i32
    %c0_i32_1 = arith.constant 0 : i32
    return %c0_i32, %c0_i32_0 : i32, i32
  }
  func.func @transform_21(%arg0: i32) -> (i32, i32) {
    %c0_i32 = arith.constant 0 : i32
    %c0_i32_0 = arith.constant 0 : i32
    %c0_i32_1 = arith.constant 0 : i32
    return %c0_i32, %c0_i32_0 : i32, i32
  }
  func.func @transform_22(%arg0: i32) -> (i32, i32) {
    %c0_i32 = arith.constant 0 : i32
    %c0_i32_0 = arith.constant 0 : i32
    %c0_i32_1 = arith.constant 0 : i32
    return %c0_i32, %c0_i32_0 : i32, i32
  }
  func.func @transform_23(%arg0: i32) -> (i32, i32) {
    %c0_i32 = arith.constant 0 : i32
    %c0_i32_0 = arith.constant 0 : i32
    %c0_i32_1 = arith.constant 0 : i32
    return %c0_i32, %c0_i32_0 : i32, i32
  }
  func.func @transform_24(%arg0: i32) -> (i32, i32) {
    %c0_i32 = arith.constant 0 : i32
    %c0_i32_0 = arith.constant 0 : i32
    %c0_i32_1 = arith.constant 0 : i32
    return %c0_i32, %c0_i32_0 : i32, i32
  }
  func.func @transform_25(%arg0: i32) -> (i32, i32) {
    %c0_i32 = arith.constant 0 : i32
    %c0_i32_0 = arith.constant 0 : i32
    %c0_i32_1 = arith.constant 0 : i32
    return %c0_i32, %c0_i32_0 : i32, i32
  }
  func.func @transform_26(%arg0: i32) -> (i32, i32) {
    %c0_i32 = arith.constant 0 : i32
    %c0_i32_0 = arith.constant 0 : i32
    return %arg0, %c0_i32 : i32, i32
  }
}

module attributes {stable_mosaic.version = 11 : i64} {
  func.func @_classify_kernel(%arg0: i32, %arg1: memref<16x32xf32, #tpu.memory_space<vmem>>, %arg2: memref<32x48xf32, #tpu.memory_space<vmem>>, %arg3: memref<1x48xf32, #tpu.memory_space<vmem>>, %arg4: memref<1x1xf32, #tpu.memory_space<smem>>, %arg5: memref<32x64xf32, #tpu.memory_space<vmem>>, %arg6: memref<1x64xf32, #tpu.memory_space<vmem>>, %arg7: memref<64x32xf32, #tpu.memory_space<vmem>>, %arg8: memref<1x32xf32, #tpu.memory_space<vmem>>, %arg9: memref<32x64xf32, #tpu.memory_space<vmem>>, %arg10: memref<1x64xf32, #tpu.memory_space<vmem>>, %arg11: memref<64x32xf32, #tpu.memory_space<vmem>>, %arg12: memref<1x32xf32, #tpu.memory_space<vmem>>, %arg13: memref<32x16xf32, #tpu.memory_space<vmem>>, %arg14: memref<1x16xf32, #tpu.memory_space<vmem>>, %arg15: memref<16x32xf32, #tpu.memory_space<vmem>>, %arg16: memref<1x32xf32, #tpu.memory_space<vmem>>, %arg17: memref<32x16xf32, #tpu.memory_space<vmem>>, %arg18: memref<1x16xf32, #tpu.memory_space<vmem>>, %arg19: memref<16x8xf32, #tpu.memory_space<vmem>>, %arg20: memref<1x8xf32, #tpu.memory_space<vmem>>, %arg21: memref<8x16xf32, #tpu.memory_space<vmem>>, %arg22: memref<1x16xf32, #tpu.memory_space<vmem>>, %arg23: memref<16x8xf32, #tpu.memory_space<vmem>>, %arg24: memref<1x8xf32, #tpu.memory_space<vmem>>, %arg25: memref<8x128xf32, #tpu.memory_space<vmem>>, %arg26: memref<1x128xf32, #tpu.memory_space<vmem>>, %arg27: memref<16x128xf32, #tpu.memory_space<vmem>>) attributes {dimension_semantics = [#tpu.dimension_semantics<parallel>], iteration_bounds = array<i64: 4>, scalar_prefetch = 0 : i64, scratch_operands = 0 : i64, tpu.core_type = #tpu.core_type<tc>, window_params = [{transform_indices = @transform_0, window_bounds = array<i64: 16, 32>}, {pipeline_mode = #tpu.pipeline_mode<synchronous>, transform_indices = @transform_1, window_bounds = array<i64: 32, 48>}, {pipeline_mode = #tpu.pipeline_mode<synchronous>, transform_indices = @transform_2, window_bounds = array<i64: 1, 48>}, {transform_indices = @transform_3, window_bounds = array<i64: 1, 1>}, {pipeline_mode = #tpu.pipeline_mode<synchronous>, transform_indices = @transform_4, window_bounds = array<i64: 32, 64>}, {pipeline_mode = #tpu.pipeline_mode<synchronous>, transform_indices = @transform_5, window_bounds = array<i64: 1, 64>}, {pipeline_mode = #tpu.pipeline_mode<synchronous>, transform_indices = @transform_6, window_bounds = array<i64: 64, 32>}, {pipeline_mode = #tpu.pipeline_mode<synchronous>, transform_indices = @transform_7, window_bounds = array<i64: 1, 32>}, {pipeline_mode = #tpu.pipeline_mode<synchronous>, transform_indices = @transform_8, window_bounds = array<i64: 32, 64>}, {pipeline_mode = #tpu.pipeline_mode<synchronous>, transform_indices = @transform_9, window_bounds = array<i64: 1, 64>}, {pipeline_mode = #tpu.pipeline_mode<synchronous>, transform_indices = @transform_10, window_bounds = array<i64: 64, 32>}, {pipeline_mode = #tpu.pipeline_mode<synchronous>, transform_indices = @transform_11, window_bounds = array<i64: 1, 32>}, {pipeline_mode = #tpu.pipeline_mode<synchronous>, transform_indices = @transform_12, window_bounds = array<i64: 32, 16>}, {pipeline_mode = #tpu.pipeline_mode<synchronous>, transform_indices = @transform_13, window_bounds = array<i64: 1, 16>}, {pipeline_mode = #tpu.pipeline_mode<synchronous>, transform_indices = @transform_14, window_bounds = array<i64: 16, 32>}, {pipeline_mode = #tpu.pipeline_mode<synchronous>, transform_indices = @transform_15, window_bounds = array<i64: 1, 32>}, {pipeline_mode = #tpu.pipeline_mode<synchronous>, transform_indices = @transform_16, window_bounds = array<i64: 32, 16>}, {pipeline_mode = #tpu.pipeline_mode<synchronous>, transform_indices = @transform_17, window_bounds = array<i64: 1, 16>}, {pipeline_mode = #tpu.pipeline_mode<synchronous>, transform_indices = @transform_18, window_bounds = array<i64: 16, 8>}, {pipeline_mode = #tpu.pipeline_mode<synchronous>, transform_indices = @transform_19, window_bounds = array<i64: 1, 8>}, {pipeline_mode = #tpu.pipeline_mode<synchronous>, transform_indices = @transform_20, window_bounds = array<i64: 8, 16>}, {pipeline_mode = #tpu.pipeline_mode<synchronous>, transform_indices = @transform_21, window_bounds = array<i64: 1, 16>}, {pipeline_mode = #tpu.pipeline_mode<synchronous>, transform_indices = @transform_22, window_bounds = array<i64: 16, 8>}, {pipeline_mode = #tpu.pipeline_mode<synchronous>, transform_indices = @transform_23, window_bounds = array<i64: 1, 8>}, {pipeline_mode = #tpu.pipeline_mode<synchronous>, transform_indices = @transform_24, window_bounds = array<i64: 8, 128>}, {pipeline_mode = #tpu.pipeline_mode<synchronous>, transform_indices = @transform_25, window_bounds = array<i64: 1, 128>}, {transform_indices = @transform_26, window_bounds = array<i64: 16, 128>}]} {
    %c0 = arith.constant 0 : index
    %c0_0 = arith.constant 0 : index
    %0 = vector.load %arg1[%c0, %c0_0] : memref<16x32xf32, #tpu.memory_space<vmem>>, vector<16x32xf32>
    %c0_1 = arith.constant 0 : index
    %c0_2 = arith.constant 0 : index
    %1 = vector.load %arg2[%c0_1, %c0_2] : memref<32x48xf32, #tpu.memory_space<vmem>>, vector<32x48xf32>
    %cst = arith.constant dense<0.000000e+00> : vector<16x48xf32>
    %2 = tpu.matmul %0, %1, %cst {dimension_numbers = #tpu.dot_dimension_numbers<[1], [0], [0], [1], [0, 0, 1, 1], [], []>} : vector<16x32xf32>, vector<32x48xf32>, vector<16x48xf32> -> vector<16x48xf32>
    %c0_3 = arith.constant 0 : index
    %c0_4 = arith.constant 0 : index
    %3 = vector.load %arg3[%c0_3, %c0_4] : memref<1x48xf32, #tpu.memory_space<vmem>>, vector<1x48xf32>
    %4 = vector.broadcast %3 : vector<1x48xf32> to vector<16x48xf32>
    %5 = arith.addf %2, %4 : vector<16x48xf32>
    %6 = vector.extract_strided_slice %5 {offsets = [0, 0], sizes = [16, 32], strides = [1, 1]} : vector<16x48xf32> to vector<16x32xf32>
    %7 = vector.extract_strided_slice %5 {offsets = [0, 32], sizes = [16, 8], strides = [1, 1]} : vector<16x48xf32> to vector<16x8xf32>
    %8 = vector.extract_strided_slice %5 {offsets = [0, 40], sizes = [16, 8], strides = [1, 1]} : vector<16x48xf32> to vector<16x8xf32>
    %cst_5 = arith.constant dense<0xFF800000> : vector<16xf32>
    %9 = vector.multi_reduction <maximumf>, %7, %cst_5 [1] : vector<16x8xf32> to vector<16xf32>
    %10 = vector.shape_cast %9 : vector<16xf32> to vector<16x1xf32>
    %cst_6 = arith.constant dense<0x7F800000> : vector<16xf32>
    %11 = vector.multi_reduction <minimumf>, %7, %cst_6 [1] : vector<16x8xf32> to vector<16xf32>
    %12 = vector.shape_cast %11 : vector<16xf32> to vector<16x1xf32>
    %cst_7 = arith.constant 0.000000e+00 : f32
    %13 = vector.broadcast %cst_7 : f32 to vector<16x32xf32>
    %14 = arith.cmpf oge, %6, %13 : vector<16x32xf32>
    %15 = vector.broadcast %10 : vector<16x1xf32> to vector<16x32xf32>
    %16 = arith.mulf %6, %15 : vector<16x32xf32>
    %17 = vector.broadcast %12 : vector<16x1xf32> to vector<16x32xf32>
    %18 = arith.mulf %6, %17 : vector<16x32xf32>
    %19 = arith.select %14, %16, %18 : vector<16x32xi1>, vector<16x32xf32>
    %20 = vector.shape_cast %6 : vector<16x32xf32> to vector<16x1x32xf32>
    %21 = vector.shape_cast %19 : vector<16x32xf32> to vector<16x1x32xf32>
    %cst_8 = arith.constant 0.000000e+00 : f32
    %22 = vector.broadcast %cst_8 : f32 to vector<16x32xf32>
    %cst_9 = arith.constant 0.000000e+00 : f32
    %23 = vector.broadcast %cst_9 : f32 to vector<16x32xf32>
    %24 = vector.shape_cast %7 : vector<16x8xf32> to vector<16x8x1xf32>
    %25 = vector.broadcast %24 : vector<16x8x1xf32> to vector<16x8x32xf32>
    %26 = vector.broadcast %20 : vector<16x1x32xf32> to vector<16x8x32xf32>
    %27 = arith.mulf %25, %26 : vector<16x8x32xf32>
    %28 = vector.broadcast %21 : vector<16x1x32xf32> to vector<16x8x32xf32>
    %29 = arith.subf %27, %28 : vector<16x8x32xf32>
    %30 = math.exp %29 : vector<16x8x32xf32>
    %31 = vector.shape_cast %8 : vector<16x8xf32> to vector<16x8x1xf32>
    %32 = vector.broadcast %31 : vector<16x8x1xf32> to vector<16x8x32xf32>
    %33 = arith.mulf %32, %30 : vector<16x8x32xf32>
    %cst_10 = arith.constant dense<0.000000e+00> : vector<16x32xf32>
    %34 = vector.multi_reduction <add>, %33, %cst_10 [1] : vector<16x8x32xf32> to vector<16x32xf32>
    %35 = arith.addf %22, %34 : vector<16x32xf32>
    %cst_11 = arith.constant dense<0.000000e+00> : vector<16x32xf32>
    %36 = vector.multi_reduction <add>, %30, %cst_11 [1] : vector<16x8x32xf32> to vector<16x32xf32>
    %37 = arith.addf %23, %36 : vector<16x32xf32>
    %38 = tpu.reciprocal %37 : vector<16x32xf32> -> vector<16x32xf32>
    %39 = arith.mulf %35, %38 : vector<16x32xf32>
    %c0_12 = arith.constant 0 : index
    %c0_13 = arith.constant 0 : index
    %40 = memref.load %arg4[%c0_12, %c0_13] : memref<1x1xf32, #tpu.memory_space<smem>>
    %41 = vector.broadcast %40 : f32 to vector<16x32xf32>
    %42 = arith.mulf %41, %39 : vector<16x32xf32>
    %43 = arith.addf %42, %0 : vector<16x32xf32>
    %c0_14 = arith.constant 0 : index
    %c0_15 = arith.constant 0 : index
    %44 = vector.load %arg5[%c0_14, %c0_15] : memref<32x64xf32, #tpu.memory_space<vmem>>, vector<32x64xf32>
    %c0_16 = arith.constant 0 : index
    %c0_17 = arith.constant 0 : index
    %45 = vector.load %arg7[%c0_16, %c0_17] : memref<64x32xf32, #tpu.memory_space<vmem>>, vector<64x32xf32>
    %c0_18 = arith.constant 0 : index
    %c0_19 = arith.constant 0 : index
    %46 = vector.load %arg9[%c0_18, %c0_19] : memref<32x64xf32, #tpu.memory_space<vmem>>, vector<32x64xf32>
    %cst_20 = arith.constant dense<0.000000e+00> : vector<16x64xf32>
    %47 = tpu.matmul %43, %44, %cst_20 {dimension_numbers = #tpu.dot_dimension_numbers<[1], [0], [0], [1], [0, 0, 1, 1], [], []>} : vector<16x32xf32>, vector<32x64xf32>, vector<16x64xf32> -> vector<16x64xf32>
    %c0_21 = arith.constant 0 : index
    %c0_22 = arith.constant 0 : index
    %48 = vector.load %arg6[%c0_21, %c0_22] : memref<1x64xf32, #tpu.memory_space<vmem>>, vector<1x64xf32>
    %49 = vector.broadcast %48 : vector<1x64xf32> to vector<16x64xf32>
    %50 = arith.addf %47, %49 : vector<16x64xf32>
    %cst_23 = arith.constant dense<0.000000e+00> : vector<16x32xf32>
    %51 = tpu.matmul %50, %45, %cst_23 {dimension_numbers = #tpu.dot_dimension_numbers<[1], [0], [0], [1], [0, 0, 1, 1], [], []>} : vector<16x64xf32>, vector<64x32xf32>, vector<16x32xf32> -> vector<16x32xf32>
    %c0_24 = arith.constant 0 : index
    %c0_25 = arith.constant 0 : index
    %52 = vector.load %arg8[%c0_24, %c0_25] : memref<1x32xf32, #tpu.memory_space<vmem>>, vector<1x32xf32>
    %53 = vector.broadcast %52 : vector<1x32xf32> to vector<16x32xf32>
    %54 = arith.addf %51, %53 : vector<16x32xf32>
    %cst_26 = arith.constant dense<0.000000e+00> : vector<16x64xf32>
    %55 = tpu.matmul %54, %46, %cst_26 {dimension_numbers = #tpu.dot_dimension_numbers<[1], [0], [0], [1], [0, 0, 1, 1], [], []>} : vector<16x32xf32>, vector<32x64xf32>, vector<16x64xf32> -> vector<16x64xf32>
    %c0_27 = arith.constant 0 : index
    %c0_28 = arith.constant 0 : index
    %56 = vector.load %arg10[%c0_27, %c0_28] : memref<1x64xf32, #tpu.memory_space<vmem>>, vector<1x64xf32>
    %57 = vector.broadcast %56 : vector<1x64xf32> to vector<16x64xf32>
    %58 = arith.addf %55, %57 : vector<16x64xf32>
    %59 = arith.addf %50, %58 : vector<16x64xf32>
    %cst_29 = arith.constant 0.000000e+00 : f32
    %60 = vector.broadcast %cst_29 : f32 to vector<16x64xf32>
    %61 = arith.cmpf oge, %59, %60 : vector<16x64xf32>
    %cst_30 = arith.constant 2.000000e-01 : f32
    %62 = vector.broadcast %cst_30 : f32 to vector<16x64xf32>
    %63 = arith.mulf %62, %59 : vector<16x64xf32>
    %64 = arith.select %61, %59, %63 : vector<16x64xi1>, vector<16x64xf32>
    %c0_31 = arith.constant 0 : index
    %c0_32 = arith.constant 0 : index
    %65 = vector.load %arg11[%c0_31, %c0_32] : memref<64x32xf32, #tpu.memory_space<vmem>>, vector<64x32xf32>
    %c0_33 = arith.constant 0 : index
    %c0_34 = arith.constant 0 : index
    %66 = vector.load %arg13[%c0_33, %c0_34] : memref<32x16xf32, #tpu.memory_space<vmem>>, vector<32x16xf32>
    %c0_35 = arith.constant 0 : index
    %c0_36 = arith.constant 0 : index
    %67 = vector.load %arg15[%c0_35, %c0_36] : memref<16x32xf32, #tpu.memory_space<vmem>>, vector<16x32xf32>
    %cst_37 = arith.constant dense<0.000000e+00> : vector<16x32xf32>
    %68 = tpu.matmul %64, %65, %cst_37 {dimension_numbers = #tpu.dot_dimension_numbers<[1], [0], [0], [1], [0, 0, 1, 1], [], []>} : vector<16x64xf32>, vector<64x32xf32>, vector<16x32xf32> -> vector<16x32xf32>
    %c0_38 = arith.constant 0 : index
    %c0_39 = arith.constant 0 : index
    %69 = vector.load %arg12[%c0_38, %c0_39] : memref<1x32xf32, #tpu.memory_space<vmem>>, vector<1x32xf32>
    %70 = vector.broadcast %69 : vector<1x32xf32> to vector<16x32xf32>
    %71 = arith.addf %68, %70 : vector<16x32xf32>
    %cst_40 = arith.constant dense<0.000000e+00> : vector<16x16xf32>
    %72 = tpu.matmul %71, %66, %cst_40 {dimension_numbers = #tpu.dot_dimension_numbers<[1], [0], [0], [1], [0, 0, 1, 1], [], []>} : vector<16x32xf32>, vector<32x16xf32>, vector<16x16xf32> -> vector<16x16xf32>
    %c0_41 = arith.constant 0 : index
    %c0_42 = arith.constant 0 : index
    %73 = vector.load %arg14[%c0_41, %c0_42] : memref<1x16xf32, #tpu.memory_space<vmem>>, vector<1x16xf32>
    %74 = vector.broadcast %73 : vector<1x16xf32> to vector<16x16xf32>
    %75 = arith.addf %72, %74 : vector<16x16xf32>
    %cst_43 = arith.constant dense<0.000000e+00> : vector<16x32xf32>
    %76 = tpu.matmul %75, %67, %cst_43 {dimension_numbers = #tpu.dot_dimension_numbers<[1], [0], [0], [1], [0, 0, 1, 1], [], []>} : vector<16x16xf32>, vector<16x32xf32>, vector<16x32xf32> -> vector<16x32xf32>
    %c0_44 = arith.constant 0 : index
    %c0_45 = arith.constant 0 : index
    %77 = vector.load %arg16[%c0_44, %c0_45] : memref<1x32xf32, #tpu.memory_space<vmem>>, vector<1x32xf32>
    %78 = vector.broadcast %77 : vector<1x32xf32> to vector<16x32xf32>
    %79 = arith.addf %76, %78 : vector<16x32xf32>
    %80 = arith.addf %71, %79 : vector<16x32xf32>
    %cst_46 = arith.constant 0.000000e+00 : f32
    %81 = vector.broadcast %cst_46 : f32 to vector<16x32xf32>
    %82 = arith.cmpf oge, %80, %81 : vector<16x32xf32>
    %cst_47 = arith.constant 2.000000e-01 : f32
    %83 = vector.broadcast %cst_47 : f32 to vector<16x32xf32>
    %84 = arith.mulf %83, %80 : vector<16x32xf32>
    %85 = arith.select %82, %80, %84 : vector<16x32xi1>, vector<16x32xf32>
    %c0_48 = arith.constant 0 : index
    %c0_49 = arith.constant 0 : index
    %86 = vector.load %arg17[%c0_48, %c0_49] : memref<32x16xf32, #tpu.memory_space<vmem>>, vector<32x16xf32>
    %c0_50 = arith.constant 0 : index
    %c0_51 = arith.constant 0 : index
    %87 = vector.load %arg19[%c0_50, %c0_51] : memref<16x8xf32, #tpu.memory_space<vmem>>, vector<16x8xf32>
    %c0_52 = arith.constant 0 : index
    %c0_53 = arith.constant 0 : index
    %88 = vector.load %arg21[%c0_52, %c0_53] : memref<8x16xf32, #tpu.memory_space<vmem>>, vector<8x16xf32>
    %cst_54 = arith.constant dense<0.000000e+00> : vector<16x16xf32>
    %89 = tpu.matmul %85, %86, %cst_54 {dimension_numbers = #tpu.dot_dimension_numbers<[1], [0], [0], [1], [0, 0, 1, 1], [], []>} : vector<16x32xf32>, vector<32x16xf32>, vector<16x16xf32> -> vector<16x16xf32>
    %c0_55 = arith.constant 0 : index
    %c0_56 = arith.constant 0 : index
    %90 = vector.load %arg18[%c0_55, %c0_56] : memref<1x16xf32, #tpu.memory_space<vmem>>, vector<1x16xf32>
    %91 = vector.broadcast %90 : vector<1x16xf32> to vector<16x16xf32>
    %92 = arith.addf %89, %91 : vector<16x16xf32>
    %cst_57 = arith.constant dense<0.000000e+00> : vector<16x8xf32>
    %93 = tpu.matmul %92, %87, %cst_57 {dimension_numbers = #tpu.dot_dimension_numbers<[1], [0], [0], [1], [0, 0, 1, 1], [], []>} : vector<16x16xf32>, vector<16x8xf32>, vector<16x8xf32> -> vector<16x8xf32>
    %c0_58 = arith.constant 0 : index
    %c0_59 = arith.constant 0 : index
    %94 = vector.load %arg20[%c0_58, %c0_59] : memref<1x8xf32, #tpu.memory_space<vmem>>, vector<1x8xf32>
    %95 = vector.broadcast %94 : vector<1x8xf32> to vector<16x8xf32>
    %96 = arith.addf %93, %95 : vector<16x8xf32>
    %cst_60 = arith.constant dense<0.000000e+00> : vector<16x16xf32>
    %97 = tpu.matmul %96, %88, %cst_60 {dimension_numbers = #tpu.dot_dimension_numbers<[1], [0], [0], [1], [0, 0, 1, 1], [], []>} : vector<16x8xf32>, vector<8x16xf32>, vector<16x16xf32> -> vector<16x16xf32>
    %c0_61 = arith.constant 0 : index
    %c0_62 = arith.constant 0 : index
    %98 = vector.load %arg22[%c0_61, %c0_62] : memref<1x16xf32, #tpu.memory_space<vmem>>, vector<1x16xf32>
    %99 = vector.broadcast %98 : vector<1x16xf32> to vector<16x16xf32>
    %100 = arith.addf %97, %99 : vector<16x16xf32>
    %101 = arith.addf %92, %100 : vector<16x16xf32>
    %cst_63 = arith.constant 0.000000e+00 : f32
    %102 = vector.broadcast %cst_63 : f32 to vector<16x16xf32>
    %103 = arith.cmpf oge, %101, %102 : vector<16x16xf32>
    %cst_64 = arith.constant 2.000000e-01 : f32
    %104 = vector.broadcast %cst_64 : f32 to vector<16x16xf32>
    %105 = arith.mulf %104, %101 : vector<16x16xf32>
    %106 = arith.select %103, %101, %105 : vector<16x16xi1>, vector<16x16xf32>
    %c0_65 = arith.constant 0 : index
    %c0_66 = arith.constant 0 : index
    %107 = vector.load %arg23[%c0_65, %c0_66] : memref<16x8xf32, #tpu.memory_space<vmem>>, vector<16x8xf32>
    %cst_67 = arith.constant dense<0.000000e+00> : vector<16x8xf32>
    %108 = tpu.matmul %106, %107, %cst_67 {dimension_numbers = #tpu.dot_dimension_numbers<[1], [0], [0], [1], [0, 0, 1, 1], [], []>} : vector<16x16xf32>, vector<16x8xf32>, vector<16x8xf32> -> vector<16x8xf32>
    %c0_68 = arith.constant 0 : index
    %c0_69 = arith.constant 0 : index
    %109 = vector.load %arg24[%c0_68, %c0_69] : memref<1x8xf32, #tpu.memory_space<vmem>>, vector<1x8xf32>
    %110 = vector.broadcast %109 : vector<1x8xf32> to vector<16x8xf32>
    %111 = arith.addf %108, %110 : vector<16x8xf32>
    %c0_70 = arith.constant 0 : index
    %c0_71 = arith.constant 0 : index
    %112 = vector.load %arg25[%c0_70, %c0_71] : memref<8x128xf32, #tpu.memory_space<vmem>>, vector<8x128xf32>
    %cst_72 = arith.constant dense<0.000000e+00> : vector<16x128xf32>
    %113 = tpu.matmul %111, %112, %cst_72 {dimension_numbers = #tpu.dot_dimension_numbers<[1], [0], [0], [1], [0, 0, 1, 1], [], []>} : vector<16x8xf32>, vector<8x128xf32>, vector<16x128xf32> -> vector<16x128xf32>
    %c0_73 = arith.constant 0 : index
    %c0_74 = arith.constant 0 : index
    %114 = vector.load %arg26[%c0_73, %c0_74] : memref<1x128xf32, #tpu.memory_space<vmem>>, vector<1x128xf32>
    %115 = vector.broadcast %114 : vector<1x128xf32> to vector<16x128xf32>
    %116 = arith.addf %113, %115 : vector<16x128xf32>
    %c0_75 = arith.constant 0 : index
    %c0_76 = arith.constant 0 : index
    %117 = vector.load %arg27[%c0_75, %c0_76] : memref<16x128xf32, #tpu.memory_space<vmem>>, vector<16x128xf32>
    tpu.vector_store %arg27[%c0_75, %c0_76], %116 {strides = array<i32>} : memref<16x128xf32, #tpu.memory_space<vmem>>, vector<16x128xf32>,
    return
  }
  func.func @transform_0(%arg0: i32) -> (i32, i32) {
    %c0_i32 = arith.constant 0 : i32
    %c0_i32_0 = arith.constant 0 : i32
    return %arg0, %c0_i32 : i32, i32
  }
  func.func @transform_1(%arg0: i32) -> (i32, i32) {
    %c0_i32 = arith.constant 0 : i32
    %c0_i32_0 = arith.constant 0 : i32
    %c0_i32_1 = arith.constant 0 : i32
    return %c0_i32, %c0_i32_0 : i32, i32
  }
  func.func @transform_2(%arg0: i32) -> (i32, i32) {
    %c0_i32 = arith.constant 0 : i32
    %c0_i32_0 = arith.constant 0 : i32
    %c0_i32_1 = arith.constant 0 : i32
    return %c0_i32, %c0_i32_0 : i32, i32
  }
  func.func @transform_3(%arg0: i32) -> (i32, i32) {
    %c0_i32 = arith.constant 0 : i32
    %c0_i32_0 = arith.constant 0 : i32
    %c0_i32_1 = arith.constant 0 : i32
    return %c0_i32, %c0_i32_0 : i32, i32
  }
  func.func @transform_4(%arg0: i32) -> (i32, i32) {
    %c0_i32 = arith.constant 0 : i32
    %c0_i32_0 = arith.constant 0 : i32
    %c0_i32_1 = arith.constant 0 : i32
    return %c0_i32, %c0_i32_0 : i32, i32
  }
  func.func @transform_5(%arg0: i32) -> (i32, i32) {
    %c0_i32 = arith.constant 0 : i32
    %c0_i32_0 = arith.constant 0 : i32
    %c0_i32_1 = arith.constant 0 : i32
    return %c0_i32, %c0_i32_0 : i32, i32
  }
  func.func @transform_6(%arg0: i32) -> (i32, i32) {
    %c0_i32 = arith.constant 0 : i32
    %c0_i32_0 = arith.constant 0 : i32
    %c0_i32_1 = arith.constant 0 : i32
    return %c0_i32, %c0_i32_0 : i32, i32
  }
  func.func @transform_7(%arg0: i32) -> (i32, i32) {
    %c0_i32 = arith.constant 0 : i32
    %c0_i32_0 = arith.constant 0 : i32
    %c0_i32_1 = arith.constant 0 : i32
    return %c0_i32, %c0_i32_0 : i32, i32
  }
  func.func @transform_8(%arg0: i32) -> (i32, i32) {
    %c0_i32 = arith.constant 0 : i32
    %c0_i32_0 = arith.constant 0 : i32
    %c0_i32_1 = arith.constant 0 : i32
    return %c0_i32, %c0_i32_0 : i32, i32
  }
  func.func @transform_9(%arg0: i32) -> (i32, i32) {
    %c0_i32 = arith.constant 0 : i32
    %c0_i32_0 = arith.constant 0 : i32
    %c0_i32_1 = arith.constant 0 : i32
    return %c0_i32, %c0_i32_0 : i32, i32
  }
  func.func @transform_10(%arg0: i32) -> (i32, i32) {
    %c0_i32 = arith.constant 0 : i32
    %c0_i32_0 = arith.constant 0 : i32
    %c0_i32_1 = arith.constant 0 : i32
    return %c0_i32, %c0_i32_0 : i32, i32
  }
  func.func @transform_11(%arg0: i32) -> (i32, i32) {
    %c0_i32 = arith.constant 0 : i32
    %c0_i32_0 = arith.constant 0 : i32
    %c0_i32_1 = arith.constant 0 : i32
    return %c0_i32, %c0_i32_0 : i32, i32
  }
  func.func @transform_12(%arg0: i32) -> (i32, i32) {
    %c0_i32 = arith.constant 0 : i32
    %c0_i32_0 = arith.constant 0 : i32
    %c0_i32_1 = arith.constant 0 : i32
    return %c0_i32, %c0_i32_0 : i32, i32
  }
  func.func @transform_13(%arg0: i32) -> (i32, i32) {
    %c0_i32 = arith.constant 0 : i32
    %c0_i32_0 = arith.constant 0 : i32
    %c0_i32_1 = arith.constant 0 : i32
    return %c0_i32, %c0_i32_0 : i32, i32
  }
  func.func @transform_14(%arg0: i32) -> (i32, i32) {
    %c0_i32 = arith.constant 0 : i32
    %c0_i32_0 = arith.constant 0 : i32
    %c0_i32_1 = arith.constant 0 : i32
    return %c0_i32, %c0_i32_0 : i32, i32
  }
  func.func @transform_15(%arg0: i32) -> (i32, i32) {
    %c0_i32 = arith.constant 0 : i32
    %c0_i32_0 = arith.constant 0 : i32
    %c0_i32_1 = arith.constant 0 : i32
    return %c0_i32, %c0_i32_0 : i32, i32
  }
  func.func @transform_16(%arg0: i32) -> (i32, i32) {
    %c0_i32 = arith.constant 0 : i32
    %c0_i32_0 = arith.constant 0 : i32
    %c0_i32_1 = arith.constant 0 : i32
    return %c0_i32, %c0_i32_0 : i32, i32
  }
  func.func @transform_17(%arg0: i32) -> (i32, i32) {
    %c0_i32 = arith.constant 0 : i32
    %c0_i32_0 = arith.constant 0 : i32
    %c0_i32_1 = arith.constant 0 : i32
    return %c0_i32, %c0_i32_0 : i32, i32
  }
  func.func @transform_18(%arg0: i32) -> (i32, i32) {
    %c0_i32 = arith.constant 0 : i32
    %c0_i32_0 = arith.constant 0 : i32
    %c0_i32_1 = arith.constant 0 : i32
    return %c0_i32, %c0_i32_0 : i32, i32
  }
  func.func @transform_19(%arg0: i32) -> (i32, i32) {
    %c0_i32 = arith.constant 0 : i32
    %c0_i32_0 = arith.constant 0 : i32
    %c0_i32_1 = arith.constant 0 : i32
    return %c0_i32, %c0_i32_0 : i32, i32
  }
  func.func @transform_20(%arg0: i32) -> (i32, i32) {
    %c0_i32 = arith.constant 0 : i32
    %c0_i32_0 = arith.constant 0 : i32
    %c0_i32_1 = arith.constant 0 : i32
    return %c0_i32, %c0_i32_0 : i32, i32
  }
  func.func @transform_21(%arg0: i32) -> (i32, i32) {
    %c0_i32 = arith.constant 0 : i32
    %c0_i32_0 = arith.constant 0 : i32
    %c0_i32_1 = arith.constant 0 : i32
    return %c0_i32, %c0_i32_0 : i32, i32
  }
  func.func @transform_22(%arg0: i32) -> (i32, i32) {
    %c0_i32 = arith.constant 0 : i32
    %c0_i32_0 = arith.constant 0 : i32
    %c0_i32_1 = arith.constant 0 : i32
    return %c0_i32, %c0_i32_0 : i32, i32
  }
  func.func @transform_23(%arg0: i32) -> (i32, i32) {
    %c0_i32 = arith.constant 0 : i32
    %c0_i32_0 = arith.constant 0 : i32
    %c0_i32_1 = arith.constant 0 : i32
    return %c0_i32, %c0_i32_0 : i32, i32
  }
  func.func @transform_24(%arg0: i32) -> (i32, i32) {
    %c0_i32 = arith.constant 0 : i32
    %c0_i32_0 = arith.constant 0 : i32
    %c0_i32_1 = arith.constant 0 : i32
    return %c0_i32, %c0_i32_0 : i32, i32
  }
  func.func @transform_25(%arg0: i32) -> (i32, i32) {
    %c0_i32 = arith.constant 0 : i32
    %c0_i32_0 = arith.constant 0 : i32
    %c0_i32_1 = arith.constant 0 : i32
    return %c0_i32, %c0_i32_0 : i32, i32
  }
  func.func @transform_26(%arg0: i32) -> (i32, i32) {
    %c0_i32 = arith.constant 0 : i32
    %c0_i32_0 = arith.constant 0 : i32
    return %arg0, %c0_i32 : i32, i32
  }
}

</mosaic_0001>

<llo_original>
// kernel: tpu_custom_call.1
$region0: #{tpu_custom_call.1}
  #allocation0 [shape = 'u32[]', space=smem, size = 0x4, offset = 0x4, fixed_abs, tag = 'smem constant byte address 0x4 - core index']
  #allocation1 [shape = 'u32[144,128]{1,0:T(1,128)}', space=vmem, size = 0x12000, scoped, tag = 'internal scratch']
  #allocation2 [shape = 'f32[1,1]{1,0:T(1,128)S(6)}', space=smem, size = 0x200, scoped, tag = 'scoped memory for tpu_custom_call.1']
  %s0 = inlined_call_operand.vmem [shape: f32[64,32], index: 0, kind: input, shape index: {}]
  %s1 = inlined_call_operand.vmem [shape: f32[32,48], index: 1, kind: input, shape index: {}]
  %s2 = inlined_call_operand.vmem [shape: f32[1,48], index: 2, kind: input, shape index: {}]
  %s3 = inlined_call_operand.<no memory space> [shape: f32[1,1], index: 3, kind: input, shape index: {}]
  %s4 = inlined_call_operand.vmem [shape: f32[32,64], index: 4, kind: input, shape index: {}]
  %s5 = inlined_call_operand.vmem [shape: f32[1,64], index: 5, kind: input, shape index: {}]
  %s6 = inlined_call_operand.vmem [shape: f32[64,32], index: 6, kind: input, shape index: {}]
  %s7 = inlined_call_operand.vmem [shape: f32[1,32], index: 7, kind: input, shape index: {}]
  %s8 = inlined_call_operand.vmem [shape: f32[32,64], index: 8, kind: input, shape index: {}]
  %s9 = inlined_call_operand.vmem [shape: f32[1,64], index: 9, kind: input, shape index: {}]
  %s10 = inlined_call_operand.vmem [shape: f32[64,32], index: 10, kind: input, shape index: {}]
  %s11 = inlined_call_operand.vmem [shape: f32[1,32], index: 11, kind: input, shape index: {}]
  %s12 = inlined_call_operand.vmem [shape: f32[32,16], index: 12, kind: input, shape index: {}]
  %s13 = inlined_call_operand.vmem [shape: f32[1,16], index: 13, kind: input, shape index: {}]
  %s14 = inlined_call_operand.vmem [shape: f32[16,32], index: 14, kind: input, shape index: {}]
  %s15 = inlined_call_operand.vmem [shape: f32[1,32], index: 15, kind: input, shape index: {}]
  %s16 = inlined_call_operand.vmem [shape: f32[32,16], index: 16, kind: input, shape index: {}]
  %s17 = inlined_call_operand.vmem [shape: f32[1,16], index: 17, kind: input, shape index: {}]
  %s18 = inlined_call_operand.vmem [shape: f32[16,8], index: 18, kind: input, shape index: {}]
  %s19 = inlined_call_operand.vmem [shape: f32[1,8], index: 19, kind: input, shape index: {}]
  %s20 = inlined_call_operand.vmem [shape: f32[8,16], index: 20, kind: input, shape index: {}]
  %s21 = inlined_call_operand.vmem [shape: f32[1,16], index: 21, kind: input, shape index: {}]
  %s22 = inlined_call_operand.vmem [shape: f32[16,8], index: 22, kind: input, shape index: {}]
  %s23 = inlined_call_operand.vmem [shape: f32[1,8], index: 23, kind: input, shape index: {}]
  %s24 = inlined_call_operand.vmem [shape: f32[8,128], index: 24, kind: input, shape index: {}]
  %s25 = inlined_call_operand.vmem [shape: f32[1,128], index: 25, kind: input, shape index: {}]
  %s26 = inlined_call_operand.hbm [shape: f32[64,128], index: 26, kind: output, shape index: {}]
  %s27 = sld [smem:[#allocation0]]
  $region137: #{tpu_custom_call.1} parent=0
    _
  %s29 = ssub.s32 1, %s27
  %s30 = scalar_select 0, %s29, %s27
  %31 = sst [smem:[#allocation2]] %s3
  $region1: #{tpu_custom_call.1} parent=0
    #allocation3 [shape = 'u8[16384]{0}', space=vmem, size = 0x4000, scoped, tag = 'output window, operand 0']
    #allocation4 [shape = 's32[2]{0}', space=sflag, size = 0x8, scoped, tag = 'scoped memory for tpu_custom_call.1']
    %32 = vsyncpa [#allocation4], 0
    %s33 = scalar_lea.sflag [#allocation4], 1
    %34 = vsyncpa %s33, 0
    loop: start=0, step=1, limit=6
    $region2: #{tpu_custom_call.1} parent=1 // loop_pre_header
      _
    $region3: #{tpu_custom_call.1} parent=1 // loop_header
      %s36 = sphi 0, %s40
      %p37 = scmp.ge.s32.totalorder %s36, 6
      %s46 = sphi 0, %s48
      %s49 = sphi 0, %s46
      %s50 = sphi 0, %s49
      %s66 = sphi 0, %s50
      %s70 = sphi 0, %s70
      %s72 = sphi 0, %s70
      %s73 = sphi 0, %s72
      %s87 = sphi 0, %s73
      %s91 = sphi 0, %s91
      %s93 = sphi 0, %s91
      %s94 = sphi 0, %s93
      %s108 = sphi 0, %s94
      %s112 = sphi 0, %s112
      %s114 = sphi 0, %s112
      %s115 = sphi 0, %s114
      %s129 = sphi 0, %s115
      %s133 = sphi 0, %s133
      %s135 = sphi 0, %s133
      %s136 = sphi 0, %s135
      %s150 = sphi 0, %s136
      %s154 = sphi 0, %s154
      %s156 = sphi 0, %s154
      %s157 = sphi 0, %s156
      %s171 = sphi 0, %s157
      %s175 = sphi 0, %s175
      %s177 = sphi 0, %s175
      %s178 = sphi 0, %s177
      %s192 = sphi 0, %s178
      %s196 = sphi 0, %s196
      %s198 = sphi 0, %s196
      %s199 = sphi 0, %s198
      %s213 = sphi 0, %s199
      %s217 = sphi 0, %s217
      %s219 = sphi 0, %s217
      %s220 = sphi 0, %s219
      %s234 = sphi 0, %s220
      %s238 = sphi 0, %s238
      %s240 = sphi 0, %s238
      %s241 = sphi 0, %s240
      %s255 = sphi 0, %s241
      %s259 = sphi 0, %s259
      %s261 = sphi 0, %s259
      %s262 = sphi 0, %s261
      %s276 = sphi 0, %s262
      %s280 = sphi 0, %s280
      %s282 = sphi 0, %s280
      %s283 = sphi 0, %s282
      %s297 = sphi 0, %s283
      %s301 = sphi 0, %s301
      %s303 = sphi 0, %s301
      %s304 = sphi 0, %s303
      %s318 = sphi 0, %s304
      %s322 = sphi 0, %s322
      %s324 = sphi 0, %s322
      %s325 = sphi 0, %s324
      %s339 = sphi 0, %s325
      %s343 = sphi 0, %s343
      %s345 = sphi 0, %s343
      %s346 = sphi 0, %s345
      %s360 = sphi 0, %s346
      %s364 = sphi 0, %s364
      %s366 = sphi 0, %s364
      %s367 = sphi 0, %s366
      %s381 = sphi 0, %s367
      %s385 = sphi 0, %s385
      %s387 = sphi 0, %s385
      %s388 = sphi 0, %s387
      %s402 = sphi 0, %s388
      %s406 = sphi 0, %s406
      %s408 = sphi 0, %s406
      %s409 = sphi 0, %s408
      %s423 = sphi 0, %s409
      %s427 = sphi 0, %s427
      %s429 = sphi 0, %s427
      %s430 = sphi 0, %s429
      %s444 = sphi 0, %s430
      %s448 = sphi 0, %s448
      %s450 = sphi 0, %s448
      %s451 = sphi 0, %s450
      %s465 = sphi 0, %s451
      %s469 = sphi 0, %s469
      %s471 = sphi 0, %s469
      %s472 = sphi 0, %s471
      %s486 = sphi 0, %s472
      %s490 = sphi 0, %s490
      %s492 = sphi 0, %s490
      %s493 = sphi 0, %s492
      %s507 = sphi 0, %s493
      %s511 = sphi 0, %s511
      %s513 = sphi 0, %s511
      %s514 = sphi 0, %s513
      %s528 = sphi 0, %s514
      %s532 = sphi 0, %s532
      %s534 = sphi 0, %s532
      %s535 = sphi 0, %s534
      %s549 = sphi 0, %s535
      %s553 = sphi 0, %s553
      %s555 = sphi 0, %s553
      %s556 = sphi 0, %s555
      %s570 = sphi 0, %s556
      %s574 = sphi 0, %s574
      %s576 = sphi 0, %s574
      %s577 = sphi 0, %s576
      %s591 = sphi 0, %s577
      %s597 = sphi 0, %s599
      %s600 = sphi 0, %s597
      %s601 = sphi 0, %s600
      %s617 = sphi 0, %s601
    $region4: #{tpu_custom_call.1} parent=1 // loop_header_branch
      %39 = sbr.rel (%p37) target = $region8
    $region5: #{tpu_custom_call.1} parent=1 // loop_body
      %s41 = ssub.s32 %s36, 1
      %s42 = ssub.s32 %s36, 2
      %s43 = sadd.s32 %s36, 1
      %s44 = ssub.s32 %s36, %s43
      %p45 = scmp.eq.s32.totalorder %s44, 0
      %s47 = sadd.s32 %s46, 1
      %s48 = scalar_select %p45, %s46, %s47
      %p51 = pneg %p45
      %p52 = scmp.eq.s32.totalorder %s36, 3
      %p53 = por %p51, %p52
      %p54 = scmp.ne.s32.totalorder %s46, %s49
      %p55 = scmp.eq.s32.totalorder %s36, 0
      %p56 = por %p54, %p55
      %p57 = scmp.ne.s32.totalorder %s46, %s49
      %p58 = scmp.eq.s32.totalorder %s41, 3
      %p59 = por %p57, %p58
      %p60 = scmp.ne.s32.totalorder %s49, %s50
      %p61 = scmp.eq.s32.totalorder %s41, 0
      %p62 = por %p60, %p61
      %p63 = scmp.ne.s32.totalorder %s49, %s50
      %p64 = scmp.eq.s32.totalorder %s42, 3
      %p65 = por %p63, %p64
      %p67 = scmp.ne.s32.totalorder %s50, %s66
      %p68 = scmp.eq.s32.totalorder %s42, 0
      %p69 = por %p67, %p68
      %s71 = sadd.s32 %s70, 1
      %p74 = scmp.eq.s32.totalorder %s36, 3
      %p75 = scmp.ne.s32.totalorder %s70, %s72
      %p76 = scmp.eq.s32.totalorder %s36, 0
      %p77 = por %p75, %p76
      %p78 = scmp.ne.s32.totalorder %s70, %s72
      %p79 = scmp.eq.s32.totalorder %s41, 3
      %p80 = por %p78, %p79
      %p81 = scmp.ne.s32.totalorder %s72, %s73
      %p82 = scmp.eq.s32.totalorder %s41, 0
      %p83 = por %p81, %p82
      %p84 = scmp.ne.s32.totalorder %s72, %s73
      %p85 = scmp.eq.s32.totalorder %s42, 3
      %p86 = por %p84, %p85
      %p88 = scmp.ne.s32.totalorder %s73, %s87
      %p89 = scmp.eq.s32.totalorder %s42, 0
      %p90 = por %p88, %p89
      %s92 = sadd.s32 %s91, 1
      %p95 = scmp.eq.s32.totalorder %s36, 3
      %p96 = scmp.ne.s32.totalorder %s91, %s93
      %p97 = scmp.eq.s32.totalorder %s36, 0
      %p98 = por %p96, %p97
      %p99 = scmp.ne.s32.totalorder %s91, %s93
      %p100 = scmp.eq.s32.totalorder %s41, 3
      %p101 = por %p99, %p100
      %p102 = scmp.ne.s32.totalorder %s93, %s94
      %p103 = scmp.eq.s32.totalorder %s41, 0
      %p104 = por %p102, %p103
      %p105 = scmp.ne.s32.totalorder %s93, %s94
      %p106 = scmp.eq.s32.totalorder %s42, 3
      %p107 = por %p105, %p106
      %p109 = scmp.ne.s32.totalorder %s94, %s108
      %p110 = scmp.eq.s32.totalorder %s42, 0
      %p111 = por %p109, %p110
      %s113 = sadd.s32 %s112, 1
      %p116 = scmp.eq.s32.totalorder %s36, 3
      %p117 = scmp.ne.s32.totalorder %s112, %s114
      %p118 = scmp.eq.s32.totalorder %s36, 0
      %p119 = por %p117, %p118
      %p120 = scmp.ne.s32.totalorder %s112, %s114
      %p121 = scmp.eq.s32.totalorder %s41, 3
      %p122 = por %p120, %p121
      %p123 = scmp.ne.s32.totalorder %s114, %s115
      %p124 = scmp.eq.s32.totalorder %s41, 0
      %p125 = por %p123, %p124
      %p126 = scmp.ne.s32.totalorder %s114, %s115
      %p127 = scmp.eq.s32.totalorder %s42, 3
      %p128 = por %p126, %p127
      %p130 = scmp.ne.s32.totalorder %s115, %s129
      %p131 = scmp.eq.s32.totalorder %s42, 0
      %p132 = por %p130, %p131
      %s134 = sadd.s32 %s133, 1
      %p137 = scmp.eq.s32.totalorder %s36, 3
      %p138 = scmp.ne.s32.totalorder %s133, %s135
      %p139 = scmp.eq.s32.totalorder %s36, 0
      %p140 = por %p138, %p139
      %p141 = scmp.ne.s32.totalorder %s133, %s135
      %p142 = scmp.eq.s32.totalorder %s41, 3
      %p143 = por %p141, %p142
      %p144 = scmp.ne.s32.totalorder %s135, %s136
      %p145 = scmp.eq.s32.totalorder %s41, 0
      %p146 = por %p144, %p145
      %p147 = scmp.ne.s32.totalorder %s135, %s136
      %p148 = scmp.eq.s32.totalorder %s42, 3
      %p149 = por %p147, %p148
      %p151 = scmp.ne.s32.totalorder %s136, %s150
      %p152 = scmp.eq.s32.totalorder %s42, 0
      %p153 = por %p151, %p152
      %s155 = sadd.s32 %s154, 1
      %p158 = scmp.eq.s32.totalorder %s36, 3
      %p159 = scmp.ne.s32.totalorder %s154, %s156
      %p160 = scmp.eq.s32.totalorder %s36, 0
      %p161 = por %p159, %p160
      %p162 = scmp.ne.s32.totalorder %s154, %s156
      %p163 = scmp.eq.s32.totalorder %s41, 3
      %p164 = por %p162, %p163
      %p165 = scmp.ne.s32.totalorder %s156, %s157
      %p166 = scmp.eq.s32.totalorder %s41, 0
      %p167 = por %p165, %p166
      %p168 = scmp.ne.s32.totalorder %s156, %s157
      %p169 = scmp.eq.s32.totalorder %s42, 3
      %p170 = por %p168, %p169
      %p172 = scmp.ne.s32.totalorder %s157, %s171
      %p173 = scmp.eq.s32.totalorder %s42, 0
      %p174 = por %p172, %p173
      %s176 = sadd.s32 %s175, 1
      %p179 = scmp.eq.s32.totalorder %s36, 3
      %p180 = scmp.ne.s32.totalorder %s175, %s177
      %p181 = scmp.eq.s32.totalorder %s36, 0
      %p182 = por %p180, %p181
      %p183 = scmp.ne.s32.totalorder %s175, %s177
      %p184 = scmp.eq.s32.totalorder %s41, 3
      %p185 = por %p183, %p184
      %p186 = scmp.ne.s32.totalorder %s177, %s178
      %p187 = scmp.eq.s32.totalorder %s41, 0
      %p188 = por %p186, %p187
      %p189 = scmp.ne.s32.totalorder %s177, %s178
      %p190 = scmp.eq.s32.totalorder %s42, 3
      %p191 = por %p189, %p190
      %p193 = scmp.ne.s32.totalorder %s178, %s192
      %p194 = scmp.eq.s32.totalorder %s42, 0
      %p195 = por %p193, %p194
      %s197 = sadd.s32 %s196, 1
      %p200 = scmp.eq.s32.totalorder %s36, 3
      %p201 = scmp.ne.s32.totalorder %s196, %s198
      %p202 = scmp.eq.s32.totalorder %s36, 0
      %p203 = por %p201, %p202
      %p204 = scmp.ne.s32.totalorder %s196, %s198
      %p205 = scmp.eq.s32.totalorder %s41, 3
      %p206 = por %p204, %p205
      %p207 = scmp.ne.s32.totalorder %s198, %s199
      %p208 = scmp.eq.s32.totalorder %s41, 0
      %p209 = por %p207, %p208
      %p210 = scmp.ne.s32.totalorder %s198, %s199
      %p211 = scmp.eq.s32.totalorder %s42, 3
      %p212 = por %p210, %p211
      %p214 = scmp.ne.s32.totalorder %s199, %s213
      %p215 = scmp.eq.s32.totalorder %s42, 0
      %p216 = por %p214, %p215
      %s218 = sadd.s32 %s217, 1
      %p221 = scmp.eq.s32.totalorder %s36, 3
      %p222 = scmp.ne.s32.totalorder %s217, %s219
      %p223 = scmp.eq.s32.totalorder %s36, 0
      %p224 = por %p222, %p223
      %p225 = scmp.ne.s32.totalorder %s217, %s219
      %p226 = scmp.eq.s32.totalorder %s41, 3
      %p227 = por %p225, %p226
      %p228 = scmp.ne.s32.totalorder %s219, %s220
      %p229 = scmp.eq.s32.totalorder %s41, 0
      %p230 = por %p228, %p229
      %p231 = scmp.ne.s32.totalorder %s219, %s220
      %p232 = scmp.eq.s32.totalorder %s42, 3
      %p233 = por %p231, %p232
      %p235 = scmp.ne.s32.totalorder %s220, %s234
      %p236 = scmp.eq.s32.totalorder %s42, 0
      %p237 = por %p235, %p236
      %s239 = sadd.s32 %s238, 1
      %p242 = scmp.eq.s32.totalorder %s36, 3
      %p243 = scmp.ne.s32.totalorder %s238, %s240
      %p244 = scmp.eq.s32.totalorder %s36, 0
      %p245 = por %p243, %p244
      %p246 = scmp.ne.s32.totalorder %s238, %s240
      %p247 = scmp.eq.s32.totalorder %s41, 3
      %p248 = por %p246, %p247
      %p249 = scmp.ne.s32.totalorder %s240, %s241
      %p250 = scmp.eq.s32.totalorder %s41, 0
      %p251 = por %p249, %p250
      %p252 = scmp.ne.s32.totalorder %s240, %s241
      %p253 = scmp.eq.s32.totalorder %s42, 3
      %p254 = por %p252, %p253
      %p256 = scmp.ne.s32.totalorder %s241, %s255
      %p257 = scmp.eq.s32.totalorder %s42, 0
      %p258 = por %p256, %p257
      %s260 = sadd.s32 %s259, 1
      %p263 = scmp.eq.s32.totalorder %s36, 3
      %p264 = scmp.ne.s32.totalorder %s259, %s261
      %p265 = scmp.eq.s32.totalorder %s36, 0
      %p266 = por %p264, %p265
      %p267 = scmp.ne.s32.totalorder %s259, %s261
      %p268 = scmp.eq.s32.totalorder %s41, 3
      %p269 = por %p267, %p268
      %p270 = scmp.ne.s32.totalorder %s261, %s262
      %p271 = scmp.eq.s32.totalorder %s41, 0
      %p272 = por %p270, %p271
      %p273 = scmp.ne.s32.totalorder %s261, %s262
      %p274 = scmp.eq.s32.totalorder %s42, 3
      %p275 = por %p273, %p274
      %p277 = scmp.ne.s32.totalorder %s262, %s276
      %p278 = scmp.eq.s32.totalorder %s42, 0
      %p279 = por %p277, %p278
      %s281 = sadd.s32 %s280, 1
      %p284 = scmp.eq.s32.totalorder %s36, 3
      %p285 = scmp.ne.s32.totalorder %s280, %s282
      %p286 = scmp.eq.s32.totalorder %s36, 0
      %p287 = por %p285, %p286
      %p288 = scmp.ne.s32.totalorder %s280, %s282
      %p289 = scmp.eq.s32.totalorder %s41, 3
      %p290 = por %p288, %p289
      %p291 = scmp.ne.s32.totalorder %s282, %s283
      %p292 = scmp.eq.s32.totalorder %s41, 0
      %p293 = por %p291, %p292
      %p294 = scmp.ne.s32.totalorder %s282, %s283
      %p295 = scmp.eq.s32.totalorder %s42, 3
      %p296 = por %p294, %p295
      %p298 = scmp.ne.s32.totalorder %s283, %s297
      %p299 = scmp.eq.s32.totalorder %s42, 0
      %p300 = por %p298, %p299
      %s302 = sadd.s32 %s301, 1
      %p305 = scmp.eq.s32.totalorder %s36, 3
      %p306 = scmp.ne.s32.totalorder %s301, %s303
      %p307 = scmp.eq.s32.totalorder %s36, 0
      %p308 = por %p306, %p307
      %p309 = scmp.ne.s32.totalorder %s301, %s303
      %p310 = scmp.eq.s32.totalorder %s41, 3
      %p311 = por %p309, %p310
      %p312 = scmp.ne.s32.totalorder %s303, %s304
      %p313 = scmp.eq.s32.totalorder %s41, 0
      %p314 = por %p312, %p313
      %p315 = scmp.ne.s32.totalorder %s303, %s304
      %p316 = scmp.eq.s32.totalorder %s42, 3
      %p317 = por %p315, %p316
      %p319 = scmp.ne.s32.totalorder %s304, %s318
      %p320 = scmp.eq.s32.totalorder %s42, 0
      %p321 = por %p319, %p320
      %s323 = sadd.s32 %s322, 1
      %p326 = scmp.eq.s32.totalorder %s36, 3
      %p327 = scmp.ne.s32.totalorder %s322, %s324
      %p328 = scmp.eq.s32.totalorder %s36, 0
      %p329 = por %p327, %p328
      %p330 = scmp.ne.s32.totalorder %s322, %s324
      %p331 = scmp.eq.s32.totalorder %s41, 3
      %p332 = por %p330, %p331
      %p333 = scmp.ne.s32.totalorder %s324, %s325
      %p334 = scmp.eq.s32.totalorder %s41, 0
      %p335 = por %p333, %p334
      %p336 = scmp.ne.s32.totalorder %s324, %s325
      %p337 = scmp.eq.s32.totalorder %s42, 3
      %p338 = por %p336, %p337
      %p340 = scmp.ne.s32.totalorder %s325, %s339
      %p341 = scmp.eq.s32.totalorder %s42, 0
      %p342 = por %p340, %p341
      %s344 = sadd.s32 %s343, 1
      %p347 = scmp.eq.s32.totalorder %s36, 3
      %p348 = scmp.ne.s32.totalorder %s343, %s345
      %p349 = scmp.eq.s32.totalorder %s36, 0
      %p350 = por %p348, %p349
      %p351 = scmp.ne.s32.totalorder %s343, %s345
      %p352 = scmp.eq.s32.totalorder %s41, 3
      %p353 = por %p351, %p352
      %p354 = scmp.ne.s32.totalorder %s345, %s346
      %p355 = scmp.eq.s32.totalorder %s41, 0
      %p356 = por %p354, %p355
      %p357 = scmp.ne.s32.totalorder %s345, %s346
      %p358 = scmp.eq.s32.totalorder %s42, 3
      %p359 = por %p357, %p358
      %p361 = scmp.ne.s32.totalorder %s346, %s360
      %p362 = scmp.eq.s32.totalorder %s42, 0
      %p363 = por %p361, %p362
      %s365 = sadd.s32 %s364, 1
      %p368 = scmp.eq.s32.totalorder %s36, 3
      %p369 = scmp.ne.s32.totalorder %s364, %s366
      %p370 = scmp.eq.s32.totalorder %s36, 0
      %p371 = por %p369, %p370
      %p372 = scmp.ne.s32.totalorder %s364, %s366
      %p373 = scmp.eq.s32.totalorder %s41, 3
      %p374 = por %p372, %p373
      %p375 = scmp.ne.s32.totalorder %s366, %s367
      %p376 = scmp.eq.s32.totalorder %s41, 0
      %p377 = por %p375, %p376
      %p378 = scmp.ne.s32.totalorder %s366, %s367
      %p379 = scmp.eq.s32.totalorder %s42, 3
      %p380 = por %p378, %p379
      %p382 = scmp.ne.s32.totalorder %s367, %s381
      %p383 = scmp.eq.s32.totalorder %s42, 0
      %p384 = por %p382, %p383
      %s386 = sadd.s32 %s385, 1
      %p389 = scmp.eq.s32.totalorder %s36, 3
      %p390 = scmp.ne.s32.totalorder %s385, %s387
      %p391 = scmp.eq.s32.totalorder %s36, 0
      %p392 = por %p390, %p391
      %p393 = scmp.ne.s32.totalorder %s385, %s387
      %p394 = scmp.eq.s32.totalorder %s41, 3
      %p395 = por %p393, %p394
      %p396 = scmp.ne.s32.totalorder %s387, %s388
      %p397 = scmp.eq.s32.totalorder %s41, 0
      %p398 = por %p396, %p397
      %p399 = scmp.ne.s32.totalorder %s387, %s388
      %p400 = scmp.eq.s32.totalorder %s42, 3
      %p401 = por %p399, %p400
      %p403 = scmp.ne.s32.totalorder %s388, %s402
      %p404 = scmp.eq.s32.totalorder %s42, 0
      %p405 = por %p403, %p404
      %s407 = sadd.s32 %s406, 1
      %p410 = scmp.eq.s32.totalorder %s36, 3
      %p411 = scmp.ne.s32.totalorder %s406, %s408
      %p412 = scmp.eq.s32.totalorder %s36, 0
      %p413 = por %p411, %p412
      %p414 = scmp.ne.s32.totalorder %s406, %s408
      %p415 = scmp.eq.s32.totalorder %s41, 3
      %p416 = por %p414, %p415
      %p417 = scmp.ne.s32.totalorder %s408, %s409
      %p418 = scmp.eq.s32.totalorder %s41, 0
      %p419 = por %p417, %p418
      %p420 = scmp.ne.s32.totalorder %s408, %s409
      %p421 = scmp.eq.s32.totalorder %s42, 3
      %p422 = por %p420, %p421
      %p424 = scmp.ne.s32.totalorder %s409, %s423
      %p425 = scmp.eq.s32.totalorder %s42, 0
      %p426 = por %p424, %p425
      %s428 = sadd.s32 %s427, 1
      %p431 = scmp.eq.s32.totalorder %s36, 3
      %p432 = scmp.ne.s32.totalorder %s427, %s429
      %p433 = scmp.eq.s32.totalorder %s36, 0
      %p434 = por %p432, %p433
      %p435 = scmp.ne.s32.totalorder %s427, %s429
      %p436 = scmp.eq.s32.totalorder %s41, 3
      %p437 = por %p435, %p436
      %p438 = scmp.ne.s32.totalorder %s429, %s430
      %p439 = scmp.eq.s32.totalorder %s41, 0
      %p440 = por %p438, %p439
      %p441 = scmp.ne.s32.totalorder %s429, %s430
      %p442 = scmp.eq.s32.totalorder %s42, 3
      %p443 = por %p441, %p442
      %p445 = scmp.ne.s32.totalorder %s430, %s444
      %p446 = scmp.eq.s32.totalorder %s42, 0
      %p447 = por %p445, %p446
      %s449 = sadd.s32 %s448, 1
      %p452 = scmp.eq.s32.totalorder %s36, 3
      %p453 = scmp.ne.s32.totalorder %s448, %s450
      %p454 = scmp.eq.s32.totalorder %s36, 0
      %p455 = por %p453, %p454
      %p456 = scmp.ne.s32.totalorder %s448, %s450
      %p457 = scmp.eq.s32.totalorder %s41, 3
      %p458 = por %p456, %p457
      %p459 = scmp.ne.s32.totalorder %s450, %s451
      %p460 = scmp.eq.s32.totalorder %s41, 0
      %p461 = por %p459, %p460
      %p462 = scmp.ne.s32.totalorder %s450, %s451
      %p463 = scmp.eq.s32.totalorder %s42, 3
      %p464 = por %p462, %p463
      %p466 = scmp.ne.s32.totalorder %s451, %s465
      %p467 = scmp.eq.s32.totalorder %s42, 0
      %p468 = por %p466, %p467
      %s470 = sadd.s32 %s469, 1
      %p473 = scmp.eq.s32.totalorder %s36, 3
      %p474 = scmp.ne.s32.totalorder %s469, %s471
      %p475 = scmp.eq.s32.totalorder %s36, 0
      %p476 = por %p474, %p475
      %p477 = scmp.ne.s32.totalorder %s469, %s471
      %p478 = scmp.eq.s32.totalorder %s41, 3
      %p479 = por %p477, %p478
      %p480 = scmp.ne.s32.totalorder %s471, %s472
      %p481 = scmp.eq.s32.totalorder %s41, 0
      %p482 = por %p480, %p481
      %p483 = scmp.ne.s32.totalorder %s471, %s472
      %p484 = scmp.eq.s32.totalorder %s42, 3
      %p485 = por %p483, %p484
      %p487 = scmp.ne.s32.totalorder %s472, %s486
      %p488 = scmp.eq.s32.totalorder %s42, 0
      %p489 = por %p487, %p488
      %s491 = sadd.s32 %s490, 1
      %p494 = scmp.eq.s32.totalorder %s36, 3
      %p495 = scmp.ne.s32.totalorder %s490, %s492
      %p496 = scmp.eq.s32.totalorder %s36, 0
      %p497 = por %p495, %p496
      %p498 = scmp.ne.s32.totalorder %s490, %s492
      %p499 = scmp.eq.s32.totalorder %s41, 3
      %p500 = por %p498, %p499
      %p501 = scmp.ne.s32.totalorder %s492, %s493
      %p502 = scmp.eq.s32.totalorder %s41, 0
      %p503 = por %p501, %p502
      %p504 = scmp.ne.s32.totalorder %s492, %s493
      %p505 = scmp.eq.s32.totalorder %s42, 3
      %p506 = por %p504, %p505
      %p508 = scmp.ne.s32.totalorder %s493, %s507
      %p509 = scmp.eq.s32.totalorder %s42, 0
      %p510 = por %p508, %p509
      %s512 = sadd.s32 %s511, 1
      %p515 = scmp.eq.s32.totalorder %s36, 3
      %p516 = scmp.ne.s32.totalorder %s511, %s513
      %p517 = scmp.eq.s32.totalorder %s36, 0
      %p518 = por %p516, %p517
      %p519 = scmp.ne.s32.totalorder %s511, %s513
      %p520 = scmp.eq.s32.totalorder %s41, 3
      %p521 = por %p519, %p520
      %p522 = scmp.ne.s32.totalorder %s513, %s514
      %p523 = scmp.eq.s32.totalorder %s41, 0
      %p524 = por %p522, %p523
      %p525 = scmp.ne.s32.totalorder %s513, %s514
      %p526 = scmp.eq.s32.totalorder %s42, 3
      %p527 = por %p525, %p526
      %p529 = scmp.ne.s32.totalorder %s514, %s528
      %p530 = scmp.eq.s32.totalorder %s42, 0
      %p531 = por %p529, %p530
      %s533 = sadd.s32 %s532, 1
      %p536 = scmp.eq.s32.totalorder %s36, 3
      %p537 = scmp.ne.s32.totalorder %s532, %s534
      %p538 = scmp.eq.s32.totalorder %s36, 0
      %p539 = por %p537, %p538
      %p540 = scmp.ne.s32.totalorder %s532, %s534
      %p541 = scmp.eq.s32.totalorder %s41, 3
      %p542 = por %p540, %p541
      %p543 = scmp.ne.s32.totalorder %s534, %s535
      %p544 = scmp.eq.s32.totalorder %s41, 0
      %p545 = por %p543, %p544
      %p546 = scmp.ne.s32.totalorder %s534, %s535
      %p547 = scmp.eq.s32.totalorder %s42, 3
      %p548 = por %p546, %p547
      %p550 = scmp.ne.s32.totalorder %s535, %s549
      %p551 = scmp.eq.s32.totalorder %s42, 0
      %p552 = por %p550, %p551
      %s554 = sadd.s32 %s553, 1
      %p557 = scmp.eq.s32.totalorder %s36, 3
      %p558 = scmp.ne.s32.totalorder %s553, %s555
      %p559 = scmp.eq.s32.totalorder %s36, 0
      %p560 = por %p558, %p559
      %p561 = scmp.ne.s32.totalorder %s553, %s555
      %p562 = scmp.eq.s32.totalorder %s41, 3
      %p563 = por %p561, %p562
      %p564 = scmp.ne.s32.totalorder %s555, %s556
      %p565 = scmp.eq.s32.totalorder %s41, 0
      %p566 = por %p564, %p565
      %p567 = scmp.ne.s32.totalorder %s555, %s556
      %p568 = scmp.eq.s32.totalorder %s42, 3
      %p569 = por %p567, %p568
      %p571 = scmp.ne.s32.totalorder %s556, %s570
      %p572 = scmp.eq.s32.totalorder %s42, 0
      %p573 = por %p571, %p572
      %s575 = sadd.s32 %s574, 1
      %p578 = scmp.eq.s32.totalorder %s36, 3
      %p579 = scmp.ne.s32.totalorder %s574, %s576
      %p580 = scmp.eq.s32.totalorder %s36, 0
      %p581 = por %p579, %p580
      %p582 = scmp.ne.s32.totalorder %s574, %s576
      %p583 = scmp.eq.s32.totalorder %s41, 3
      %p584 = por %p582, %p583
      %p585 = scmp.ne.s32.totalorder %s576, %s577
      %p586 = scmp.eq.s32.totalorder %s41, 0
      %p587 = por %p585, %p586
      %p588 = scmp.ne.s32.totalorder %s576, %s577
      %p589 = scmp.eq.s32.totalorder %s42, 3
      %p590 = por %p588, %p589
      %p592 = scmp.ne.s32.totalorder %s577, %s591
      %p593 = scmp.eq.s32.totalorder %s42, 0
      %p594 = por %p592, %p593
      %s595 = ssub.s32 %s36, %s43
      %p596 = scmp.eq.s32.totalorder %s595, 0
      %s598 = sadd.s32 %s597, 1
      %s599 = scalar_select %p596, %s597, %s598
      %p602 = pneg %p596
      %p603 = scmp.eq.s32.totalorder %s36, 3
      %p604 = por %p602, %p603
      %p605 = scmp.ne.s32.totalorder %s597, %s600
      %p606 = scmp.eq.s32.totalorder %s36, 0
      %p607 = por %p605, %p606
      %p608 = scmp.ne.s32.totalorder %s597, %s600
      %p609 = scmp.eq.s32.totalorder %s41, 3
      %p610 = por %p608, %p609
      %p611 = scmp.ne.s32.totalorder %s600, %s601
      %p612 = scmp.eq.s32.totalorder %s41, 0
      %p613 = por %p611, %p612
      %p614 = scmp.ne.s32.totalorder %s600, %s601
      %p615 = scmp.eq.s32.totalorder %s42, 3
      %p616 = por %p614, %p615
      %p618 = scmp.ne.s32.totalorder %s601, %s617
      %p619 = scmp.eq.s32.totalorder %s42, 0
      %p620 = por %p618, %p619
      %p621 = scmp.le.s32.totalorder 1, %s36
      %p622 = scmp.lt.s32.totalorder %s36, 5
      %p623 = pnand %p621, %p622
      %p624 = pneg %p623
      // Predicated region
      $region9: #{tpu_custom_call.1} parent=5 // pred_check
        _
      $region10: #{tpu_custom_call.1} parent=5 // pred_check_branch
        %626 = sbr.rel (%p623) target = $region12
      $region11: #{tpu_custom_call.1} parent=5 // pred_region
        %s627 = ssub.s32 %s36, 1
        // Predicated region
        $region13: #{tpu_custom_call.1} parent=11 // pred_check
          %p628 = pneg %p83
        $region14: #{tpu_custom_call.1} parent=11 // pred_check_branch
          %630 = sbr.rel (%p628) target = $region16
        $region15: #{tpu_custom_call.1} parent=11 // pred_region
          _
        $region16: #{tpu_custom_call.1} parent=11 // pred_fallthru
          _
        // Predicated region
        $region17: #{tpu_custom_call.1} parent=11 // pred_check
          %p631 = pneg %p104
        $region18: #{tpu_custom_call.1} parent=11 // pred_check_branch
          %633 = sbr.rel (%p631) target = $region20
        $region19: #{tpu_custom_call.1} parent=11 // pred_region
          _
        $region20: #{tpu_custom_call.1} parent=11 // pred_fallthru
          _
        // Predicated region
        $region21: #{tpu_custom_call.1} parent=11 // pred_check
          %p634 = pneg %p125
        $region22: #{tpu_custom_call.1} parent=11 // pred_check_branch
          %636 = sbr.rel (%p634) target = $region24
        $region23: #{tpu_custom_call.1} parent=11 // pred_region
          _
        $region24: #{tpu_custom_call.1} parent=11 // pred_fallthru
          _
        // Predicated region
        $region25: #{tpu_custom_call.1} parent=11 // pred_check
          %p637 = pneg %p146
        $region26: #{tpu_custom_call.1} parent=11 // pred_check_branch
          %639 = sbr.rel (%p637) target = $region28
        $region27: #{tpu_custom_call.1} parent=11 // pred_region
          _
        $region28: #{tpu_custom_call.1} parent=11 // pred_fallthru
          _
        // Predicated region
        $region29: #{tpu_custom_call.1} parent=11 // pred_check
          %p640 = pneg %p167
        $region30: #{tpu_custom_call.1} parent=11 // pred_check_branch
          %642 = sbr.rel (%p640) target = $region32
        $region31: #{tpu_custom_call.1} parent=11 // pred_region
          _
        $region32: #{tpu_custom_call.1} parent=11 // pred_fallthru
          _
        // Predicated region
        $region33: #{tpu_custom_call.1} parent=11 // pred_check
          %p643 = pneg %p188
        $region34: #{tpu_custom_call.1} parent=11 // pred_check_branch
          %645 = sbr.rel (%p643) target = $region36
        $region35: #{tpu_custom_call.1} parent=11 // pred_region
          _
        $region36: #{tpu_custom_call.1} parent=11 // pred_fallthru
          _
        // Predicated region
        $region37: #{tpu_custom_call.1} parent=11 // pred_check
          %p646 = pneg %p209
        $region38: #{tpu_custom_call.1} parent=11 // pred_check_branch
          %648 = sbr.rel (%p646) target = $region40
        $region39: #{tpu_custom_call.1} parent=11 // pred_region
          _
        $region40: #{tpu_custom_call.1} parent=11 // pred_fallthru
          _
        // Predicated region
        $region41: #{tpu_custom_call.1} parent=11 // pred_check
          %p649 = pneg %p230
        $region42: #{tpu_custom_call.1} parent=11 // pred_check_branch
          %651 = sbr.rel (%p649) target = $region44
        $region43: #{tpu_custom_call.1} parent=11 // pred_region
          _
        $region44: #{tpu_custom_call.1} parent=11 // pred_fallthru
          _
        // Predicated region
        $region45: #{tpu_custom_call.1} parent=11 // pred_check
          %p652 = pneg %p251
        $region46: #{tpu_custom_call.1} parent=11 // pred_check_branch
          %654 = sbr.rel (%p652) target = $region48
        $region47: #{tpu_custom_call.1} parent=11 // pred_region
          _
        $region48: #{tpu_custom_call.1} parent=11 // pred_fallthru
          _
        // Predicated region
        $region49: #{tpu_custom_call.1} parent=11 // pred_check
          %p655 = pneg %p272
        $region50: #{tpu_custom_call.1} parent=11 // pred_check_branch
          %657 = sbr.rel (%p655) target = $region52
        $region51: #{tpu_custom_call.1} parent=11 // pred_region
          _
        $region52: #{tpu_custom_call.1} parent=11 // pred_fallthru
          _
        // Predicated region
        $region53: #{tpu_custom_call.1} parent=11 // pred_check
          %p658 = pneg %p293
        $region54: #{tpu_custom_call.1} parent=11 // pred_check_branch
          %660 = sbr.rel (%p658) target = $region56
        $region55: #{tpu_custom_call.1} parent=11 // pred_region
          _
        $region56: #{tpu_custom_call.1} parent=11 // pred_fallthru
          _
        // Predicated region
        $region57: #{tpu_custom_call.1} parent=11 // pred_check
          %p661 = pneg %p314
        $region58: #{tpu_custom_call.1} parent=11 // pred_check_branch
          %663 = sbr.rel (%p661) target = $region60
        $region59: #{tpu_custom_call.1} parent=11 // pred_region
          _
        $region60: #{tpu_custom_call.1} parent=11 // pred_fallthru
          _
        // Predicated region
        $region61: #{tpu_custom_call.1} parent=11 // pred_check
          %p664 = pneg %p335
        $region62: #{tpu_custom_call.1} parent=11 // pred_check_branch
          %666 = sbr.rel (%p664) target = $region64
        $region63: #{tpu_custom_call.1} parent=11 // pred_region
          _
        $region64: #{tpu_custom_call.1} parent=11 // pred_fallthru
          _
        // Predicated region
        $region65: #{tpu_custom_call.1} parent=11 // pred_check
          %p667 = pneg %p356
        $region66: #{tpu_custom_call.1} parent=11 // pred_check_branch
          %669 = sbr.rel (%p667) target = $region68
        $region67: #{tpu_custom_call.1} parent=11 // pred_region
          _
        $region68: #{tpu_custom_call.1} parent=11 // pred_fallthru
          _
        // Predicated region
        $region69: #{tpu_custom_call.1} parent=11 // pred_check
          %p670 = pneg %p377
        $region70: #{tpu_custom_call.1} parent=11 // pred_check_branch
          %672 = sbr.rel (%p670) target = $region72
        $region71: #{tpu_custom_call.1} parent=11 // pred_region
          _
        $region72: #{tpu_custom_call.1} parent=11 // pred_fallthru
          _
        // Predicated region
        $region73: #{tpu_custom_call.1} parent=11 // pred_check
          %p673 = pneg %p398
        $region74: #{tpu_custom_call.1} parent=11 // pred_check_branch
          %675 = sbr.rel (%p673) target = $region76
        $region75: #{tpu_custom_call.1} parent=11 // pred_region
          _
        $region76: #{tpu_custom_call.1} parent=11 // pred_fallthru
          _
        // Predicated region
        $region77: #{tpu_custom_call.1} parent=11 // pred_check
          %p676 = pneg %p419
        $region78: #{tpu_custom_call.1} parent=11 // pred_check_branch
          %678 = sbr.rel (%p676) target = $region80
        $region79: #{tpu_custom_call.1} parent=11 // pred_region
          _
        $region80: #{tpu_custom_call.1} parent=11 // pred_fallthru
          _
        // Predicated region
        $region81: #{tpu_custom_call.1} parent=11 // pred_check
          %p679 = pneg %p440
        $region82: #{tpu_custom_call.1} parent=11 // pred_check_branch
          %681 = sbr.rel (%p679) target = $region84
        $region83: #{tpu_custom_call.1} parent=11 // pred_region
          _
        $region84: #{tpu_custom_call.1} parent=11 // pred_fallthru
          _
        // Predicated region
        $region85: #{tpu_custom_call.1} parent=11 // pred_check
          %p682 = pneg %p461
        $region86: #{tpu_custom_call.1} parent=11 // pred_check_branch
          %684 = sbr.rel (%p682) target = $region88
        $region87: #{tpu_custom_call.1} parent=11 // pred_region
          _
        $region88: #{tpu_custom_call.1} parent=11 // pred_fallthru
          _
        // Predicated region
        $region89: #{tpu_custom_call.1} parent=11 // pred_check
          %p685 = pneg %p482
        $region90: #{tpu_custom_call.1} parent=11 // pred_check_branch
          %687 = sbr.rel (%p685) target = $region92
        $region91: #{tpu_custom_call.1} parent=11 // pred_region
          _
        $region92: #{tpu_custom_call.1} parent=11 // pred_fallthru
          _
        // Predicated region
        $region93: #{tpu_custom_call.1} parent=11 // pred_check
          %p688 = pneg %p503
        $region94: #{tpu_custom_call.1} parent=11 // pred_check_branch
          %690 = sbr.rel (%p688) target = $region96
        $region95: #{tpu_custom_call.1} parent=11 // pred_region
          _
        $region96: #{tpu_custom_call.1} parent=11 // pred_fallthru
          _
        // Predicated region
        $region97: #{tpu_custom_call.1} parent=11 // pred_check
          %p691 = pneg %p524
        $region98: #{tpu_custom_call.1} parent=11 // pred_check_branch
          %693 = sbr.rel (%p691) target = $region100
        $region99: #{tpu_custom_call.1} parent=11 // pred_region
          _
        $region100: #{tpu_custom_call.1} parent=11 // pred_fallthru
          _
        // Predicated region
        $region101: #{tpu_custom_call.1} parent=11 // pred_check
          %p694 = pneg %p545
        $region102: #{tpu_custom_call.1} parent=11 // pred_check_branch
          %696 = sbr.rel (%p694) target = $region104
        $region103: #{tpu_custom_call.1} parent=11 // pred_region
          _
        $region104: #{tpu_custom_call.1} parent=11 // pred_fallthru
          _
        // Predicated region
        $region105: #{tpu_custom_call.1} parent=11 // pred_check
          %p697 = pneg %p566
        $region106: #{tpu_custom_call.1} parent=11 // pred_check_branch
          %699 = sbr.rel (%p697) target = $region108
        $region107: #{tpu_custom_call.1} parent=11 // pred_region
          _
        $region108: #{tpu_custom_call.1} parent=11 // pred_fallthru
          _
        // Predicated region
        $region109: #{tpu_custom_call.1} parent=11 // pred_check
          %p700 = pneg %p587
        $region110: #{tpu_custom_call.1} parent=11 // pred_check_branch
          %702 = sbr.rel (%p700) target = $region112
        $region111: #{tpu_custom_call.1} parent=11 // pred_region
          _
        $region112: #{tpu_custom_call.1} parent=11 // pred_fallthru
          _
      $region12: #{tpu_custom_call.1} parent=5 // pred_fallthru
        _
      %p703 = scmp.lt.s32.totalorder %s36, 4
      // Predicated region
      $region113: #{tpu_custom_call.1} parent=5 // pred_check
        %p704 = pneg %p703
      $region114: #{tpu_custom_call.1} parent=5 // pred_check_branch
        %706 = sbr.rel (%p704) target = $region116
      $region115: #{tpu_custom_call.1} parent=5 // pred_region
        // Predicated region
        $region117: #{tpu_custom_call.1} parent=115 // pred_check
          %p707 = pneg %p56
        $region118: #{tpu_custom_call.1} parent=115 // pred_check_branch
          %709 = sbr.rel (%p707) target = $region120
        $region119: #{tpu_custom_call.1} parent=115 // pred_region
          %s710 = smul.u32 2, %s36
          %p711 = scmp.lt.s32.totalorder %s710, 7
          %s712 = scalar_select %p711, %s710, 7
          %s713 = smul.addr %s712, 8
          %s714 = scalar_lea.vmem %s0, %s713
          %s715 = smul.u32 2, %s36
        $region120: #{tpu_custom_call.1} parent=115 // pred_fallthru
          _
      $region116: #{tpu_custom_call.1} parent=5 // pred_fallthru
        _
      %p716 = scmp.le.s32.totalorder 1, %s36
      %p717 = scmp.lt.s32.totalorder %s36, 5
      %p718 = pnand %p716, %p717
      %p719 = pneg %p718
      // Predicated region
      $region121: #{tpu_custom_call.1} parent=5 // pred_check
        _
      $region122: #{tpu_custom_call.1} parent=5 // pred_check_branch
        %721 = sbr.rel (%p718) target = $region124
      $region123: #{tpu_custom_call.1} parent=5 // pred_region
        %s722 = ssub.s32 %s36, 1
        %s723 = smul.u32 2, %s41
        %p724 = scmp.lt.s32.totalorder %s723, 7
        %s725 = scalar_select %p724, %s723, 7
        %s726 = smul.addr %s725, 8
        %s727 = scalar_lea.vmem %s0, %s726
        %p728 = pneg %p62
        %p729 = pneg %p59
        %p730 = pneg %p83
        %p731 = pneg %p80
        %p732 = pneg %p104
        %p733 = pneg %p101
        %p734 = pneg %p125
        %p735 = pneg %p122
        %p736 = pneg %p146
        %p737 = pneg %p143
        %p738 = pneg %p167
        %p739 = pneg %p164
        %p740 = pneg %p188
        %p741 = pneg %p185
        %p742 = pneg %p209
        %p743 = pneg %p206
        %p744 = pneg %p230
        %p745 = pneg %p227
        %p746 = pneg %p251
        %p747 = pneg %p248
        %p748 = pneg %p272
        %p749 = pneg %p269
        %p750 = pneg %p293
        %p751 = pneg %p290
        %p752 = pneg %p314
        %p753 = pneg %p311
        %p754 = pneg %p335
        %p755 = pneg %p332
        %p756 = pneg %p356
        %p757 = pneg %p353
        %p758 = pneg %p377
        %p759 = pneg %p374
        %p760 = pneg %p398
        %p761 = pneg %p395
        %p762 = pneg %p419
        %p763 = pneg %p416
        %p764 = pneg %p440
        %p765 = pneg %p437
        %p766 = pneg %p461
        %p767 = pneg %p458
        %p768 = pneg %p482
        %p769 = pneg %p479
        %p770 = pneg %p503
        %p771 = pneg %p500
        %p772 = pneg %p524
        %p773 = pneg %p521
        %p774 = pneg %p545
        %p775 = pneg %p542
        %p776 = pneg %p566
        %p777 = pneg %p563
        %p778 = pneg %p587
        %p779 = pneg %p584
        %p780 = pneg %p613
        %p781 = pneg %p610
        %s782 = sand.u32 %s600, 1
        %s783 = scalar_lea.sflag [#allocation4], %s782
        %s784 = sand.u32 %s600, 1
        %s785 = smul.addr %s784, 16
        %s786 = scalar_lea.vmem [#allocation3], %s785
        %s787 = smul.u32 2, %s41
        %p788 = scmp.lt.s32.totalorder %s787, 7
        %s789 = scalar_select %p788, %s787, 7
        %s790 = smul.addr %s789, 8
        %s791 = scalar_lea.vmem %s0, %s790
        %s792 = smul.u32 2, %s41
        %s793 = smul.u32 2, %s41
        %v794 = vld [vmem:[%s791] sm:$0xff]
        %v795 = vld [vmem:[%s791 + $0x8] sm:$0xff]
        %v796 = vld [vmem:[%s1] sm:$0xff]
        %v797 = vld [vmem:[%s1 + $0x8] sm:$0xff]
        %v798 = vld [vmem:[%s1 + $0x10] sm:$0xff]
        %v799 = vld [vmem:[%s1 + $0x18] sm:$0xff]
        %v800 = vld [vmem:[%s2] sm:$0x1]
        %v802 = vlaneseq
        %v803 = vshrl.u32 %v802, 7
        %v804 = vsub.s32 0, %v803
        %v805 = vrot.slane %v800, %v804
        %vm807 = vcmask 261120
        %v809 = vsel %vm807, %v794, 0
        %v812 = vsel %vm807, %v795, 0
        %814 = vmatprep.subr.mxu0 0.0
        %815 = vmatpush1.msra.mxu0 %v796
        %816 = vmatprep.subr.mxu0 0.0
        %817 = vmatpush1.msra.mxu0 %v797
        %818 = vmatprep.subr.mxu0 0.0
        %819 = vmatpush1.msra.mxu0 %v798
        %820 = vmatprep.subr.mxu0 0.0
        %821 = vmatpush1.msra.mxu0 %v799
        %822 = vmatprep.subr.mxu0 0.0
        %823 = vmatpush1.msra.mxu0 0.0
        %824 = vmatprep.subr.mxu0 0.0
        %825 = vmatpush1.msra.mxu0 0.0
        %826 = vmatprep.subr.mxu0 0.0
        %827 = vmatpush1.msra.mxu0 0.0
        %828 = vmatprep.subr.mxu0 0.0
        %829 = vmatpush1.msra.mxu0 0.0
        %830 = vmatprep.subr.mxu0 0.0
        %831 = vmatpush1.msra.mxu0 0.0
        %832 = vmatprep.subr.mxu0 0.0
        %833 = vmatpush1.msra.mxu0 0.0
        %834 = vmatprep.subr.mxu0 0.0
        %835 = vmatpush1.msra.mxu0 0.0
        %836 = vmatprep.subr.mxu0 0.0
        %837 = vmatpush1.msra.mxu0 0.0
        %838 = vmatprep.subr.mxu0 0.0
        %839 = vmatpush1.msra.mxu0 0.0
        %840 = vmatprep.subr.mxu0 0.0
        %841 = vmatpush1.msra.mxu0 0.0
        %842 = vmatprep.subr.mxu0 0.0
        %843 = vmatpush1.msra.mxu0 0.0
        %844 = vmatprep.subr.mxu0 0.0
        %845 = vmatpush1.msra.mxu0 0.0
        %846 = vmatprep.subr.mxu0 0.0
        %847 = vmatpush1.msra.mxu0 0.0
        %848 = vmatprep.subr.mxu0 0.0
        %849 = vmatpush1.msra.mxu0 0.0
        %850 = vmatprep.subr.mxu0 0.0
        %851 = vmatpush1.msra.mxu0 0.0
        %852 = vmatprep.subr.mxu0 0.0
        %853 = vmatpush1.msra.mxu0 0.0
        %854 = vmatprep.subr.mxu0 0.0
        %855 = vmatpush1.msra.mxu0 0.0
        %856 = vmatprep.subr.mxu0 0.0
        %857 = vmatpush1.msra.mxu0 0.0
        %858 = vmatprep.subr.mxu0 0.0
        %859 = vmatpush1.msra.mxu0 0.0
        %860 = vmatprep.subr.mxu0 0.0
        %861 = vmatpush1.msra.mxu0 0.0
        %862 = vmatprep.subr.mxu0 0.0
        %863 = vmatpush1.msra.mxu0 0.0
        %864 = vmatprep.subr.mxu0 0.0
        %865 = vmatpush1.msra.mxu0 0.0
        %866 = vmatprep.subr.mxu0 0.0
        %867 = vmatpush1.msra.mxu0 0.0
        %868 = vmatprep.subr.mxu0 0.0
        %869 = vmatpush1.msra.mxu0 0.0
        %870 = vmatprep.subr.mxu0 0.0
        %871 = vmatpush1.msra.mxu0 0.0
        %872 = vmatprep.subr.mxu0 0.0
        %873 = vmatpush1.msra.mxu0 0.0
        %874 = vmatprep.subr.mxu0 0.0
        %875 = vmatpush1.msra.mxu0 0.0
        %876 = vmatprep.subr.mxu0 0.0
        %877 = vmatpush1.msra.mxu0 0.0
        %878 = vmatprep.mubr.f32.mxu0 0.0
        %879 = vmatmul.mubr.f32.gmra.mrb[0].mxu0 %v809
        %v880 = vpop.f32.mrb[0].mxu0
        %v881 = vadd.f32 %v805, %v880
        %v882 = vpop.f32.mrb[0].mxu0
        %883 = vmatprep.mubr.f32.mxu0 0.0
        %884 = vmatmul.mubr.f32.gmra.mrb[0].mxu0 %v812
        %v885 = vpop.f32.mrb[0].mxu0
        %v886 = vadd.f32 %v805, %v885
        %v887 = vpop.f32.mrb[0].mxu0
        %888 = vdwg.mxu0
        %vm889 = vcmask 326912
        %v890 = vsel %vm889, %v881, -inf
        %891 = vmax.xlane.f32.xlu0 %v890
        %v892 = vpop.xlane.xlu0 %891
        %v893 = vsel %vm889, %v886, -inf
        %894 = vmax.xlane.f32.xlu0 %v893
        %v895 = vpop.xlane.xlu0 %894
        %v896 = vsel %vm889, %v881, inf
        %897 = vmin.xlane.f32.xlu0 %v896
        %v898 = vpop.xlane.xlu0 %897
        %v899 = vsel %vm889, %v886, inf
        %900 = vmin.xlane.f32.xlu0 %v899
        %v901 = vpop.xlane.xlu0 %900
        %vm902 = vcmp.ge.f32.partialorder %v881, 0.0
        %vm903 = vcmp.ge.f32.partialorder %v886, 0.0
        %v904 = vmul.f32 %v881, %v892
        %v905 = vmul.f32 %v886, %v895
        %v906 = vmul.f32 %v881, %v898
        %v907 = vmul.f32 %v886, %v901
        %v908 = vsel %vm902, %v904, %v906
        %v909 = vsel %vm903, %v905, %v907
        %v912 = vcombine.high %v881, %v881
        %v914 = vunpack.c.l.s4 1966171168
        %v915 = vunpack.c.0.s8 %v914
        %v916 = vlaneseq
        %v917 = vshrl.u32 %v916, 7
        %v918 = vsub.s32 %v915, %v917
        %v919 = vrot.slane %v881, %v918
        %v921 = vunpack.c.l.s4 1966171168
        %v922 = vunpack.c.0.s8 %v921
        %v923 = vlaneseq
        %v924 = vshrl.u32 %v923, 7
        %v925 = vsub.s32 %v922, %v924
        %v926 = vrot.slane %v912, %v925
        %v927 = vcombine.high %v919, %v919
        %v928 = vcombine.high %v926, %v926
        %v930 = vunpack.c.l.s4 1966171168
        %v931 = vunpack.c.0.s8 %v930
        %v932 = vlaneseq
        %v933 = vshrl.u32 %v932, 7
        %v934 = vsub.s32 %v931, %v933
        %v935 = vrot.slane %v919, %v934
        %v937 = vunpack.c.l.s4 1966171168
        %v938 = vunpack.c.0.s8 %v937
        %v939 = vlaneseq
        %v940 = vshrl.u32 %v939, 7
        %v941 = vsub.s32 %v938, %v940
        %v942 = vrot.slane %v926, %v941
        %v944 = vunpack.c.l.s4 1966171168
        %v945 = vunpack.c.0.s8 %v944
        %v946 = vlaneseq
        %v947 = vshrl.u32 %v946, 7
        %v948 = vsub.s32 %v945, %v947
        %v949 = vrot.slane %v927, %v948
        %v951 = vunpack.c.l.s4 1966171168
        %v952 = vunpack.c.0.s8 %v951
        %v953 = vlaneseq
        %v954 = vshrl.u32 %v953, 7
        %v955 = vsub.s32 %v952, %v954
        %v956 = vrot.slane %v928, %v955
        %v957 = vcombine.high %v935, %v935
        %v958 = vcombine.high %v942, %v942
        %v959 = vcombine.high %v949, %v949
        %v960 = vcombine.high %v956, %v956
        %v961 = vcombine.high %v886, %v886
        %v963 = vunpack.c.l.s4 1966171168
        %v964 = vunpack.c.0.s8 %v963
        %v965 = vlaneseq
        %v966 = vshrl.u32 %v965, 7
        %v967 = vsub.s32 %v964, %v966
        %v968 = vrot.slane %v886, %v967
        %v970 = vunpack.c.l.s4 1966171168
        %v971 = vunpack.c.0.s8 %v970
        %v972 = vlaneseq
        %v973 = vshrl.u32 %v972, 7
        %v974 = vsub.s32 %v971, %v973
        %v975 = vrot.slane %v961, %v974
        %v976 = vcombine.high %v968, %v968
        %v977 = vcombine.high %v975, %v975
        %v979 = vunpack.c.l.s4 1966171168
        %v980 = vunpack.c.0.s8 %v979
        %v981 = vlaneseq
        %v982 = vshrl.u32 %v981, 7
        %v983 = vsub.s32 %v980, %v982
        %v984 = vrot.slane %v968, %v983
        %v986 = vunpack.c.l.s4 1966171168
        %v987 = vunpack.c.0.s8 %v986
        %v988 = vlaneseq
        %v989 = vshrl.u32 %v988, 7
        %v990 = vsub.s32 %v987, %v989
        %v991 = vrot.slane %v975, %v990
        %v993 = vunpack.c.l.s4 1966171168
        %v994 = vunpack.c.0.s8 %v993
        %v995 = vlaneseq
        %v996 = vshrl.u32 %v995, 7
        %v997 = vsub.s32 %v994, %v996
        %v998 = vrot.slane %v976, %v997
        %v1000 = vunpack.c.l.s4 1966171168
        %v1001 = vunpack.c.0.s8 %v1000
        %v1002 = vlaneseq
        %v1003 = vshrl.u32 %v1002, 7
        %v1004 = vsub.s32 %v1001, %v1003
        %v1005 = vrot.slane %v977, %v1004
        %v1006 = vcombine.high %v984, %v984
        %v1007 = vcombine.high %v991, %v991
        %v1008 = vcombine.high %v998, %v998
        %v1009 = vcombine.high %v1005, %v1005
        %v1012 = vcombine.high %v908, %v908
        %v1014 = vunpack.c.l.s4 1966171168
        %v1015 = vunpack.c.0.s8 %v1014
        %v1016 = vlaneseq
        %v1017 = vshrl.u32 %v1016, 7
        %v1018 = vsub.s32 %v1015, %v1017
        %v1019 = vrot.slane %v908, %v1018
        %v1021 = vunpack.c.l.s4 1966171168
        %v1022 = vunpack.c.0.s8 %v1021
        %v1023 = vlaneseq
        %v1024 = vshrl.u32 %v1023, 7
        %v1025 = vsub.s32 %v1022, %v1024
        %v1026 = vrot.slane %v1012, %v1025
        %v1027 = vcombine.high %v1019, %v1019
        %v1028 = vcombine.high %v1026, %v1026
        %v1030 = vunpack.c.l.s4 1966171168
        %v1031 = vunpack.c.0.s8 %v1030
        %v1032 = vlaneseq
        %v1033 = vshrl.u32 %v1032, 7
        %v1034 = vsub.s32 %v1031, %v1033
        %v1035 = vrot.slane %v1019, %v1034
        %v1037 = vunpack.c.l.s4 1966171168
        %v1038 = vunpack.c.0.s8 %v1037
        %v1039 = vlaneseq
        %v1040 = vshrl.u32 %v1039, 7
        %v1041 = vsub.s32 %v1038, %v1040
        %v1042 = vrot.slane %v1026, %v1041
        %v1044 = vunpack.c.l.s4 1966171168
        %v1045 = vunpack.c.0.s8 %v1044
        %v1046 = vlaneseq
        %v1047 = vshrl.u32 %v1046, 7
        %v1048 = vsub.s32 %v1045, %v1047
        %v1049 = vrot.slane %v1027, %v1048
        %v1051 = vunpack.c.l.s4 1966171168
        %v1052 = vunpack.c.0.s8 %v1051
        %v1053 = vlaneseq
        %v1054 = vshrl.u32 %v1053, 7
        %v1055 = vsub.s32 %v1052, %v1054
        %v1056 = vrot.slane %v1028, %v1055
        %v1057 = vcombine.high %v1035, %v1035
        %v1058 = vcombine.high %v1042, %v1042
        %v1059 = vcombine.high %v1049, %v1049
        %v1060 = vcombine.high %v1056, %v1056
        %v1061 = vcombine.high %v909, %v909
        %v1063 = vunpack.c.l.s4 1966171168
        %v1064 = vunpack.c.0.s8 %v1063
        %v1065 = vlaneseq
        %v1066 = vshrl.u32 %v1065, 7
        %v1067 = vsub.s32 %v1064, %v1066
        %v1068 = vrot.slane %v909, %v1067
        %v1070 = vunpack.c.l.s4 1966171168
        %v1071 = vunpack.c.0.s8 %v1070
        %v1072 = vlaneseq
        %v1073 = vshrl.u32 %v1072, 7
        %v1074 = vsub.s32 %v1071, %v1073
        %v1075 = vrot.slane %v1061, %v1074
        %v1076 = vcombine.high %v1068, %v1068
        %v1077 = vcombine.high %v1075, %v1075
        %v1079 = vunpack.c.l.s4 1966171168
        %v1080 = vunpack.c.0.s8 %v1079
        %v1081 = vlaneseq
        %v1082 = vshrl.u32 %v1081, 7
        %v1083 = vsub.s32 %v1080, %v1082
        %v1084 = vrot.slane %v1068, %v1083
        %v1086 = vunpack.c.l.s4 1966171168
        %v1087 = vunpack.c.0.s8 %v1086
        %v1088 = vlaneseq
        %v1089 = vshrl.u32 %v1088, 7
        %v1090 = vsub.s32 %v1087, %v1089
        %v1091 = vrot.slane %v1075, %v1090
        %v1093 = vunpack.c.l.s4 1966171168
        %v1094 = vunpack.c.0.s8 %v1093
        %v1095 = vlaneseq
        %v1096 = vshrl.u32 %v1095, 7
        %v1097 = vsub.s32 %v1094, %v1096
        %v1098 = vrot.slane %v1076, %v1097
        %v1100 = vunpack.c.l.s4 1966171168
        %v1101 = vunpack.c.0.s8 %v1100
        %v1102 = vlaneseq
        %v1103 = vshrl.u32 %v1102, 7
        %v1104 = vsub.s32 %v1101, %v1103
        %v1105 = vrot.slane %v1077, %v1104
        %v1106 = vcombine.high %v1084, %v1084
        %v1107 = vcombine.high %v1091, %v1091
        %v1108 = vcombine.high %v1098, %v1098
        %v1109 = vcombine.high %v1105, %v1105
        %v1110 = vlaneseq
        %v1111 = vshrl.u32 %v1110, 7
        %v1112 = vsub.s32 0, %v1111
        %v1113 = vrot.slane %v881, %v1112
        %s1115 = sor.u32 256, 32
        %1116 = vbcast.lane.b32.xlu0 %v1113, %s1115
        %v1117 = vpop.permute.xlu0 %1116
        %v1118 = vlaneseq
        %v1119 = vshrl.u32 %v1118, 7
        %v1120 = vsub.s32 1, %v1119
        %v1121 = vrot.slane %v881, %v1120
        %s1123 = sor.u32 256, 32
        %1124 = vbcast.lane.b32.xlu0 %v1121, %s1123
        %v1125 = vpop.permute.xlu0 %1124
        %v1126 = vlaneseq
        %v1127 = vshrl.u32 %v1126, 7
        %v1128 = vsub.s32 2, %v1127
        %v1129 = vrot.slane %v881, %v1128
        %s1131 = sor.u32 256, 32
        %1132 = vbcast.lane.b32.xlu0 %v1129, %s1131
        %v1133 = vpop.permute.xlu0 %1132
        %v1134 = vlaneseq
        %v1135 = vshrl.u32 %v1134, 7
        %v1136 = vsub.s32 3, %v1135
        %v1137 = vrot.slane %v881, %v1136
        %s1139 = sor.u32 256, 32
        %1140 = vbcast.lane.b32.xlu0 %v1137, %s1139
        %v1141 = vpop.permute.xlu0 %1140
        %v1142 = vlaneseq
        %v1143 = vshrl.u32 %v1142, 7
        %v1144 = vsub.s32 4, %v1143
        %v1145 = vrot.slane %v881, %v1144
        %s1147 = sor.u32 256, 32
        %1148 = vbcast.lane.b32.xlu0 %v1145, %s1147
        %v1149 = vpop.permute.xlu0 %1148
        %v1150 = vlaneseq
        %v1151 = vshrl.u32 %v1150, 7
        %v1152 = vsub.s32 5, %v1151
        %v1153 = vrot.slane %v881, %v1152
        %s1155 = sor.u32 256, 32
        %1156 = vbcast.lane.b32.xlu0 %v1153, %s1155
        %v1157 = vpop.permute.xlu0 %1156
        %v1158 = vlaneseq
        %v1159 = vshrl.u32 %v1158, 7
        %v1160 = vsub.s32 6, %v1159
        %v1161 = vrot.slane %v881, %v1160
        %s1163 = sor.u32 256, 32
        %1164 = vbcast.lane.b32.xlu0 %v1161, %s1163
        %v1165 = vpop.permute.xlu0 %1164
        %v1166 = vlaneseq
        %v1167 = vshrl.u32 %v1166, 7
        %v1168 = vsub.s32 7, %v1167
        %v1169 = vrot.slane %v881, %v1168
        %s1171 = sor.u32 256, 32
        %1172 = vbcast.lane.b32.xlu0 %v1169, %s1171
        %v1173 = vpop.permute.xlu0 %1172
        %v1174 = vlaneseq
        %v1175 = vshrl.u32 %v1174, 7
        %v1176 = vsub.s32 0, %v1175
        %v1177 = vrot.slane %v886, %v1176
        %s1179 = sor.u32 256, 32
        %1180 = vbcast.lane.b32.xlu0 %v1177, %s1179
        %v1181 = vpop.permute.xlu0 %1180
        %v1182 = vlaneseq
        %v1183 = vshrl.u32 %v1182, 7
        %v1184 = vsub.s32 1, %v1183
        %v1185 = vrot.slane %v886, %v1184
        %s1187 = sor.u32 256, 32
        %1188 = vbcast.lane.b32.xlu0 %v1185, %s1187
        %v1189 = vpop.permute.xlu0 %1188
        %v1190 = vlaneseq
        %v1191 = vshrl.u32 %v1190, 7
        %v1192 = vsub.s32 2, %v1191
        %v1193 = vrot.slane %v886, %v1192
        %s1195 = sor.u32 256, 32
        %1196 = vbcast.lane.b32.xlu0 %v1193, %s1195
        %v1197 = vpop.permute.xlu0 %1196
        %v1198 = vlaneseq
        %v1199 = vshrl.u32 %v1198, 7
        %v1200 = vsub.s32 3, %v1199
        %v1201 = vrot.slane %v886, %v1200
        %s1203 = sor.u32 256, 32
        %1204 = vbcast.lane.b32.xlu0 %v1201, %s1203
        %v1205 = vpop.permute.xlu0 %1204
        %v1206 = vlaneseq
        %v1207 = vshrl.u32 %v1206, 7
        %v1208 = vsub.s32 4, %v1207
        %v1209 = vrot.slane %v886, %v1208
        %s1211 = sor.u32 256, 32
        %1212 = vbcast.lane.b32.xlu0 %v1209, %s1211
        %v1213 = vpop.permute.xlu0 %1212
        %v1214 = vlaneseq
        %v1215 = vshrl.u32 %v1214, 7
        %v1216 = vsub.s32 5, %v1215
        %v1217 = vrot.slane %v886, %v1216
        %s1219 = sor.u32 256, 32
        %1220 = vbcast.lane.b32.xlu0 %v1217, %s1219
        %v1221 = vpop.permute.xlu0 %1220
        %v1222 = vlaneseq
        %v1223 = vshrl.u32 %v1222, 7
        %v1224 = vsub.s32 6, %v1223
        %v1225 = vrot.slane %v886, %v1224
        %s1227 = sor.u32 256, 32
        %1228 = vbcast.lane.b32.xlu0 %v1225, %s1227
        %v1229 = vpop.permute.xlu0 %1228
        %v1230 = vlaneseq
        %v1231 = vshrl.u32 %v1230, 7
        %v1232 = vsub.s32 7, %v1231
        %v1233 = vrot.slane %v886, %v1232
        %s1235 = sor.u32 256, 32
        %1236 = vbcast.lane.b32.xlu0 %v1233, %s1235
        %v1237 = vpop.permute.xlu0 %1236
        %v1238 = vlaneseq
        %v1239 = vshrl.u32 %v1238, 7
        %v1240 = vsub.s32 0, %v1239
        %v1241 = vrot.slane %v935, %v1240
        %v1242 = vlaneseq
        %v1243 = vshrl.u32 %v1242, 7
        %v1244 = vsub.s32 0, %v1243
        %v1245 = vrot.slane %v949, %v1244
        %v1246 = vlaneseq
        %v1247 = vshrl.u32 %v1246, 7
        %v1248 = vsub.s32 0, %v1247
        %v1249 = vrot.slane %v957, %v1248
        %v1250 = vlaneseq
        %v1251 = vshrl.u32 %v1250, 7
        %v1252 = vsub.s32 0, %v1251
        %v1253 = vrot.slane %v959, %v1252
        %v1254 = vlaneseq
        %v1255 = vshrl.u32 %v1254, 7
        %v1256 = vsub.s32 0, %v1255
        %v1257 = vrot.slane %v942, %v1256
        %v1258 = vlaneseq
        %v1259 = vshrl.u32 %v1258, 7
        %v1260 = vsub.s32 0, %v1259
        %v1261 = vrot.slane %v956, %v1260
        %v1262 = vlaneseq
        %v1263 = vshrl.u32 %v1262, 7
        %v1264 = vsub.s32 0, %v1263
        %v1265 = vrot.slane %v958, %v1264
        %v1266 = vlaneseq
        %v1267 = vshrl.u32 %v1266, 7
        %v1268 = vsub.s32 0, %v1267
        %v1269 = vrot.slane %v960, %v1268
        %v1270 = vlaneseq
        %v1271 = vshrl.u32 %v1270, 7
        %v1272 = vsub.s32 0, %v1271
        %v1273 = vrot.slane %v984, %v1272
        %v1274 = vlaneseq
        %v1275 = vshrl.u32 %v1274, 7
        %v1276 = vsub.s32 0, %v1275
        %v1277 = vrot.slane %v998, %v1276
        %v1278 = vlaneseq
        %v1279 = vshrl.u32 %v1278, 7
        %v1280 = vsub.s32 0, %v1279
        %v1281 = vrot.slane %v1006, %v1280
        %v1282 = vlaneseq
        %v1283 = vshrl.u32 %v1282, 7
        %v1284 = vsub.s32 0, %v1283
        %v1285 = vrot.slane %v1008, %v1284
        %v1286 = vlaneseq
        %v1287 = vshrl.u32 %v1286, 7
        %v1288 = vsub.s32 0, %v1287
        %v1289 = vrot.slane %v991, %v1288
        %v1290 = vlaneseq
        %v1291 = vshrl.u32 %v1290, 7
        %v1292 = vsub.s32 0, %v1291
        %v1293 = vrot.slane %v1005, %v1292
        %v1294 = vlaneseq
        %v1295 = vshrl.u32 %v1294, 7
        %v1296 = vsub.s32 0, %v1295
        %v1297 = vrot.slane %v1007, %v1296
        %v1298 = vlaneseq
        %v1299 = vshrl.u32 %v1298, 7
        %v1300 = vsub.s32 0, %v1299
        %v1301 = vrot.slane %v1009, %v1300
        %v1318 = vmul.f32 %v1117, %v1241
        %v1319 = vmul.f32 %v1125, %v1245
        %v1320 = vmul.f32 %v1133, %v1249
        %v1321 = vmul.f32 %v1141, %v1253
        %v1322 = vmul.f32 %v1149, %v1257
        %v1323 = vmul.f32 %v1157, %v1261
        %v1324 = vmul.f32 %v1165, %v1265
        %v1325 = vmul.f32 %v1173, %v1269
        %v1326 = vmul.f32 %v1181, %v1273
        %v1327 = vmul.f32 %v1189, %v1277
        %v1328 = vmul.f32 %v1197, %v1281
        %v1329 = vmul.f32 %v1205, %v1285
        %v1330 = vmul.f32 %v1213, %v1289
        %v1331 = vmul.f32 %v1221, %v1293
        %v1332 = vmul.f32 %v1229, %v1297
        %v1333 = vmul.f32 %v1237, %v1301
        %v1334 = vlaneseq
        %v1335 = vshrl.u32 %v1334, 7
        %v1336 = vsub.s32 0, %v1335
        %v1337 = vrot.slane %v1035, %v1336
        %v1338 = vlaneseq
        %v1339 = vshrl.u32 %v1338, 7
        %v1340 = vsub.s32 0, %v1339
        %v1341 = vrot.slane %v1049, %v1340
        %v1342 = vlaneseq
        %v1343 = vshrl.u32 %v1342, 7
        %v1344 = vsub.s32 0, %v1343
        %v1345 = vrot.slane %v1057, %v1344
        %v1346 = vlaneseq
        %v1347 = vshrl.u32 %v1346, 7
        %v1348 = vsub.s32 0, %v1347
        %v1349 = vrot.slane %v1059, %v1348
        %v1350 = vlaneseq
        %v1351 = vshrl.u32 %v1350, 7
        %v1352 = vsub.s32 0, %v1351
        %v1353 = vrot.slane %v1042, %v1352
        %v1354 = vlaneseq
        %v1355 = vshrl.u32 %v1354, 7
        %v1356 = vsub.s32 0, %v1355
        %v1357 = vrot.slane %v1056, %v1356
        %v1358 = vlaneseq
        %v1359 = vshrl.u32 %v1358, 7
        %v1360 = vsub.s32 0, %v1359
        %v1361 = vrot.slane %v1058, %v1360
        %v1362 = vlaneseq
        %v1363 = vshrl.u32 %v1362, 7
        %v1364 = vsub.s32 0, %v1363
        %v1365 = vrot.slane %v1060, %v1364
        %v1366 = vlaneseq
        %v1367 = vshrl.u32 %v1366, 7
        %v1368 = vsub.s32 0, %v1367
        %v1369 = vrot.slane %v1084, %v1368
        %v1370 = vlaneseq
        %v1371 = vshrl.u32 %v1370, 7
        %v1372 = vsub.s32 0, %v1371
        %v1373 = vrot.slane %v1098, %v1372
        %v1374 = vlaneseq
        %v1375 = vshrl.u32 %v1374, 7
        %v1376 = vsub.s32 0, %v1375
        %v1377 = vrot.slane %v1106, %v1376
        %v1378 = vlaneseq
        %v1379 = vshrl.u32 %v1378, 7
        %v1380 = vsub.s32 0, %v1379
        %v1381 = vrot.slane %v1108, %v1380
        %v1382 = vlaneseq
        %v1383 = vshrl.u32 %v1382, 7
        %v1384 = vsub.s32 0, %v1383
        %v1385 = vrot.slane %v1091, %v1384
        %v1386 = vlaneseq
        %v1387 = vshrl.u32 %v1386, 7
        %v1388 = vsub.s32 0, %v1387
        %v1389 = vrot.slane %v1105, %v1388
        %v1390 = vlaneseq
        %v1391 = vshrl.u32 %v1390, 7
        %v1392 = vsub.s32 0, %v1391
        %v1393 = vrot.slane %v1107, %v1392
        %v1394 = vlaneseq
        %v1395 = vshrl.u32 %v1394, 7
        %v1396 = vsub.s32 0, %v1395
        %v1397 = vrot.slane %v1109, %v1396
        %v1414 = vsub.f32 %v1318, %v1337
        %v1415 = vsub.f32 %v1319, %v1341
        %v1416 = vsub.f32 %v1320, %v1345
        %v1417 = vsub.f32 %v1321, %v1349
        %v1418 = vsub.f32 %v1322, %v1353
        %v1419 = vsub.f32 %v1323, %v1357
        %v1420 = vsub.f32 %v1324, %v1361
        %v1421 = vsub.f32 %v1325, %v1365
        %v1422 = vsub.f32 %v1326, %v1369
        %v1423 = vsub.f32 %v1327, %v1373
        %v1424 = vsub.f32 %v1328, %v1377
        %v1425 = vsub.f32 %v1329, %v1381
        %v1426 = vsub.f32 %v1330, %v1385
        %v1427 = vsub.f32 %v1331, %v1389
        %v1428 = vsub.f32 %v1332, %v1393
        %v1429 = vsub.f32 %v1333, %v1397
        %v1430 = vmul.f32 %v1414, 1.442695
        %v1431 = vpow.pop %v1430
        %v1432 = vmul.f32 %v1415, 1.442695
        %v1433 = vpow.pop %v1432
        %v1434 = vmul.f32 %v1416, 1.442695
        %v1435 = vpow.pop %v1434
        %v1436 = vmul.f32 %v1417, 1.442695
        %v1437 = vpow.pop %v1436
        %v1438 = vmul.f32 %v1418, 1.442695
        %v1439 = vpow.pop %v1438
        %v1440 = vmul.f32 %v1419, 1.442695
        %v1441 = vpow.pop %v1440
        %v1442 = vmul.f32 %v1420, 1.442695
        %v1443 = vpow.pop %v1442
        %v1444 = vmul.f32 %v1421, 1.442695
        %v1445 = vpow.pop %v1444
        %v1446 = vmul.f32 %v1422, 1.442695
        %v1447 = vpow.pop %v1446
        %v1448 = vmul.f32 %v1423, 1.442695
        %v1449 = vpow.pop %v1448
        %v1450 = vmul.f32 %v1424, 1.442695
        %v1451 = vpow.pop %v1450
        %v1452 = vmul.f32 %v1425, 1.442695
        %v1453 = vpow.pop %v1452
        %v1454 = vmul.f32 %v1426, 1.442695
        %v1455 = vpow.pop %v1454
        %v1456 = vmul.f32 %v1427, 1.442695
        %v1457 = vpow.pop %v1456
        %v1458 = vmul.f32 %v1428, 1.442695
        %v1459 = vpow.pop %v1458
        %v1460 = vmul.f32 %v1429, 1.442695
        %v1461 = vpow.pop %v1460
        %s1463 = sor.u32 256, 40
        %1464 = vbcast.lane.b32.xlu0 %v1113, %s1463
        %v1465 = vpop.permute.xlu0 %1464
        %s1467 = sor.u32 256, 40
        %1468 = vbcast.lane.b32.xlu0 %v1121, %s1467
        %v1469 = vpop.permute.xlu0 %1468
        %s1471 = sor.u32 256, 40
        %1472 = vbcast.lane.b32.xlu0 %v1129, %s1471
        %v1473 = vpop.permute.xlu0 %1472
        %s1475 = sor.u32 256, 40
        %1476 = vbcast.lane.b32.xlu0 %v1137, %s1475
        %v1477 = vpop.permute.xlu0 %1476
        %s1479 = sor.u32 256, 40
        %1480 = vbcast.lane.b32.xlu0 %v1145, %s1479
        %v1481 = vpop.permute.xlu0 %1480
        %s1483 = sor.u32 256, 40
        %1484 = vbcast.lane.b32.xlu0 %v1153, %s1483
        %v1485 = vpop.permute.xlu0 %1484
        %s1487 = sor.u32 256, 40
        %1488 = vbcast.lane.b32.xlu0 %v1161, %s1487
        %v1489 = vpop.permute.xlu0 %1488
        %s1491 = sor.u32 256, 40
        %1492 = vbcast.lane.b32.xlu0 %v1169, %s1491
        %v1493 = vpop.permute.xlu0 %1492
        %s1495 = sor.u32 256, 40
        %1496 = vbcast.lane.b32.xlu0 %v1177, %s1495
        %v1497 = vpop.permute.xlu0 %1496
        %s1499 = sor.u32 256, 40
        %1500 = vbcast.lane.b32.xlu0 %v1185, %s1499
        %v1501 = vpop.permute.xlu0 %1500
        %s1503 = sor.u32 256, 40
        %1504 = vbcast.lane.b32.xlu0 %v1193, %s1503
        %v1505 = vpop.permute.xlu0 %1504
        %s1507 = sor.u32 256, 40
        %1508 = vbcast.lane.b32.xlu0 %v1201, %s1507
        %v1509 = vpop.permute.xlu0 %1508
        %s1511 = sor.u32 256, 40
        %1512 = vbcast.lane.b32.xlu0 %v1209, %s1511
        %v1513 = vpop.permute.xlu0 %1512
        %s1515 = sor.u32 256, 40
        %1516 = vbcast.lane.b32.xlu0 %v1217, %s1515
        %v1517 = vpop.permute.xlu0 %1516
        %s1519 = sor.u32 256, 40
        %1520 = vbcast.lane.b32.xlu0 %v1225, %s1519
        %v1521 = vpop.permute.xlu0 %1520
        %s1523 = sor.u32 256, 40
        %1524 = vbcast.lane.b32.xlu0 %v1233, %s1523
        %v1525 = vpop.permute.xlu0 %1524
        %v1526 = vmul.f32 %v1465, %v1431
        %v1527 = vmul.f32 %v1469, %v1433
        %v1528 = vmul.f32 %v1473, %v1435
        %v1529 = vmul.f32 %v1477, %v1437
        %v1530 = vmul.f32 %v1481, %v1439
        %v1531 = vmul.f32 %v1485, %v1441
        %v1532 = vmul.f32 %v1489, %v1443
        %v1533 = vmul.f32 %v1493, %v1445
        %v1534 = vmul.f32 %v1497, %v1447
        %v1535 = vmul.f32 %v1501, %v1449
        %v1536 = vmul.f32 %v1505, %v1451
        %v1537 = vmul.f32 %v1509, %v1453
        %v1538 = vmul.f32 %v1513, %v1455
        %v1539 = vmul.f32 %v1517, %v1457
        %v1540 = vmul.f32 %v1521, %v1459
        %v1541 = vmul.f32 %v1525, %v1461
        %v1542 = vsel %vm807, %v1526, 0.0
        %v1543 = vrot.slane %v1542, 4
        %v1544 = vadd.f32 %v1542, %v1543
        %v1545 = vrot.slane %v1544, 2
        %v1546 = vadd.f32 %v1544, %v1545
        %v1547 = vrot.slane %v1546, 1
        %v1548 = vadd.f32 %v1546, %v1547
        %v1549 = vsel %vm807, %v1527, 0.0
        %v1550 = vrot.slane %v1549, 4
        %v1551 = vadd.f32 %v1549, %v1550
        %v1552 = vrot.slane %v1551, 2
        %v1553 = vadd.f32 %v1551, %v1552
        %v1554 = vrot.slane %v1553, 1
        %v1555 = vadd.f32 %v1553, %v1554
        %v1556 = vsel %vm807, %v1528, 0.0
        %v1557 = vrot.slane %v1556, 4
        %v1558 = vadd.f32 %v1556, %v1557
        %v1559 = vrot.slane %v1558, 2
        %v1560 = vadd.f32 %v1558, %v1559
        %v1561 = vrot.slane %v1560, 1
        %v1562 = vadd.f32 %v1560, %v1561
        %v1563 = vsel %vm807, %v1529, 0.0
        %v1564 = vrot.slane %v1563, 4
        %v1565 = vadd.f32 %v1563, %v1564
        %v1566 = vrot.slane %v1565, 2
        %v1567 = vadd.f32 %v1565, %v1566
        %v1568 = vrot.slane %v1567, 1
        %v1569 = vadd.f32 %v1567, %v1568
        %v1570 = vsel %vm807, %v1530, 0.0
        %v1571 = vrot.slane %v1570, 4
        %v1572 = vadd.f32 %v1570, %v1571
        %v1573 = vrot.slane %v1572, 2
        %v1574 = vadd.f32 %v1572, %v1573
        %v1575 = vrot.slane %v1574, 1
        %v1576 = vadd.f32 %v1574, %v1575
        %v1577 = vsel %vm807, %v1531, 0.0
        %v1578 = vrot.slane %v1577, 4
        %v1579 = vadd.f32 %v1577, %v1578
        %v1580 = vrot.slane %v1579, 2
        %v1581 = vadd.f32 %v1579, %v1580
        %v1582 = vrot.slane %v1581, 1
        %v1583 = vadd.f32 %v1581, %v1582
        %v1584 = vsel %vm807, %v1532, 0.0
        %v1585 = vrot.slane %v1584, 4
        %v1586 = vadd.f32 %v1584, %v1585
        %v1587 = vrot.slane %v1586, 2
        %v1588 = vadd.f32 %v1586, %v1587
        %v1589 = vrot.slane %v1588, 1
        %v1590 = vadd.f32 %v1588, %v1589
        %v1591 = vsel %vm807, %v1533, 0.0
        %v1592 = vrot.slane %v1591, 4
        %v1593 = vadd.f32 %v1591, %v1592
        %v1594 = vrot.slane %v1593, 2
        %v1595 = vadd.f32 %v1593, %v1594
        %v1596 = vrot.slane %v1595, 1
        %v1597 = vadd.f32 %v1595, %v1596
        %v1598 = vsel %vm807, %v1534, 0.0
        %v1599 = vrot.slane %v1598, 4
        %v1600 = vadd.f32 %v1598, %v1599
        %v1601 = vrot.slane %v1600, 2
        %v1602 = vadd.f32 %v1600, %v1601
        %v1603 = vrot.slane %v1602, 1
        %v1604 = vadd.f32 %v1602, %v1603
        %v1605 = vsel %vm807, %v1535, 0.0
        %v1606 = vrot.slane %v1605, 4
        %v1607 = vadd.f32 %v1605, %v1606
        %v1608 = vrot.slane %v1607, 2
        %v1609 = vadd.f32 %v1607, %v1608
        %v1610 = vrot.slane %v1609, 1
        %v1611 = vadd.f32 %v1609, %v1610
        %v1612 = vsel %vm807, %v1536, 0.0
        %v1613 = vrot.slane %v1612, 4
        %v1614 = vadd.f32 %v1612, %v1613
        %v1615 = vrot.slane %v1614, 2
        %v1616 = vadd.f32 %v1614, %v1615
        %v1617 = vrot.slane %v1616, 1
        %v1618 = vadd.f32 %v1616, %v1617
        %v1619 = vsel %vm807, %v1537, 0.0
        %v1620 = vrot.slane %v1619, 4
        %v1621 = vadd.f32 %v1619, %v1620
        %v1622 = vrot.slane %v1621, 2
        %v1623 = vadd.f32 %v1621, %v1622
        %v1624 = vrot.slane %v1623, 1
        %v1625 = vadd.f32 %v1623, %v1624
        %v1626 = vsel %vm807, %v1538, 0.0
        %v1627 = vrot.slane %v1626, 4
        %v1628 = vadd.f32 %v1626, %v1627
        %v1629 = vrot.slane %v1628, 2
        %v1630 = vadd.f32 %v1628, %v1629
        %v1631 = vrot.slane %v1630, 1
        %v1632 = vadd.f32 %v1630, %v1631
        %v1633 = vsel %vm807, %v1539, 0.0
        %v1634 = vrot.slane %v1633, 4
        %v1635 = vadd.f32 %v1633, %v1634
        %v1636 = vrot.slane %v1635, 2
        %v1637 = vadd.f32 %v1635, %v1636
        %v1638 = vrot.slane %v1637, 1
        %v1639 = vadd.f32 %v1637, %v1638
        %v1640 = vsel %vm807, %v1540, 0.0
        %v1641 = vrot.slane %v1640, 4
        %v1642 = vadd.f32 %v1640, %v1641
        %v1643 = vrot.slane %v1642, 2
        %v1644 = vadd.f32 %v1642, %v1643
        %v1645 = vrot.slane %v1644, 1
        %v1646 = vadd.f32 %v1644, %v1645
        %v1647 = vsel %vm807, %v1541, 0.0
        %v1648 = vrot.slane %v1647, 4
        %v1649 = vadd.f32 %v1647, %v1648
        %v1650 = vrot.slane %v1649, 2
        %v1651 = vadd.f32 %v1649, %v1650
        %v1652 = vrot.slane %v1651, 1
        %v1653 = vadd.f32 %v1651, %v1652
        %v1654 = vadd.f32 %v1548, 0.0
        %v1655 = vadd.f32 %v1555, 0.0
        %v1656 = vadd.f32 %v1562, 0.0
        %v1657 = vadd.f32 %v1569, 0.0
        %v1658 = vadd.f32 %v1576, 0.0
        %v1659 = vadd.f32 %v1583, 0.0
        %v1660 = vadd.f32 %v1590, 0.0
        %v1661 = vadd.f32 %v1597, 0.0
        %v1662 = vadd.f32 %v1604, 0.0
        %v1663 = vadd.f32 %v1611, 0.0
        %v1664 = vadd.f32 %v1618, 0.0
        %v1665 = vadd.f32 %v1625, 0.0
        %v1666 = vadd.f32 %v1632, 0.0
        %v1667 = vadd.f32 %v1639, 0.0
        %v1668 = vadd.f32 %v1646, 0.0
        %v1669 = vadd.f32 %v1653, 0.0
        %v1670 = vsel %vm807, %v1431, 0.0
        %v1671 = vrot.slane %v1670, 4
        %v1672 = vadd.f32 %v1670, %v1671
        %v1673 = vrot.slane %v1672, 2
        %v1674 = vadd.f32 %v1672, %v1673
        %v1675 = vrot.slane %v1674, 1
        %v1676 = vadd.f32 %v1674, %v1675
        %v1677 = vsel %vm807, %v1433, 0.0
        %v1678 = vrot.slane %v1677, 4
        %v1679 = vadd.f32 %v1677, %v1678
        %v1680 = vrot.slane %v1679, 2
        %v1681 = vadd.f32 %v1679, %v1680
        %v1682 = vrot.slane %v1681, 1
        %v1683 = vadd.f32 %v1681, %v1682
        %v1684 = vsel %vm807, %v1435, 0.0
        %v1685 = vrot.slane %v1684, 4
        %v1686 = vadd.f32 %v1684, %v1685
        %v1687 = vrot.slane %v1686, 2
        %v1688 = vadd.f32 %v1686, %v1687
        %v1689 = vrot.slane %v1688, 1
        %v1690 = vadd.f32 %v1688, %v1689
        %v1691 = vsel %vm807, %v1437, 0.0
        %v1692 = vrot.slane %v1691, 4
        %v1693 = vadd.f32 %v1691, %v1692
        %v1694 = vrot.slane %v1693, 2
        %v1695 = vadd.f32 %v1693, %v1694
        %v1696 = vrot.slane %v1695, 1
        %v1697 = vadd.f32 %v1695, %v1696
        %v1698 = vsel %vm807, %v1439, 0.0
        %v1699 = vrot.slane %v1698, 4
        %v1700 = vadd.f32 %v1698, %v1699
        %v1701 = vrot.slane %v1700, 2
        %v1702 = vadd.f32 %v1700, %v1701
        %v1703 = vrot.slane %v1702, 1
        %v1704 = vadd.f32 %v1702, %v1703
        %v1705 = vsel %vm807, %v1441, 0.0
        %v1706 = vrot.slane %v1705, 4
        %v1707 = vadd.f32 %v1705, %v1706
        %v1708 = vrot.slane %v1707, 2
        %v1709 = vadd.f32 %v1707, %v1708
        %v1710 = vrot.slane %v1709, 1
        %v1711 = vadd.f32 %v1709, %v1710
        %v1712 = vsel %vm807, %v1443, 0.0
        %v1713 = vrot.slane %v1712, 4
        %v1714 = vadd.f32 %v1712, %v1713
        %v1715 = vrot.slane %v1714, 2
        %v1716 = vadd.f32 %v1714, %v1715
        %v1717 = vrot.slane %v1716, 1
        %v1718 = vadd.f32 %v1716, %v1717
        %v1719 = vsel %vm807, %v1445, 0.0
        %v1720 = vrot.slane %v1719, 4
        %v1721 = vadd.f32 %v1719, %v1720
        %v1722 = vrot.slane %v1721, 2
        %v1723 = vadd.f32 %v1721, %v1722
        %v1724 = vrot.slane %v1723, 1
        %v1725 = vadd.f32 %v1723, %v1724
        %v1726 = vsel %vm807, %v1447, 0.0
        %v1727 = vrot.slane %v1726, 4
        %v1728 = vadd.f32 %v1726, %v1727
        %v1729 = vrot.slane %v1728, 2
        %v1730 = vadd.f32 %v1728, %v1729
        %v1731 = vrot.slane %v1730, 1
        %v1732 = vadd.f32 %v1730, %v1731
        %v1733 = vsel %vm807, %v1449, 0.0
        %v1734 = vrot.slane %v1733, 4
        %v1735 = vadd.f32 %v1733, %v1734
        %v1736 = vrot.slane %v1735, 2
        %v1737 = vadd.f32 %v1735, %v1736
        %v1738 = vrot.slane %v1737, 1
        %v1739 = vadd.f32 %v1737, %v1738
        %v1740 = vsel %vm807, %v1451, 0.0
        %v1741 = vrot.slane %v1740, 4
        %v1742 = vadd.f32 %v1740, %v1741
        %v1743 = vrot.slane %v1742, 2
        %v1744 = vadd.f32 %v1742, %v1743
        %v1745 = vrot.slane %v1744, 1
        %v1746 = vadd.f32 %v1744, %v1745
        %v1747 = vsel %vm807, %v1453, 0.0
        %v1748 = vrot.slane %v1747, 4
        %v1749 = vadd.f32 %v1747, %v1748
        %v1750 = vrot.slane %v1749, 2
        %v1751 = vadd.f32 %v1749, %v1750
        %v1752 = vrot.slane %v1751, 1
        %v1753 = vadd.f32 %v1751, %v1752
        %v1754 = vsel %vm807, %v1455, 0.0
        %v1755 = vrot.slane %v1754, 4
        %v1756 = vadd.f32 %v1754, %v1755
        %v1757 = vrot.slane %v1756, 2
        %v1758 = vadd.f32 %v1756, %v1757
        %v1759 = vrot.slane %v1758, 1
        %v1760 = vadd.f32 %v1758, %v1759
        %v1761 = vsel %vm807, %v1457, 0.0
        %v1762 = vrot.slane %v1761, 4
        %v1763 = vadd.f32 %v1761, %v1762
        %v1764 = vrot.slane %v1763, 2
        %v1765 = vadd.f32 %v1763, %v1764
        %v1766 = vrot.slane %v1765, 1
        %v1767 = vadd.f32 %v1765, %v1766
        %v1768 = vsel %vm807, %v1459, 0.0
        %v1769 = vrot.slane %v1768, 4
        %v1770 = vadd.f32 %v1768, %v1769
        %v1771 = vrot.slane %v1770, 2
        %v1772 = vadd.f32 %v1770, %v1771
        %v1773 = vrot.slane %v1772, 1
        %v1774 = vadd.f32 %v1772, %v1773
        %v1775 = vsel %vm807, %v1461, 0.0
        %v1776 = vrot.slane %v1775, 4
        %v1777 = vadd.f32 %v1775, %v1776
        %v1778 = vrot.slane %v1777, 2
        %v1779 = vadd.f32 %v1777, %v1778
        %v1780 = vrot.slane %v1779, 1
        %v1781 = vadd.f32 %v1779, %v1780
        %v1782 = vadd.f32 %v1676, 0.0
        %v1783 = vadd.f32 %v1683, 0.0
        %v1784 = vadd.f32 %v1690, 0.0
        %v1785 = vadd.f32 %v1697, 0.0
        %v1786 = vadd.f32 %v1704, 0.0
        %v1787 = vadd.f32 %v1711, 0.0
        %v1788 = vadd.f32 %v1718, 0.0
        %v1789 = vadd.f32 %v1725, 0.0
        %v1790 = vadd.f32 %v1732, 0.0
        %v1791 = vadd.f32 %v1739, 0.0
        %v1792 = vadd.f32 %v1746, 0.0
        %v1793 = vadd.f32 %v1753, 0.0
        %v1794 = vadd.f32 %v1760, 0.0
        %v1795 = vadd.f32 %v1767, 0.0
        %v1796 = vadd.f32 %v1774, 0.0
        %v1797 = vadd.f32 %v1781, 0.0
        %v1798 = vrcp.pop %v1782
        %v1799 = vrcp.pop %v1783
        %v1800 = vrcp.pop %v1784
        %v1801 = vrcp.pop %v1785
        %v1802 = vrcp.pop %v1786
        %v1803 = vrcp.pop %v1787
        %v1804 = vrcp.pop %v1788
        %v1805 = vrcp.pop %v1789
        %v1806 = vrcp.pop %v1790
        %v1807 = vrcp.pop %v1791
        %v1808 = vrcp.pop %v1792
        %v1809 = vrcp.pop %v1793
        %v1810 = vrcp.pop %v1794
        %v1811 = vrcp.pop %v1795
        %v1812 = vrcp.pop %v1796
        %v1813 = vrcp.pop %v1797
        %v1814 = vmul.f32 %v1654, %v1798
        %v1815 = vmul.f32 %v1655, %v1799
        %v1816 = vmul.f32 %v1656, %v1800
        %v1817 = vmul.f32 %v1657, %v1801
        %v1818 = vmul.f32 %v1658, %v1802
        %v1819 = vmul.f32 %v1659, %v1803
        %v1820 = vmul.f32 %v1660, %v1804
        %v1821 = vmul.f32 %v1661, %v1805
        %v1822 = vmul.f32 %v1662, %v1806
        %v1823 = vmul.f32 %v1663, %v1807
        %v1824 = vmul.f32 %v1664, %v1808
        %v1825 = vmul.f32 %v1665, %v1809
        %v1826 = vmul.f32 %v1666, %v1810
        %v1827 = vmul.f32 %v1667, %v1811
        %v1828 = vmul.f32 %v1668, %v1812
        %v1829 = vmul.f32 %v1669, %v1813
        %s1830 = sld [smem:[#allocation2]]
        %v1831 = vstv %s1830
        %v1832 = vmul.f32 %v1831, %v1814
        %v1833 = vmul.f32 %v1831, %v1815
        %v1834 = vmul.f32 %v1831, %v1816
        %v1835 = vmul.f32 %v1831, %v1817
        %v1836 = vmul.f32 %v1831, %v1818
        %v1837 = vmul.f32 %v1831, %v1819
        %v1838 = vmul.f32 %v1831, %v1820
        %v1839 = vmul.f32 %v1831, %v1821
        %v1840 = vmul.f32 %v1831, %v1822
        %v1841 = vmul.f32 %v1831, %v1823
        %v1842 = vmul.f32 %v1831, %v1824
        %v1843 = vmul.f32 %v1831, %v1825
        %v1844 = vmul.f32 %v1831, %v1826
        %v1845 = vmul.f32 %v1831, %v1827
        %v1846 = vmul.f32 %v1831, %v1828
        %v1847 = vmul.f32 %v1831, %v1829
        %v1848 = vrot.slane %v794, 1
        %v1849 = vrot.slane %v794, 2
        %v1850 = vrot.slane %v794, 3
        %v1851 = vrot.slane %v794, 4
        %v1852 = vrot.slane %v794, 5
        %v1853 = vrot.slane %v794, 6
        %v1854 = vrot.slane %v794, 7
        %v1855 = vrot.slane %v795, 1
        %v1856 = vrot.slane %v795, 2
        %v1857 = vrot.slane %v795, 3
        %v1858 = vrot.slane %v795, 4
        %v1859 = vrot.slane %v795, 5
        %v1860 = vrot.slane %v795, 6
        %v1861 = vrot.slane %v795, 7
        %v1878 = vadd.f32 %v1832, %v794
        %v1879 = vadd.f32 %v1833, %v1848
        %v1880 = vadd.f32 %v1834, %v1849
        %v1881 = vadd.f32 %v1835, %v1850
        %v1882 = vadd.f32 %v1836, %v1851
        %v1883 = vadd.f32 %v1837, %v1852
        %v1884 = vadd.f32 %v1838, %v1853
        %v1885 = vadd.f32 %v1839, %v1854
        %v1886 = vadd.f32 %v1840, %v795
        %v1887 = vadd.f32 %v1841, %v1855
        %v1888 = vadd.f32 %v1842, %v1856
        %v1889 = vadd.f32 %v1843, %v1857
        %v1890 = vadd.f32 %v1844, %v1858
        %v1891 = vadd.f32 %v1845, %v1859
        %v1892 = vadd.f32 %v1846, %v1860
        %v1893 = vadd.f32 %v1847, %v1861
        %v1894 = vld [vmem:[%s4] sm:$0xff]
        %v1895 = vld [vmem:[%s4 + $0x8] sm:$0xff]
        %v1896 = vld [vmem:[%s4 + $0x10] sm:$0xff]
        %v1897 = vld [vmem:[%s4 + $0x18] sm:$0xff]
        %v1898 = vld [vmem:[%s6] sm:$0xff]
        %v1899 = vld [vmem:[%s6 + $0x8] sm:$0xff]
        %v1900 = vld [vmem:[%s6 + $0x10] sm:$0xff]
        %v1901 = vld [vmem:[%s6 + $0x18] sm:$0xff]
        %v1902 = vld [vmem:[%s6 + $0x20] sm:$0xff]
        %v1903 = vld [vmem:[%s6 + $0x28] sm:$0xff]
        %v1904 = vld [vmem:[%s6 + $0x30] sm:$0xff]
        %v1905 = vld [vmem:[%s6 + $0x38] sm:$0xff]
        %v1906 = vld [vmem:[%s8] sm:$0xff]
        %v1907 = vld [vmem:[%s8 + $0x8] sm:$0xff]
        %v1908 = vld [vmem:[%s8 + $0x10] sm:$0xff]
        %v1909 = vld [vmem:[%s8 + $0x18] sm:$0xff]
        %v1910 = vld [vmem:[%s5] sm:$0x1]
        %v1912 = vlaneseq
        %v1913 = vshrl.u32 %v1912, 7
        %v1914 = vsub.s32 0, %v1913
        %v1915 = vrot.slane %v1910, %v1914
        %v1933 = vrot.slane %v1879, 7
        %vm1934 = vcmask 1041409
        %v1935 = vsel %vm1934, %v1933, %v1878
        %v1936 = vrot.slane %v1880, 6
        %vm1937 = vcmask 1042434
        %v1938 = vsel %vm1937, %v1936, %v1935
        %v1939 = vrot.slane %v1881, 5
        %vm1940 = vcmask 1043459
        %v1941 = vsel %vm1940, %v1939, %v1938
        %v1942 = vrot.slane %v1882, 4
        %vm1943 = vcmask 1044484
        %v1944 = vsel %vm1943, %v1942, %v1941
        %v1945 = vrot.slane %v1883, 3
        %vm1946 = vcmask 1045509
        %v1947 = vsel %vm1946, %v1945, %v1944
        %v1948 = vrot.slane %v1884, 2
        %vm1949 = vcmask 1046534
        %v1950 = vsel %vm1949, %v1948, %v1947
        %v1951 = vrot.slane %v1885, 1
        %vm1952 = vcmask 1047559
        %v1953 = vsel %vm1952, %v1951, %v1950
        %v1954 = vrot.slane %v1887, 7
        %v1955 = vsel %vm1934, %v1954, %v1886
        %v1956 = vrot.slane %v1888, 6
        %v1957 = vsel %vm1937, %v1956, %v1955
        %v1958 = vrot.slane %v1889, 5
        %v1959 = vsel %vm1940, %v1958, %v1957
        %v1960 = vrot.slane %v1890, 4
        %v1961 = vsel %vm1943, %v1960, %v1959
        %v1962 = vrot.slane %v1891, 3
        %v1963 = vsel %vm1946, %v1962, %v1961
        %v1964 = vrot.slane %v1892, 2
        %v1965 = vsel %vm1949, %v1964, %v1963
        %v1966 = vrot.slane %v1893, 1
        %v1967 = vsel %vm1952, %v1966, %v1965
        %v1968 = vsel %vm807, %v1953, 0
        %v1970 = vsel %vm807, %v1967, 0
        %1972 = vmatprep.subr.mxu0 0.0
        %1973 = vmatpush1.msra.mxu0 %v1894
        %1974 = vmatprep.subr.mxu0 0.0
        %1975 = vmatpush1.msra.mxu0 %v1895
        %1976 = vmatprep.subr.mxu0 0.0
        %1977 = vmatpush1.msra.mxu0 %v1896
        %1978 = vmatprep.subr.mxu0 0.0
        %1979 = vmatpush1.msra.mxu0 %v1897
        %1980 = vmatprep.subr.mxu0 0.0
        %1981 = vmatpush1.msra.mxu0 0.0
        %1982 = vmatprep.subr.mxu0 0.0
        %1983 = vmatpush1.msra.mxu0 0.0
        %1984 = vmatprep.subr.mxu0 0.0
        %1985 = vmatpush1.msra.mxu0 0.0
        %1986 = vmatprep.subr.mxu0 0.0
        %1987 = vmatpush1.msra.mxu0 0.0
        %1988 = vmatprep.subr.mxu0 0.0
        %1989 = vmatpush1.msra.mxu0 0.0
        %1990 = vmatprep.subr.mxu0 0.0
        %1991 = vmatpush1.msra.mxu0 0.0
        %1992 = vmatprep.subr.mxu0 0.0
        %1993 = vmatpush1.msra.mxu0 0.0
        %1994 = vmatprep.subr.mxu0 0.0
        %1995 = vmatpush1.msra.mxu0 0.0
        %1996 = vmatprep.subr.mxu0 0.0
        %1997 = vmatpush1.msra.mxu0 0.0
        %1998 = vmatprep.subr.mxu0 0.0
        %1999 = vmatpush1.msra.mxu0 0.0
        %2000 = vmatprep.subr.mxu0 0.0
        %2001 = vmatpush1.msra.mxu0 0.0
        %2002 = vmatprep.subr.mxu0 0.0
        %2003 = vmatpush1.msra.mxu0 0.0
        %2004 = vmatprep.subr.mxu0 0.0
        %2005 = vmatpush1.msra.mxu0 0.0
        %2006 = vmatprep.subr.mxu0 0.0
        %2007 = vmatpush1.msra.mxu0 0.0
        %2008 = vmatprep.subr.mxu0 0.0
        %2009 = vmatpush1.msra.mxu0 0.0
        %2010 = vmatprep.subr.mxu0 0.0
        %2011 = vmatpush1.msra.mxu0 0.0
        %2012 = vmatprep.subr.mxu0 0.0
        %2013 = vmatpush1.msra.mxu0 0.0
        %2014 = vmatprep.subr.mxu0 0.0
        %2015 = vmatpush1.msra.mxu0 0.0
        %2016 = vmatprep.subr.mxu0 0.0
        %2017 = vmatpush1.msra.mxu0 0.0
        %2018 = vmatprep.subr.mxu0 0.0
        %2019 = vmatpush1.msra.mxu0 0.0
        %2020 = vmatprep.subr.mxu0 0.0
        %2021 = vmatpush1.msra.mxu0 0.0
        %2022 = vmatprep.subr.mxu0 0.0
        %2023 = vmatpush1.msra.mxu0 0.0
        %2024 = vmatprep.subr.mxu0 0.0
        %2025 = vmatpush1.msra.mxu0 0.0
        %2026 = vmatprep.subr.mxu0 0.0
        %2027 = vmatpush1.msra.mxu0 0.0
        %2028 = vmatprep.subr.mxu0 0.0
        %2029 = vmatpush1.msra.mxu0 0.0
        %2030 = vmatprep.subr.mxu0 0.0
        %2031 = vmatpush1.msra.mxu0 0.0
        %2032 = vmatprep.subr.mxu0 0.0
        %2033 = vmatpush1.msra.mxu0 0.0
        %2034 = vmatprep.subr.mxu0 0.0
        %2035 = vmatpush1.msra.mxu0 0.0
        %2036 = vmatprep.mubr.f32.mxu0 0.0
        %2037 = vmatmul.mubr.f32.gmra.mrb[0].mxu0 %v1968
        %v2038 = vpop.f32.mrb[0].mxu0
        %v2039 = vadd.f32 %v1915, %v2038
        %v2040 = vpop.f32.mrb[0].mxu0
        %2041 = vmatprep.mubr.f32.mxu0 0.0
        %2042 = vmatmul.mubr.f32.gmra.mrb[0].mxu0 %v1970
        %v2043 = vpop.f32.mrb[0].mxu0
        %v2044 = vadd.f32 %v1915, %v2043
        %v2045 = vpop.f32.mrb[0].mxu0
        %2046 = vdwg.mxu0
        %v2047 = vld [vmem:[%s7] sm:$0x1]
        %v2049 = vlaneseq
        %v2050 = vshrl.u32 %v2049, 7
        %v2051 = vsub.s32 0, %v2050
        %v2052 = vrot.slane %v2047, %v2051
        %vm2054 = vcmask 523264
        %v2056 = vsel %vm2054, %v2039, 0
        %v2059 = vsel %vm2054, %v2044, 0
        %2061 = vmatprep.subr.mxu0 0.0
        %2062 = vmatpush1.msra.mxu0 %v1898
        %2063 = vmatprep.subr.mxu0 0.0
        %2064 = vmatpush1.msra.mxu0 %v1899
        %2065 = vmatprep.subr.mxu0 0.0
        %2066 = vmatpush1.msra.mxu0 %v1900
        %2067 = vmatprep.subr.mxu0 0.0
        %2068 = vmatpush1.msra.mxu0 %v1901
        %2069 = vmatprep.subr.mxu0 0.0
        %2070 = vmatpush1.msra.mxu0 %v1902
        %2071 = vmatprep.subr.mxu0 0.0
        %2072 = vmatpush1.msra.mxu0 %v1903
        %2073 = vmatprep.subr.mxu0 0.0
        %2074 = vmatpush1.msra.mxu0 %v1904
        %2075 = vmatprep.subr.mxu0 0.0
        %2076 = vmatpush1.msra.mxu0 %v1905
        %2077 = vmatprep.subr.mxu0 0.0
        %2078 = vmatpush1.msra.mxu0 0.0
        %2079 = vmatprep.subr.mxu0 0.0
        %2080 = vmatpush1.msra.mxu0 0.0
        %2081 = vmatprep.subr.mxu0 0.0
        %2082 = vmatpush1.msra.mxu0 0.0
        %2083 = vmatprep.subr.mxu0 0.0
        %2084 = vmatpush1.msra.mxu0 0.0
        %2085 = vmatprep.subr.mxu0 0.0
        %2086 = vmatpush1.msra.mxu0 0.0
        %2087 = vmatprep.subr.mxu0 0.0
        %2088 = vmatpush1.msra.mxu0 0.0
        %2089 = vmatprep.subr.mxu0 0.0
        %2090 = vmatpush1.msra.mxu0 0.0
        %2091 = vmatprep.subr.mxu0 0.0
        %2092 = vmatpush1.msra.mxu0 0.0
        %2093 = vmatprep.subr.mxu0 0.0
        %2094 = vmatpush1.msra.mxu0 0.0
        %2095 = vmatprep.subr.mxu0 0.0
        %2096 = vmatpush1.msra.mxu0 0.0
        %2097 = vmatprep.subr.mxu0 0.0
        %2098 = vmatpush1.msra.mxu0 0.0
        %2099 = vmatprep.subr.mxu0 0.0
        %2100 = vmatpush1.msra.mxu0 0.0
        %2101 = vmatprep.subr.mxu0 0.0
        %2102 = vmatpush1.msra.mxu0 0.0
        %2103 = vmatprep.subr.mxu0 0.0
        %2104 = vmatpush1.msra.mxu0 0.0
        %2105 = vmatprep.subr.mxu0 0.0
        %2106 = vmatpush1.msra.mxu0 0.0
        %2107 = vmatprep.subr.mxu0 0.0
        %2108 = vmatpush1.msra.mxu0 0.0
        %2109 = vmatprep.subr.mxu0 0.0
        %2110 = vmatpush1.msra.mxu0 0.0
        %2111 = vmatprep.subr.mxu0 0.0
        %2112 = vmatpush1.msra.mxu0 0.0
        %2113 = vmatprep.subr.mxu0 0.0
        %2114 = vmatpush1.msra.mxu0 0.0
        %2115 = vmatprep.subr.mxu0 0.0
        %2116 = vmatpush1.msra.mxu0 0.0
        %2117 = vmatprep.subr.mxu0 0.0
        %2118 = vmatpush1.msra.mxu0 0.0
        %2119 = vmatprep.subr.mxu0 0.0
        %2120 = vmatpush1.msra.mxu0 0.0
        %2121 = vmatprep.subr.mxu0 0.0
        %2122 = vmatpush1.msra.mxu0 0.0
        %2123 = vmatprep.subr.mxu0 0.0
        %2124 = vmatpush1.msra.mxu0 0.0
        %2125 = vmatprep.mubr.f32.mxu0 0.0
        %2126 = vmatmul.mubr.f32.gmra.mrb[0].mxu0 %v2056
        %v2127 = vpop.f32.mrb[0].mxu0
        %v2128 = vadd.f32 %v2052, %v2127
        %v2129 = vpop.f32.mrb[0].mxu0
        %2130 = vmatprep.mubr.f32.mxu0 0.0
        %2131 = vmatmul.mubr.f32.gmra.mrb[0].mxu0 %v2059
        %v2132 = vpop.f32.mrb[0].mxu0
        %v2133 = vadd.f32 %v2052, %v2132
        %v2134 = vpop.f32.mrb[0].mxu0
        %2135 = vdwg.mxu0
        %v2136 = vld [vmem:[%s9] sm:$0x1]
        %v2138 = vlaneseq
        %v2139 = vshrl.u32 %v2138, 7
        %v2140 = vsub.s32 0, %v2139
        %v2141 = vrot.slane %v2136, %v2140
        %v2144 = vsel %vm807, %v2128, 0
        %v2147 = vsel %vm807, %v2133, 0
        %2149 = vmatprep.subr.mxu0 0.0
        %2150 = vmatpush1.msra.mxu0 %v1906
        %2151 = vmatprep.subr.mxu0 0.0
        %2152 = vmatpush1.msra.mxu0 %v1907
        %2153 = vmatprep.subr.mxu0 0.0
        %2154 = vmatpush1.msra.mxu0 %v1908
        %2155 = vmatprep.subr.mxu0 0.0
        %2156 = vmatpush1.msra.mxu0 %v1909
        %2157 = vmatprep.subr.mxu0 0.0
        %2158 = vmatpush1.msra.mxu0 0.0
        %2159 = vmatprep.subr.mxu0 0.0
        %2160 = vmatpush1.msra.mxu0 0.0
        %2161 = vmatprep.subr.mxu0 0.0
        %2162 = vmatpush1.msra.mxu0 0.0
        %2163 = vmatprep.subr.mxu0 0.0
        %2164 = vmatpush1.msra.mxu0 0.0
        %2165 = vmatprep.subr.mxu0 0.0
        %2166 = vmatpush1.msra.mxu0 0.0
        %2167 = vmatprep.subr.mxu0 0.0
        %2168 = vmatpush1.msra.mxu0 0.0
        %2169 = vmatprep.subr.mxu0 0.0
        %2170 = vmatpush1.msra.mxu0 0.0
        %2171 = vmatprep.subr.mxu0 0.0
        %2172 = vmatpush1.msra.mxu0 0.0
        %2173 = vmatprep.subr.mxu0 0.0
        %2174 = vmatpush1.msra.mxu0 0.0
        %2175 = vmatprep.subr.mxu0 0.0
        %2176 = vmatpush1.msra.mxu0 0.0
        %2177 = vmatprep.subr.mxu0 0.0
        %2178 = vmatpush1.msra.mxu0 0.0
        %2179 = vmatprep.subr.mxu0 0.0
        %2180 = vmatpush1.msra.mxu0 0.0
        %2181 = vmatprep.subr.mxu0 0.0
        %2182 = vmatpush1.msra.mxu0 0.0
        %2183 = vmatprep.subr.mxu0 0.0
        %2184 = vmatpush1.msra.mxu0 0.0
        %2185 = vmatprep.subr.mxu0 0.0
        %2186 = vmatpush1.msra.mxu0 0.0
        %2187 = vmatprep.subr.mxu0 0.0
        %2188 = vmatpush1.msra.mxu0 0.0
        %2189 = vmatprep.subr.mxu0 0.0
        %2190 = vmatpush1.msra.mxu0 0.0
        %2191 = vmatprep.subr.mxu0 0.0
        %2192 = vmatpush1.msra.mxu0 0.0
        %2193 = vmatprep.subr.mxu0 0.0
        %2194 = vmatpush1.msra.mxu0 0.0
        %2195 = vmatprep.subr.mxu0 0.0
        %2196 = vmatpush1.msra.mxu0 0.0
        %2197 = vmatprep.subr.mxu0 0.0
        %2198 = vmatpush1.msra.mxu0 0.0
        %2199 = vmatprep.subr.mxu0 0.0
        %2200 = vmatpush1.msra.mxu0 0.0
        %2201 = vmatprep.subr.mxu0 0.0
        %2202 = vmatpush1.msra.mxu0 0.0
        %2203 = vmatprep.subr.mxu0 0.0
        %2204 = vmatpush1.msra.mxu0 0.0
        %2205 = vmatprep.subr.mxu0 0.0
        %2206 = vmatpush1.msra.mxu0 0.0
        %2207 = vmatprep.subr.mxu0 0.0
        %2208 = vmatpush1.msra.mxu0 0.0
        %2209 = vmatprep.subr.mxu0 0.0
        %2210 = vmatpush1.msra.mxu0 0.0
        %2211 = vmatprep.subr.mxu0 0.0
        %2212 = vmatpush1.msra.mxu0 0.0
        %2213 = vmatprep.mubr.f32.mxu0 0.0
        %2214 = vmatmul.mubr.f32.gmra.mrb[0].mxu0 %v2144
        %v2215 = vpop.f32.mrb[0].mxu0
        %v2216 = vadd.f32 %v2141, %v2215
        %v2217 = vpop.f32.mrb[0].mxu0
        %2218 = vmatprep.mubr.f32.mxu0 0.0
        %2219 = vmatmul.mubr.f32.gmra.mrb[0].mxu0 %v2147
        %v2220 = vpop.f32.mrb[0].mxu0
        %v2221 = vadd.f32 %v2141, %v2220
        %v2222 = vpop.f32.mrb[0].mxu0
        %2223 = vdwg.mxu0
        %v2224 = vadd.f32 %v2039, %v2216
        %v2225 = vadd.f32 %v2044, %v2221
        %vm2226 = vcmp.ge.f32.partialorder %v2224, 0.0
        %vm2227 = vcmp.ge.f32.partialorder %v2225, 0.0
        %v2228 = vmul.f32 %v2224, 0.2
        %v2229 = vmul.f32 %v2225, 0.2
        %v2230 = vsel %vm2226, %v2224, %v2228
        %v2231 = vsel %vm2227, %v2225, %v2229
        %v2232 = vld [vmem:[%s10] sm:$0xff]
        %v2233 = vld [vmem:[%s10 + $0x8] sm:$0xff]
        %v2234 = vld [vmem:[%s10 + $0x10] sm:$0xff]
        %v2235 = vld [vmem:[%s10 + $0x18] sm:$0xff]
        %v2236 = vld [vmem:[%s10 + $0x20] sm:$0xff]
        %v2237 = vld [vmem:[%s10 + $0x28] sm:$0xff]
        %v2238 = vld [vmem:[%s10 + $0x30] sm:$0xff]
        %v2239 = vld [vmem:[%s10 + $0x38] sm:$0xff]
        %v2240 = vld [vmem:[%s12] sm:$0xff]
        %v2241 = vld [vmem:[%s12 + $0x8] sm:$0xff]
        %v2242 = vld [vmem:[%s12 + $0x10] sm:$0xff]
        %v2243 = vld [vmem:[%s12 + $0x18] sm:$0xff]
        %v2244 = vld [vmem:[%s14] sm:$0xff]
        %v2245 = vld [vmem:[%s14 + $0x8] sm:$0xff]
        %v2246 = vld [vmem:[%s11] sm:$0x1]
        %v2248 = vlaneseq
        %v2249 = vshrl.u32 %v2248, 7
        %v2250 = vsub.s32 0, %v2249
        %v2251 = vrot.slane %v2246, %v2250
        %v2254 = vsel %vm2054, %v2230, 0
        %v2257 = vsel %vm2054, %v2231, 0
        %2259 = vmatprep.subr.mxu0 0.0
        %2260 = vmatpush1.msra.mxu0 %v2232
        %2261 = vmatprep.subr.mxu0 0.0
        %2262 = vmatpush1.msra.mxu0 %v2233
        %2263 = vmatprep.subr.mxu0 0.0
        %2264 = vmatpush1.msra.mxu0 %v2234
        %2265 = vmatprep.subr.mxu0 0.0
        %2266 = vmatpush1.msra.mxu0 %v2235
        %2267 = vmatprep.subr.mxu0 0.0
        %2268 = vmatpush1.msra.mxu0 %v2236
        %2269 = vmatprep.subr.mxu0 0.0
        %2270 = vmatpush1.msra.mxu0 %v2237
        %2271 = vmatprep.subr.mxu0 0.0
        %2272 = vmatpush1.msra.mxu0 %v2238
        %2273 = vmatprep.subr.mxu0 0.0
        %2274 = vmatpush1.msra.mxu0 %v2239
        %2275 = vmatprep.subr.mxu0 0.0
        %2276 = vmatpush1.msra.mxu0 0.0
        %2277 = vmatprep.subr.mxu0 0.0
        %2278 = vmatpush1.msra.mxu0 0.0
        %2279 = vmatprep.subr.mxu0 0.0
        %2280 = vmatpush1.msra.mxu0 0.0
        %2281 = vmatprep.subr.mxu0 0.0
        %2282 = vmatpush1.msra.mxu0 0.0
        %2283 = vmatprep.subr.mxu0 0.0
        %2284 = vmatpush1.msra.mxu0 0.0
        %2285 = vmatprep.subr.mxu0 0.0
        %2286 = vmatpush1.msra.mxu0 0.0
        %2287 = vmatprep.subr.mxu0 0.0
        %2288 = vmatpush1.msra.mxu0 0.0
        %2289 = vmatprep.subr.mxu0 0.0
        %2290 = vmatpush1.msra.mxu0 0.0
        %2291 = vmatprep.subr.mxu0 0.0
        %2292 = vmatpush1.msra.mxu0 0.0
        %2293 = vmatprep.subr.mxu0 0.0
        %2294 = vmatpush1.msra.mxu0 0.0
        %2295 = vmatprep.subr.mxu0 0.0
        %2296 = vmatpush1.msra.mxu0 0.0
        %2297 = vmatprep.subr.mxu0 0.0
        %2298 = vmatpush1.msra.mxu0 0.0
        %2299 = vmatprep.subr.mxu0 0.0
        %2300 = vmatpush1.msra.mxu0 0.0
        %2301 = vmatprep.subr.mxu0 0.0
        %2302 = vmatpush1.msra.mxu0 0.0
        %2303 = vmatprep.subr.mxu0 0.0
        %2304 = vmatpush1.msra.mxu0 0.0
        %2305 = vmatprep.subr.mxu0 0.0
        %2306 = vmatpush1.msra.mxu0 0.0
        %2307 = vmatprep.subr.mxu0 0.0
        %2308 = vmatpush1.msra.mxu0 0.0
        %2309 = vmatprep.subr.mxu0 0.0
        %2310 = vmatpush1.msra.mxu0 0.0
        %2311 = vmatprep.subr.mxu0 0.0
        %2312 = vmatpush1.msra.mxu0 0.0
        %2313 = vmatprep.subr.mxu0 0.0
        %2314 = vmatpush1.msra.mxu0 0.0
        %2315 = vmatprep.subr.mxu0 0.0
        %2316 = vmatpush1.msra.mxu0 0.0
        %2317 = vmatprep.subr.mxu0 0.0
        %2318 = vmatpush1.msra.mxu0 0.0
        %2319 = vmatprep.subr.mxu0 0.0
        %2320 = vmatpush1.msra.mxu0 0.0
        %2321 = vmatprep.subr.mxu0 0.0
        %2322 = vmatpush1.msra.mxu0 0.0
        %2323 = vmatprep.mubr.f32.mxu0 0.0
        %2324 = vmatmul.mubr.f32.gmra.mrb[0].mxu0 %v2254
        %v2325 = vpop.f32.mrb[0].mxu0
        %v2326 = vadd.f32 %v2251, %v2325
        %v2327 = vpop.f32.mrb[0].mxu0
        %2328 = vmatprep.mubr.f32.mxu0 0.0
        %2329 = vmatmul.mubr.f32.gmra.mrb[0].mxu0 %v2257
        %v2330 = vpop.f32.mrb[0].mxu0
        %v2331 = vadd.f32 %v2251, %v2330
        %v2332 = vpop.f32.mrb[0].mxu0
        %2333 = vdwg.mxu0
        %v2334 = vld [vmem:[%s13] sm:$0x1]
        %v2336 = vlaneseq
        %v2337 = vshrl.u32 %v2336, 7
        %v2338 = vsub.s32 0, %v2337
        %v2339 = vrot.slane %v2334, %v2338
        %v2342 = vsel %vm807, %v2326, 0
        %v2345 = vsel %vm807, %v2331, 0
        %2347 = vmatprep.subr.mxu0 0.0
        %2348 = vmatpush1.msra.mxu0 %v2240
        %2349 = vmatprep.subr.mxu0 0.0
        %2350 = vmatpush1.msra.mxu0 %v2241
        %2351 = vmatprep.subr.mxu0 0.0
        %2352 = vmatpush1.msra.mxu0 %v2242
        %2353 = vmatprep.subr.mxu0 0.0
        %2354 = vmatpush1.msra.mxu0 %v2243
        %2355 = vmatprep.subr.mxu0 0.0
        %2356 = vmatpush1.msra.mxu0 0.0
        %2357 = vmatprep.subr.mxu0 0.0
        %2358 = vmatpush1.msra.mxu0 0.0
        %2359 = vmatprep.subr.mxu0 0.0
        %2360 = vmatpush1.msra.mxu0 0.0
        %2361 = vmatprep.subr.mxu0 0.0
        %2362 = vmatpush1.msra.mxu0 0.0
        %2363 = vmatprep.subr.mxu0 0.0
        %2364 = vmatpush1.msra.mxu0 0.0
        %2365 = vmatprep.subr.mxu0 0.0
        %2366 = vmatpush1.msra.mxu0 0.0
        %2367 = vmatprep.subr.mxu0 0.0
        %2368 = vmatpush1.msra.mxu0 0.0
        %2369 = vmatprep.subr.mxu0 0.0
        %2370 = vmatpush1.msra.mxu0 0.0
        %2371 = vmatprep.subr.mxu0 0.0
        %2372 = vmatpush1.msra.mxu0 0.0
        %2373 = vmatprep.subr.mxu0 0.0
        %2374 = vmatpush1.msra.mxu0 0.0
        %2375 = vmatprep.subr.mxu0 0.0
        %2376 = vmatpush1.msra.mxu0 0.0
        %2377 = vmatprep.subr.mxu0 0.0
        %2378 = vmatpush1.msra.mxu0 0.0
        %2379 = vmatprep.subr.mxu0 0.0
        %2380 = vmatpush1.msra.mxu0 0.0
        %2381 = vmatprep.subr.mxu0 0.0
        %2382 = vmatpush1.msra.mxu0 0.0
        %2383 = vmatprep.subr.mxu0 0.0
        %2384 = vmatpush1.msra.mxu0 0.0
        %2385 = vmatprep.subr.mxu0 0.0
        %2386 = vmatpush1.msra.mxu0 0.0
        %2387 = vmatprep.subr.mxu0 0.0
        %2388 = vmatpush1.msra.mxu0 0.0
        %2389 = vmatprep.subr.mxu0 0.0
        %2390 = vmatpush1.msra.mxu0 0.0
        %2391 = vmatprep.subr.mxu0 0.0
        %2392 = vmatpush1.msra.mxu0 0.0
        %2393 = vmatprep.subr.mxu0 0.0
        %2394 = vmatpush1.msra.mxu0 0.0
        %2395 = vmatprep.subr.mxu0 0.0
        %2396 = vmatpush1.msra.mxu0 0.0
        %2397 = vmatprep.subr.mxu0 0.0
        %2398 = vmatpush1.msra.mxu0 0.0
        %2399 = vmatprep.subr.mxu0 0.0
        %2400 = vmatpush1.msra.mxu0 0.0
        %2401 = vmatprep.subr.mxu0 0.0
        %2402 = vmatpush1.msra.mxu0 0.0
        %2403 = vmatprep.subr.mxu0 0.0
        %2404 = vmatpush1.msra.mxu0 0.0
        %2405 = vmatprep.subr.mxu0 0.0
        %2406 = vmatpush1.msra.mxu0 0.0
        %2407 = vmatprep.subr.mxu0 0.0
        %2408 = vmatpush1.msra.mxu0 0.0
        %2409 = vmatprep.subr.mxu0 0.0
        %2410 = vmatpush1.msra.mxu0 0.0
        %2411 = vmatprep.mubr.f32.mxu0 0.0
        %2412 = vmatmul.mubr.f32.gmra.mrb[0].mxu0 %v2342
        %v2413 = vpop.f32.mrb[0].mxu0
        %v2414 = vadd.f32 %v2339, %v2413
        %v2415 = vpop.f32.mrb[0].mxu0
        %2416 = vmatprep.mubr.f32.mxu0 0.0
        %2417 = vmatmul.mubr.f32.gmra.mrb[0].mxu0 %v2345
        %v2418 = vpop.f32.mrb[0].mxu0
        %v2419 = vadd.f32 %v2339, %v2418
        %v2420 = vpop.f32.mrb[0].mxu0
        %2421 = vdwg.mxu0
        %v2422 = vld [vmem:[%s15] sm:$0x1]
        %v2424 = vlaneseq
        %v2425 = vshrl.u32 %v2424, 7
        %v2426 = vsub.s32 0, %v2425
        %v2427 = vrot.slane %v2422, %v2426
        %vm2429 = vcmask 130048
        %v2431 = vsel %vm2429, %v2414, 0
        %v2434 = vsel %vm2429, %v2419, 0
        %2436 = vmatprep.subr.mxu0 0.0
        %2437 = vmatpush1.msra.mxu0 %v2244
        %2438 = vmatprep.subr.mxu0 0.0
        %2439 = vmatpush1.msra.mxu0 %v2245
        %2440 = vmatprep.subr.mxu0 0.0
        %2441 = vmatpush1.msra.mxu0 0.0
        %2442 = vmatprep.subr.mxu0 0.0
        %2443 = vmatpush1.msra.mxu0 0.0
        %2444 = vmatprep.subr.mxu0 0.0
        %2445 = vmatpush1.msra.mxu0 0.0
        %2446 = vmatprep.subr.mxu0 0.0
        %2447 = vmatpush1.msra.mxu0 0.0
        %2448 = vmatprep.subr.mxu0 0.0
        %2449 = vmatpush1.msra.mxu0 0.0
        %2450 = vmatprep.subr.mxu0 0.0
        %2451 = vmatpush1.msra.mxu0 0.0
        %2452 = vmatprep.subr.mxu0 0.0
        %2453 = vmatpush1.msra.mxu0 0.0
        %2454 = vmatprep.subr.mxu0 0.0
        %2455 = vmatpush1.msra.mxu0 0.0
        %2456 = vmatprep.subr.mxu0 0.0
        %2457 = vmatpush1.msra.mxu0 0.0
        %2458 = vmatprep.subr.mxu0 0.0
        %2459 = vmatpush1.msra.mxu0 0.0
        %2460 = vmatprep.subr.mxu0 0.0
        %2461 = vmatpush1.msra.mxu0 0.0
        %2462 = vmatprep.subr.mxu0 0.0
        %2463 = vmatpush1.msra.mxu0 0.0
        %2464 = vmatprep.subr.mxu0 0.0
        %2465 = vmatpush1.msra.mxu0 0.0
        %2466 = vmatprep.subr.mxu0 0.0
        %2467 = vmatpush1.msra.mxu0 0.0
        %2468 = vmatprep.subr.mxu0 0.0
        %2469 = vmatpush1.msra.mxu0 0.0
        %2470 = vmatprep.subr.mxu0 0.0
        %2471 = vmatpush1.msra.mxu0 0.0
        %2472 = vmatprep.subr.mxu0 0.0
        %2473 = vmatpush1.msra.mxu0 0.0
        %2474 = vmatprep.subr.mxu0 0.0
        %2475 = vmatpush1.msra.mxu0 0.0
        %2476 = vmatprep.subr.mxu0 0.0
        %2477 = vmatpush1.msra.mxu0 0.0
        %2478 = vmatprep.subr.mxu0 0.0
        %2479 = vmatpush1.msra.mxu0 0.0
        %2480 = vmatprep.subr.mxu0 0.0
        %2481 = vmatpush1.msra.mxu0 0.0
        %2482 = vmatprep.subr.mxu0 0.0
        %2483 = vmatpush1.msra.mxu0 0.0
        %2484 = vmatprep.subr.mxu0 0.0
        %2485 = vmatpush1.msra.mxu0 0.0
        %2486 = vmatprep.subr.mxu0 0.0
        %2487 = vmatpush1.msra.mxu0 0.0
        %2488 = vmatprep.subr.mxu0 0.0
        %2489 = vmatpush1.msra.mxu0 0.0
        %2490 = vmatprep.subr.mxu0 0.0
        %2491 = vmatpush1.msra.mxu0 0.0
        %2492 = vmatprep.subr.mxu0 0.0
        %2493 = vmatpush1.msra.mxu0 0.0
        %2494 = vmatprep.subr.mxu0 0.0
        %2495 = vmatpush1.msra.mxu0 0.0
        %2496 = vmatprep.subr.mxu0 0.0
        %2497 = vmatpush1.msra.mxu0 0.0
        %2498 = vmatprep.subr.mxu0 0.0
        %2499 = vmatpush1.msra.mxu0 0.0
        %2500 = vmatprep.mubr.f32.mxu0 0.0
        %2501 = vmatmul.mubr.f32.gmra.mrb[0].mxu0 %v2431
        %v2502 = vpop.f32.mrb[0].mxu0
        %v2503 = vadd.f32 %v2427, %v2502
        %v2504 = vpop.f32.mrb[0].mxu0
        %2505 = vmatprep.mubr.f32.mxu0 0.0
        %2506 = vmatmul.mubr.f32.gmra.mrb[0].mxu0 %v2434
        %v2507 = vpop.f32.mrb[0].mxu0
        %v2508 = vadd.f32 %v2427, %v2507
        %v2509 = vpop.f32.mrb[0].mxu0
        %2510 = vdwg.mxu0
        %v2511 = vadd.f32 %v2326, %v2503
        %v2512 = vadd.f32 %v2331, %v2508
        %vm2513 = vcmp.ge.f32.partialorder %v2511, 0.0
        %vm2514 = vcmp.ge.f32.partialorder %v2512, 0.0
        %v2515 = vmul.f32 %v2511, 0.2
        %v2516 = vmul.f32 %v2512, 0.2
        %v2517 = vsel %vm2513, %v2511, %v2515
        %v2518 = vsel %vm2514, %v2512, %v2516
        %v2519 = vld [vmem:[%s16] sm:$0xff]
        %v2520 = vld [vmem:[%s16 + $0x8] sm:$0xff]
        %v2521 = vld [vmem:[%s16 + $0x10] sm:$0xff]
        %v2522 = vld [vmem:[%s16 + $0x18] sm:$0xff]
        %v2523 = vld [vmem:[%s18] sm:$0xff]
        %v2524 = vld [vmem:[%s18 + $0x8] sm:$0xff]
        %v2525 = vld [vmem:[%s20] sm:$0xff]
        %v2526 = vld [vmem:[%s17] sm:$0x1]
        %v2528 = vlaneseq
        %v2529 = vshrl.u32 %v2528, 7
        %v2530 = vsub.s32 0, %v2529
        %v2531 = vrot.slane %v2526, %v2530
        %v2534 = vsel %vm807, %v2517, 0
        %v2537 = vsel %vm807, %v2518, 0
        %2539 = vmatprep.subr.mxu0 0.0
        %2540 = vmatpush1.msra.mxu0 %v2519
        %2541 = vmatprep.subr.mxu0 0.0
        %2542 = vmatpush1.msra.mxu0 %v2520
        %2543 = vmatprep.subr.mxu0 0.0
        %2544 = vmatpush1.msra.mxu0 %v2521
        %2545 = vmatprep.subr.mxu0 0.0
        %2546 = vmatpush1.msra.mxu0 %v2522
        %2547 = vmatprep.subr.mxu0 0.0
        %2548 = vmatpush1.msra.mxu0 0.0
        %2549 = vmatprep.subr.mxu0 0.0
        %2550 = vmatpush1.msra.mxu0 0.0
        %2551 = vmatprep.subr.mxu0 0.0
        %2552 = vmatpush1.msra.mxu0 0.0
        %2553 = vmatprep.subr.mxu0 0.0
        %2554 = vmatpush1.msra.mxu0 0.0
        %2555 = vmatprep.subr.mxu0 0.0
        %2556 = vmatpush1.msra.mxu0 0.0
        %2557 = vmatprep.subr.mxu0 0.0
        %2558 = vmatpush1.msra.mxu0 0.0
        %2559 = vmatprep.subr.mxu0 0.0
        %2560 = vmatpush1.msra.mxu0 0.0
        %2561 = vmatprep.subr.mxu0 0.0
        %2562 = vmatpush1.msra.mxu0 0.0
        %2563 = vmatprep.subr.mxu0 0.0
        %2564 = vmatpush1.msra.mxu0 0.0
        %2565 = vmatprep.subr.mxu0 0.0
        %2566 = vmatpush1.msra.mxu0 0.0
        %2567 = vmatprep.subr.mxu0 0.0
        %2568 = vmatpush1.msra.mxu0 0.0
        %2569 = vmatprep.subr.mxu0 0.0
        %2570 = vmatpush1.msra.mxu0 0.0
        %2571 = vmatprep.subr.mxu0 0.0
        %2572 = vmatpush1.msra.mxu0 0.0
        %2573 = vmatprep.subr.mxu0 0.0
        %2574 = vmatpush1.msra.mxu0 0.0
        %2575 = vmatprep.subr.mxu0 0.0
        %2576 = vmatpush1.msra.mxu0 0.0
        %2577 = vmatprep.subr.mxu0 0.0
        %2578 = vmatpush1.msra.mxu0 0.0
        %2579 = vmatprep.subr.mxu0 0.0
        %2580 = vmatpush1.msra.mxu0 0.0
        %2581 = vmatprep.subr.mxu0 0.0
        %2582 = vmatpush1.msra.mxu0 0.0
        %2583 = vmatprep.subr.mxu0 0.0
        %2584 = vmatpush1.msra.mxu0 0.0
        %2585 = vmatprep.subr.mxu0 0.0
        %2586 = vmatpush1.msra.mxu0 0.0
        %2587 = vmatprep.subr.mxu0 0.0
        %2588 = vmatpush1.msra.mxu0 0.0
        %2589 = vmatprep.subr.mxu0 0.0
        %2590 = vmatpush1.msra.mxu0 0.0
        %2591 = vmatprep.subr.mxu0 0.0
        %2592 = vmatpush1.msra.mxu0 0.0
        %2593 = vmatprep.subr.mxu0 0.0
        %2594 = vmatpush1.msra.mxu0 0.0
        %2595 = vmatprep.subr.mxu0 0.0
        %2596 = vmatpush1.msra.mxu0 0.0
        %2597 = vmatprep.subr.mxu0 0.0
        %2598 = vmatpush1.msra.mxu0 0.0
        %2599 = vmatprep.subr.mxu0 0.0
        %2600 = vmatpush1.msra.mxu0 0.0
        %2601 = vmatprep.subr.mxu0 0.0
        %2602 = vmatpush1.msra.mxu0 0.0
        %2603 = vmatprep.mubr.f32.mxu0 0.0
        %2604 = vmatmul.mubr.f32.gmra.mrb[0].mxu0 %v2534
        %v2605 = vpop.f32.mrb[0].mxu0
        %v2606 = vadd.f32 %v2531, %v2605
        %v2607 = vpop.f32.mrb[0].mxu0
        %2608 = vmatprep.mubr.f32.mxu0 0.0
        %2609 = vmatmul.mubr.f32.gmra.mrb[0].mxu0 %v2537
        %v2610 = vpop.f32.mrb[0].mxu0
        %v2611 = vadd.f32 %v2531, %v2610
        %v2612 = vpop.f32.mrb[0].mxu0
        %2613 = vdwg.mxu0
        %v2614 = vld [vmem:[%s19] sm:$0x1]
        %v2616 = vlaneseq
        %v2617 = vshrl.u32 %v2616, 7
        %v2618 = vsub.s32 0, %v2617
        %v2619 = vrot.slane %v2614, %v2618
        %v2622 = vsel %vm2429, %v2606, 0
        %v2625 = vsel %vm2429, %v2611, 0
        %2627 = vmatprep.subr.mxu0 0.0
        %2628 = vmatpush1.msra.mxu0 %v2523
        %2629 = vmatprep.subr.mxu0 0.0
        %2630 = vmatpush1.msra.mxu0 %v2524
        %2631 = vmatprep.subr.mxu0 0.0
        %2632 = vmatpush1.msra.mxu0 0.0
        %2633 = vmatprep.subr.mxu0 0.0
        %2634 = vmatpush1.msra.mxu0 0.0
        %2635 = vmatprep.subr.mxu0 0.0
        %2636 = vmatpush1.msra.mxu0 0.0
        %2637 = vmatprep.subr.mxu0 0.0
        %2638 = vmatpush1.msra.mxu0 0.0
        %2639 = vmatprep.subr.mxu0 0.0
        %2640 = vmatpush1.msra.mxu0 0.0
        %2641 = vmatprep.subr.mxu0 0.0
        %2642 = vmatpush1.msra.mxu0 0.0
        %2643 = vmatprep.subr.mxu0 0.0
        %2644 = vmatpush1.msra.mxu0 0.0
        %2645 = vmatprep.subr.mxu0 0.0
        %2646 = vmatpush1.msra.mxu0 0.0
        %2647 = vmatprep.subr.mxu0 0.0
        %2648 = vmatpush1.msra.mxu0 0.0
        %2649 = vmatprep.subr.mxu0 0.0
        %2650 = vmatpush1.msra.mxu0 0.0
        %2651 = vmatprep.subr.mxu0 0.0
        %2652 = vmatpush1.msra.mxu0 0.0
        %2653 = vmatprep.subr.mxu0 0.0
        %2654 = vmatpush1.msra.mxu0 0.0
        %2655 = vmatprep.subr.mxu0 0.0
        %2656 = vmatpush1.msra.mxu0 0.0
        %2657 = vmatprep.subr.mxu0 0.0
        %2658 = vmatpush1.msra.mxu0 0.0
        %2659 = vmatprep.subr.mxu0 0.0
        %2660 = vmatpush1.msra.mxu0 0.0
        %2661 = vmatprep.subr.mxu0 0.0
        %2662 = vmatpush1.msra.mxu0 0.0
        %2663 = vmatprep.subr.mxu0 0.0
        %2664 = vmatpush1.msra.mxu0 0.0
        %2665 = vmatprep.subr.mxu0 0.0
        %2666 = vmatpush1.msra.mxu0 0.0
        %2667 = vmatprep.subr.mxu0 0.0
        %2668 = vmatpush1.msra.mxu0 0.0
        %2669 = vmatprep.subr.mxu0 0.0
        %2670 = vmatpush1.msra.mxu0 0.0
        %2671 = vmatprep.subr.mxu0 0.0
        %2672 = vmatpush1.msra.mxu0 0.0
        %2673 = vmatprep.subr.mxu0 0.0
        %2674 = vmatpush1.msra.mxu0 0.0
        %2675 = vmatprep.subr.mxu0 0.0
        %2676 = vmatpush1.msra.mxu0 0.0
        %2677 = vmatprep.subr.mxu0 0.0
        %2678 = vmatpush1.msra.mxu0 0.0
        %2679 = vmatprep.subr.mxu0 0.0
        %2680 = vmatpush1.msra.mxu0 0.0
        %2681 = vmatprep.subr.mxu0 0.0
        %2682 = vmatpush1.msra.mxu0 0.0
        %2683 = vmatprep.subr.mxu0 0.0
        %2684 = vmatpush1.msra.mxu0 0.0
        %2685 = vmatprep.subr.mxu0 0.0
        %2686 = vmatpush1.msra.mxu0 0.0
        %2687 = vmatprep.subr.mxu0 0.0
        %2688 = vmatpush1.msra.mxu0 0.0
        %2689 = vmatprep.subr.mxu0 0.0
        %2690 = vmatpush1.msra.mxu0 0.0
        %2691 = vmatprep.mubr.f32.mxu0 0.0
        %2692 = vmatmul.mubr.f32.gmra.mrb[0].mxu0 %v2622
        %v2693 = vpop.f32.mrb[0].mxu0
        %v2694 = vadd.f32 %v2619, %v2693
        %v2695 = vpop.f32.mrb[0].mxu0
        %2696 = vmatprep.mubr.f32.mxu0 0.0
        %2697 = vmatmul.mubr.f32.gmra.mrb[0].mxu0 %v2625
        %v2698 = vpop.f32.mrb[0].mxu0
        %v2699 = vadd.f32 %v2619, %v2698
        %v2700 = vpop.f32.mrb[0].mxu0
        %2701 = vdwg.mxu0
        %v2702 = vld [vmem:[%s21] sm:$0x1]
        %v2704 = vlaneseq
        %v2705 = vshrl.u32 %v2704, 7
        %v2706 = vsub.s32 0, %v2705
        %v2707 = vrot.slane %v2702, %v2706
        %vm2709 = vcmask 64512
        %v2711 = vsel %vm2709, %v2694, 0
        %v2714 = vsel %vm2709, %v2699, 0
        %2716 = vmatprep.subr.mxu0 0.0
        %2717 = vmatpush1.msra.mxu0 %v2525
        %2718 = vmatprep.subr.mxu0 0.0
        %2719 = vmatpush1.msra.mxu0 0.0
        %2720 = vmatprep.subr.mxu0 0.0
        %2721 = vmatpush1.msra.mxu0 0.0
        %2722 = vmatprep.subr.mxu0 0.0
        %2723 = vmatpush1.msra.mxu0 0.0
        %2724 = vmatprep.subr.mxu0 0.0
        %2725 = vmatpush1.msra.mxu0 0.0
        %2726 = vmatprep.subr.mxu0 0.0
        %2727 = vmatpush1.msra.mxu0 0.0
        %2728 = vmatprep.subr.mxu0 0.0
        %2729 = vmatpush1.msra.mxu0 0.0
        %2730 = vmatprep.subr.mxu0 0.0
        %2731 = vmatpush1.msra.mxu0 0.0
        %2732 = vmatprep.subr.mxu0 0.0
        %2733 = vmatpush1.msra.mxu0 0.0
        %2734 = vmatprep.subr.mxu0 0.0
        %2735 = vmatpush1.msra.mxu0 0.0
        %2736 = vmatprep.subr.mxu0 0.0
        %2737 = vmatpush1.msra.mxu0 0.0
        %2738 = vmatprep.subr.mxu0 0.0
        %2739 = vmatpush1.msra.mxu0 0.0
        %2740 = vmatprep.subr.mxu0 0.0
        %2741 = vmatpush1.msra.mxu0 0.0
        %2742 = vmatprep.subr.mxu0 0.0
        %2743 = vmatpush1.msra.mxu0 0.0
        %2744 = vmatprep.subr.mxu0 0.0
        %2745 = vmatpush1.msra.mxu0 0.0
        %2746 = vmatprep.subr.mxu0 0.0
        %2747 = vmatpush1.msra.mxu0 0.0
        %2748 = vmatprep.subr.mxu0 0.0
        %2749 = vmatpush1.msra.mxu0 0.0
        %2750 = vmatprep.subr.mxu0 0.0
        %2751 = vmatpush1.msra.mxu0 0.0
        %2752 = vmatprep.subr.mxu0 0.0
        %2753 = vmatpush1.msra.mxu0 0.0
        %2754 = vmatprep.subr.mxu0 0.0
        %2755 = vmatpush1.msra.mxu0 0.0
        %2756 = vmatprep.subr.mxu0 0.0
        %2757 = vmatpush1.msra.mxu0 0.0
        %2758 = vmatprep.subr.mxu0 0.0
        %2759 = vmatpush1.msra.mxu0 0.0
        %2760 = vmatprep.subr.mxu0 0.0
        %2761 = vmatpush1.msra.mxu0 0.0
        %2762 = vmatprep.subr.mxu0 0.0
        %2763 = vmatpush1.msra.mxu0 0.0
        %2764 = vmatprep.subr.mxu0 0.0
        %2765 = vmatpush1.msra.mxu0 0.0
        %2766 = vmatprep.subr.mxu0 0.0
        %2767 = vmatpush1.msra.mxu0 0.0
        %2768 = vmatprep.subr.mxu0 0.0
        %2769 = vmatpush1.msra.mxu0 0.0
        %2770 = vmatprep.subr.mxu0 0.0
        %2771 = vmatpush1.msra.mxu0 0.0
        %2772 = vmatprep.subr.mxu0 0.0
        %2773 = vmatpush1.msra.mxu0 0.0
        %2774 = vmatprep.subr.mxu0 0.0
        %2775 = vmatpush1.msra.mxu0 0.0
        %2776 = vmatprep.subr.mxu0 0.0
        %2777 = vmatpush1.msra.mxu0 0.0
        %2778 = vmatprep.subr.mxu0 0.0
        %2779 = vmatpush1.msra.mxu0 0.0
        %2780 = vmatprep.mubr.f32.mxu0 0.0
        %2781 = vmatmul.mubr.f32.gmra.mrb[0].mxu0 %v2711
        %v2782 = vpop.f32.mrb[0].mxu0
        %v2783 = vadd.f32 %v2707, %v2782
        %v2784 = vpop.f32.mrb[0].mxu0
        %2785 = vmatprep.mubr.f32.mxu0 0.0
        %2786 = vmatmul.mubr.f32.gmra.mrb[0].mxu0 %v2714
        %v2787 = vpop.f32.mrb[0].mxu0
        %v2788 = vadd.f32 %v2707, %v2787
        %v2789 = vpop.f32.mrb[0].mxu0
        %2790 = vdwg.mxu0
        %v2791 = vadd.f32 %v2606, %v2783
        %v2792 = vadd.f32 %v2611, %v2788
        %vm2793 = vcmp.ge.f32.partialorder %v2791, 0.0
        %vm2794 = vcmp.ge.f32.partialorder %v2792, 0.0
        %v2795 = vmul.f32 %v2791, 0.2
        %v2796 = vmul.f32 %v2792, 0.2
        %v2797 = vsel %vm2793, %v2791, %v2795
        %v2798 = vsel %vm2794, %v2792, %v2796
        %v2799 = vld [vmem:[%s22] sm:$0xff]
        %v2800 = vld [vmem:[%s22 + $0x8] sm:$0xff]
        %v2801 = vld [vmem:[%s23] sm:$0x1]
        %v2803 = vlaneseq
        %v2804 = vshrl.u32 %v2803, 7
        %v2805 = vsub.s32 0, %v2804
        %v2806 = vrot.slane %v2801, %v2805
        %v2809 = vsel %vm2429, %v2797, 0
        %v2812 = vsel %vm2429, %v2798, 0
        %2814 = vmatprep.subr.mxu0 0.0
        %2815 = vmatpush1.msra.mxu0 %v2799
        %2816 = vmatprep.subr.mxu0 0.0
        %2817 = vmatpush1.msra.mxu0 %v2800
        %2818 = vmatprep.subr.mxu0 0.0
        %2819 = vmatpush1.msra.mxu0 0.0
        %2820 = vmatprep.subr.mxu0 0.0
        %2821 = vmatpush1.msra.mxu0 0.0
        %2822 = vmatprep.subr.mxu0 0.0
        %2823 = vmatpush1.msra.mxu0 0.0
        %2824 = vmatprep.subr.mxu0 0.0
        %2825 = vmatpush1.msra.mxu0 0.0
        %2826 = vmatprep.subr.mxu0 0.0
        %2827 = vmatpush1.msra.mxu0 0.0
        %2828 = vmatprep.subr.mxu0 0.0
        %2829 = vmatpush1.msra.mxu0 0.0
        %2830 = vmatprep.subr.mxu0 0.0
        %2831 = vmatpush1.msra.mxu0 0.0
        %2832 = vmatprep.subr.mxu0 0.0
        %2833 = vmatpush1.msra.mxu0 0.0
        %2834 = vmatprep.subr.mxu0 0.0
        %2835 = vmatpush1.msra.mxu0 0.0
        %2836 = vmatprep.subr.mxu0 0.0
        %2837 = vmatpush1.msra.mxu0 0.0
        %2838 = vmatprep.subr.mxu0 0.0
        %2839 = vmatpush1.msra.mxu0 0.0
        %2840 = vmatprep.subr.mxu0 0.0
        %2841 = vmatpush1.msra.mxu0 0.0
        %2842 = vmatprep.subr.mxu0 0.0
        %2843 = vmatpush1.msra.mxu0 0.0
        %2844 = vmatprep.subr.mxu0 0.0
        %2845 = vmatpush1.msra.mxu0 0.0
        %2846 = vmatprep.subr.mxu0 0.0
        %2847 = vmatpush1.msra.mxu0 0.0
        %2848 = vmatprep.subr.mxu0 0.0
        %2849 = vmatpush1.msra.mxu0 0.0
        %2850 = vmatprep.subr.mxu0 0.0
        %2851 = vmatpush1.msra.mxu0 0.0
        %2852 = vmatprep.subr.mxu0 0.0
        %2853 = vmatpush1.msra.mxu0 0.0
        %2854 = vmatprep.subr.mxu0 0.0
        %2855 = vmatpush1.msra.mxu0 0.0
        %2856 = vmatprep.subr.mxu0 0.0
        %2857 = vmatpush1.msra.mxu0 0.0
        %2858 = vmatprep.subr.mxu0 0.0
        %2859 = vmatpush1.msra.mxu0 0.0
        %2860 = vmatprep.subr.mxu0 0.0
        %2861 = vmatpush1.msra.mxu0 0.0
        %2862 = vmatprep.subr.mxu0 0.0
        %2863 = vmatpush1.msra.mxu0 0.0
        %2864 = vmatprep.subr.mxu0 0.0
        %2865 = vmatpush1.msra.mxu0 0.0
        %2866 = vmatprep.subr.mxu0 0.0
        %2867 = vmatpush1.msra.mxu0 0.0
        %2868 = vmatprep.subr.mxu0 0.0
        %2869 = vmatpush1.msra.mxu0 0.0
        %2870 = vmatprep.subr.mxu0 0.0
        %2871 = vmatpush1.msra.mxu0 0.0
        %2872 = vmatprep.subr.mxu0 0.0
        %2873 = vmatpush1.msra.mxu0 0.0
        %2874 = vmatprep.subr.mxu0 0.0
        %2875 = vmatpush1.msra.mxu0 0.0
        %2876 = vmatprep.subr.mxu0 0.0
        %2877 = vmatpush1.msra.mxu0 0.0
        %2878 = vmatprep.mubr.f32.mxu0 0.0
        %2879 = vmatmul.mubr.f32.gmra.mrb[0].mxu0 %v2809
        %v2880 = vpop.f32.mrb[0].mxu0
        %v2881 = vadd.f32 %v2806, %v2880
        %v2882 = vpop.f32.mrb[0].mxu0
        %2883 = vmatprep.mubr.f32.mxu0 0.0
        %2884 = vmatmul.mubr.f32.gmra.mrb[0].mxu0 %v2812
        %v2885 = vpop.f32.mrb[0].mxu0
        %v2886 = vadd.f32 %v2806, %v2885
        %v2887 = vpop.f32.mrb[0].mxu0
        %2888 = vdwg.mxu0
        %v2889 = vld [vmem:[%s24] sm:$0xff]
        %v2890 = vld [vmem:[%s25] sm:$0x1]
        %v2892 = vlaneseq
        %v2893 = vshrl.u32 %v2892, 7
        %v2894 = vsub.s32 0, %v2893
        %v2895 = vrot.slane %v2890, %v2894
        %v2898 = vsel %vm2709, %v2881, 0
        %v2901 = vsel %vm2709, %v2886, 0
        %2903 = vmatprep.subr.mxu0 0.0
        %2904 = vmatpush1.msra.mxu0 %v2889
        %2905 = vmatprep.subr.mxu0 0.0
        %2906 = vmatpush1.msra.mxu0 0.0
        %2907 = vmatprep.subr.mxu0 0.0
        %2908 = vmatpush1.msra.mxu0 0.0
        %2909 = vmatprep.subr.mxu0 0.0
        %2910 = vmatpush1.msra.mxu0 0.0
        %2911 = vmatprep.subr.mxu0 0.0
        %2912 = vmatpush1.msra.mxu0 0.0
        %2913 = vmatprep.subr.mxu0 0.0
        %2914 = vmatpush1.msra.mxu0 0.0
        %2915 = vmatprep.subr.mxu0 0.0
        %2916 = vmatpush1.msra.mxu0 0.0
        %2917 = vmatprep.subr.mxu0 0.0
        %2918 = vmatpush1.msra.mxu0 0.0
        %2919 = vmatprep.subr.mxu0 0.0
        %2920 = vmatpush1.msra.mxu0 0.0
        %2921 = vmatprep.subr.mxu0 0.0
        %2922 = vmatpush1.msra.mxu0 0.0
        %2923 = vmatprep.subr.mxu0 0.0
        %2924 = vmatpush1.msra.mxu0 0.0
        %2925 = vmatprep.subr.mxu0 0.0
        %2926 = vmatpush1.msra.mxu0 0.0
        %2927 = vmatprep.subr.mxu0 0.0
        %2928 = vmatpush1.msra.mxu0 0.0
        %2929 = vmatprep.subr.mxu0 0.0
        %2930 = vmatpush1.msra.mxu0 0.0
        %2931 = vmatprep.subr.mxu0 0.0
        %2932 = vmatpush1.msra.mxu0 0.0
        %2933 = vmatprep.subr.mxu0 0.0
        %2934 = vmatpush1.msra.mxu0 0.0
        %2935 = vmatprep.subr.mxu0 0.0
        %2936 = vmatpush1.msra.mxu0 0.0
        %2937 = vmatprep.subr.mxu0 0.0
        %2938 = vmatpush1.msra.mxu0 0.0
        %2939 = vmatprep.subr.mxu0 0.0
        %2940 = vmatpush1.msra.mxu0 0.0
        %2941 = vmatprep.subr.mxu0 0.0
        %2942 = vmatpush1.msra.mxu0 0.0
        %2943 = vmatprep.subr.mxu0 0.0
        %2944 = vmatpush1.msra.mxu0 0.0
        %2945 = vmatprep.subr.mxu0 0.0
        %2946 = vmatpush1.msra.mxu0 0.0
        %2947 = vmatprep.subr.mxu0 0.0
        %2948 = vmatpush1.msra.mxu0 0.0
        %2949 = vmatprep.subr.mxu0 0.0
        %2950 = vmatpush1.msra.mxu0 0.0
        %2951 = vmatprep.subr.mxu0 0.0
        %2952 = vmatpush1.msra.mxu0 0.0
        %2953 = vmatprep.subr.mxu0 0.0
        %2954 = vmatpush1.msra.mxu0 0.0
        %2955 = vmatprep.subr.mxu0 0.0
        %2956 = vmatpush1.msra.mxu0 0.0
        %2957 = vmatprep.subr.mxu0 0.0
        %2958 = vmatpush1.msra.mxu0 0.0
        %2959 = vmatprep.subr.mxu0 0.0
        %2960 = vmatpush1.msra.mxu0 0.0
        %2961 = vmatprep.subr.mxu0 0.0
        %2962 = vmatpush1.msra.mxu0 0.0
        %2963 = vmatprep.subr.mxu0 0.0
        %2964 = vmatpush1.msra.mxu0 0.0
        %2965 = vmatprep.subr.mxu0 0.0
        %2966 = vmatpush1.msra.mxu0 0.0
        %2967 = vmatprep.mubr.f32.mxu0 0.0
        %2968 = vmatmul.mubr.f32.gmra.mrb[0].mxu0 %v2898
        %v2969 = vpop.f32.mrb[0].mxu0
        %v2970 = vadd.f32 %v2895, %v2969
        %v2971 = vpop.f32.mrb[0].mxu0
        %2972 = vmatprep.mubr.f32.mxu0 0.0
        %2973 = vmatmul.mubr.f32.gmra.mrb[0].mxu0 %v2901
        %v2974 = vpop.f32.mrb[0].mxu0
        %v2975 = vadd.f32 %v2895, %v2974
        %v2976 = vpop.f32.mrb[0].mxu0
        %2977 = vdwg.mxu0
        %2978 = vst [vmem:[%s786] sm:$0xff] %v2970
        %2979 = vst [vmem:[%s786 + $0x8] sm:$0xff] %v2975
        %s2980 = sand.u32 %s600, 1
        %s2981 = scalar_lea.sflag [#allocation4], %s2980
        %s2982 = sand.u32 %s600, 1
        %s2983 = smul.addr %s2982, 16
        %s2984 = scalar_lea.vmem [#allocation3], %s2983
        // Predicated region
        $region125: #{tpu_custom_call.1} parent=123 // pred_check
          %p2985 = pneg %p610
        $region126: #{tpu_custom_call.1} parent=123 // pred_check_branch
          %2987 = sbr.rel (%p2985) target = $region128
        $region127: #{tpu_custom_call.1} parent=123 // pred_region
          %s2988 = smul.u32 2, %s41
          %s2990 = ssub.s32 256, 256
          %2991 = vsyncadd %s2981, %s2990
          %s2992 = smul.addr %s2988, 128
          %s2993 = scalar_lea.hbm %s26, %s2992
          %s2994 = sshll.u32 %s2984, 4
          %s2995 = int_to_ptr.vmem [resolvable:$true] %s2994
          %3000 = dma.vmem_to_hbm [thread:$0]  %s2995, 256, %s2993, %s2981, 128, 128, 8
        $region128: #{tpu_custom_call.1} parent=123 // pred_fallthru
          _
      $region124: #{tpu_custom_call.1} parent=5 // pred_fallthru
        _
      %p3001 = scmp.le.s32.totalorder 2, %s36
      // Predicated region
      $region129: #{tpu_custom_call.1} parent=5 // pred_check
        %p3002 = pneg %p3001
      $region130: #{tpu_custom_call.1} parent=5 // pred_check_branch
        %3004 = sbr.rel (%p3002) target = $region132
      $region131: #{tpu_custom_call.1} parent=5 // pred_region
        %s3005 = ssub.s32 %s36, 2
        // Predicated region
        $region133: #{tpu_custom_call.1} parent=131 // pred_check
          %p3006 = pneg %p616
        $region134: #{tpu_custom_call.1} parent=131 // pred_check_branch
          %3008 = sbr.rel (%p3006) target = $region136
        $region135: #{tpu_custom_call.1} parent=131 // pred_region
          %s3009 = sand.u32 %s601, 1
          %s3010 = scalar_lea.sflag [#allocation4], %s3009
          %s3011 = sand.u32 %s601, 1
          %s3012 = smul.addr %s3011, 16
          %s3013 = scalar_lea.vmem [#allocation3], %s3012
          %3014 = dma.done %s3010, 256
        $region136: #{tpu_custom_call.1} parent=131 // pred_fallthru
          _
      $region132: #{tpu_custom_call.1} parent=5 // pred_fallthru
        _
    $region6: #{tpu_custom_call.1} parent=1 // loop_footer
      %s40 = sadd.s32 1, %s36
    $region7: #{tpu_custom_call.1} parent=1 // loop_footer_branch
      %35 = sbr.rel target = $region3
    $region8: #{tpu_custom_call.1} parent=1 // loop_exit
      _
    %3015 = vsyncpa [#allocation4], 1
    %s3016 = scalar_lea.sflag [#allocation4], 1
    %3017 = vsyncpa %s3016, 1

// kernel: tpu_custom_call.1
$region0: #{tpu_custom_call.1}
  #allocation0 [shape = 'u32[]', space=smem, size = 0x4, offset = 0x4, fixed_abs, tag = 'smem constant byte address 0x4 - core index']
  #allocation1 [shape = 'u32[144,128]{1,0:T(1,128)}', space=vmem, size = 0x12000, scoped, tag = 'internal scratch']
  #allocation2 [shape = 'f32[1,1]{1,0:T(1,128)S(6)}', space=smem, size = 0x200, scoped, tag = 'scoped memory for tpu_custom_call.1']
  %s0 = inlined_call_operand.vmem [shape: f32[64,32], index: 0, kind: input, shape index: {}]
  %s1 = inlined_call_operand.vmem [shape: f32[32,48], index: 1, kind: input, shape index: {}]
  %s2 = inlined_call_operand.vmem [shape: f32[1,48], index: 2, kind: input, shape index: {}]
  %s3 = inlined_call_operand.<no memory space> [shape: f32[1,1], index: 3, kind: input, shape index: {}]
  %s4 = inlined_call_operand.vmem [shape: f32[32,64], index: 4, kind: input, shape index: {}]
  %s5 = inlined_call_operand.vmem [shape: f32[1,64], index: 5, kind: input, shape index: {}]
  %s6 = inlined_call_operand.vmem [shape: f32[64,32], index: 6, kind: input, shape index: {}]
  %s7 = inlined_call_operand.vmem [shape: f32[1,32], index: 7, kind: input, shape index: {}]
  %s8 = inlined_call_operand.vmem [shape: f32[32,64], index: 8, kind: input, shape index: {}]
  %s9 = inlined_call_operand.vmem [shape: f32[1,64], index: 9, kind: input, shape index: {}]
  %s10 = inlined_call_operand.vmem [shape: f32[64,32], index: 10, kind: input, shape index: {}]
  %s11 = inlined_call_operand.vmem [shape: f32[1,32], index: 11, kind: input, shape index: {}]
  %s12 = inlined_call_operand.vmem [shape: f32[32,16], index: 12, kind: input, shape index: {}]
  %s13 = inlined_call_operand.vmem [shape: f32[1,16], index: 13, kind: input, shape index: {}]
  %s14 = inlined_call_operand.vmem [shape: f32[16,32], index: 14, kind: input, shape index: {}]
  %s15 = inlined_call_operand.vmem [shape: f32[1,32], index: 15, kind: input, shape index: {}]
  %s16 = inlined_call_operand.vmem [shape: f32[32,16], index: 16, kind: input, shape index: {}]
  %s17 = inlined_call_operand.vmem [shape: f32[1,16], index: 17, kind: input, shape index: {}]
  %s18 = inlined_call_operand.vmem [shape: f32[16,8], index: 18, kind: input, shape index: {}]
  %s19 = inlined_call_operand.vmem [shape: f32[1,8], index: 19, kind: input, shape index: {}]
  %s20 = inlined_call_operand.vmem [shape: f32[8,16], index: 20, kind: input, shape index: {}]
  %s21 = inlined_call_operand.vmem [shape: f32[1,16], index: 21, kind: input, shape index: {}]
  %s22 = inlined_call_operand.vmem [shape: f32[16,8], index: 22, kind: input, shape index: {}]
  %s23 = inlined_call_operand.vmem [shape: f32[1,8], index: 23, kind: input, shape index: {}]
  %s24 = inlined_call_operand.vmem [shape: f32[8,128], index: 24, kind: input, shape index: {}]
  %s25 = inlined_call_operand.vmem [shape: f32[1,128], index: 25, kind: input, shape index: {}]
  %s26 = inlined_call_operand.hbm [shape: f32[64,128], index: 26, kind: output, shape index: {}]
  %s27 = sld [smem:[#allocation0]]
  $region137: #{tpu_custom_call.1} parent=0
    _
  %s29 = ssub.s32 1, %s27
  %s30 = scalar_select 0, %s29, %s27
  %31 = sst [smem:[#allocation2]] %s3
  $region1: #{tpu_custom_call.1} parent=0
    #allocation3 [shape = 'u8[16384]{0}', space=vmem, size = 0x4000, scoped, tag = 'output window, operand 0']
    #allocation4 [shape = 's32[2]{0}', space=sflag, size = 0x8, scoped, tag = 'scoped memory for tpu_custom_call.1']
    %32 = vsyncpa [#allocation4], 0
    %s33 = scalar_lea.sflag [#allocation4], 1
    %34 = vsyncpa %s33, 0
    loop: start=0, step=1, limit=6
    $region2: #{tpu_custom_call.1} parent=1 // loop_pre_header
      _
    $region3: #{tpu_custom_call.1} parent=1 // loop_header
      %s36 = sphi 0, %s40
      %p37 = scmp.ge.s32.totalorder %s36, 6
      %s46 = sphi 0, %s48
      %s49 = sphi 0, %s46
      %s50 = sphi 0, %s49
      %s66 = sphi 0, %s50
      %s70 = sphi 0, %s70
      %s72 = sphi 0, %s70
      %s73 = sphi 0, %s72
      %s87 = sphi 0, %s73
      %s91 = sphi 0, %s91
      %s93 = sphi 0, %s91
      %s94 = sphi 0, %s93
      %s108 = sphi 0, %s94
      %s112 = sphi 0, %s112
      %s114 = sphi 0, %s112
      %s115 = sphi 0, %s114
      %s129 = sphi 0, %s115
      %s133 = sphi 0, %s133
      %s135 = sphi 0, %s133
      %s136 = sphi 0, %s135
      %s150 = sphi 0, %s136
      %s154 = sphi 0, %s154
      %s156 = sphi 0, %s154
      %s157 = sphi 0, %s156
      %s171 = sphi 0, %s157
      %s175 = sphi 0, %s175
      %s177 = sphi 0, %s175
      %s178 = sphi 0, %s177
      %s192 = sphi 0, %s178
      %s196 = sphi 0, %s196
      %s198 = sphi 0, %s196
      %s199 = sphi 0, %s198
      %s213 = sphi 0, %s199
      %s217 = sphi 0, %s217
      %s219 = sphi 0, %s217
      %s220 = sphi 0, %s219
      %s234 = sphi 0, %s220
      %s238 = sphi 0, %s238
      %s240 = sphi 0, %s238
      %s241 = sphi 0, %s240
      %s255 = sphi 0, %s241
      %s259 = sphi 0, %s259
      %s261 = sphi 0, %s259
      %s262 = sphi 0, %s261
      %s276 = sphi 0, %s262
      %s280 = sphi 0, %s280
      %s282 = sphi 0, %s280
      %s283 = sphi 0, %s282
      %s297 = sphi 0, %s283
      %s301 = sphi 0, %s301
      %s303 = sphi 0, %s301
      %s304 = sphi 0, %s303
      %s318 = sphi 0, %s304
      %s322 = sphi 0, %s322
      %s324 = sphi 0, %s322
      %s325 = sphi 0, %s324
      %s339 = sphi 0, %s325
      %s343 = sphi 0, %s343
      %s345 = sphi 0, %s343
      %s346 = sphi 0, %s345
      %s360 = sphi 0, %s346
      %s364 = sphi 0, %s364
      %s366 = sphi 0, %s364
      %s367 = sphi 0, %s366
      %s381 = sphi 0, %s367
      %s385 = sphi 0, %s385
      %s387 = sphi 0, %s385
      %s388 = sphi 0, %s387
      %s402 = sphi 0, %s388
      %s406 = sphi 0, %s406
      %s408 = sphi 0, %s406
      %s409 = sphi 0, %s408
      %s423 = sphi 0, %s409
      %s427 = sphi 0, %s427
      %s429 = sphi 0, %s427
      %s430 = sphi 0, %s429
      %s444 = sphi 0, %s430
      %s448 = sphi 0, %s448
      %s450 = sphi 0, %s448
      %s451 = sphi 0, %s450
      %s465 = sphi 0, %s451
      %s469 = sphi 0, %s469
      %s471 = sphi 0, %s469
      %s472 = sphi 0, %s471
      %s486 = sphi 0, %s472
      %s490 = sphi 0, %s490
      %s492 = sphi 0, %s490
      %s493 = sphi 0, %s492
      %s507 = sphi 0, %s493
      %s511 = sphi 0, %s511
      %s513 = sphi 0, %s511
      %s514 = sphi 0, %s513
      %s528 = sphi 0, %s514
      %s532 = sphi 0, %s532
      %s534 = sphi 0, %s532
      %s535 = sphi 0, %s534
      %s549 = sphi 0, %s535
      %s553 = sphi 0, %s553
      %s555 = sphi 0, %s553
      %s556 = sphi 0, %s555
      %s570 = sphi 0, %s556
      %s574 = sphi 0, %s574
      %s576 = sphi 0, %s574
      %s577 = sphi 0, %s576
      %s591 = sphi 0, %s577
      %s597 = sphi 0, %s599
      %s600 = sphi 0, %s597
      %s601 = sphi 0, %s600
      %s617 = sphi 0, %s601
    $region4: #{tpu_custom_call.1} parent=1 // loop_header_branch
      %39 = sbr.rel (%p37) target = $region8
    $region5: #{tpu_custom_call.1} parent=1 // loop_body
      %s41 = ssub.s32 %s36, 1
      %s42 = ssub.s32 %s36, 2
      %s43 = sadd.s32 %s36, 1
      %s44 = ssub.s32 %s36, %s43
      %p45 = scmp.eq.s32.totalorder %s44, 0
      %s47 = sadd.s32 %s46, 1
      %s48 = scalar_select %p45, %s46, %s47
      %p51 = pneg %p45
      %p52 = scmp.eq.s32.totalorder %s36, 3
      %p53 = por %p51, %p52
      %p54 = scmp.ne.s32.totalorder %s46, %s49
      %p55 = scmp.eq.s32.totalorder %s36, 0
      %p56 = por %p54, %p55
      %p57 = scmp.ne.s32.totalorder %s46, %s49
      %p58 = scmp.eq.s32.totalorder %s41, 3
      %p59 = por %p57, %p58
      %p60 = scmp.ne.s32.totalorder %s49, %s50
      %p61 = scmp.eq.s32.totalorder %s41, 0
      %p62 = por %p60, %p61
      %p63 = scmp.ne.s32.totalorder %s49, %s50
      %p64 = scmp.eq.s32.totalorder %s42, 3
      %p65 = por %p63, %p64
      %p67 = scmp.ne.s32.totalorder %s50, %s66
      %p68 = scmp.eq.s32.totalorder %s42, 0
      %p69 = por %p67, %p68
      %s71 = sadd.s32 %s70, 1
      %p74 = scmp.eq.s32.totalorder %s36, 3
      %p75 = scmp.ne.s32.totalorder %s70, %s72
      %p76 = scmp.eq.s32.totalorder %s36, 0
      %p77 = por %p75, %p76
      %p78 = scmp.ne.s32.totalorder %s70, %s72
      %p79 = scmp.eq.s32.totalorder %s41, 3
      %p80 = por %p78, %p79
      %p81 = scmp.ne.s32.totalorder %s72, %s73
      %p82 = scmp.eq.s32.totalorder %s41, 0
      %p83 = por %p81, %p82
      %p84 = scmp.ne.s32.totalorder %s72, %s73
      %p85 = scmp.eq.s32.totalorder %s42, 3
      %p86 = por %p84, %p85
      %p88 = scmp.ne.s32.totalorder %s73, %s87
      %p89 = scmp.eq.s32.totalorder %s42, 0
      %p90 = por %p88, %p89
      %s92 = sadd.s32 %s91, 1
      %p95 = scmp.eq.s32.totalorder %s36, 3
      %p96 = scmp.ne.s32.totalorder %s91, %s93
      %p97 = scmp.eq.s32.totalorder %s36, 0
      %p98 = por %p96, %p97
      %p99 = scmp.ne.s32.totalorder %s91, %s93
      %p100 = scmp.eq.s32.totalorder %s41, 3
      %p101 = por %p99, %p100
      %p102 = scmp.ne.s32.totalorder %s93, %s94
      %p103 = scmp.eq.s32.totalorder %s41, 0
      %p104 = por %p102, %p103
      %p105 = scmp.ne.s32.totalorder %s93, %s94
      %p106 = scmp.eq.s32.totalorder %s42, 3
      %p107 = por %p105, %p106
      %p109 = scmp.ne.s32.totalorder %s94, %s108
      %p110 = scmp.eq.s32.totalorder %s42, 0
      %p111 = por %p109, %p110
      %s113 = sadd.s32 %s112, 1
      %p116 = scmp.eq.s32.totalorder %s36, 3
      %p117 = scmp.ne.s32.totalorder %s112, %s114
      %p118 = scmp.eq.s32.totalorder %s36, 0
      %p119 = por %p117, %p118
      %p120 = scmp.ne.s32.totalorder %s112, %s114
      %p121 = scmp.eq.s32.totalorder %s41, 3
      %p122 = por %p120, %p121
      %p123 = scmp.ne.s32.totalorder %s114, %s115
      %p124 = scmp.eq.s32.totalorder %s41, 0
      %p125 = por %p123, %p124
      %p126 = scmp.ne.s32.totalorder %s114, %s115
      %p127 = scmp.eq.s32.totalorder %s42, 3
      %p128 = por %p126, %p127
      %p130 = scmp.ne.s32.totalorder %s115, %s129
      %p131 = scmp.eq.s32.totalorder %s42, 0
      %p132 = por %p130, %p131
      %s134 = sadd.s32 %s133, 1
      %p137 = scmp.eq.s32.totalorder %s36, 3
      %p138 = scmp.ne.s32.totalorder %s133, %s135
      %p139 = scmp.eq.s32.totalorder %s36, 0
      %p140 = por %p138, %p139
      %p141 = scmp.ne.s32.totalorder %s133, %s135
      %p142 = scmp.eq.s32.totalorder %s41, 3
      %p143 = por %p141, %p142
      %p144 = scmp.ne.s32.totalorder %s135, %s136
      %p145 = scmp.eq.s32.totalorder %s41, 0
      %p146 = por %p144, %p145
      %p147 = scmp.ne.s32.totalorder %s135, %s136
      %p148 = scmp.eq.s32.totalorder %s42, 3
      %p149 = por %p147, %p148
      %p151 = scmp.ne.s32.totalorder %s136, %s150
      %p152 = scmp.eq.s32.totalorder %s42, 0
      %p153 = por %p151, %p152
      %s155 = sadd.s32 %s154, 1
      %p158 = scmp.eq.s32.totalorder %s36, 3
      %p159 = scmp.ne.s32.totalorder %s154, %s156
      %p160 = scmp.eq.s32.totalorder %s36, 0
      %p161 = por %p159, %p160
      %p162 = scmp.ne.s32.totalorder %s154, %s156
      %p163 = scmp.eq.s32.totalorder %s41, 3
      %p164 = por %p162, %p163
      %p165 = scmp.ne.s32.totalorder %s156, %s157
      %p166 = scmp.eq.s32.totalorder %s41, 0
      %p167 = por %p165, %p166
      %p168 = scmp.ne.s32.totalorder %s156, %s157
      %p169 = scmp.eq.s32.totalorder %s42, 3
      %p170 = por %p168, %p169
      %p172 = scmp.ne.s32.totalorder %s157, %s171
      %p173 = scmp.eq.s32.totalorder %s42, 0
      %p174 = por %p172, %p173
      %s176 = sadd.s32 %s175, 1
      %p179 = scmp.eq.s32.totalorder %s36, 3
      %p180 = scmp.ne.s32.totalorder %s175, %s177
      %p181 = scmp.eq.s32.totalorder %s36, 0
      %p182 = por %p180, %p181
      %p183 = scmp.ne.s32.totalorder %s175, %s177
      %p184 = scmp.eq.s32.totalorder %s41, 3
      %p185 = por %p183, %p184
      %p186 = scmp.ne.s32.totalorder %s177, %s178
      %p187 = scmp.eq.s32.totalorder %s41, 0
      %p188 = por %p186, %p187
      %p189 = scmp.ne.s32.totalorder %s177, %s178
      %p190 = scmp.eq.s32.totalorder %s42, 3
      %p191 = por %p189, %p190
      %p193 = scmp.ne.s32.totalorder %s178, %s192
      %p194 = scmp.eq.s32.totalorder %s42, 0
      %p195 = por %p193, %p194
      %s197 = sadd.s32 %s196, 1
      %p200 = scmp.eq.s32.totalorder %s36, 3
      %p201 = scmp.ne.s32.totalorder %s196, %s198
      %p202 = scmp.eq.s32.totalorder %s36, 0
      %p203 = por %p201, %p202
      %p204 = scmp.ne.s32.totalorder %s196, %s198
      %p205 = scmp.eq.s32.totalorder %s41, 3
      %p206 = por %p204, %p205
      %p207 = scmp.ne.s32.totalorder %s198, %s199
      %p208 = scmp.eq.s32.totalorder %s41, 0
      %p209 = por %p207, %p208
      %p210 = scmp.ne.s32.totalorder %s198, %s199
      %p211 = scmp.eq.s32.totalorder %s42, 3
      %p212 = por %p210, %p211
      %p214 = scmp.ne.s32.totalorder %s199, %s213
      %p215 = scmp.eq.s32.totalorder %s42, 0
      %p216 = por %p214, %p215
      %s218 = sadd.s32 %s217, 1
      %p221 = scmp.eq.s32.totalorder %s36, 3
      %p222 = scmp.ne.s32.totalorder %s217, %s219
      %p223 = scmp.eq.s32.totalorder %s36, 0
      %p224 = por %p222, %p223
      %p225 = scmp.ne.s32.totalorder %s217, %s219
      %p226 = scmp.eq.s32.totalorder %s41, 3
      %p227 = por %p225, %p226
      %p228 = scmp.ne.s32.totalorder %s219, %s220
      %p229 = scmp.eq.s32.totalorder %s41, 0
      %p230 = por %p228, %p229
      %p231 = scmp.ne.s32.totalorder %s219, %s220
      %p232 = scmp.eq.s32.totalorder %s42, 3
      %p233 = por %p231, %p232
      %p235 = scmp.ne.s32.totalorder %s220, %s234
      %p236 = scmp.eq.s32.totalorder %s42, 0
      %p237 = por %p235, %p236
      %s239 = sadd.s32 %s238, 1
      %p242 = scmp.eq.s32.totalorder %s36, 3
      %p243 = scmp.ne.s32.totalorder %s238, %s240
      %p244 = scmp.eq.s32.totalorder %s36, 0
      %p245 = por %p243, %p244
      %p246 = scmp.ne.s32.totalorder %s238, %s240
      %p247 = scmp.eq.s32.totalorder %s41, 3
      %p248 = por %p246, %p247
      %p249 = scmp.ne.s32.totalorder %s240, %s241
      %p250 = scmp.eq.s32.totalorder %s41, 0
      %p251 = por %p249, %p250
      %p252 = scmp.ne.s32.totalorder %s240, %s241
      %p253 = scmp.eq.s32.totalorder %s42, 3
      %p254 = por %p252, %p253
      %p256 = scmp.ne.s32.totalorder %s241, %s255
      %p257 = scmp.eq.s32.totalorder %s42, 0
      %p258 = por %p256, %p257
      %s260 = sadd.s32 %s259, 1
      %p263 = scmp.eq.s32.totalorder %s36, 3
      %p264 = scmp.ne.s32.totalorder %s259, %s261
      %p265 = scmp.eq.s32.totalorder %s36, 0
      %p266 = por %p264, %p265
      %p267 = scmp.ne.s32.totalorder %s259, %s261
      %p268 = scmp.eq.s32.totalorder %s41, 3
      %p269 = por %p267, %p268
      %p270 = scmp.ne.s32.totalorder %s261, %s262
      %p271 = scmp.eq.s32.totalorder %s41, 0
      %p272 = por %p270, %p271
      %p273 = scmp.ne.s32.totalorder %s261, %s262
      %p274 = scmp.eq.s32.totalorder %s42, 3
      %p275 = por %p273, %p274
      %p277 = scmp.ne.s32.totalorder %s262, %s276
      %p278 = scmp.eq.s32.totalorder %s42, 0
      %p279 = por %p277, %p278
      %s281 = sadd.s32 %s280, 1
      %p284 = scmp.eq.s32.totalorder %s36, 3
      %p285 = scmp.ne.s32.totalorder %s280, %s282
      %p286 = scmp.eq.s32.totalorder %s36, 0
      %p287 = por %p285, %p286
      %p288 = scmp.ne.s32.totalorder %s280, %s282
      %p289 = scmp.eq.s32.totalorder %s41, 3
      %p290 = por %p288, %p289
      %p291 = scmp.ne.s32.totalorder %s282, %s283
      %p292 = scmp.eq.s32.totalorder %s41, 0
      %p293 = por %p291, %p292
      %p294 = scmp.ne.s32.totalorder %s282, %s283
      %p295 = scmp.eq.s32.totalorder %s42, 3
      %p296 = por %p294, %p295
      %p298 = scmp.ne.s32.totalorder %s283, %s297
      %p299 = scmp.eq.s32.totalorder %s42, 0
      %p300 = por %p298, %p299
      %s302 = sadd.s32 %s301, 1
      %p305 = scmp.eq.s32.totalorder %s36, 3
      %p306 = scmp.ne.s32.totalorder %s301, %s303
      %p307 = scmp.eq.s32.totalorder %s36, 0
      %p308 = por %p306, %p307
      %p309 = scmp.ne.s32.totalorder %s301, %s303
      %p310 = scmp.eq.s32.totalorder %s41, 3
      %p311 = por %p309, %p310
      %p312 = scmp.ne.s32.totalorder %s303, %s304
      %p313 = scmp.eq.s32.totalorder %s41, 0
      %p314 = por %p312, %p313
      %p315 = scmp.ne.s32.totalorder %s303, %s304
      %p316 = scmp.eq.s32.totalorder %s42, 3
      %p317 = por %p315, %p316
      %p319 = scmp.ne.s32.totalorder %s304, %s318
      %p320 = scmp.eq.s32.totalorder %s42, 0
      %p321 = por %p319, %p320
      %s323 = sadd.s32 %s322, 1
      %p326 = scmp.eq.s32.totalorder %s36, 3
      %p327 = scmp.ne.s32.totalorder %s322, %s324
      %p328 = scmp.eq.s32.totalorder %s36, 0
      %p329 = por %p327, %p328
      %p330 = scmp.ne.s32.totalorder %s322, %s324
      %p331 = scmp.eq.s32.totalorder %s41, 3
      %p332 = por %p330, %p331
      %p333 = scmp.ne.s32.totalorder %s324, %s325
      %p334 = scmp.eq.s32.totalorder %s41, 0
      %p335 = por %p333, %p334
      %p336 = scmp.ne.s32.totalorder %s324, %s325
      %p337 = scmp.eq.s32.totalorder %s42, 3
      %p338 = por %p336, %p337
      %p340 = scmp.ne.s32.totalorder %s325, %s339
      %p341 = scmp.eq.s32.totalorder %s42, 0
      %p342 = por %p340, %p341
      %s344 = sadd.s32 %s343, 1
      %p347 = scmp.eq.s32.totalorder %s36, 3
      %p348 = scmp.ne.s32.totalorder %s343, %s345
      %p349 = scmp.eq.s32.totalorder %s36, 0
      %p350 = por %p348, %p349
      %p351 = scmp.ne.s32.totalorder %s343, %s345
      %p352 = scmp.eq.s32.totalorder %s41, 3
      %p353 = por %p351, %p352
      %p354 = scmp.ne.s32.totalorder %s345, %s346
      %p355 = scmp.eq.s32.totalorder %s41, 0
      %p356 = por %p354, %p355
      %p357 = scmp.ne.s32.totalorder %s345, %s346
      %p358 = scmp.eq.s32.totalorder %s42, 3
      %p359 = por %p357, %p358
      %p361 = scmp.ne.s32.totalorder %s346, %s360
      %p362 = scmp.eq.s32.totalorder %s42, 0
      %p363 = por %p361, %p362
      %s365 = sadd.s32 %s364, 1
      %p368 = scmp.eq.s32.totalorder %s36, 3
      %p369 = scmp.ne.s32.totalorder %s364, %s366
      %p370 = scmp.eq.s32.totalorder %s36, 0
      %p371 = por %p369, %p370
      %p372 = scmp.ne.s32.totalorder %s364, %s366
      %p373 = scmp.eq.s32.totalorder %s41, 3
      %p374 = por %p372, %p373
      %p375 = scmp.ne.s32.totalorder %s366, %s367
      %p376 = scmp.eq.s32.totalorder %s41, 0
      %p377 = por %p375, %p376
      %p378 = scmp.ne.s32.totalorder %s366, %s367
      %p379 = scmp.eq.s32.totalorder %s42, 3
      %p380 = por %p378, %p379
      %p382 = scmp.ne.s32.totalorder %s367, %s381
      %p383 = scmp.eq.s32.totalorder %s42, 0
      %p384 = por %p382, %p383
      %s386 = sadd.s32 %s385, 1
      %p389 = scmp.eq.s32.totalorder %s36, 3
      %p390 = scmp.ne.s32.totalorder %s385, %s387
      %p391 = scmp.eq.s32.totalorder %s36, 0
      %p392 = por %p390, %p391
      %p393 = scmp.ne.s32.totalorder %s385, %s387
      %p394 = scmp.eq.s32.totalorder %s41, 3
      %p395 = por %p393, %p394
      %p396 = scmp.ne.s32.totalorder %s387, %s388
      %p397 = scmp.eq.s32.totalorder %s41, 0
      %p398 = por %p396, %p397
      %p399 = scmp.ne.s32.totalorder %s387, %s388
      %p400 = scmp.eq.s32.totalorder %s42, 3
      %p401 = por %p399, %p400
      %p403 = scmp.ne.s32.totalorder %s388, %s402
      %p404 = scmp.eq.s32.totalorder %s42, 0
      %p405 = por %p403, %p404
      %s407 = sadd.s32 %s406, 1
      %p410 = scmp.eq.s32.totalorder %s36, 3
      %p411 = scmp.ne.s32.totalorder %s406, %s408
      %p412 = scmp.eq.s32.totalorder %s36, 0
      %p413 = por %p411, %p412
      %p414 = scmp.ne.s32.totalorder %s406, %s408
      %p415 = scmp.eq.s32.totalorder %s41, 3
      %p416 = por %p414, %p415
      %p417 = scmp.ne.s32.totalorder %s408, %s409
      %p418 = scmp.eq.s32.totalorder %s41, 0
      %p419 = por %p417, %p418
      %p420 = scmp.ne.s32.totalorder %s408, %s409
      %p421 = scmp.eq.s32.totalorder %s42, 3
      %p422 = por %p420, %p421
      %p424 = scmp.ne.s32.totalorder %s409, %s423
      %p425 = scmp.eq.s32.totalorder %s42, 0
      %p426 = por %p424, %p425
      %s428 = sadd.s32 %s427, 1
      %p431 = scmp.eq.s32.totalorder %s36, 3
      %p432 = scmp.ne.s32.totalorder %s427, %s429
      %p433 = scmp.eq.s32.totalorder %s36, 0
      %p434 = por %p432, %p433
      %p435 = scmp.ne.s32.totalorder %s427, %s429
      %p436 = scmp.eq.s32.totalorder %s41, 3
      %p437 = por %p435, %p436
      %p438 = scmp.ne.s32.totalorder %s429, %s430
      %p439 = scmp.eq.s32.totalorder %s41, 0
      %p440 = por %p438, %p439
      %p441 = scmp.ne.s32.totalorder %s429, %s430
      %p442 = scmp.eq.s32.totalorder %s42, 3
      %p443 = por %p441, %p442
      %p445 = scmp.ne.s32.totalorder %s430, %s444
      %p446 = scmp.eq.s32.totalorder %s42, 0
      %p447 = por %p445, %p446
      %s449 = sadd.s32 %s448, 1
      %p452 = scmp.eq.s32.totalorder %s36, 3
      %p453 = scmp.ne.s32.totalorder %s448, %s450
      %p454 = scmp.eq.s32.totalorder %s36, 0
      %p455 = por %p453, %p454
      %p456 = scmp.ne.s32.totalorder %s448, %s450
      %p457 = scmp.eq.s32.totalorder %s41, 3
      %p458 = por %p456, %p457
      %p459 = scmp.ne.s32.totalorder %s450, %s451
      %p460 = scmp.eq.s32.totalorder %s41, 0
      %p461 = por %p459, %p460
      %p462 = scmp.ne.s32.totalorder %s450, %s451
      %p463 = scmp.eq.s32.totalorder %s42, 3
      %p464 = por %p462, %p463
      %p466 = scmp.ne.s32.totalorder %s451, %s465
      %p467 = scmp.eq.s32.totalorder %s42, 0
      %p468 = por %p466, %p467
      %s470 = sadd.s32 %s469, 1
      %p473 = scmp.eq.s32.totalorder %s36, 3
      %p474 = scmp.ne.s32.totalorder %s469, %s471
      %p475 = scmp.eq.s32.totalorder %s36, 0
      %p476 = por %p474, %p475
      %p477 = scmp.ne.s32.totalorder %s469, %s471
      %p478 = scmp.eq.s32.totalorder %s41, 3
      %p479 = por %p477, %p478
      %p480 = scmp.ne.s32.totalorder %s471, %s472
      %p481 = scmp.eq.s32.totalorder %s41, 0
      %p482 = por %p480, %p481
      %p483 = scmp.ne.s32.totalorder %s471, %s472
      %p484 = scmp.eq.s32.totalorder %s42, 3
      %p485 = por %p483, %p484
      %p487 = scmp.ne.s32.totalorder %s472, %s486
      %p488 = scmp.eq.s32.totalorder %s42, 0
      %p489 = por %p487, %p488
      %s491 = sadd.s32 %s490, 1
      %p494 = scmp.eq.s32.totalorder %s36, 3
      %p495 = scmp.ne.s32.totalorder %s490, %s492
      %p496 = scmp.eq.s32.totalorder %s36, 0
      %p497 = por %p495, %p496
      %p498 = scmp.ne.s32.totalorder %s490, %s492
      %p499 = scmp.eq.s32.totalorder %s41, 3
      %p500 = por %p498, %p499
      %p501 = scmp.ne.s32.totalorder %s492, %s493
      %p502 = scmp.eq.s32.totalorder %s41, 0
      %p503 = por %p501, %p502
      %p504 = scmp.ne.s32.totalorder %s492, %s493
      %p505 = scmp.eq.s32.totalorder %s42, 3
      %p506 = por %p504, %p505
      %p508 = scmp.ne.s32.totalorder %s493, %s507
      %p509 = scmp.eq.s32.totalorder %s42, 0
      %p510 = por %p508, %p509
      %s512 = sadd.s32 %s511, 1
      %p515 = scmp.eq.s32.totalorder %s36, 3
      %p516 = scmp.ne.s32.totalorder %s511, %s513
      %p517 = scmp.eq.s32.totalorder %s36, 0
      %p518 = por %p516, %p517
      %p519 = scmp.ne.s32.totalorder %s511, %s513
      %p520 = scmp.eq.s32.totalorder %s41, 3
      %p521 = por %p519, %p520
      %p522 = scmp.ne.s32.totalorder %s513, %s514
      %p523 = scmp.eq.s32.totalorder %s41, 0
      %p524 = por %p522, %p523
      %p525 = scmp.ne.s32.totalorder %s513, %s514
      %p526 = scmp.eq.s32.totalorder %s42, 3
      %p527 = por %p525, %p526
      %p529 = scmp.ne.s32.totalorder %s514, %s528
      %p530 = scmp.eq.s32.totalorder %s42, 0
      %p531 = por %p529, %p530
      %s533 = sadd.s32 %s532, 1
      %p536 = scmp.eq.s32.totalorder %s36, 3
      %p537 = scmp.ne.s32.totalorder %s532, %s534
      %p538 = scmp.eq.s32.totalorder %s36, 0
      %p539 = por %p537, %p538
      %p540 = scmp.ne.s32.totalorder %s532, %s534
      %p541 = scmp.eq.s32.totalorder %s41, 3
      %p542 = por %p540, %p541
      %p543 = scmp.ne.s32.totalorder %s534, %s535
      %p544 = scmp.eq.s32.totalorder %s41, 0
      %p545 = por %p543, %p544
      %p546 = scmp.ne.s32.totalorder %s534, %s535
      %p547 = scmp.eq.s32.totalorder %s42, 3
      %p548 = por %p546, %p547
      %p550 = scmp.ne.s32.totalorder %s535, %s549
      %p551 = scmp.eq.s32.totalorder %s42, 0
      %p552 = por %p550, %p551
      %s554 = sadd.s32 %s553, 1
      %p557 = scmp.eq.s32.totalorder %s36, 3
      %p558 = scmp.ne.s32.totalorder %s553, %s555
      %p559 = scmp.eq.s32.totalorder %s36, 0
      %p560 = por %p558, %p559
      %p561 = scmp.ne.s32.totalorder %s553, %s555
      %p562 = scmp.eq.s32.totalorder %s41, 3
      %p563 = por %p561, %p562
      %p564 = scmp.ne.s32.totalorder %s555, %s556
      %p565 = scmp.eq.s32.totalorder %s41, 0
      %p566 = por %p564, %p565
      %p567 = scmp.ne.s32.totalorder %s555, %s556
      %p568 = scmp.eq.s32.totalorder %s42, 3
      %p569 = por %p567, %p568
      %p571 = scmp.ne.s32.totalorder %s556, %s570
      %p572 = scmp.eq.s32.totalorder %s42, 0
      %p573 = por %p571, %p572
      %s575 = sadd.s32 %s574, 1
      %p578 = scmp.eq.s32.totalorder %s36, 3
      %p579 = scmp.ne.s32.totalorder %s574, %s576
      %p580 = scmp.eq.s32.totalorder %s36, 0
      %p581 = por %p579, %p580
      %p582 = scmp.ne.s32.totalorder %s574, %s576
      %p583 = scmp.eq.s32.totalorder %s41, 3
      %p584 = por %p582, %p583
      %p585 = scmp.ne.s32.totalorder %s576, %s577
      %p586 = scmp.eq.s32.totalorder %s41, 0
      %p587 = por %p585, %p586
      %p588 = scmp.ne.s32.totalorder %s576, %s577
      %p589 = scmp.eq.s32.totalorder %s42, 3
      %p590 = por %p588, %p589
      %p592 = scmp.ne.s32.totalorder %s577, %s591
      %p593 = scmp.eq.s32.totalorder %s42, 0
      %p594 = por %p592, %p593
      %s595 = ssub.s32 %s36, %s43
      %p596 = scmp.eq.s32.totalorder %s595, 0
      %s598 = sadd.s32 %s597, 1
      %s599 = scalar_select %p596, %s597, %s598
      %p602 = pneg %p596
      %p603 = scmp.eq.s32.totalorder %s36, 3
      %p604 = por %p602, %p603
      %p605 = scmp.ne.s32.totalorder %s597, %s600
      %p606 = scmp.eq.s32.totalorder %s36, 0
      %p607 = por %p605, %p606
      %p608 = scmp.ne.s32.totalorder %s597, %s600
      %p609 = scmp.eq.s32.totalorder %s41, 3
      %p610 = por %p608, %p609
      %p611 = scmp.ne.s32.totalorder %s600, %s601
      %p612 = scmp.eq.s32.totalorder %s41, 0
      %p613 = por %p611, %p612
      %p614 = scmp.ne.s32.totalorder %s600, %s601
      %p615 = scmp.eq.s32.totalorder %s42, 3
      %p616 = por %p614, %p615
      %p618 = scmp.ne.s32.totalorder %s601, %s617
      %p619 = scmp.eq.s32.totalorder %s42, 0
      %p620 = por %p618, %p619
      %p621 = scmp.le.s32.totalorder 1, %s36
      %p622 = scmp.lt.s32.totalorder %s36, 5
      %p623 = pnand %p621, %p622
      %p624 = pneg %p623
      // Predicated region
      $region9: #{tpu_custom_call.1} parent=5 // pred_check
        _
      $region10: #{tpu_custom_call.1} parent=5 // pred_check_branch
        %626 = sbr.rel (%p623) target = $region12
      $region11: #{tpu_custom_call.1} parent=5 // pred_region
        %s627 = ssub.s32 %s36, 1
        // Predicated region
        $region13: #{tpu_custom_call.1} parent=11 // pred_check
          %p628 = pneg %p83
        $region14: #{tpu_custom_call.1} parent=11 // pred_check_branch
          %630 = sbr.rel (%p628) target = $region16
        $region15: #{tpu_custom_call.1} parent=11 // pred_region
          _
        $region16: #{tpu_custom_call.1} parent=11 // pred_fallthru
          _
        // Predicated region
        $region17: #{tpu_custom_call.1} parent=11 // pred_check
          %p631 = pneg %p104
        $region18: #{tpu_custom_call.1} parent=11 // pred_check_branch
          %633 = sbr.rel (%p631) target = $region20
        $region19: #{tpu_custom_call.1} parent=11 // pred_region
          _
        $region20: #{tpu_custom_call.1} parent=11 // pred_fallthru
          _
        // Predicated region
        $region21: #{tpu_custom_call.1} parent=11 // pred_check
          %p634 = pneg %p125
        $region22: #{tpu_custom_call.1} parent=11 // pred_check_branch
          %636 = sbr.rel (%p634) target = $region24
        $region23: #{tpu_custom_call.1} parent=11 // pred_region
          _
        $region24: #{tpu_custom_call.1} parent=11 // pred_fallthru
          _
        // Predicated region
        $region25: #{tpu_custom_call.1} parent=11 // pred_check
          %p637 = pneg %p146
        $region26: #{tpu_custom_call.1} parent=11 // pred_check_branch
          %639 = sbr.rel (%p637) target = $region28
        $region27: #{tpu_custom_call.1} parent=11 // pred_region
          _
        $region28: #{tpu_custom_call.1} parent=11 // pred_fallthru
          _
        // Predicated region
        $region29: #{tpu_custom_call.1} parent=11 // pred_check
          %p640 = pneg %p167
        $region30: #{tpu_custom_call.1} parent=11 // pred_check_branch
          %642 = sbr.rel (%p640) target = $region32
        $region31: #{tpu_custom_call.1} parent=11 // pred_region
          _
        $region32: #{tpu_custom_call.1} parent=11 // pred_fallthru
          _
        // Predicated region
        $region33: #{tpu_custom_call.1} parent=11 // pred_check
          %p643 = pneg %p188
        $region34: #{tpu_custom_call.1} parent=11 // pred_check_branch
          %645 = sbr.rel (%p643) target = $region36
        $region35: #{tpu_custom_call.1} parent=11 // pred_region
          _
        $region36: #{tpu_custom_call.1} parent=11 // pred_fallthru
          _
        // Predicated region
        $region37: #{tpu_custom_call.1} parent=11 // pred_check
          %p646 = pneg %p209
        $region38: #{tpu_custom_call.1} parent=11 // pred_check_branch
          %648 = sbr.rel (%p646) target = $region40
        $region39: #{tpu_custom_call.1} parent=11 // pred_region
          _
        $region40: #{tpu_custom_call.1} parent=11 // pred_fallthru
          _
        // Predicated region
        $region41: #{tpu_custom_call.1} parent=11 // pred_check
          %p649 = pneg %p230
        $region42: #{tpu_custom_call.1} parent=11 // pred_check_branch
          %651 = sbr.rel (%p649) target = $region44
        $region43: #{tpu_custom_call.1} parent=11 // pred_region
          _
        $region44: #{tpu_custom_call.1} parent=11 // pred_fallthru
          _
        // Predicated region
        $region45: #{tpu_custom_call.1} parent=11 // pred_check
          %p652 = pneg %p251
        $region46: #{tpu_custom_call.1} parent=11 // pred_check_branch
          %654 = sbr.rel (%p652) target = $region48
        $region47: #{tpu_custom_call.1} parent=11 // pred_region
          _
        $region48: #{tpu_custom_call.1} parent=11 // pred_fallthru
          _
        // Predicated region
        $region49: #{tpu_custom_call.1} parent=11 // pred_check
          %p655 = pneg %p272
        $region50: #{tpu_custom_call.1} parent=11 // pred_check_branch
          %657 = sbr.rel (%p655) target = $region52
        $region51: #{tpu_custom_call.1} parent=11 // pred_region
          _
        $region52: #{tpu_custom_call.1} parent=11 // pred_fallthru
          _
        // Predicated region
        $region53: #{tpu_custom_call.1} parent=11 // pred_check
          %p658 = pneg %p293
        $region54: #{tpu_custom_call.1} parent=11 // pred_check_branch
          %660 = sbr.rel (%p658) target = $region56
        $region55: #{tpu_custom_call.1} parent=11 // pred_region
          _
        $region56: #{tpu_custom_call.1} parent=11 // pred_fallthru
          _
        // Predicated region
        $region57: #{tpu_custom_call.1} parent=11 // pred_check
          %p661 = pneg %p314
        $region58: #{tpu_custom_call.1} parent=11 // pred_check_branch
          %663 = sbr.rel (%p661) target = $region60
        $region59: #{tpu_custom_call.1} parent=11 // pred_region
          _
        $region60: #{tpu_custom_call.1} parent=11 // pred_fallthru
          _
        // Predicated region
        $region61: #{tpu_custom_call.1} parent=11 // pred_check
          %p664 = pneg %p335
        $region62: #{tpu_custom_call.1} parent=11 // pred_check_branch
          %666 = sbr.rel (%p664) target = $region64
        $region63: #{tpu_custom_call.1} parent=11 // pred_region
          _
        $region64: #{tpu_custom_call.1} parent=11 // pred_fallthru
          _
        // Predicated region
        $region65: #{tpu_custom_call.1} parent=11 // pred_check
          %p667 = pneg %p356
        $region66: #{tpu_custom_call.1} parent=11 // pred_check_branch
          %669 = sbr.rel (%p667) target = $region68
        $region67: #{tpu_custom_call.1} parent=11 // pred_region
          _
        $region68: #{tpu_custom_call.1} parent=11 // pred_fallthru
          _
        // Predicated region
        $region69: #{tpu_custom_call.1} parent=11 // pred_check
          %p670 = pneg %p377
        $region70: #{tpu_custom_call.1} parent=11 // pred_check_branch
          %672 = sbr.rel (%p670) target = $region72
        $region71: #{tpu_custom_call.1} parent=11 // pred_region
          _
        $region72: #{tpu_custom_call.1} parent=11 // pred_fallthru
          _
        // Predicated region
        $region73: #{tpu_custom_call.1} parent=11 // pred_check
          %p673 = pneg %p398
        $region74: #{tpu_custom_call.1} parent=11 // pred_check_branch
          %675 = sbr.rel (%p673) target = $region76
        $region75: #{tpu_custom_call.1} parent=11 // pred_region
          _
        $region76: #{tpu_custom_call.1} parent=11 // pred_fallthru
          _
        // Predicated region
        $region77: #{tpu_custom_call.1} parent=11 // pred_check
          %p676 = pneg %p419
        $region78: #{tpu_custom_call.1} parent=11 // pred_check_branch
          %678 = sbr.rel (%p676) target = $region80
        $region79: #{tpu_custom_call.1} parent=11 // pred_region
          _
        $region80: #{tpu_custom_call.1} parent=11 // pred_fallthru
          _
        // Predicated region
        $region81: #{tpu_custom_call.1} parent=11 // pred_check
          %p679 = pneg %p440
        $region82: #{tpu_custom_call.1} parent=11 // pred_check_branch
          %681 = sbr.rel (%p679) target = $region84
        $region83: #{tpu_custom_call.1} parent=11 // pred_region
          _
        $region84: #{tpu_custom_call.1} parent=11 // pred_fallthru
          _
        // Predicated region
        $region85: #{tpu_custom_call.1} parent=11 // pred_check
          %p682 = pneg %p461
        $region86: #{tpu_custom_call.1} parent=11 // pred_check_branch
          %684 = sbr.rel (%p682) target = $region88
        $region87: #{tpu_custom_call.1} parent=11 // pred_region
          _
        $region88: #{tpu_custom_call.1} parent=11 // pred_fallthru
          _
        // Predicated region
        $region89: #{tpu_custom_call.1} parent=11 // pred_check
          %p685 = pneg %p482
        $region90: #{tpu_custom_call.1} parent=11 // pred_check_branch
          %687 = sbr.rel (%p685) target = $region92
        $region91: #{tpu_custom_call.1} parent=11 // pred_region
          _
        $region92: #{tpu_custom_call.1} parent=11 // pred_fallthru
          _
        // Predicated region
        $region93: #{tpu_custom_call.1} parent=11 // pred_check
          %p688 = pneg %p503
        $region94: #{tpu_custom_call.1} parent=11 // pred_check_branch
          %690 = sbr.rel (%p688) target = $region96
        $region95: #{tpu_custom_call.1} parent=11 // pred_region
          _
        $region96: #{tpu_custom_call.1} parent=11 // pred_fallthru
          _
        // Predicated region
        $region97: #{tpu_custom_call.1} parent=11 // pred_check
          %p691 = pneg %p524
        $region98: #{tpu_custom_call.1} parent=11 // pred_check_branch
          %693 = sbr.rel (%p691) target = $region100
        $region99: #{tpu_custom_call.1} parent=11 // pred_region
          _
        $region100: #{tpu_custom_call.1} parent=11 // pred_fallthru
          _
        // Predicated region
        $region101: #{tpu_custom_call.1} parent=11 // pred_check
          %p694 = pneg %p545
        $region102: #{tpu_custom_call.1} parent=11 // pred_check_branch
          %696 = sbr.rel (%p694) target = $region104
        $region103: #{tpu_custom_call.1} parent=11 // pred_region
          _
        $region104: #{tpu_custom_call.1} parent=11 // pred_fallthru
          _
        // Predicated region
        $region105: #{tpu_custom_call.1} parent=11 // pred_check
          %p697 = pneg %p566
        $region106: #{tpu_custom_call.1} parent=11 // pred_check_branch
          %699 = sbr.rel (%p697) target = $region108
        $region107: #{tpu_custom_call.1} parent=11 // pred_region
          _
        $region108: #{tpu_custom_call.1} parent=11 // pred_fallthru
          _
        // Predicated region
        $region109: #{tpu_custom_call.1} parent=11 // pred_check
          %p700 = pneg %p587
        $region110: #{tpu_custom_call.1} parent=11 // pred_check_branch
          %702 = sbr.rel (%p700) target = $region112
        $region111: #{tpu_custom_call.1} parent=11 // pred_region
          _
        $region112: #{tpu_custom_call.1} parent=11 // pred_fallthru
          _
      $region12: #{tpu_custom_call.1} parent=5 // pred_fallthru
        _
      %p703 = scmp.lt.s32.totalorder %s36, 4
      // Predicated region
      $region113: #{tpu_custom_call.1} parent=5 // pred_check
        %p704 = pneg %p703
      $region114: #{tpu_custom_call.1} parent=5 // pred_check_branch
        %706 = sbr.rel (%p704) target = $region116
      $region115: #{tpu_custom_call.1} parent=5 // pred_region
        // Predicated region
        $region117: #{tpu_custom_call.1} parent=115 // pred_check
          %p707 = pneg %p56
        $region118: #{tpu_custom_call.1} parent=115 // pred_check_branch
          %709 = sbr.rel (%p707) target = $region120
        $region119: #{tpu_custom_call.1} parent=115 // pred_region
          %s710 = smul.u32 2, %s36
          %p711 = scmp.lt.s32.totalorder %s710, 7
          %s712 = scalar_select %p711, %s710, 7
          %s713 = smul.addr %s712, 8
          %s714 = scalar_lea.vmem %s0, %s713
          %s715 = smul.u32 2, %s36
        $region120: #{tpu_custom_call.1} parent=115 // pred_fallthru
          _
      $region116: #{tpu_custom_call.1} parent=5 // pred_fallthru
        _
      %p716 = scmp.le.s32.totalorder 1, %s36
      %p717 = scmp.lt.s32.totalorder %s36, 5
      %p718 = pnand %p716, %p717
      %p719 = pneg %p718
      // Predicated region
      $region121: #{tpu_custom_call.1} parent=5 // pred_check
        _
      $region122: #{tpu_custom_call.1} parent=5 // pred_check_branch
        %721 = sbr.rel (%p718) target = $region124
      $region123: #{tpu_custom_call.1} parent=5 // pred_region
        %s722 = ssub.s32 %s36, 1
        %s723 = smul.u32 2, %s41
        %p724 = scmp.lt.s32.totalorder %s723, 7
        %s725 = scalar_select %p724, %s723, 7
        %s726 = smul.addr %s725, 8
        %s727 = scalar_lea.vmem %s0, %s726
        %p728 = pneg %p62
        %p729 = pneg %p59
        %p730 = pneg %p83
        %p731 = pneg %p80
        %p732 = pneg %p104
        %p733 = pneg %p101
        %p734 = pneg %p125
        %p735 = pneg %p122
        %p736 = pneg %p146
        %p737 = pneg %p143
        %p738 = pneg %p167
        %p739 = pneg %p164
        %p740 = pneg %p188
        %p741 = pneg %p185
        %p742 = pneg %p209
        %p743 = pneg %p206
        %p744 = pneg %p230
        %p745 = pneg %p227
        %p746 = pneg %p251
        %p747 = pneg %p248
        %p748 = pneg %p272
        %p749 = pneg %p269
        %p750 = pneg %p293
        %p751 = pneg %p290
        %p752 = pneg %p314
        %p753 = pneg %p311
        %p754 = pneg %p335
        %p755 = pneg %p332
        %p756 = pneg %p356
        %p757 = pneg %p353
        %p758 = pneg %p377
        %p759 = pneg %p374
        %p760 = pneg %p398
        %p761 = pneg %p395
        %p762 = pneg %p419
        %p763 = pneg %p416
        %p764 = pneg %p440
        %p765 = pneg %p437
        %p766 = pneg %p461
        %p767 = pneg %p458
        %p768 = pneg %p482
        %p769 = pneg %p479
        %p770 = pneg %p503
        %p771 = pneg %p500
        %p772 = pneg %p524
        %p773 = pneg %p521
        %p774 = pneg %p545
        %p775 = pneg %p542
        %p776 = pneg %p566
        %p777 = pneg %p563
        %p778 = pneg %p587
        %p779 = pneg %p584
        %p780 = pneg %p613
        %p781 = pneg %p610
        %s782 = sand.u32 %s600, 1
        %s783 = scalar_lea.sflag [#allocation4], %s782
        %s784 = sand.u32 %s600, 1
        %s785 = smul.addr %s784, 16
        %s786 = scalar_lea.vmem [#allocation3], %s785
        %s787 = smul.u32 2, %s41
        %p788 = scmp.lt.s32.totalorder %s787, 7
        %s789 = scalar_select %p788, %s787, 7
        %s790 = smul.addr %s789, 8
        %s791 = scalar_lea.vmem %s0, %s790
        %s792 = smul.u32 2, %s41
        %s793 = smul.u32 2, %s41
        %v794 = vld [vmem:[%s791] sm:$0xff]
        %v795 = vld [vmem:[%s791 + $0x8] sm:$0xff]
        %v796 = vld [vmem:[%s1] sm:$0xff]
        %v797 = vld [vmem:[%s1 + $0x8] sm:$0xff]
        %v798 = vld [vmem:[%s1 + $0x10] sm:$0xff]
        %v799 = vld [vmem:[%s1 + $0x18] sm:$0xff]
        %v800 = vld [vmem:[%s2] sm:$0x1]
        %v802 = vlaneseq
        %v803 = vshrl.u32 %v802, 7
        %v804 = vsub.s32 0, %v803
        %v805 = vrot.slane %v800, %v804
        %vm807 = vcmask 261120
        %v809 = vsel %vm807, %v794, 0
        %v812 = vsel %vm807, %v795, 0
        %814 = vmatprep.subr.mxu0 0.0
        %815 = vmatpush1.msra.mxu0 %v796
        %816 = vmatprep.subr.mxu0 0.0
        %817 = vmatpush1.msra.mxu0 %v797
        %818 = vmatprep.subr.mxu0 0.0
        %819 = vmatpush1.msra.mxu0 %v798
        %820 = vmatprep.subr.mxu0 0.0
        %821 = vmatpush1.msra.mxu0 %v799
        %822 = vmatprep.subr.mxu0 0.0
        %823 = vmatpush1.msra.mxu0 0.0
        %824 = vmatprep.subr.mxu0 0.0
        %825 = vmatpush1.msra.mxu0 0.0
        %826 = vmatprep.subr.mxu0 0.0
        %827 = vmatpush1.msra.mxu0 0.0
        %828 = vmatprep.subr.mxu0 0.0
        %829 = vmatpush1.msra.mxu0 0.0
        %830 = vmatprep.subr.mxu0 0.0
        %831 = vmatpush1.msra.mxu0 0.0
        %832 = vmatprep.subr.mxu0 0.0
        %833 = vmatpush1.msra.mxu0 0.0
        %834 = vmatprep.subr.mxu0 0.0
        %835 = vmatpush1.msra.mxu0 0.0
        %836 = vmatprep.subr.mxu0 0.0
        %837 = vmatpush1.msra.mxu0 0.0
        %838 = vmatprep.subr.mxu0 0.0
        %839 = vmatpush1.msra.mxu0 0.0
        %840 = vmatprep.subr.mxu0 0.0
        %841 = vmatpush1.msra.mxu0 0.0
        %842 = vmatprep.subr.mxu0 0.0
        %843 = vmatpush1.msra.mxu0 0.0
        %844 = vmatprep.subr.mxu0 0.0
        %845 = vmatpush1.msra.mxu0 0.0
        %846 = vmatprep.subr.mxu0 0.0
        %847 = vmatpush1.msra.mxu0 0.0
        %848 = vmatprep.subr.mxu0 0.0
        %849 = vmatpush1.msra.mxu0 0.0
        %850 = vmatprep.subr.mxu0 0.0
        %851 = vmatpush1.msra.mxu0 0.0
        %852 = vmatprep.subr.mxu0 0.0
        %853 = vmatpush1.msra.mxu0 0.0
        %854 = vmatprep.subr.mxu0 0.0
        %855 = vmatpush1.msra.mxu0 0.0
        %856 = vmatprep.subr.mxu0 0.0
        %857 = vmatpush1.msra.mxu0 0.0
        %858 = vmatprep.subr.mxu0 0.0
        %859 = vmatpush1.msra.mxu0 0.0
        %860 = vmatprep.subr.mxu0 0.0
        %861 = vmatpush1.msra.mxu0 0.0
        %862 = vmatprep.subr.mxu0 0.0
        %863 = vmatpush1.msra.mxu0 0.0
        %864 = vmatprep.subr.mxu0 0.0
        %865 = vmatpush1.msra.mxu0 0.0
        %866 = vmatprep.subr.mxu0 0.0
        %867 = vmatpush1.msra.mxu0 0.0
        %868 = vmatprep.subr.mxu0 0.0
        %869 = vmatpush1.msra.mxu0 0.0
        %870 = vmatprep.subr.mxu0 0.0
        %871 = vmatpush1.msra.mxu0 0.0
        %872 = vmatprep.subr.mxu0 0.0
        %873 = vmatpush1.msra.mxu0 0.0
        %874 = vmatprep.subr.mxu0 0.0
        %875 = vmatpush1.msra.mxu0 0.0
        %876 = vmatprep.subr.mxu0 0.0
        %877 = vmatpush1.msra.mxu0 0.0
        %878 = vmatprep.mubr.f32.mxu0 0.0
        %879 = vmatmul.mubr.f32.gmra.mrb[0].mxu0 %v809
        %v880 = vpop.f32.mrb[0].mxu0
        %v881 = vadd.f32 %v805, %v880
        %v882 = vpop.f32.mrb[0].mxu0
        %883 = vmatprep.mubr.f32.mxu0 0.0
        %884 = vmatmul.mubr.f32.gmra.mrb[0].mxu0 %v812
        %v885 = vpop.f32.mrb[0].mxu0
        %v886 = vadd.f32 %v805, %v885
        %v887 = vpop.f32.mrb[0].mxu0
        %888 = vdwg.mxu0
        %vm889 = vcmask 326912
        %v890 = vsel %vm889, %v881, -inf
        %891 = vmax.xlane.f32.xlu0 %v890
        %v892 = vpop.xlane.xlu0 %891
        %v893 = vsel %vm889, %v886, -inf
        %894 = vmax.xlane.f32.xlu0 %v893
        %v895 = vpop.xlane.xlu0 %894
        %v896 = vsel %vm889, %v881, inf
        %897 = vmin.xlane.f32.xlu0 %v896
        %v898 = vpop.xlane.xlu0 %897
        %v899 = vsel %vm889, %v886, inf
        %900 = vmin.xlane.f32.xlu0 %v899
        %v901 = vpop.xlane.xlu0 %900
        %vm902 = vcmp.ge.f32.partialorder %v881, 0.0
        %vm903 = vcmp.ge.f32.partialorder %v886, 0.0
        %v904 = vmul.f32 %v881, %v892
        %v905 = vmul.f32 %v886, %v895
        %v906 = vmul.f32 %v881, %v898
        %v907 = vmul.f32 %v886, %v901
        %v908 = vsel %vm902, %v904, %v906
        %v909 = vsel %vm903, %v905, %v907
        %v912 = vcombine.high %v881, %v881
        %v914 = vunpack.c.l.s4 1966171168
        %v915 = vunpack.c.0.s8 %v914
        %v916 = vlaneseq
        %v917 = vshrl.u32 %v916, 7
        %v918 = vsub.s32 %v915, %v917
        %v919 = vrot.slane %v881, %v918
        %v921 = vunpack.c.l.s4 1966171168
        %v922 = vunpack.c.0.s8 %v921
        %v923 = vlaneseq
        %v924 = vshrl.u32 %v923, 7
        %v925 = vsub.s32 %v922, %v924
        %v926 = vrot.slane %v912, %v925
        %v927 = vcombine.high %v919, %v919
        %v928 = vcombine.high %v926, %v926
        %v930 = vunpack.c.l.s4 1966171168
        %v931 = vunpack.c.0.s8 %v930
        %v932 = vlaneseq
        %v933 = vshrl.u32 %v932, 7
        %v934 = vsub.s32 %v931, %v933
        %v935 = vrot.slane %v919, %v934
        %v937 = vunpack.c.l.s4 1966171168
        %v938 = vunpack.c.0.s8 %v937
        %v939 = vlaneseq
        %v940 = vshrl.u32 %v939, 7
        %v941 = vsub.s32 %v938, %v940
        %v942 = vrot.slane %v926, %v941
        %v944 = vunpack.c.l.s4 1966171168
        %v945 = vunpack.c.0.s8 %v944
        %v946 = vlaneseq
        %v947 = vshrl.u32 %v946, 7
        %v948 = vsub.s32 %v945, %v947
        %v949 = vrot.slane %v927, %v948
        %v951 = vunpack.c.l.s4 1966171168
        %v952 = vunpack.c.0.s8 %v951
        %v953 = vlaneseq
        %v954 = vshrl.u32 %v953, 7
        %v955 = vsub.s32 %v952, %v954
        %v956 = vrot.slane %v928, %v955
        %v957 = vcombine.high %v935, %v935
        %v958 = vcombine.high %v942, %v942
        %v959 = vcombine.high %v949, %v949
        %v960 = vcombine.high %v956, %v956
        %v961 = vcombine.high %v886, %v886
        %v963 = vunpack.c.l.s4 1966171168
        %v964 = vunpack.c.0.s8 %v963
        %v965 = vlaneseq
        %v966 = vshrl.u32 %v965, 7
        %v967 = vsub.s32 %v964, %v966
        %v968 = vrot.slane %v886, %v967
        %v970 = vunpack.c.l.s4 1966171168
        %v971 = vunpack.c.0.s8 %v970
        %v972 = vlaneseq
        %v973 = vshrl.u32 %v972, 7
        %v974 = vsub.s32 %v971, %v973
        %v975 = vrot.slane %v961, %v974
        %v976 = vcombine.high %v968, %v968
        %v977 = vcombine.high %v975, %v975
        %v979 = vunpack.c.l.s4 1966171168
        %v980 = vunpack.c.0.s8 %v979
        %v981 = vlaneseq
        %v982 = vshrl.u32 %v981, 7
        %v983 = vsub.s32 %v980, %v982
        %v984 = vrot.slane %v968, %v983
        %v986 = vunpack.c.l.s4 1966171168
        %v987 = vunpack.c.0.s8 %v986
        %v988 = vlaneseq
        %v989 = vshrl.u32 %v988, 7
        %v990 = vsub.s32 %v987, %v989
        %v991 = vrot.slane %v975, %v990
        %v993 = vunpack.c.l.s4 1966171168
        %v994 = vunpack.c.0.s8 %v993
        %v995 = vlaneseq
        %v996 = vshrl.u32 %v995, 7
        %v997 = vsub.s32 %v994, %v996
        %v998 = vrot.slane %v976, %v997
        %v1000 = vunpack.c.l.s4 1966171168
        %v1001 = vunpack.c.0.s8 %v1000
        %v1002 = vlaneseq
        %v1003 = vshrl.u32 %v1002, 7
        %v1004 = vsub.s32 %v1001, %v1003
        %v1005 = vrot.slane %v977, %v1004
        %v1006 = vcombine.high %v984, %v984
        %v1007 = vcombine.high %v991, %v991
        %v1008 = vcombine.high %v998, %v998
        %v1009 = vcombine.high %v1005, %v1005
        %v1012 = vcombine.high %v908, %v908
        %v1014 = vunpack.c.l.s4 1966171168
        %v1015 = vunpack.c.0.s8 %v1014
        %v1016 = vlaneseq
        %v1017 = vshrl.u32 %v1016, 7
        %v1018 = vsub.s32 %v1015, %v1017
        %v1019 = vrot.slane %v908, %v1018
        %v1021 = vunpack.c.l.s4 1966171168
        %v1022 = vunpack.c.0.s8 %v1021
        %v1023 = vlaneseq
        %v1024 = vshrl.u32 %v1023, 7
        %v1025 = vsub.s32 %v1022, %v1024
        %v1026 = vrot.slane %v1012, %v1025
        %v1027 = vcombine.high %v1019, %v1019
        %v1028 = vcombine.high %v1026, %v1026
        %v1030 = vunpack.c.l.s4 1966171168
        %v1031 = vunpack.c.0.s8 %v1030
        %v1032 = vlaneseq
        %v1033 = vshrl.u32 %v1032, 7
        %v1034 = vsub.s32 %v1031, %v1033
        %v1035 = vrot.slane %v1019, %v1034
        %v1037 = vunpack.c.l.s4 1966171168
        %v1038 = vunpack.c.0.s8 %v1037
        %v1039 = vlaneseq
        %v1040 = vshrl.u32 %v1039, 7
        %v1041 = vsub.s32 %v1038, %v1040
        %v1042 = vrot.slane %v1026, %v1041
        %v1044 = vunpack.c.l.s4 1966171168
        %v1045 = vunpack.c.0.s8 %v1044
        %v1046 = vlaneseq
        %v1047 = vshrl.u32 %v1046, 7
        %v1048 = vsub.s32 %v1045, %v1047
        %v1049 = vrot.slane %v1027, %v1048
        %v1051 = vunpack.c.l.s4 1966171168
        %v1052 = vunpack.c.0.s8 %v1051
        %v1053 = vlaneseq
        %v1054 = vshrl.u32 %v1053, 7
        %v1055 = vsub.s32 %v1052, %v1054
        %v1056 = vrot.slane %v1028, %v1055
        %v1057 = vcombine.high %v1035, %v1035
        %v1058 = vcombine.high %v1042, %v1042
        %v1059 = vcombine.high %v1049, %v1049
        %v1060 = vcombine.high %v1056, %v1056
        %v1061 = vcombine.high %v909, %v909
        %v1063 = vunpack.c.l.s4 1966171168
        %v1064 = vunpack.c.0.s8 %v1063
        %v1065 = vlaneseq
        %v1066 = vshrl.u32 %v1065, 7
        %v1067 = vsub.s32 %v1064, %v1066
        %v1068 = vrot.slane %v909, %v1067
        %v1070 = vunpack.c.l.s4 1966171168
        %v1071 = vunpack.c.0.s8 %v1070
        %v1072 = vlaneseq
        %v1073 = vshrl.u32 %v1072, 7
        %v1074 = vsub.s32 %v1071, %v1073
        %v1075 = vrot.slane %v1061, %v1074
        %v1076 = vcombine.high %v1068, %v1068
        %v1077 = vcombine.high %v1075, %v1075
        %v1079 = vunpack.c.l.s4 1966171168
        %v1080 = vunpack.c.0.s8 %v1079
        %v1081 = vlaneseq
        %v1082 = vshrl.u32 %v1081, 7
        %v1083 = vsub.s32 %v1080, %v1082
        %v1084 = vrot.slane %v1068, %v1083
        %v1086 = vunpack.c.l.s4 1966171168
        %v1087 = vunpack.c.0.s8 %v1086
        %v1088 = vlaneseq
        %v1089 = vshrl.u32 %v1088, 7
        %v1090 = vsub.s32 %v1087, %v1089
        %v1091 = vrot.slane %v1075, %v1090
        %v1093 = vunpack.c.l.s4 1966171168
        %v1094 = vunpack.c.0.s8 %v1093
        %v1095 = vlaneseq
        %v1096 = vshrl.u32 %v1095, 7
        %v1097 = vsub.s32 %v1094, %v1096
        %v1098 = vrot.slane %v1076, %v1097
        %v1100 = vunpack.c.l.s4 1966171168
        %v1101 = vunpack.c.0.s8 %v1100
        %v1102 = vlaneseq
        %v1103 = vshrl.u32 %v1102, 7
        %v1104 = vsub.s32 %v1101, %v1103
        %v1105 = vrot.slane %v1077, %v1104
        %v1106 = vcombine.high %v1084, %v1084
        %v1107 = vcombine.high %v1091, %v1091
        %v1108 = vcombine.high %v1098, %v1098
        %v1109 = vcombine.high %v1105, %v1105
        %v1110 = vlaneseq
        %v1111 = vshrl.u32 %v1110, 7
        %v1112 = vsub.s32 0, %v1111
        %v1113 = vrot.slane %v881, %v1112
        %s1115 = sor.u32 256, 32
        %1116 = vbcast.lane.b32.xlu0 %v1113, %s1115
        %v1117 = vpop.permute.xlu0 %1116
        %v1118 = vlaneseq
        %v1119 = vshrl.u32 %v1118, 7
        %v1120 = vsub.s32 1, %v1119
        %v1121 = vrot.slane %v881, %v1120
        %s1123 = sor.u32 256, 32
        %1124 = vbcast.lane.b32.xlu0 %v1121, %s1123
        %v1125 = vpop.permute.xlu0 %1124
        %v1126 = vlaneseq
        %v1127 = vshrl.u32 %v1126, 7
        %v1128 = vsub.s32 2, %v1127
        %v1129 = vrot.slane %v881, %v1128
        %s1131 = sor.u32 256, 32
        %1132 = vbcast.lane.b32.xlu0 %v1129, %s1131
        %v1133 = vpop.permute.xlu0 %1132
        %v1134 = vlaneseq
        %v1135 = vshrl.u32 %v1134, 7
        %v1136 = vsub.s32 3, %v1135
        %v1137 = vrot.slane %v881, %v1136
        %s1139 = sor.u32 256, 32
        %1140 = vbcast.lane.b32.xlu0 %v1137, %s1139
        %v1141 = vpop.permute.xlu0 %1140
        %v1142 = vlaneseq
        %v1143 = vshrl.u32 %v1142, 7
        %v1144 = vsub.s32 4, %v1143
        %v1145 = vrot.slane %v881, %v1144
        %s1147 = sor.u32 256, 32
        %1148 = vbcast.lane.b32.xlu0 %v1145, %s1147
        %v1149 = vpop.permute.xlu0 %1148
        %v1150 = vlaneseq
        %v1151 = vshrl.u32 %v1150, 7
        %v1152 = vsub.s32 5, %v1151
        %v1153 = vrot.slane %v881, %v1152
        %s1155 = sor.u32 256, 32
        %1156 = vbcast.lane.b32.xlu0 %v1153, %s1155
        %v1157 = vpop.permute.xlu0 %1156
        %v1158 = vlaneseq
        %v1159 = vshrl.u32 %v1158, 7
        %v1160 = vsub.s32 6, %v1159
        %v1161 = vrot.slane %v881, %v1160
        %s1163 = sor.u32 256, 32
        %1164 = vbcast.lane.b32.xlu0 %v1161, %s1163
        %v1165 = vpop.permute.xlu0 %1164
        %v1166 = vlaneseq
        %v1167 = vshrl.u32 %v1166, 7
        %v1168 = vsub.s32 7, %v1167
        %v1169 = vrot.slane %v881, %v1168
        %s1171 = sor.u32 256, 32
        %1172 = vbcast.lane.b32.xlu0 %v1169, %s1171
        %v1173 = vpop.permute.xlu0 %1172
        %v1174 = vlaneseq
        %v1175 = vshrl.u32 %v1174, 7
        %v1176 = vsub.s32 0, %v1175
        %v1177 = vrot.slane %v886, %v1176
        %s1179 = sor.u32 256, 32
        %1180 = vbcast.lane.b32.xlu0 %v1177, %s1179
        %v1181 = vpop.permute.xlu0 %1180
        %v1182 = vlaneseq
        %v1183 = vshrl.u32 %v1182, 7
        %v1184 = vsub.s32 1, %v1183
        %v1185 = vrot.slane %v886, %v1184
        %s1187 = sor.u32 256, 32
        %1188 = vbcast.lane.b32.xlu0 %v1185, %s1187
        %v1189 = vpop.permute.xlu0 %1188
        %v1190 = vlaneseq
        %v1191 = vshrl.u32 %v1190, 7
        %v1192 = vsub.s32 2, %v1191
        %v1193 = vrot.slane %v886, %v1192
        %s1195 = sor.u32 256, 32
        %1196 = vbcast.lane.b32.xlu0 %v1193, %s1195
        %v1197 = vpop.permute.xlu0 %1196
        %v1198 = vlaneseq
        %v1199 = vshrl.u32 %v1198, 7
        %v1200 = vsub.s32 3, %v1199
        %v1201 = vrot.slane %v886, %v1200
        %s1203 = sor.u32 256, 32
        %1204 = vbcast.lane.b32.xlu0 %v1201, %s1203
        %v1205 = vpop.permute.xlu0 %1204
        %v1206 = vlaneseq
        %v1207 = vshrl.u32 %v1206, 7
        %v1208 = vsub.s32 4, %v1207
        %v1209 = vrot.slane %v886, %v1208
        %s1211 = sor.u32 256, 32
        %1212 = vbcast.lane.b32.xlu0 %v1209, %s1211
        %v1213 = vpop.permute.xlu0 %1212
        %v1214 = vlaneseq
        %v1215 = vshrl.u32 %v1214, 7
        %v1216 = vsub.s32 5, %v1215
        %v1217 = vrot.slane %v886, %v1216
        %s1219 = sor.u32 256, 32
        %1220 = vbcast.lane.b32.xlu0 %v1217, %s1219
        %v1221 = vpop.permute.xlu0 %1220
        %v1222 = vlaneseq
        %v1223 = vshrl.u32 %v1222, 7
        %v1224 = vsub.s32 6, %v1223
        %v1225 = vrot.slane %v886, %v1224
        %s1227 = sor.u32 256, 32
        %1228 = vbcast.lane.b32.xlu0 %v1225, %s1227
        %v1229 = vpop.permute.xlu0 %1228
        %v1230 = vlaneseq
        %v1231 = vshrl.u32 %v1230, 7
        %v1232 = vsub.s32 7, %v1231
        %v1233 = vrot.slane %v886, %v1232
        %s1235 = sor.u32 256, 32
        %1236 = vbcast.lane.b32.xlu0 %v1233, %s1235
        %v1237 = vpop.permute.xlu0 %1236
        %v1238 = vlaneseq
        %v1239 = vshrl.u32 %v1238, 7
        %v1240 = vsub.s32 0, %v1239
        %v1241 = vrot.slane %v935, %v1240
        %v1242 = vlaneseq
        %v1243 = vshrl.u32 %v1242, 7
        %v1244 = vsub.s32 0, %v1243
        %v1245 = vrot.slane %v949, %v1244
        %v1246 = vlaneseq
        %v1247 = vshrl.u32 %v1246, 7
        %v1248 = vsub.s32 0, %v1247
        %v1249 = vrot.slane %v957, %v1248
        %v1250 = vlaneseq
        %v1251 = vshrl.u32 %v1250, 7
        %v1252 = vsub.s32 0, %v1251
        %v1253 = vrot.slane %v959, %v1252
        %v1254 = vlaneseq
        %v1255 = vshrl.u32 %v1254, 7
        %v1256 = vsub.s32 0, %v1255
        %v1257 = vrot.slane %v942, %v1256
        %v1258 = vlaneseq
        %v1259 = vshrl.u32 %v1258, 7
        %v1260 = vsub.s32 0, %v1259
        %v1261 = vrot.slane %v956, %v1260
        %v1262 = vlaneseq
        %v1263 = vshrl.u32 %v1262, 7
        %v1264 = vsub.s32 0, %v1263
        %v1265 = vrot.slane %v958, %v1264
        %v1266 = vlaneseq
        %v1267 = vshrl.u32 %v1266, 7
        %v1268 = vsub.s32 0, %v1267
        %v1269 = vrot.slane %v960, %v1268
        %v1270 = vlaneseq
        %v1271 = vshrl.u32 %v1270, 7
        %v1272 = vsub.s32 0, %v1271
        %v1273 = vrot.slane %v984, %v1272
        %v1274 = vlaneseq
        %v1275 = vshrl.u32 %v1274, 7
        %v1276 = vsub.s32 0, %v1275
        %v1277 = vrot.slane %v998, %v1276
        %v1278 = vlaneseq
        %v1279 = vshrl.u32 %v1278, 7
        %v1280 = vsub.s32 0, %v1279
        %v1281 = vrot.slane %v1006, %v1280
        %v1282 = vlaneseq
        %v1283 = vshrl.u32 %v1282, 7
        %v1284 = vsub.s32 0, %v1283
        %v1285 = vrot.slane %v1008, %v1284
        %v1286 = vlaneseq
        %v1287 = vshrl.u32 %v1286, 7
        %v1288 = vsub.s32 0, %v1287
        %v1289 = vrot.slane %v991, %v1288
        %v1290 = vlaneseq
        %v1291 = vshrl.u32 %v1290, 7
        %v1292 = vsub.s32 0, %v1291
        %v1293 = vrot.slane %v1005, %v1292
        %v1294 = vlaneseq
        %v1295 = vshrl.u32 %v1294, 7
        %v1296 = vsub.s32 0, %v1295
        %v1297 = vrot.slane %v1007, %v1296
        %v1298 = vlaneseq
        %v1299 = vshrl.u32 %v1298, 7
        %v1300 = vsub.s32 0, %v1299
        %v1301 = vrot.slane %v1009, %v1300
        %v1318 = vmul.f32 %v1117, %v1241
        %v1319 = vmul.f32 %v1125, %v1245
        %v1320 = vmul.f32 %v1133, %v1249
        %v1321 = vmul.f32 %v1141, %v1253
        %v1322 = vmul.f32 %v1149, %v1257
        %v1323 = vmul.f32 %v1157, %v1261
        %v1324 = vmul.f32 %v1165, %v1265
        %v1325 = vmul.f32 %v1173, %v1269
        %v1326 = vmul.f32 %v1181, %v1273
        %v1327 = vmul.f32 %v1189, %v1277
        %v1328 = vmul.f32 %v1197, %v1281
        %v1329 = vmul.f32 %v1205, %v1285
        %v1330 = vmul.f32 %v1213, %v1289
        %v1331 = vmul.f32 %v1221, %v1293
        %v1332 = vmul.f32 %v1229, %v1297
        %v1333 = vmul.f32 %v1237, %v1301
        %v1334 = vlaneseq
        %v1335 = vshrl.u32 %v1334, 7
        %v1336 = vsub.s32 0, %v1335
        %v1337 = vrot.slane %v1035, %v1336
        %v1338 = vlaneseq
        %v1339 = vshrl.u32 %v1338, 7
        %v1340 = vsub.s32 0, %v1339
        %v1341 = vrot.slane %v1049, %v1340
        %v1342 = vlaneseq
        %v1343 = vshrl.u32 %v1342, 7
        %v1344 = vsub.s32 0, %v1343
        %v1345 = vrot.slane %v1057, %v1344
        %v1346 = vlaneseq
        %v1347 = vshrl.u32 %v1346, 7
        %v1348 = vsub.s32 0, %v1347
        %v1349 = vrot.slane %v1059, %v1348
        %v1350 = vlaneseq
        %v1351 = vshrl.u32 %v1350, 7
        %v1352 = vsub.s32 0, %v1351
        %v1353 = vrot.slane %v1042, %v1352
        %v1354 = vlaneseq
        %v1355 = vshrl.u32 %v1354, 7
        %v1356 = vsub.s32 0, %v1355
        %v1357 = vrot.slane %v1056, %v1356
        %v1358 = vlaneseq
        %v1359 = vshrl.u32 %v1358, 7
        %v1360 = vsub.s32 0, %v1359
        %v1361 = vrot.slane %v1058, %v1360
        %v1362 = vlaneseq
        %v1363 = vshrl.u32 %v1362, 7
        %v1364 = vsub.s32 0, %v1363
        %v1365 = vrot.slane %v1060, %v1364
        %v1366 = vlaneseq
        %v1367 = vshrl.u32 %v1366, 7
        %v1368 = vsub.s32 0, %v1367
        %v1369 = vrot.slane %v1084, %v1368
        %v1370 = vlaneseq
        %v1371 = vshrl.u32 %v1370, 7
        %v1372 = vsub.s32 0, %v1371
        %v1373 = vrot.slane %v1098, %v1372
        %v1374 = vlaneseq
        %v1375 = vshrl.u32 %v1374, 7
        %v1376 = vsub.s32 0, %v1375
        %v1377 = vrot.slane %v1106, %v1376
        %v1378 = vlaneseq
        %v1379 = vshrl.u32 %v1378, 7
        %v1380 = vsub.s32 0, %v1379
        %v1381 = vrot.slane %v1108, %v1380
        %v1382 = vlaneseq
        %v1383 = vshrl.u32 %v1382, 7
        %v1384 = vsub.s32 0, %v1383
        %v1385 = vrot.slane %v1091, %v1384
        %v1386 = vlaneseq
        %v1387 = vshrl.u32 %v1386, 7
        %v1388 = vsub.s32 0, %v1387
        %v1389 = vrot.slane %v1105, %v1388
        %v1390 = vlaneseq
        %v1391 = vshrl.u32 %v1390, 7
        %v1392 = vsub.s32 0, %v1391
        %v1393 = vrot.slane %v1107, %v1392
        %v1394 = vlaneseq
        %v1395 = vshrl.u32 %v1394, 7
        %v1396 = vsub.s32 0, %v1395
        %v1397 = vrot.slane %v1109, %v1396
        %v1414 = vsub.f32 %v1318, %v1337
        %v1415 = vsub.f32 %v1319, %v1341
        %v1416 = vsub.f32 %v1320, %v1345
        %v1417 = vsub.f32 %v1321, %v1349
        %v1418 = vsub.f32 %v1322, %v1353
        %v1419 = vsub.f32 %v1323, %v1357
        %v1420 = vsub.f32 %v1324, %v1361
        %v1421 = vsub.f32 %v1325, %v1365
        %v1422 = vsub.f32 %v1326, %v1369
        %v1423 = vsub.f32 %v1327, %v1373
        %v1424 = vsub.f32 %v1328, %v1377
        %v1425 = vsub.f32 %v1329, %v1381
        %v1426 = vsub.f32 %v1330, %v1385
        %v1427 = vsub.f32 %v1331, %v1389
        %v1428 = vsub.f32 %v1332, %v1393
        %v1429 = vsub.f32 %v1333, %v1397
        %v1430 = vmul.f32 %v1414, 1.442695
        %v1431 = vpow.pop %v1430
        %v1432 = vmul.f32 %v1415, 1.442695
        %v1433 = vpow.pop %v1432
        %v1434 = vmul.f32 %v1416, 1.442695
        %v1435 = vpow.pop %v1434
        %v1436 = vmul.f32 %v1417, 1.442695
        %v1437 = vpow.pop %v1436
        %v1438 = vmul.f32 %v1418, 1.442695
        %v1439 = vpow.pop %v1438
        %v1440 = vmul.f32 %v1419, 1.442695
        %v1441 = vpow.pop %v1440
        %v1442 = vmul.f32 %v1420, 1.442695
        %v1443 = vpow.pop %v1442
        %v1444 = vmul.f32 %v1421, 1.442695
        %v1445 = vpow.pop %v1444
        %v1446 = vmul.f32 %v1422, 1.442695
        %v1447 = vpow.pop %v1446
        %v1448 = vmul.f32 %v1423, 1.442695
        %v1449 = vpow.pop %v1448
        %v1450 = vmul.f32 %v1424, 1.442695
        %v1451 = vpow.pop %v1450
        %v1452 = vmul.f32 %v1425, 1.442695
        %v1453 = vpow.pop %v1452
        %v1454 = vmul.f32 %v1426, 1.442695
        %v1455 = vpow.pop %v1454
        %v1456 = vmul.f32 %v1427, 1.442695
        %v1457 = vpow.pop %v1456
        %v1458 = vmul.f32 %v1428, 1.442695
        %v1459 = vpow.pop %v1458
        %v1460 = vmul.f32 %v1429, 1.442695
        %v1461 = vpow.pop %v1460
        %s1463 = sor.u32 256, 40
        %1464 = vbcast.lane.b32.xlu0 %v1113, %s1463
        %v1465 = vpop.permute.xlu0 %1464
        %s1467 = sor.u32 256, 40
        %1468 = vbcast.lane.b32.xlu0 %v1121, %s1467
        %v1469 = vpop.permute.xlu0 %1468
        %s1471 = sor.u32 256, 40
        %1472 = vbcast.lane.b32.xlu0 %v1129, %s1471
        %v1473 = vpop.permute.xlu0 %1472
        %s1475 = sor.u32 256, 40
        %1476 = vbcast.lane.b32.xlu0 %v1137, %s1475
        %v1477 = vpop.permute.xlu0 %1476
        %s1479 = sor.u32 256, 40
        %1480 = vbcast.lane.b32.xlu0 %v1145, %s1479
        %v1481 = vpop.permute.xlu0 %1480
        %s1483 = sor.u32 256, 40
        %1484 = vbcast.lane.b32.xlu0 %v1153, %s1483
        %v1485 = vpop.permute.xlu0 %1484
        %s1487 = sor.u32 256, 40
        %1488 = vbcast.lane.b32.xlu0 %v1161, %s1487
        %v1489 = vpop.permute.xlu0 %1488
        %s1491 = sor.u32 256, 40
        %1492 = vbcast.lane.b32.xlu0 %v1169, %s1491
        %v1493 = vpop.permute.xlu0 %1492
        %s1495 = sor.u32 256, 40
        %1496 = vbcast.lane.b32.xlu0 %v1177, %s1495
        %v1497 = vpop.permute.xlu0 %1496
        %s1499 = sor.u32 256, 40
        %1500 = vbcast.lane.b32.xlu0 %v1185, %s1499
        %v1501 = vpop.permute.xlu0 %1500
        %s1503 = sor.u32 256, 40
        %1504 = vbcast.lane.b32.xlu0 %v1193, %s1503
        %v1505 = vpop.permute.xlu0 %1504
        %s1507 = sor.u32 256, 40
        %1508 = vbcast.lane.b32.xlu0 %v1201, %s1507
        %v1509 = vpop.permute.xlu0 %1508
        %s1511 = sor.u32 256, 40
        %1512 = vbcast.lane.b32.xlu0 %v1209, %s1511
        %v1513 = vpop.permute.xlu0 %1512
        %s1515 = sor.u32 256, 40
        %1516 = vbcast.lane.b32.xlu0 %v1217, %s1515
        %v1517 = vpop.permute.xlu0 %1516
        %s1519 = sor.u32 256, 40
        %1520 = vbcast.lane.b32.xlu0 %v1225, %s1519
        %v1521 = vpop.permute.xlu0 %1520
        %s1523 = sor.u32 256, 40
        %1524 = vbcast.lane.b32.xlu0 %v1233, %s1523
        %v1525 = vpop.permute.xlu0 %1524
        %v1526 = vmul.f32 %v1465, %v1431
        %v1527 = vmul.f32 %v1469, %v1433
        %v1528 = vmul.f32 %v1473, %v1435
        %v1529 = vmul.f32 %v1477, %v1437
        %v1530 = vmul.f32 %v1481, %v1439
        %v1531 = vmul.f32 %v1485, %v1441
        %v1532 = vmul.f32 %v1489, %v1443
        %v1533 = vmul.f32 %v1493, %v1445
        %v1534 = vmul.f32 %v1497, %v1447
        %v1535 = vmul.f32 %v1501, %v1449
        %v1536 = vmul.f32 %v1505, %v1451
        %v1537 = vmul.f32 %v1509, %v1453
        %v1538 = vmul.f32 %v1513, %v1455
        %v1539 = vmul.f32 %v1517, %v1457
        %v1540 = vmul.f32 %v1521, %v1459
        %v1541 = vmul.f32 %v1525, %v1461
        %v1542 = vsel %vm807, %v1526, 0.0
        %v1543 = vrot.slane %v1542, 4
        %v1544 = vadd.f32 %v1542, %v1543
        %v1545 = vrot.slane %v1544, 2
        %v1546 = vadd.f32 %v1544, %v1545
        %v1547 = vrot.slane %v1546, 1
        %v1548 = vadd.f32 %v1546, %v1547
        %v1549 = vsel %vm807, %v1527, 0.0
        %v1550 = vrot.slane %v1549, 4
        %v1551 = vadd.f32 %v1549, %v1550
        %v1552 = vrot.slane %v1551, 2
        %v1553 = vadd.f32 %v1551, %v1552
        %v1554 = vrot.slane %v1553, 1
        %v1555 = vadd.f32 %v1553, %v1554
        %v1556 = vsel %vm807, %v1528, 0.0
        %v1557 = vrot.slane %v1556, 4
        %v1558 = vadd.f32 %v1556, %v1557
        %v1559 = vrot.slane %v1558, 2
        %v1560 = vadd.f32 %v1558, %v1559
        %v1561 = vrot.slane %v1560, 1
        %v1562 = vadd.f32 %v1560, %v1561
        %v1563 = vsel %vm807, %v1529, 0.0
        %v1564 = vrot.slane %v1563, 4
        %v1565 = vadd.f32 %v1563, %v1564
        %v1566 = vrot.slane %v1565, 2
        %v1567 = vadd.f32 %v1565, %v1566
        %v1568 = vrot.slane %v1567, 1
        %v1569 = vadd.f32 %v1567, %v1568
        %v1570 = vsel %vm807, %v1530, 0.0
        %v1571 = vrot.slane %v1570, 4
        %v1572 = vadd.f32 %v1570, %v1571
        %v1573 = vrot.slane %v1572, 2
        %v1574 = vadd.f32 %v1572, %v1573
        %v1575 = vrot.slane %v1574, 1
        %v1576 = vadd.f32 %v1574, %v1575
        %v1577 = vsel %vm807, %v1531, 0.0
        %v1578 = vrot.slane %v1577, 4
        %v1579 = vadd.f32 %v1577, %v1578
        %v1580 = vrot.slane %v1579, 2
        %v1581 = vadd.f32 %v1579, %v1580
        %v1582 = vrot.slane %v1581, 1
        %v1583 = vadd.f32 %v1581, %v1582
        %v1584 = vsel %vm807, %v1532, 0.0
        %v1585 = vrot.slane %v1584, 4
        %v1586 = vadd.f32 %v1584, %v1585
        %v1587 = vrot.slane %v1586, 2
        %v1588 = vadd.f32 %v1586, %v1587
        %v1589 = vrot.slane %v1588, 1
        %v1590 = vadd.f32 %v1588, %v1589
        %v1591 = vsel %vm807, %v1533, 0.0
        %v1592 = vrot.slane %v1591, 4
        %v1593 = vadd.f32 %v1591, %v1592
        %v1594 = vrot.slane %v1593, 2
        %v1595 = vadd.f32 %v1593, %v1594
        %v1596 = vrot.slane %v1595, 1
        %v1597 = vadd.f32 %v1595, %v1596
        %v1598 = vsel %vm807, %v1534, 0.0
        %v1599 = vrot.slane %v1598, 4
        %v1600 = vadd.f32 %v1598, %v1599
        %v1601 = vrot.slane %v1600, 2
        %v1602 = vadd.f32 %v1600, %v1601
        %v1603 = vrot.slane %v1602, 1
        %v1604 = vadd.f32 %v1602, %v1603
        %v1605 = vsel %vm807, %v1535, 0.0
        %v1606 = vrot.slane %v1605, 4
        %v1607 = vadd.f32 %v1605, %v1606
        %v1608 = vrot.slane %v1607, 2
        %v1609 = vadd.f32 %v1607, %v1608
        %v1610 = vrot.slane %v1609, 1
        %v1611 = vadd.f32 %v1609, %v1610
        %v1612 = vsel %vm807, %v1536, 0.0
        %v1613 = vrot.slane %v1612, 4
        %v1614 = vadd.f32 %v1612, %v1613
        %v1615 = vrot.slane %v1614, 2
        %v1616 = vadd.f32 %v1614, %v1615
        %v1617 = vrot.slane %v1616, 1
        %v1618 = vadd.f32 %v1616, %v1617
        %v1619 = vsel %vm807, %v1537, 0.0
        %v1620 = vrot.slane %v1619, 4
        %v1621 = vadd.f32 %v1619, %v1620
        %v1622 = vrot.slane %v1621, 2
        %v1623 = vadd.f32 %v1621, %v1622
        %v1624 = vrot.slane %v1623, 1
        %v1625 = vadd.f32 %v1623, %v1624
        %v1626 = vsel %vm807, %v1538, 0.0
        %v1627 = vrot.slane %v1626, 4
        %v1628 = vadd.f32 %v1626, %v1627
        %v1629 = vrot.slane %v1628, 2
        %v1630 = vadd.f32 %v1628, %v1629
        %v1631 = vrot.slane %v1630, 1
        %v1632 = vadd.f32 %v1630, %v1631
        %v1633 = vsel %vm807, %v1539, 0.0
        %v1634 = vrot.slane %v1633, 4
        %v1635 = vadd.f32 %v1633, %v1634
        %v1636 = vrot.slane %v1635, 2
        %v1637 = vadd.f32 %v1635, %v1636
        %v1638 = vrot.slane %v1637, 1
        %v1639 = vadd.f32 %v1637, %v1638
        %v1640 = vsel %vm807, %v1540, 0.0
        %v1641 = vrot.slane %v1640, 4
        %v1642 = vadd.f32 %v1640, %v1641
        %v1643 = vrot.slane %v1642, 2
        %v1644 = vadd.f32 %v1642, %v1643
        %v1645 = vrot.slane %v1644, 1
        %v1646 = vadd.f32 %v1644, %v1645
        %v1647 = vsel %vm807, %v1541, 0.0
        %v1648 = vrot.slane %v1647, 4
        %v1649 = vadd.f32 %v1647, %v1648
        %v1650 = vrot.slane %v1649, 2
        %v1651 = vadd.f32 %v1649, %v1650
        %v1652 = vrot.slane %v1651, 1
        %v1653 = vadd.f32 %v1651, %v1652
        %v1654 = vadd.f32 %v1548, 0.0
        %v1655 = vadd.f32 %v1555, 0.0
        %v1656 = vadd.f32 %v1562, 0.0
        %v1657 = vadd.f32 %v1569, 0.0
        %v1658 = vadd.f32 %v1576, 0.0
        %v1659 = vadd.f32 %v1583, 0.0
        %v1660 = vadd.f32 %v1590, 0.0
        %v1661 = vadd.f32 %v1597, 0.0
        %v1662 = vadd.f32 %v1604, 0.0
        %v1663 = vadd.f32 %v1611, 0.0
        %v1664 = vadd.f32 %v1618, 0.0
        %v1665 = vadd.f32 %v1625, 0.0
        %v1666 = vadd.f32 %v1632, 0.0
        %v1667 = vadd.f32 %v1639, 0.0
        %v1668 = vadd.f32 %v1646, 0.0
        %v1669 = vadd.f32 %v1653, 0.0
        %v1670 = vsel %vm807, %v1431, 0.0
        %v1671 = vrot.slane %v1670, 4
        %v1672 = vadd.f32 %v1670, %v1671
        %v1673 = vrot.slane %v1672, 2
        %v1674 = vadd.f32 %v1672, %v1673
        %v1675 = vrot.slane %v1674, 1
        %v1676 = vadd.f32 %v1674, %v1675
        %v1677 = vsel %vm807, %v1433, 0.0
        %v1678 = vrot.slane %v1677, 4
        %v1679 = vadd.f32 %v1677, %v1678
        %v1680 = vrot.slane %v1679, 2
        %v1681 = vadd.f32 %v1679, %v1680
        %v1682 = vrot.slane %v1681, 1
        %v1683 = vadd.f32 %v1681, %v1682
        %v1684 = vsel %vm807, %v1435, 0.0
        %v1685 = vrot.slane %v1684, 4
        %v1686 = vadd.f32 %v1684, %v1685
        %v1687 = vrot.slane %v1686, 2
        %v1688 = vadd.f32 %v1686, %v1687
        %v1689 = vrot.slane %v1688, 1
        %v1690 = vadd.f32 %v1688, %v1689
        %v1691 = vsel %vm807, %v1437, 0.0
        %v1692 = vrot.slane %v1691, 4
        %v1693 = vadd.f32 %v1691, %v1692
        %v1694 = vrot.slane %v1693, 2
        %v1695 = vadd.f32 %v1693, %v1694
        %v1696 = vrot.slane %v1695, 1
        %v1697 = vadd.f32 %v1695, %v1696
        %v1698 = vsel %vm807, %v1439, 0.0
        %v1699 = vrot.slane %v1698, 4
        %v1700 = vadd.f32 %v1698, %v1699
        %v1701 = vrot.slane %v1700, 2
        %v1702 = vadd.f32 %v1700, %v1701
        %v1703 = vrot.slane %v1702, 1
        %v1704 = vadd.f32 %v1702, %v1703
        %v1705 = vsel %vm807, %v1441, 0.0
        %v1706 = vrot.slane %v1705, 4
        %v1707 = vadd.f32 %v1705, %v1706
        %v1708 = vrot.slane %v1707, 2
        %v1709 = vadd.f32 %v1707, %v1708
        %v1710 = vrot.slane %v1709, 1
        %v1711 = vadd.f32 %v1709, %v1710
        %v1712 = vsel %vm807, %v1443, 0.0
        %v1713 = vrot.slane %v1712, 4
        %v1714 = vadd.f32 %v1712, %v1713
        %v1715 = vrot.slane %v1714, 2
        %v1716 = vadd.f32 %v1714, %v1715
        %v1717 = vrot.slane %v1716, 1
        %v1718 = vadd.f32 %v1716, %v1717
        %v1719 = vsel %vm807, %v1445, 0.0
        %v1720 = vrot.slane %v1719, 4
        %v1721 = vadd.f32 %v1719, %v1720
        %v1722 = vrot.slane %v1721, 2
        %v1723 = vadd.f32 %v1721, %v1722
        %v1724 = vrot.slane %v1723, 1
        %v1725 = vadd.f32 %v1723, %v1724
        %v1726 = vsel %vm807, %v1447, 0.0
        %v1727 = vrot.slane %v1726, 4
        %v1728 = vadd.f32 %v1726, %v1727
        %v1729 = vrot.slane %v1728, 2
        %v1730 = vadd.f32 %v1728, %v1729
        %v1731 = vrot.slane %v1730, 1
        %v1732 = vadd.f32 %v1730, %v1731
        %v1733 = vsel %vm807, %v1449, 0.0
        %v1734 = vrot.slane %v1733, 4
        %v1735 = vadd.f32 %v1733, %v1734
        %v1736 = vrot.slane %v1735, 2
        %v1737 = vadd.f32 %v1735, %v1736
        %v1738 = vrot.slane %v1737, 1
        %v1739 = vadd.f32 %v1737, %v1738
        %v1740 = vsel %vm807, %v1451, 0.0
        %v1741 = vrot.slane %v1740, 4
        %v1742 = vadd.f32 %v1740, %v1741
        %v1743 = vrot.slane %v1742, 2
        %v1744 = vadd.f32 %v1742, %v1743
        %v1745 = vrot.slane %v1744, 1
        %v1746 = vadd.f32 %v1744, %v1745
        %v1747 = vsel %vm807, %v1453, 0.0
        %v1748 = vrot.slane %v1747, 4
        %v1749 = vadd.f32 %v1747, %v1748
        %v1750 = vrot.slane %v1749, 2
        %v1751 = vadd.f32 %v1749, %v1750
        %v1752 = vrot.slane %v1751, 1
        %v1753 = vadd.f32 %v1751, %v1752
        %v1754 = vsel %vm807, %v1455, 0.0
        %v1755 = vrot.slane %v1754, 4
        %v1756 = vadd.f32 %v1754, %v1755
        %v1757 = vrot.slane %v1756, 2
        %v1758 = vadd.f32 %v1756, %v1757
        %v1759 = vrot.slane %v1758, 1
        %v1760 = vadd.f32 %v1758, %v1759
        %v1761 = vsel %vm807, %v1457, 0.0
        %v1762 = vrot.slane %v1761, 4
        %v1763 = vadd.f32 %v1761, %v1762
        %v1764 = vrot.slane %v1763, 2
        %v1765 = vadd.f32 %v1763, %v1764
        %v1766 = vrot.slane %v1765, 1
        %v1767 = vadd.f32 %v1765, %v1766
        %v1768 = vsel %vm807, %v1459, 0.0
        %v1769 = vrot.slane %v1768, 4
        %v1770 = vadd.f32 %v1768, %v1769
        %v1771 = vrot.slane %v1770, 2
        %v1772 = vadd.f32 %v1770, %v1771
        %v1773 = vrot.slane %v1772, 1
        %v1774 = vadd.f32 %v1772, %v1773
        %v1775 = vsel %vm807, %v1461, 0.0
        %v1776 = vrot.slane %v1775, 4
        %v1777 = vadd.f32 %v1775, %v1776
        %v1778 = vrot.slane %v1777, 2
        %v1779 = vadd.f32 %v1777, %v1778
        %v1780 = vrot.slane %v1779, 1
        %v1781 = vadd.f32 %v1779, %v1780
        %v1782 = vadd.f32 %v1676, 0.0
        %v1783 = vadd.f32 %v1683, 0.0
        %v1784 = vadd.f32 %v1690, 0.0
        %v1785 = vadd.f32 %v1697, 0.0
        %v1786 = vadd.f32 %v1704, 0.0
        %v1787 = vadd.f32 %v1711, 0.0
        %v1788 = vadd.f32 %v1718, 0.0
        %v1789 = vadd.f32 %v1725, 0.0
        %v1790 = vadd.f32 %v1732, 0.0
        %v1791 = vadd.f32 %v1739, 0.0
        %v1792 = vadd.f32 %v1746, 0.0
        %v1793 = vadd.f32 %v1753, 0.0
        %v1794 = vadd.f32 %v1760, 0.0
        %v1795 = vadd.f32 %v1767, 0.0
        %v1796 = vadd.f32 %v1774, 0.0
        %v1797 = vadd.f32 %v1781, 0.0
        %v1798 = vrcp.pop %v1782
        %v1799 = vrcp.pop %v1783
        %v1800 = vrcp.pop %v1784
        %v1801 = vrcp.pop %v1785
        %v1802 = vrcp.pop %v1786
        %v1803 = vrcp.pop %v1787
        %v1804 = vrcp.pop %v1788
        %v1805 = vrcp.pop %v1789
        %v1806 = vrcp.pop %v1790
        %v1807 = vrcp.pop %v1791
        %v1808 = vrcp.pop %v1792
        %v1809 = vrcp.pop %v1793
        %v1810 = vrcp.pop %v1794
        %v1811 = vrcp.pop %v1795
        %v1812 = vrcp.pop %v1796
        %v1813 = vrcp.pop %v1797
        %v1814 = vmul.f32 %v1654, %v1798
        %v1815 = vmul.f32 %v1655, %v1799
        %v1816 = vmul.f32 %v1656, %v1800
        %v1817 = vmul.f32 %v1657, %v1801
        %v1818 = vmul.f32 %v1658, %v1802
        %v1819 = vmul.f32 %v1659, %v1803
        %v1820 = vmul.f32 %v1660, %v1804
        %v1821 = vmul.f32 %v1661, %v1805
        %v1822 = vmul.f32 %v1662, %v1806
        %v1823 = vmul.f32 %v1663, %v1807
        %v1824 = vmul.f32 %v1664, %v1808
        %v1825 = vmul.f32 %v1665, %v1809
        %v1826 = vmul.f32 %v1666, %v1810
        %v1827 = vmul.f32 %v1667, %v1811
        %v1828 = vmul.f32 %v1668, %v1812
        %v1829 = vmul.f32 %v1669, %v1813
        %s1830 = sld [smem:[#allocation2]]
        %v1831 = vstv %s1830
        %v1832 = vmul.f32 %v1831, %v1814
        %v1833 = vmul.f32 %v1831, %v1815
        %v1834 = vmul.f32 %v1831, %v1816
        %v1835 = vmul.f32 %v1831, %v1817
        %v1836 = vmul.f32 %v1831, %v1818
        %v1837 = vmul.f32 %v1831, %v1819
        %v1838 = vmul.f32 %v1831, %v1820
        %v1839 = vmul.f32 %v1831, %v1821
        %v1840 = vmul.f32 %v1831, %v1822
        %v1841 = vmul.f32 %v1831, %v1823
        %v1842 = vmul.f32 %v1831, %v1824
        %v1843 = vmul.f32 %v1831, %v1825
        %v1844 = vmul.f32 %v1831, %v1826
        %v1845 = vmul.f32 %v1831, %v1827
        %v1846 = vmul.f32 %v1831, %v1828
        %v1847 = vmul.f32 %v1831, %v1829
        %v1848 = vrot.slane %v794, 1
        %v1849 = vrot.slane %v794, 2
        %v1850 = vrot.slane %v794, 3
        %v1851 = vrot.slane %v794, 4
        %v1852 = vrot.slane %v794, 5
        %v1853 = vrot.slane %v794, 6
        %v1854 = vrot.slane %v794, 7
        %v1855 = vrot.slane %v795, 1
        %v1856 = vrot.slane %v795, 2
        %v1857 = vrot.slane %v795, 3
        %v1858 = vrot.slane %v795, 4
        %v1859 = vrot.slane %v795, 5
        %v1860 = vrot.slane %v795, 6
        %v1861 = vrot.slane %v795, 7
        %v1878 = vadd.f32 %v1832, %v794
        %v1879 = vadd.f32 %v1833, %v1848
        %v1880 = vadd.f32 %v1834, %v1849
        %v1881 = vadd.f32 %v1835, %v1850
        %v1882 = vadd.f32 %v1836, %v1851
        %v1883 = vadd.f32 %v1837, %v1852
        %v1884 = vadd.f32 %v1838, %v1853
        %v1885 = vadd.f32 %v1839, %v1854
        %v1886 = vadd.f32 %v1840, %v795
        %v1887 = vadd.f32 %v1841, %v1855
        %v1888 = vadd.f32 %v1842, %v1856
        %v1889 = vadd.f32 %v1843, %v1857
        %v1890 = vadd.f32 %v1844, %v1858
        %v1891 = vadd.f32 %v1845, %v1859
        %v1892 = vadd.f32 %v1846, %v1860
        %v1893 = vadd.f32 %v1847, %v1861
        %v1894 = vld [vmem:[%s4] sm:$0xff]
        %v1895 = vld [vmem:[%s4 + $0x8] sm:$0xff]
        %v1896 = vld [vmem:[%s4 + $0x10] sm:$0xff]
        %v1897 = vld [vmem:[%s4 + $0x18] sm:$0xff]
        %v1898 = vld [vmem:[%s6] sm:$0xff]
        %v1899 = vld [vmem:[%s6 + $0x8] sm:$0xff]
        %v1900 = vld [vmem:[%s6 + $0x10] sm:$0xff]
        %v1901 = vld [vmem:[%s6 + $0x18] sm:$0xff]
        %v1902 = vld [vmem:[%s6 + $0x20] sm:$0xff]
        %v1903 = vld [vmem:[%s6 + $0x28] sm:$0xff]
        %v1904 = vld [vmem:[%s6 + $0x30] sm:$0xff]
        %v1905 = vld [vmem:[%s6 + $0x38] sm:$0xff]
        %v1906 = vld [vmem:[%s8] sm:$0xff]
        %v1907 = vld [vmem:[%s8 + $0x8] sm:$0xff]
        %v1908 = vld [vmem:[%s8 + $0x10] sm:$0xff]
        %v1909 = vld [vmem:[%s8 + $0x18] sm:$0xff]
        %v1910 = vld [vmem:[%s5] sm:$0x1]
        %v1912 = vlaneseq
        %v1913 = vshrl.u32 %v1912, 7
        %v1914 = vsub.s32 0, %v1913
        %v1915 = vrot.slane %v1910, %v1914
        %v1933 = vrot.slane %v1879, 7
        %vm1934 = vcmask 1041409
        %v1935 = vsel %vm1934, %v1933, %v1878
        %v1936 = vrot.slane %v1880, 6
        %vm1937 = vcmask 1042434
        %v1938 = vsel %vm1937, %v1936, %v1935
        %v1939 = vrot.slane %v1881, 5
        %vm1940 = vcmask 1043459
        %v1941 = vsel %vm1940, %v1939, %v1938
        %v1942 = vrot.slane %v1882, 4
        %vm1943 = vcmask 1044484
        %v1944 = vsel %vm1943, %v1942, %v1941
        %v1945 = vrot.slane %v1883, 3
        %vm1946 = vcmask 1045509
        %v1947 = vsel %vm1946, %v1945, %v1944
        %v1948 = vrot.slane %v1884, 2
        %vm1949 = vcmask 1046534
        %v1950 = vsel %vm1949, %v1948, %v1947
        %v1951 = vrot.slane %v1885, 1
        %vm1952 = vcmask 1047559
        %v1953 = vsel %vm1952, %v1951, %v1950
        %v1954 = vrot.slane %v1887, 7
        %v1955 = vsel %vm1934, %v1954, %v1886
        %v1956 = vrot.slane %v1888, 6
        %v1957 = vsel %vm1937, %v1956, %v1955
        %v1958 = vrot.slane %v1889, 5
        %v1959 = vsel %vm1940, %v1958, %v1957
        %v1960 = vrot.slane %v1890, 4
        %v1961 = vsel %vm1943, %v1960, %v1959
        %v1962 = vrot.slane %v1891, 3
        %v1963 = vsel %vm1946, %v1962, %v1961
        %v1964 = vrot.slane %v1892, 2
        %v1965 = vsel %vm1949, %v1964, %v1963
        %v1966 = vrot.slane %v1893, 1
        %v1967 = vsel %vm1952, %v1966, %v1965
        %v1968 = vsel %vm807, %v1953, 0
        %v1970 = vsel %vm807, %v1967, 0
        %1972 = vmatprep.subr.mxu0 0.0
        %1973 = vmatpush1.msra.mxu0 %v1894
        %1974 = vmatprep.subr.mxu0 0.0
        %1975 = vmatpush1.msra.mxu0 %v1895
        %1976 = vmatprep.subr.mxu0 0.0
        %1977 = vmatpush1.msra.mxu0 %v1896
        %1978 = vmatprep.subr.mxu0 0.0
        %1979 = vmatpush1.msra.mxu0 %v1897
        %1980 = vmatprep.subr.mxu0 0.0
        %1981 = vmatpush1.msra.mxu0 0.0
        %1982 = vmatprep.subr.mxu0 0.0
        %1983 = vmatpush1.msra.mxu0 0.0
        %1984 = vmatprep.subr.mxu0 0.0
        %1985 = vmatpush1.msra.mxu0 0.0
        %1986 = vmatprep.subr.mxu0 0.0
        %1987 = vmatpush1.msra.mxu0 0.0
        %1988 = vmatprep.subr.mxu0 0.0
        %1989 = vmatpush1.msra.mxu0 0.0
        %1990 = vmatprep.subr.mxu0 0.0
        %1991 = vmatpush1.msra.mxu0 0.0
        %1992 = vmatprep.subr.mxu0 0.0
        %1993 = vmatpush1.msra.mxu0 0.0
        %1994 = vmatprep.subr.mxu0 0.0
        %1995 = vmatpush1.msra.mxu0 0.0
        %1996 = vmatprep.subr.mxu0 0.0
        %1997 = vmatpush1.msra.mxu0 0.0
        %1998 = vmatprep.subr.mxu0 0.0
        %1999 = vmatpush1.msra.mxu0 0.0
        %2000 = vmatprep.subr.mxu0 0.0
        %2001 = vmatpush1.msra.mxu0 0.0
        %2002 = vmatprep.subr.mxu0 0.0
        %2003 = vmatpush1.msra.mxu0 0.0
        %2004 = vmatprep.subr.mxu0 0.0
        %2005 = vmatpush1.msra.mxu0 0.0
        %2006 = vmatprep.subr.mxu0 0.0
        %2007 = vmatpush1.msra.mxu0 0.0
        %2008 = vmatprep.subr.mxu0 0.0
        %2009 = vmatpush1.msra.mxu0 0.0
        %2010 = vmatprep.subr.mxu0 0.0
        %2011 = vmatpush1.msra.mxu0 0.0
        %2012 = vmatprep.subr.mxu0 0.0
        %2013 = vmatpush1.msra.mxu0 0.0
        %2014 = vmatprep.subr.mxu0 0.0
        %2015 = vmatpush1.msra.mxu0 0.0
        %2016 = vmatprep.subr.mxu0 0.0
        %2017 = vmatpush1.msra.mxu0 0.0
        %2018 = vmatprep.subr.mxu0 0.0
        %2019 = vmatpush1.msra.mxu0 0.0
        %2020 = vmatprep.subr.mxu0 0.0
        %2021 = vmatpush1.msra.mxu0 0.0
        %2022 = vmatprep.subr.mxu0 0.0
        %2023 = vmatpush1.msra.mxu0 0.0
        %2024 = vmatprep.subr.mxu0 0.0
        %2025 = vmatpush1.msra.mxu0 0.0
        %2026 = vmatprep.subr.mxu0 0.0
        %2027 = vmatpush1.msra.mxu0 0.0
        %2028 = vmatprep.subr.mxu0 0.0
        %2029 = vmatpush1.msra.mxu0 0.0
        %2030 = vmatprep.subr.mxu0 0.0
        %2031 = vmatpush1.msra.mxu0 0.0
        %2032 = vmatprep.subr.mxu0 0.0
        %2033 = vmatpush1.msra.mxu0 0.0
        %2034 = vmatprep.subr.mxu0 0.0
        %2035 = vmatpush1.msra.mxu0 0.0
        %2036 = vmatprep.mubr.f32.mxu0 0.0
        %2037 = vmatmul.mubr.f32.gmra.mrb[0].mxu0 %v1968
        %v2038 = vpop.f32.mrb[0].mxu0
        %v2039 = vadd.f32 %v1915, %v2038
        %v2040 = vpop.f32.mrb[0].mxu0
        %2041 = vmatprep.mubr.f32.mxu0 0.0
        %2042 = vmatmul.mubr.f32.gmra.mrb[0].mxu0 %v1970
        %v2043 = vpop.f32.mrb[0].mxu0
        %v2044 = vadd.f32 %v1915, %v2043
        %v2045 = vpop.f32.mrb[0].mxu0
        %2046 = vdwg.mxu0
        %v2047 = vld [vmem:[%s7] sm:$0x1]
        %v2049 = vlaneseq
        %v2050 = vshrl.u32 %v2049, 7
        %v2051 = vsub.s32 0, %v2050
        %v2052 = vrot.slane %v2047, %v2051
        %vm2054 = vcmask 523264
        %v2056 = vsel %vm2054, %v2039, 0
        %v2059 = vsel %vm2054, %v2044, 0
        %2061 = vmatprep.subr.mxu0 0.0
        %2062 = vmatpush1.msra.mxu0 %v1898
        %2063 = vmatprep.subr.mxu0 0.0
        %2064 = vmatpush1.msra.mxu0 %v1899
        %2065 = vmatprep.subr.mxu0 0.0
        %2066 = vmatpush1.msra.mxu0 %v1900
        %2067 = vmatprep.subr.mxu0 0.0
        %2068 = vmatpush1.msra.mxu0 %v1901
        %2069 = vmatprep.subr.mxu0 0.0
        %2070 = vmatpush1.msra.mxu0 %v1902
        %2071 = vmatprep.subr.mxu0 0.0
        %2072 = vmatpush1.msra.mxu0 %v1903
        %2073 = vmatprep.subr.mxu0 0.0
        %2074 = vmatpush1.msra.mxu0 %v1904
        %2075 = vmatprep.subr.mxu0 0.0
        %2076 = vmatpush1.msra.mxu0 %v1905
        %2077 = vmatprep.subr.mxu0 0.0
        %2078 = vmatpush1.msra.mxu0 0.0
        %2079 = vmatprep.subr.mxu0 0.0
        %2080 = vmatpush1.msra.mxu0 0.0
        %2081 = vmatprep.subr.mxu0 0.0
        %2082 = vmatpush1.msra.mxu0 0.0
        %2083 = vmatprep.subr.mxu0 0.0
        %2084 = vmatpush1.msra.mxu0 0.0
        %2085 = vmatprep.subr.mxu0 0.0
        %2086 = vmatpush1.msra.mxu0 0.0
        %2087 = vmatprep.subr.mxu0 0.0
        %2088 = vmatpush1.msra.mxu0 0.0
        %2089 = vmatprep.subr.mxu0 0.0
        %2090 = vmatpush1.msra.mxu0 0.0
        %2091 = vmatprep.subr.mxu0 0.0
        %2092 = vmatpush1.msra.mxu0 0.0
        %2093 = vmatprep.subr.mxu0 0.0
        %2094 = vmatpush1.msra.mxu0 0.0
        %2095 = vmatprep.subr.mxu0 0.0
        %2096 = vmatpush1.msra.mxu0 0.0
        %2097 = vmatprep.subr.mxu0 0.0
        %2098 = vmatpush1.msra.mxu0 0.0
        %2099 = vmatprep.subr.mxu0 0.0
        %2100 = vmatpush1.msra.mxu0 0.0
        %2101 = vmatprep.subr.mxu0 0.0
        %2102 = vmatpush1.msra.mxu0 0.0
        %2103 = vmatprep.subr.mxu0 0.0
        %2104 = vmatpush1.msra.mxu0 0.0
        %2105 = vmatprep.subr.mxu0 0.0
        %2106 = vmatpush1.msra.mxu0 0.0
        %2107 = vmatprep.subr.mxu0 0.0
        %2108 = vmatpush1.msra.mxu0 0.0
        %2109 = vmatprep.subr.mxu0 0.0
        %2110 = vmatpush1.msra.mxu0 0.0
        %2111 = vmatprep.subr.mxu0 0.0
        %2112 = vmatpush1.msra.mxu0 0.0
        %2113 = vmatprep.subr.mxu0 0.0
        %2114 = vmatpush1.msra.mxu0 0.0
        %2115 = vmatprep.subr.mxu0 0.0
        %2116 = vmatpush1.msra.mxu0 0.0
        %2117 = vmatprep.subr.mxu0 0.0
        %2118 = vmatpush1.msra.mxu0 0.0
        %2119 = vmatprep.subr.mxu0 0.0
        %2120 = vmatpush1.msra.mxu0 0.0
        %2121 = vmatprep.subr.mxu0 0.0
        %2122 = vmatpush1.msra.mxu0 0.0
        %2123 = vmatprep.subr.mxu0 0.0
        %2124 = vmatpush1.msra.mxu0 0.0
        %2125 = vmatprep.mubr.f32.mxu0 0.0
        %2126 = vmatmul.mubr.f32.gmra.mrb[0].mxu0 %v2056
        %v2127 = vpop.f32.mrb[0].mxu0
        %v2128 = vadd.f32 %v2052, %v2127
        %v2129 = vpop.f32.mrb[0].mxu0
        %2130 = vmatprep.mubr.f32.mxu0 0.0
        %2131 = vmatmul.mubr.f32.gmra.mrb[0].mxu0 %v2059
        %v2132 = vpop.f32.mrb[0].mxu0
        %v2133 = vadd.f32 %v2052, %v2132
        %v2134 = vpop.f32.mrb[0].mxu0
        %2135 = vdwg.mxu0
        %v2136 = vld [vmem:[%s9] sm:$0x1]
        %v2138 = vlaneseq
        %v2139 = vshrl.u32 %v2138, 7
        %v2140 = vsub.s32 0, %v2139
        %v2141 = vrot.slane %v2136, %v2140
        %v2144 = vsel %vm807, %v2128, 0
        %v2147 = vsel %vm807, %v2133, 0
        %2149 = vmatprep.subr.mxu0 0.0
        %2150 = vmatpush1.msra.mxu0 %v1906
        %2151 = vmatprep.subr.mxu0 0.0
        %2152 = vmatpush1.msra.mxu0 %v1907
        %2153 = vmatprep.subr.mxu0 0.0
        %2154 = vmatpush1.msra.mxu0 %v1908
        %2155 = vmatprep.subr.mxu0 0.0
        %2156 = vmatpush1.msra.mxu0 %v1909
        %2157 = vmatprep.subr.mxu0 0.0
        %2158 = vmatpush1.msra.mxu0 0.0
        %2159 = vmatprep.subr.mxu0 0.0
        %2160 = vmatpush1.msra.mxu0 0.0
        %2161 = vmatprep.subr.mxu0 0.0
        %2162 = vmatpush1.msra.mxu0 0.0
        %2163 = vmatprep.subr.mxu0 0.0
        %2164 = vmatpush1.msra.mxu0 0.0
        %2165 = vmatprep.subr.mxu0 0.0
        %2166 = vmatpush1.msra.mxu0 0.0
        %2167 = vmatprep.subr.mxu0 0.0
        %2168 = vmatpush1.msra.mxu0 0.0
        %2169 = vmatprep.subr.mxu0 0.0
        %2170 = vmatpush1.msra.mxu0 0.0
        %2171 = vmatprep.subr.mxu0 0.0
        %2172 = vmatpush1.msra.mxu0 0.0
        %2173 = vmatprep.subr.mxu0 0.0
        %2174 = vmatpush1.msra.mxu0 0.0
        %2175 = vmatprep.subr.mxu0 0.0
        %2176 = vmatpush1.msra.mxu0 0.0
        %2177 = vmatprep.subr.mxu0 0.0
        %2178 = vmatpush1.msra.mxu0 0.0
        %2179 = vmatprep.subr.mxu0 0.0
        %2180 = vmatpush1.msra.mxu0 0.0
        %2181 = vmatprep.subr.mxu0 0.0
        %2182 = vmatpush1.msra.mxu0 0.0
        %2183 = vmatprep.subr.mxu0 0.0
        %2184 = vmatpush1.msra.mxu0 0.0
        %2185 = vmatprep.subr.mxu0 0.0
        %2186 = vmatpush1.msra.mxu0 0.0
        %2187 = vmatprep.subr.mxu0 0.0
        %2188 = vmatpush1.msra.mxu0 0.0
        %2189 = vmatprep.subr.mxu0 0.0
        %2190 = vmatpush1.msra.mxu0 0.0
        %2191 = vmatprep.subr.mxu0 0.0
        %2192 = vmatpush1.msra.mxu0 0.0
        %2193 = vmatprep.subr.mxu0 0.0
        %2194 = vmatpush1.msra.mxu0 0.0
        %2195 = vmatprep.subr.mxu0 0.0
        %2196 = vmatpush1.msra.mxu0 0.0
        %2197 = vmatprep.subr.mxu0 0.0
        %2198 = vmatpush1.msra.mxu0 0.0
        %2199 = vmatprep.subr.mxu0 0.0
        %2200 = vmatpush1.msra.mxu0 0.0
        %2201 = vmatprep.subr.mxu0 0.0
        %2202 = vmatpush1.msra.mxu0 0.0
        %2203 = vmatprep.subr.mxu0 0.0
        %2204 = vmatpush1.msra.mxu0 0.0
        %2205 = vmatprep.subr.mxu0 0.0
        %2206 = vmatpush1.msra.mxu0 0.0
        %2207 = vmatprep.subr.mxu0 0.0
        %2208 = vmatpush1.msra.mxu0 0.0
        %2209 = vmatprep.subr.mxu0 0.0
        %2210 = vmatpush1.msra.mxu0 0.0
        %2211 = vmatprep.subr.mxu0 0.0
        %2212 = vmatpush1.msra.mxu0 0.0
        %2213 = vmatprep.mubr.f32.mxu0 0.0
        %2214 = vmatmul.mubr.f32.gmra.mrb[0].mxu0 %v2144
        %v2215 = vpop.f32.mrb[0].mxu0
        %v2216 = vadd.f32 %v2141, %v2215
        %v2217 = vpop.f32.mrb[0].mxu0
        %2218 = vmatprep.mubr.f32.mxu0 0.0
        %2219 = vmatmul.mubr.f32.gmra.mrb[0].mxu0 %v2147
        %v2220 = vpop.f32.mrb[0].mxu0
        %v2221 = vadd.f32 %v2141, %v2220
        %v2222 = vpop.f32.mrb[0].mxu0
        %2223 = vdwg.mxu0
        %v2224 = vadd.f32 %v2039, %v2216
        %v2225 = vadd.f32 %v2044, %v2221
        %vm2226 = vcmp.ge.f32.partialorder %v2224, 0.0
        %vm2227 = vcmp.ge.f32.partialorder %v2225, 0.0
        %v2228 = vmul.f32 %v2224, 0.2
        %v2229 = vmul.f32 %v2225, 0.2
        %v2230 = vsel %vm2226, %v2224, %v2228
        %v2231 = vsel %vm2227, %v2225, %v2229
        %v2232 = vld [vmem:[%s10] sm:$0xff]
        %v2233 = vld [vmem:[%s10 + $0x8] sm:$0xff]
        %v2234 = vld [vmem:[%s10 + $0x10] sm:$0xff]
        %v2235 = vld [vmem:[%s10 + $0x18] sm:$0xff]
        %v2236 = vld [vmem:[%s10 + $0x20] sm:$0xff]
        %v2237 = vld [vmem:[%s10 + $0x28] sm:$0xff]
        %v2238 = vld [vmem:[%s10 + $0x30] sm:$0xff]
        %v2239 = vld [vmem:[%s10 + $0x38] sm:$0xff]
        %v2240 = vld [vmem:[%s12] sm:$0xff]
        %v2241 = vld [vmem:[%s12 + $0x8] sm:$0xff]
        %v2242 = vld [vmem:[%s12 + $0x10] sm:$0xff]
        %v2243 = vld [vmem:[%s12 + $0x18] sm:$0xff]
        %v2244 = vld [vmem:[%s14] sm:$0xff]
        %v2245 = vld [vmem:[%s14 + $0x8] sm:$0xff]
        %v2246 = vld [vmem:[%s11] sm:$0x1]
        %v2248 = vlaneseq
        %v2249 = vshrl.u32 %v2248, 7
        %v2250 = vsub.s32 0, %v2249
        %v2251 = vrot.slane %v2246, %v2250
        %v2254 = vsel %vm2054, %v2230, 0
        %v2257 = vsel %vm2054, %v2231, 0
        %2259 = vmatprep.subr.mxu0 0.0
        %2260 = vmatpush1.msra.mxu0 %v2232
        %2261 = vmatprep.subr.mxu0 0.0
        %2262 = vmatpush1.msra.mxu0 %v2233
        %2263 = vmatprep.subr.mxu0 0.0
        %2264 = vmatpush1.msra.mxu0 %v2234
        %2265 = vmatprep.subr.mxu0 0.0
        %2266 = vmatpush1.msra.mxu0 %v2235
        %2267 = vmatprep.subr.mxu0 0.0
        %2268 = vmatpush1.msra.mxu0 %v2236
        %2269 = vmatprep.subr.mxu0 0.0
        %2270 = vmatpush1.msra.mxu0 %v2237
        %2271 = vmatprep.subr.mxu0 0.0
        %2272 = vmatpush1.msra.mxu0 %v2238
        %2273 = vmatprep.subr.mxu0 0.0
        %2274 = vmatpush1.msra.mxu0 %v2239
        %2275 = vmatprep.subr.mxu0 0.0
        %2276 = vmatpush1.msra.mxu0 0.0
        %2277 = vmatprep.subr.mxu0 0.0
        %2278 = vmatpush1.msra.mxu0 0.0
        %2279 = vmatprep.subr.mxu0 0.0
        %2280 = vmatpush1.msra.mxu0 0.0
        %2281 = vmatprep.subr.mxu0 0.0
        %2282 = vmatpush1.msra.mxu0 0.0
        %2283 = vmatprep.subr.mxu0 0.0
        %2284 = vmatpush1.msra.mxu0 0.0
        %2285 = vmatprep.subr.mxu0 0.0
        %2286 = vmatpush1.msra.mxu0 0.0
        %2287 = vmatprep.subr.mxu0 0.0
        %2288 = vmatpush1.msra.mxu0 0.0
        %2289 = vmatprep.subr.mxu0 0.0
        %2290 = vmatpush1.msra.mxu0 0.0
        %2291 = vmatprep.subr.mxu0 0.0
        %2292 = vmatpush1.msra.mxu0 0.0
        %2293 = vmatprep.subr.mxu0 0.0
        %2294 = vmatpush1.msra.mxu0 0.0
        %2295 = vmatprep.subr.mxu0 0.0
        %2296 = vmatpush1.msra.mxu0 0.0
        %2297 = vmatprep.subr.mxu0 0.0
        %2298 = vmatpush1.msra.mxu0 0.0
        %2299 = vmatprep.subr.mxu0 0.0
        %2300 = vmatpush1.msra.mxu0 0.0
        %2301 = vmatprep.subr.mxu0 0.0
        %2302 = vmatpush1.msra.mxu0 0.0
        %2303 = vmatprep.subr.mxu0 0.0
        %2304 = vmatpush1.msra.mxu0 0.0
        %2305 = vmatprep.subr.mxu0 0.0
        %2306 = vmatpush1.msra.mxu0 0.0
        %2307 = vmatprep.subr.mxu0 0.0
        %2308 = vmatpush1.msra.mxu0 0.0
        %2309 = vmatprep.subr.mxu0 0.0
        %2310 = vmatpush1.msra.mxu0 0.0
        %2311 = vmatprep.subr.mxu0 0.0
        %2312 = vmatpush1.msra.mxu0 0.0
        %2313 = vmatprep.subr.mxu0 0.0
        %2314 = vmatpush1.msra.mxu0 0.0
        %2315 = vmatprep.subr.mxu0 0.0
        %2316 = vmatpush1.msra.mxu0 0.0
        %2317 = vmatprep.subr.mxu0 0.0
        %2318 = vmatpush1.msra.mxu0 0.0
        %2319 = vmatprep.subr.mxu0 0.0
        %2320 = vmatpush1.msra.mxu0 0.0
        %2321 = vmatprep.subr.mxu0 0.0
        %2322 = vmatpush1.msra.mxu0 0.0
        %2323 = vmatprep.mubr.f32.mxu0 0.0
        %2324 = vmatmul.mubr.f32.gmra.mrb[0].mxu0 %v2254
        %v2325 = vpop.f32.mrb[0].mxu0
        %v2326 = vadd.f32 %v2251, %v2325
        %v2327 = vpop.f32.mrb[0].mxu0
        %2328 = vmatprep.mubr.f32.mxu0 0.0
        %2329 = vmatmul.mubr.f32.gmra.mrb[0].mxu0 %v2257
        %v2330 = vpop.f32.mrb[0].mxu0
        %v2331 = vadd.f32 %v2251, %v2330
        %v2332 = vpop.f32.mrb[0].mxu0
        %2333 = vdwg.mxu0
        %v2334 = vld [vmem:[%s13] sm:$0x1]
        %v2336 = vlaneseq
        %v2337 = vshrl.u32 %v2336, 7
        %v2338 = vsub.s32 0, %v2337
        %v2339 = vrot.slane %v2334, %v2338
        %v2342 = vsel %vm807, %v2326, 0
        %v2345 = vsel %vm807, %v2331, 0
        %2347 = vmatprep.subr.mxu0 0.0
        %2348 = vmatpush1.msra.mxu0 %v2240
        %2349 = vmatprep.subr.mxu0 0.0
        %2350 = vmatpush1.msra.mxu0 %v2241
        %2351 = vmatprep.subr.mxu0 0.0
        %2352 = vmatpush1.msra.mxu0 %v2242
        %2353 = vmatprep.subr.mxu0 0.0
        %2354 = vmatpush1.msra.mxu0 %v2243
        %2355 = vmatprep.subr.mxu0 0.0
        %2356 = vmatpush1.msra.mxu0 0.0
        %2357 = vmatprep.subr.mxu0 0.0
        %2358 = vmatpush1.msra.mxu0 0.0
        %2359 = vmatprep.subr.mxu0 0.0
        %2360 = vmatpush1.msra.mxu0 0.0
        %2361 = vmatprep.subr.mxu0 0.0
        %2362 = vmatpush1.msra.mxu0 0.0
        %2363 = vmatprep.subr.mxu0 0.0
        %2364 = vmatpush1.msra.mxu0 0.0
        %2365 = vmatprep.subr.mxu0 0.0
        %2366 = vmatpush1.msra.mxu0 0.0
        %2367 = vmatprep.subr.mxu0 0.0
        %2368 = vmatpush1.msra.mxu0 0.0
        %2369 = vmatprep.subr.mxu0 0.0
        %2370 = vmatpush1.msra.mxu0 0.0
        %2371 = vmatprep.subr.mxu0 0.0
        %2372 = vmatpush1.msra.mxu0 0.0
        %2373 = vmatprep.subr.mxu0 0.0
        %2374 = vmatpush1.msra.mxu0 0.0
        %2375 = vmatprep.subr.mxu0 0.0
        %2376 = vmatpush1.msra.mxu0 0.0
        %2377 = vmatprep.subr.mxu0 0.0
        %2378 = vmatpush1.msra.mxu0 0.0
        %2379 = vmatprep.subr.mxu0 0.0
        %2380 = vmatpush1.msra.mxu0 0.0
        %2381 = vmatprep.subr.mxu0 0.0
        %2382 = vmatpush1.msra.mxu0 0.0
        %2383 = vmatprep.subr.mxu0 0.0
        %2384 = vmatpush1.msra.mxu0 0.0
        %2385 = vmatprep.subr.mxu0 0.0
        %2386 = vmatpush1.msra.mxu0 0.0
        %2387 = vmatprep.subr.mxu0 0.0
        %2388 = vmatpush1.msra.mxu0 0.0
        %2389 = vmatprep.subr.mxu0 0.0
        %2390 = vmatpush1.msra.mxu0 0.0
        %2391 = vmatprep.subr.mxu0 0.0
        %2392 = vmatpush1.msra.mxu0 0.0
        %2393 = vmatprep.subr.mxu0 0.0
        %2394 = vmatpush1.msra.mxu0 0.0
        %2395 = vmatprep.subr.mxu0 0.0
        %2396 = vmatpush1.msra.mxu0 0.0
        %2397 = vmatprep.subr.mxu0 0.0
        %2398 = vmatpush1.msra.mxu0 0.0
        %2399 = vmatprep.subr.mxu0 0.0
        %2400 = vmatpush1.msra.mxu0 0.0
        %2401 = vmatprep.subr.mxu0 0.0
        %2402 = vmatpush1.msra.mxu0 0.0
        %2403 = vmatprep.subr.mxu0 0.0
        %2404 = vmatpush1.msra.mxu0 0.0
        %2405 = vmatprep.subr.mxu0 0.0
        %2406 = vmatpush1.msra.mxu0 0.0
        %2407 = vmatprep.subr.mxu0 0.0
        %2408 = vmatpush1.msra.mxu0 0.0
        %2409 = vmatprep.subr.mxu0 0.0
        %2410 = vmatpush1.msra.mxu0 0.0
        %2411 = vmatprep.mubr.f32.mxu0 0.0
        %2412 = vmatmul.mubr.f32.gmra.mrb[0].mxu0 %v2342
        %v2413 = vpop.f32.mrb[0].mxu0
        %v2414 = vadd.f32 %v2339, %v2413
        %v2415 = vpop.f32.mrb[0].mxu0
        %2416 = vmatprep.mubr.f32.mxu0 0.0
        %2417 = vmatmul.mubr.f32.gmra.mrb[0].mxu0 %v2345
        %v2418 = vpop.f32.mrb[0].mxu0
        %v2419 = vadd.f32 %v2339, %v2418
        %v2420 = vpop.f32.mrb[0].mxu0
        %2421 = vdwg.mxu0
        %v2422 = vld [vmem:[%s15] sm:$0x1]
        %v2424 = vlaneseq
        %v2425 = vshrl.u32 %v2424, 7
        %v2426 = vsub.s32 0, %v2425
        %v2427 = vrot.slane %v2422, %v2426
        %vm2429 = vcmask 130048
        %v2431 = vsel %vm2429, %v2414, 0
        %v2434 = vsel %vm2429, %v2419, 0
        %2436 = vmatprep.subr.mxu0 0.0
        %2437 = vmatpush1.msra.mxu0 %v2244
        %2438 = vmatprep.subr.mxu0 0.0
        %2439 = vmatpush1.msra.mxu0 %v2245
        %2440 = vmatprep.subr.mxu0 0.0
        %2441 = vmatpush1.msra.mxu0 0.0
        %2442 = vmatprep.subr.mxu0 0.0
        %2443 = vmatpush1.msra.mxu0 0.0
        %2444 = vmatprep.subr.mxu0 0.0
        %2445 = vmatpush1.msra.mxu0 0.0
        %2446 = vmatprep.subr.mxu0 0.0
        %2447 = vmatpush1.msra.mxu0 0.0
        %2448 = vmatprep.subr.mxu0 0.0
        %2449 = vmatpush1.msra.mxu0 0.0
        %2450 = vmatprep.subr.mxu0 0.0
        %2451 = vmatpush1.msra.mxu0 0.0
        %2452 = vmatprep.subr.mxu0 0.0
        %2453 = vmatpush1.msra.mxu0 0.0
        %2454 = vmatprep.subr.mxu0 0.0
        %2455 = vmatpush1.msra.mxu0 0.0
        %2456 = vmatprep.subr.mxu0 0.0
        %2457 = vmatpush1.msra.mxu0 0.0
        %2458 = vmatprep.subr.mxu0 0.0
        %2459 = vmatpush1.msra.mxu0 0.0
        %2460 = vmatprep.subr.mxu0 0.0
        %2461 = vmatpush1.msra.mxu0 0.0
        %2462 = vmatprep.subr.mxu0 0.0
        %2463 = vmatpush1.msra.mxu0 0.0
        %2464 = vmatprep.subr.mxu0 0.0
        %2465 = vmatpush1.msra.mxu0 0.0
        %2466 = vmatprep.subr.mxu0 0.0
        %2467 = vmatpush1.msra.mxu0 0.0
        %2468 = vmatprep.subr.mxu0 0.0
        %2469 = vmatpush1.msra.mxu0 0.0
        %2470 = vmatprep.subr.mxu0 0.0
        %2471 = vmatpush1.msra.mxu0 0.0
        %2472 = vmatprep.subr.mxu0 0.0
        %2473 = vmatpush1.msra.mxu0 0.0
        %2474 = vmatprep.subr.mxu0 0.0
        %2475 = vmatpush1.msra.mxu0 0.0
        %2476 = vmatprep.subr.mxu0 0.0
        %2477 = vmatpush1.msra.mxu0 0.0
        %2478 = vmatprep.subr.mxu0 0.0
        %2479 = vmatpush1.msra.mxu0 0.0
        %2480 = vmatprep.subr.mxu0 0.0
        %2481 = vmatpush1.msra.mxu0 0.0
        %2482 = vmatprep.subr.mxu0 0.0
        %2483 = vmatpush1.msra.mxu0 0.0
        %2484 = vmatprep.subr.mxu0 0.0
        %2485 = vmatpush1.msra.mxu0 0.0
        %2486 = vmatprep.subr.mxu0 0.0
        %2487 = vmatpush1.msra.mxu0 0.0
        %2488 = vmatprep.subr.mxu0 0.0
        %2489 = vmatpush1.msra.mxu0 0.0
        %2490 = vmatprep.subr.mxu0 0.0
        %2491 = vmatpush1.msra.mxu0 0.0
        %2492 = vmatprep.subr.mxu0 0.0
        %2493 = vmatpush1.msra.mxu0 0.0
        %2494 = vmatprep.subr.mxu0 0.0
        %2495 = vmatpush1.msra.mxu0 0.0
        %2496 = vmatprep.subr.mxu0 0.0
        %2497 = vmatpush1.msra.mxu0 0.0
        %2498 = vmatprep.subr.mxu0 0.0
        %2499 = vmatpush1.msra.mxu0 0.0
        %2500 = vmatprep.mubr.f32.mxu0 0.0
        %2501 = vmatmul.mubr.f32.gmra.mrb[0].mxu0 %v2431
        %v2502 = vpop.f32.mrb[0].mxu0
        %v2503 = vadd.f32 %v2427, %v2502
        %v2504 = vpop.f32.mrb[0].mxu0
        %2505 = vmatprep.mubr.f32.mxu0 0.0
        %2506 = vmatmul.mubr.f32.gmra.mrb[0].mxu0 %v2434
        %v2507 = vpop.f32.mrb[0].mxu0
        %v2508 = vadd.f32 %v2427, %v2507
        %v2509 = vpop.f32.mrb[0].mxu0
        %2510 = vdwg.mxu0
        %v2511 = vadd.f32 %v2326, %v2503
        %v2512 = vadd.f32 %v2331, %v2508
        %vm2513 = vcmp.ge.f32.partialorder %v2511, 0.0
        %vm2514 = vcmp.ge.f32.partialorder %v2512, 0.0
        %v2515 = vmul.f32 %v2511, 0.2
        %v2516 = vmul.f32 %v2512, 0.2
        %v2517 = vsel %vm2513, %v2511, %v2515
        %v2518 = vsel %vm2514, %v2512, %v2516
        %v2519 = vld [vmem:[%s16] sm:$0xff]
        %v2520 = vld [vmem:[%s16 + $0x8] sm:$0xff]
        %v2521 = vld [vmem:[%s16 + $0x10] sm:$0xff]
        %v2522 = vld [vmem:[%s16 + $0x18] sm:$0xff]
        %v2523 = vld [vmem:[%s18] sm:$0xff]
        %v2524 = vld [vmem:[%s18 + $0x8] sm:$0xff]
        %v2525 = vld [vmem:[%s20] sm:$0xff]
        %v2526 = vld [vmem:[%s17] sm:$0x1]
        %v2528 = vlaneseq
        %v2529 = vshrl.u32 %v2528, 7
        %v2530 = vsub.s32 0, %v2529
        %v2531 = vrot.slane %v2526, %v2530
        %v2534 = vsel %vm807, %v2517, 0
        %v2537 = vsel %vm807, %v2518, 0
        %2539 = vmatprep.subr.mxu0 0.0
        %2540 = vmatpush1.msra.mxu0 %v2519
        %2541 = vmatprep.subr.mxu0 0.0
        %2542 = vmatpush1.msra.mxu0 %v2520
        %2543 = vmatprep.subr.mxu0 0.0
        %2544 = vmatpush1.msra.mxu0 %v2521
        %2545 = vmatprep.subr.mxu0 0.0
        %2546 = vmatpush1.msra.mxu0 %v2522
        %2547 = vmatprep.subr.mxu0 0.0
        %2548 = vmatpush1.msra.mxu0 0.0
        %2549 = vmatprep.subr.mxu0 0.0
        %2550 = vmatpush1.msra.mxu0 0.0
        %2551 = vmatprep.subr.mxu0 0.0
        %2552 = vmatpush1.msra.mxu0 0.0
        %2553 = vmatprep.subr.mxu0 0.0
        %2554 = vmatpush1.msra.mxu0 0.0
        %2555 = vmatprep.subr.mxu0 0.0
        %2556 = vmatpush1.msra.mxu0 0.0
        %2557 = vmatprep.subr.mxu0 0.0
        %2558 = vmatpush1.msra.mxu0 0.0
        %2559 = vmatprep.subr.mxu0 0.0
        %2560 = vmatpush1.msra.mxu0 0.0
        %2561 = vmatprep.subr.mxu0 0.0
        %2562 = vmatpush1.msra.mxu0 0.0
        %2563 = vmatprep.subr.mxu0 0.0
        %2564 = vmatpush1.msra.mxu0 0.0
        %2565 = vmatprep.subr.mxu0 0.0
        %2566 = vmatpush1.msra.mxu0 0.0
        %2567 = vmatprep.subr.mxu0 0.0
        %2568 = vmatpush1.msra.mxu0 0.0
        %2569 = vmatprep.subr.mxu0 0.0
        %2570 = vmatpush1.msra.mxu0 0.0
        %2571 = vmatprep.subr.mxu0 0.0
        %2572 = vmatpush1.msra.mxu0 0.0
        %2573 = vmatprep.subr.mxu0 0.0
        %2574 = vmatpush1.msra.mxu0 0.0
        %2575 = vmatprep.subr.mxu0 0.0
        %2576 = vmatpush1.msra.mxu0 0.0
        %2577 = vmatprep.subr.mxu0 0.0
        %2578 = vmatpush1.msra.mxu0 0.0
        %2579 = vmatprep.subr.mxu0 0.0
        %2580 = vmatpush1.msra.mxu0 0.0
        %2581 = vmatprep.subr.mxu0 0.0
        %2582 = vmatpush1.msra.mxu0 0.0
        %2583 = vmatprep.subr.mxu0 0.0
        %2584 = vmatpush1.msra.mxu0 0.0
        %2585 = vmatprep.subr.mxu0 0.0
        %2586 = vmatpush1.msra.mxu0 0.0
        %2587 = vmatprep.subr.mxu0 0.0
        %2588 = vmatpush1.msra.mxu0 0.0
        %2589 = vmatprep.subr.mxu0 0.0
        %2590 = vmatpush1.msra.mxu0 0.0
        %2591 = vmatprep.subr.mxu0 0.0
        %2592 = vmatpush1.msra.mxu0 0.0
        %2593 = vmatprep.subr.mxu0 0.0
        %2594 = vmatpush1.msra.mxu0 0.0
        %2595 = vmatprep.subr.mxu0 0.0
        %2596 = vmatpush1.msra.mxu0 0.0
        %2597 = vmatprep.subr.mxu0 0.0
        %2598 = vmatpush1.msra.mxu0 0.0
        %2599 = vmatprep.subr.mxu0 0.0
        %2600 = vmatpush1.msra.mxu0 0.0
        %2601 = vmatprep.subr.mxu0 0.0
        %2602 = vmatpush1.msra.mxu0 0.0
        %2603 = vmatprep.mubr.f32.mxu0 0.0
        %2604 = vmatmul.mubr.f32.gmra.mrb[0].mxu0 %v2534
        %v2605 = vpop.f32.mrb[0].mxu0
        %v2606 = vadd.f32 %v2531, %v2605
        %v2607 = vpop.f32.mrb[0].mxu0
        %2608 = vmatprep.mubr.f32.mxu0 0.0
        %2609 = vmatmul.mubr.f32.gmra.mrb[0].mxu0 %v2537
        %v2610 = vpop.f32.mrb[0].mxu0
        %v2611 = vadd.f32 %v2531, %v2610
        %v2612 = vpop.f32.mrb[0].mxu0
        %2613 = vdwg.mxu0
        %v2614 = vld [vmem:[%s19] sm:$0x1]
        %v2616 = vlaneseq
        %v2617 = vshrl.u32 %v2616, 7
        %v2618 = vsub.s32 0, %v2617
        %v2619 = vrot.slane %v2614, %v2618
        %v2622 = vsel %vm2429, %v2606, 0
        %v2625 = vsel %vm2429, %v2611, 0
        %2627 = vmatprep.subr.mxu0 0.0
        %2628 = vmatpush1.msra.mxu0 %v2523
        %2629 = vmatprep.subr.mxu0 0.0
        %2630 = vmatpush1.msra.mxu0 %v2524
        %2631 = vmatprep.subr.mxu0 0.0
        %2632 = vmatpush1.msra.mxu0 0.0
        %2633 = vmatprep.subr.mxu0 0.0
        %2634 = vmatpush1.msra.mxu0 0.0
        %2635 = vmatprep.subr.mxu0 0.0
        %2636 = vmatpush1.msra.mxu0 0.0
        %2637 = vmatprep.subr.mxu0 0.0
        %2638 = vmatpush1.msra.mxu0 0.0
        %2639 = vmatprep.subr.mxu0 0.0
        %2640 = vmatpush1.msra.mxu0 0.0
        %2641 = vmatprep.subr.mxu0 0.0
        %2642 = vmatpush1.msra.mxu0 0.0
        %2643 = vmatprep.subr.mxu0 0.0
        %2644 = vmatpush1.msra.mxu0 0.0
        %2645 = vmatprep.subr.mxu0 0.0
        %2646 = vmatpush1.msra.mxu0 0.0
        %2647 = vmatprep.subr.mxu0 0.0
        %2648 = vmatpush1.msra.mxu0 0.0
        %2649 = vmatprep.subr.mxu0 0.0
        %2650 = vmatpush1.msra.mxu0 0.0
        %2651 = vmatprep.subr.mxu0 0.0
        %2652 = vmatpush1.msra.mxu0 0.0
        %2653 = vmatprep.subr.mxu0 0.0
        %2654 = vmatpush1.msra.mxu0 0.0
        %2655 = vmatprep.subr.mxu0 0.0
        %2656 = vmatpush1.msra.mxu0 0.0
        %2657 = vmatprep.subr.mxu0 0.0
        %2658 = vmatpush1.msra.mxu0 0.0
        %2659 = vmatprep.subr.mxu0 0.0
        %2660 = vmatpush1.msra.mxu0 0.0
        %2661 = vmatprep.subr.mxu0 0.0
        %2662 = vmatpush1.msra.mxu0 0.0
        %2663 = vmatprep.subr.mxu0 0.0
        %2664 = vmatpush1.msra.mxu0 0.0
        %2665 = vmatprep.subr.mxu0 0.0
        %2666 = vmatpush1.msra.mxu0 0.0
        %2667 = vmatprep.subr.mxu0 0.0
        %2668 = vmatpush1.msra.mxu0 0.0
        %2669 = vmatprep.subr.mxu0 0.0
        %2670 = vmatpush1.msra.mxu0 0.0
        %2671 = vmatprep.subr.mxu0 0.0
        %2672 = vmatpush1.msra.mxu0 0.0
        %2673 = vmatprep.subr.mxu0 0.0
        %2674 = vmatpush1.msra.mxu0 0.0
        %2675 = vmatprep.subr.mxu0 0.0
        %2676 = vmatpush1.msra.mxu0 0.0
        %2677 = vmatprep.subr.mxu0 0.0
        %2678 = vmatpush1.msra.mxu0 0.0
        %2679 = vmatprep.subr.mxu0 0.0
        %2680 = vmatpush1.msra.mxu0 0.0
        %2681 = vmatprep.subr.mxu0 0.0
        %2682 = vmatpush1.msra.mxu0 0.0
        %2683 = vmatprep.subr.mxu0 0.0
        %2684 = vmatpush1.msra.mxu0 0.0
        %2685 = vmatprep.subr.mxu0 0.0
        %2686 = vmatpush1.msra.mxu0 0.0
        %2687 = vmatprep.subr.mxu0 0.0
        %2688 = vmatpush1.msra.mxu0 0.0
        %2689 = vmatprep.subr.mxu0 0.0
        %2690 = vmatpush1.msra.mxu0 0.0
        %2691 = vmatprep.mubr.f32.mxu0 0.0
        %2692 = vmatmul.mubr.f32.gmra.mrb[0].mxu0 %v2622
        %v2693 = vpop.f32.mrb[0].mxu0
        %v2694 = vadd.f32 %v2619, %v2693
        %v2695 = vpop.f32.mrb[0].mxu0
        %2696 = vmatprep.mubr.f32.mxu0 0.0
        %2697 = vmatmul.mubr.f32.gmra.mrb[0].mxu0 %v2625
        %v2698 = vpop.f32.mrb[0].mxu0
        %v2699 = vadd.f32 %v2619, %v2698
        %v2700 = vpop.f32.mrb[0].mxu0
        %2701 = vdwg.mxu0
        %v2702 = vld [vmem:[%s21] sm:$0x1]
        %v2704 = vlaneseq
        %v2705 = vshrl.u32 %v2704, 7
        %v2706 = vsub.s32 0, %v2705
        %v2707 = vrot.slane %v2702, %v2706
        %vm2709 = vcmask 64512
        %v2711 = vsel %vm2709, %v2694, 0
        %v2714 = vsel %vm2709, %v2699, 0
        %2716 = vmatprep.subr.mxu0 0.0
        %2717 = vmatpush1.msra.mxu0 %v2525
        %2718 = vmatprep.subr.mxu0 0.0
        %2719 = vmatpush1.msra.mxu0 0.0
        %2720 = vmatprep.subr.mxu0 0.0
        %2721 = vmatpush1.msra.mxu0 0.0
        %2722 = vmatprep.subr.mxu0 0.0
        %2723 = vmatpush1.msra.mxu0 0.0
        %2724 = vmatprep.subr.mxu0 0.0
        %2725 = vmatpush1.msra.mxu0 0.0
        %2726 = vmatprep.subr.mxu0 0.0
        %2727 = vmatpush1.msra.mxu0 0.0
        %2728 = vmatprep.subr.mxu0 0.0
        %2729 = vmatpush1.msra.mxu0 0.0
        %2730 = vmatprep.subr.mxu0 0.0
        %2731 = vmatpush1.msra.mxu0 0.0
        %2732 = vmatprep.subr.mxu0 0.0
        %2733 = vmatpush1.msra.mxu0 0.0
        %2734 = vmatprep.subr.mxu0 0.0
        %2735 = vmatpush1.msra.mxu0 0.0
        %2736 = vmatprep.subr.mxu0 0.0
        %2737 = vmatpush1.msra.mxu0 0.0
        %2738 = vmatprep.subr.mxu0 0.0
        %2739 = vmatpush1.msra.mxu0 0.0
        %2740 = vmatprep.subr.mxu0 0.0
        %2741 = vmatpush1.msra.mxu0 0.0
        %2742 = vmatprep.subr.mxu0 0.0
        %2743 = vmatpush1.msra.mxu0 0.0
        %2744 = vmatprep.subr.mxu0 0.0
        %2745 = vmatpush1.msra.mxu0 0.0
        %2746 = vmatprep.subr.mxu0 0.0
        %2747 = vmatpush1.msra.mxu0 0.0
        %2748 = vmatprep.subr.mxu0 0.0
        %2749 = vmatpush1.msra.mxu0 0.0
        %2750 = vmatprep.subr.mxu0 0.0
        %2751 = vmatpush1.msra.mxu0 0.0
        %2752 = vmatprep.subr.mxu0 0.0
        %2753 = vmatpush1.msra.mxu0 0.0
        %2754 = vmatprep.subr.mxu0 0.0
        %2755 = vmatpush1.msra.mxu0 0.0
        %2756 = vmatprep.subr.mxu0 0.0
        %2757 = vmatpush1.msra.mxu0 0.0
        %2758 = vmatprep.subr.mxu0 0.0
        %2759 = vmatpush1.msra.mxu0 0.0
        %2760 = vmatprep.subr.mxu0 0.0
        %2761 = vmatpush1.msra.mxu0 0.0
        %2762 = vmatprep.subr.mxu0 0.0
        %2763 = vmatpush1.msra.mxu0 0.0
        %2764 = vmatprep.subr.mxu0 0.0
        %2765 = vmatpush1.msra.mxu0 0.0
        %2766 = vmatprep.subr.mxu0 0.0
        %2767 = vmatpush1.msra.mxu0 0.0
        %2768 = vmatprep.subr.mxu0 0.0
        %2769 = vmatpush1.msra.mxu0 0.0
        %2770 = vmatprep.subr.mxu0 0.0
        %2771 = vmatpush1.msra.mxu0 0.0
        %2772 = vmatprep.subr.mxu0 0.0
        %2773 = vmatpush1.msra.mxu0 0.0
        %2774 = vmatprep.subr.mxu0 0.0
        %2775 = vmatpush1.msra.mxu0 0.0
        %2776 = vmatprep.subr.mxu0 0.0
        %2777 = vmatpush1.msra.mxu0 0.0
        %2778 = vmatprep.subr.mxu0 0.0
        %2779 = vmatpush1.msra.mxu0 0.0
        %2780 = vmatprep.mubr.f32.mxu0 0.0
        %2781 = vmatmul.mubr.f32.gmra.mrb[0].mxu0 %v2711
        %v2782 = vpop.f32.mrb[0].mxu0
        %v2783 = vadd.f32 %v2707, %v2782
        %v2784 = vpop.f32.mrb[0].mxu0
        %2785 = vmatprep.mubr.f32.mxu0 0.0
        %2786 = vmatmul.mubr.f32.gmra.mrb[0].mxu0 %v2714
        %v2787 = vpop.f32.mrb[0].mxu0
        %v2788 = vadd.f32 %v2707, %v2787
        %v2789 = vpop.f32.mrb[0].mxu0
        %2790 = vdwg.mxu0
        %v2791 = vadd.f32 %v2606, %v2783
        %v2792 = vadd.f32 %v2611, %v2788
        %vm2793 = vcmp.ge.f32.partialorder %v2791, 0.0
        %vm2794 = vcmp.ge.f32.partialorder %v2792, 0.0
        %v2795 = vmul.f32 %v2791, 0.2
        %v2796 = vmul.f32 %v2792, 0.2
        %v2797 = vsel %vm2793, %v2791, %v2795
        %v2798 = vsel %vm2794, %v2792, %v2796
        %v2799 = vld [vmem:[%s22] sm:$0xff]
        %v2800 = vld [vmem:[%s22 + $0x8] sm:$0xff]
        %v2801 = vld [vmem:[%s23] sm:$0x1]
        %v2803 = vlaneseq
        %v2804 = vshrl.u32 %v2803, 7
        %v2805 = vsub.s32 0, %v2804
        %v2806 = vrot.slane %v2801, %v2805
        %v2809 = vsel %vm2429, %v2797, 0
        %v2812 = vsel %vm2429, %v2798, 0
        %2814 = vmatprep.subr.mxu0 0.0
        %2815 = vmatpush1.msra.mxu0 %v2799
        %2816 = vmatprep.subr.mxu0 0.0
        %2817 = vmatpush1.msra.mxu0 %v2800
        %2818 = vmatprep.subr.mxu0 0.0
        %2819 = vmatpush1.msra.mxu0 0.0
        %2820 = vmatprep.subr.mxu0 0.0
        %2821 = vmatpush1.msra.mxu0 0.0
        %2822 = vmatprep.subr.mxu0 0.0
        %2823 = vmatpush1.msra.mxu0 0.0
        %2824 = vmatprep.subr.mxu0 0.0
        %2825 = vmatpush1.msra.mxu0 0.0
        %2826 = vmatprep.subr.mxu0 0.0
        %2827 = vmatpush1.msra.mxu0 0.0
        %2828 = vmatprep.subr.mxu0 0.0
        %2829 = vmatpush1.msra.mxu0 0.0
        %2830 = vmatprep.subr.mxu0 0.0
        %2831 = vmatpush1.msra.mxu0 0.0
        %2832 = vmatprep.subr.mxu0 0.0
        %2833 = vmatpush1.msra.mxu0 0.0
        %2834 = vmatprep.subr.mxu0 0.0
        %2835 = vmatpush1.msra.mxu0 0.0
        %2836 = vmatprep.subr.mxu0 0.0
        %2837 = vmatpush1.msra.mxu0 0.0
        %2838 = vmatprep.subr.mxu0 0.0
        %2839 = vmatpush1.msra.mxu0 0.0
        %2840 = vmatprep.subr.mxu0 0.0
        %2841 = vmatpush1.msra.mxu0 0.0
        %2842 = vmatprep.subr.mxu0 0.0
        %2843 = vmatpush1.msra.mxu0 0.0
        %2844 = vmatprep.subr.mxu0 0.0
        %2845 = vmatpush1.msra.mxu0 0.0
        %2846 = vmatprep.subr.mxu0 0.0
        %2847 = vmatpush1.msra.mxu0 0.0
        %2848 = vmatprep.subr.mxu0 0.0
        %2849 = vmatpush1.msra.mxu0 0.0
        %2850 = vmatprep.subr.mxu0 0.0
        %2851 = vmatpush1.msra.mxu0 0.0
        %2852 = vmatprep.subr.mxu0 0.0
        %2853 = vmatpush1.msra.mxu0 0.0
        %2854 = vmatprep.subr.mxu0 0.0
        %2855 = vmatpush1.msra.mxu0 0.0
        %2856 = vmatprep.subr.mxu0 0.0
        %2857 = vmatpush1.msra.mxu0 0.0
        %2858 = vmatprep.subr.mxu0 0.0
        %2859 = vmatpush1.msra.mxu0 0.0
        %2860 = vmatprep.subr.mxu0 0.0
        %2861 = vmatpush1.msra.mxu0 0.0
        %2862 = vmatprep.subr.mxu0 0.0
        %2863 = vmatpush1.msra.mxu0 0.0
        %2864 = vmatprep.subr.mxu0 0.0
        %2865 = vmatpush1.msra.mxu0 0.0
        %2866 = vmatprep.subr.mxu0 0.0
        %2867 = vmatpush1.msra.mxu0 0.0
        %2868 = vmatprep.subr.mxu0 0.0
        %2869 = vmatpush1.msra.mxu0 0.0
        %2870 = vmatprep.subr.mxu0 0.0
        %2871 = vmatpush1.msra.mxu0 0.0
        %2872 = vmatprep.subr.mxu0 0.0
        %2873 = vmatpush1.msra.mxu0 0.0
        %2874 = vmatprep.subr.mxu0 0.0
        %2875 = vmatpush1.msra.mxu0 0.0
        %2876 = vmatprep.subr.mxu0 0.0
        %2877 = vmatpush1.msra.mxu0 0.0
        %2878 = vmatprep.mubr.f32.mxu0 0.0
        %2879 = vmatmul.mubr.f32.gmra.mrb[0].mxu0 %v2809
        %v2880 = vpop.f32.mrb[0].mxu0
        %v2881 = vadd.f32 %v2806, %v2880
        %v2882 = vpop.f32.mrb[0].mxu0
        %2883 = vmatprep.mubr.f32.mxu0 0.0
        %2884 = vmatmul.mubr.f32.gmra.mrb[0].mxu0 %v2812
        %v2885 = vpop.f32.mrb[0].mxu0
        %v2886 = vadd.f32 %v2806, %v2885
        %v2887 = vpop.f32.mrb[0].mxu0
        %2888 = vdwg.mxu0
        %v2889 = vld [vmem:[%s24] sm:$0xff]
        %v2890 = vld [vmem:[%s25] sm:$0x1]
        %v2892 = vlaneseq
        %v2893 = vshrl.u32 %v2892, 7
        %v2894 = vsub.s32 0, %v2893
        %v2895 = vrot.slane %v2890, %v2894
        %v2898 = vsel %vm2709, %v2881, 0
        %v2901 = vsel %vm2709, %v2886, 0
        %2903 = vmatprep.subr.mxu0 0.0
        %2904 = vmatpush1.msra.mxu0 %v2889
        %2905 = vmatprep.subr.mxu0 0.0
        %2906 = vmatpush1.msra.mxu0 0.0
        %2907 = vmatprep.subr.mxu0 0.0
        %2908 = vmatpush1.msra.mxu0 0.0
        %2909 = vmatprep.subr.mxu0 0.0
        %2910 = vmatpush1.msra.mxu0 0.0
        %2911 = vmatprep.subr.mxu0 0.0
        %2912 = vmatpush1.msra.mxu0 0.0
        %2913 = vmatprep.subr.mxu0 0.0
        %2914 = vmatpush1.msra.mxu0 0.0
        %2915 = vmatprep.subr.mxu0 0.0
        %2916 = vmatpush1.msra.mxu0 0.0
        %2917 = vmatprep.subr.mxu0 0.0
        %2918 = vmatpush1.msra.mxu0 0.0
        %2919 = vmatprep.subr.mxu0 0.0
        %2920 = vmatpush1.msra.mxu0 0.0
        %2921 = vmatprep.subr.mxu0 0.0
        %2922 = vmatpush1.msra.mxu0 0.0
        %2923 = vmatprep.subr.mxu0 0.0
        %2924 = vmatpush1.msra.mxu0 0.0
        %2925 = vmatprep.subr.mxu0 0.0
        %2926 = vmatpush1.msra.mxu0 0.0
        %2927 = vmatprep.subr.mxu0 0.0
        %2928 = vmatpush1.msra.mxu0 0.0
        %2929 = vmatprep.subr.mxu0 0.0
        %2930 = vmatpush1.msra.mxu0 0.0
        %2931 = vmatprep.subr.mxu0 0.0
        %2932 = vmatpush1.msra.mxu0 0.0
        %2933 = vmatprep.subr.mxu0 0.0
        %2934 = vmatpush1.msra.mxu0 0.0
        %2935 = vmatprep.subr.mxu0 0.0
        %2936 = vmatpush1.msra.mxu0 0.0
        %2937 = vmatprep.subr.mxu0 0.0
        %2938 = vmatpush1.msra.mxu0 0.0
        %2939 = vmatprep.subr.mxu0 0.0
        %2940 = vmatpush1.msra.mxu0 0.0
        %2941 = vmatprep.subr.mxu0 0.0
        %2942 = vmatpush1.msra.mxu0 0.0
        %2943 = vmatprep.subr.mxu0 0.0
        %2944 = vmatpush1.msra.mxu0 0.0
        %2945 = vmatprep.subr.mxu0 0.0
        %2946 = vmatpush1.msra.mxu0 0.0
        %2947 = vmatprep.subr.mxu0 0.0
        %2948 = vmatpush1.msra.mxu0 0.0
        %2949 = vmatprep.subr.mxu0 0.0
        %2950 = vmatpush1.msra.mxu0 0.0
        %2951 = vmatprep.subr.mxu0 0.0
        %2952 = vmatpush1.msra.mxu0 0.0
        %2953 = vmatprep.subr.mxu0 0.0
        %2954 = vmatpush1.msra.mxu0 0.0
        %2955 = vmatprep.subr.mxu0 0.0
        %2956 = vmatpush1.msra.mxu0 0.0
        %2957 = vmatprep.subr.mxu0 0.0
        %2958 = vmatpush1.msra.mxu0 0.0
        %2959 = vmatprep.subr.mxu0 0.0
        %2960 = vmatpush1.msra.mxu0 0.0
        %2961 = vmatprep.subr.mxu0 0.0
        %2962 = vmatpush1.msra.mxu0 0.0
        %2963 = vmatprep.subr.mxu0 0.0
        %2964 = vmatpush1.msra.mxu0 0.0
        %2965 = vmatprep.subr.mxu0 0.0
        %2966 = vmatpush1.msra.mxu0 0.0
        %2967 = vmatprep.mubr.f32.mxu0 0.0
        %2968 = vmatmul.mubr.f32.gmra.mrb[0].mxu0 %v2898
        %v2969 = vpop.f32.mrb[0].mxu0
        %v2970 = vadd.f32 %v2895, %v2969
        %v2971 = vpop.f32.mrb[0].mxu0
        %2972 = vmatprep.mubr.f32.mxu0 0.0
        %2973 = vmatmul.mubr.f32.gmra.mrb[0].mxu0 %v2901
        %v2974 = vpop.f32.mrb[0].mxu0
        %v2975 = vadd.f32 %v2895, %v2974
        %v2976 = vpop.f32.mrb[0].mxu0
        %2977 = vdwg.mxu0
        %2978 = vst [vmem:[%s786] sm:$0xff] %v2970
        %2979 = vst [vmem:[%s786 + $0x8] sm:$0xff] %v2975
        %s2980 = sand.u32 %s600, 1
        %s2981 = scalar_lea.sflag [#allocation4], %s2980
        %s2982 = sand.u32 %s600, 1
        %s2983 = smul.addr %s2982, 16
        %s2984 = scalar_lea.vmem [#allocation3], %s2983
        // Predicated region
        $region125: #{tpu_custom_call.1} parent=123 // pred_check
          %p2985 = pneg %p610
        $region126: #{tpu_custom_call.1} parent=123 // pred_check_branch
          %2987 = sbr.rel (%p2985) target = $region128
        $region127: #{tpu_custom_call.1} parent=123 // pred_region
          %s2988 = smul.u32 2, %s41
          %s2990 = ssub.s32 256, 256
          %2991 = vsyncadd %s2981, %s2990
          %s2992 = smul.addr %s2988, 128
          %s2993 = scalar_lea.hbm %s26, %s2992
          %s2994 = sshll.u32 %s2984, 4
          %s2995 = int_to_ptr.vmem [resolvable:$true] %s2994
          %3000 = dma.vmem_to_hbm [thread:$0]  %s2995, 256, %s2993, %s2981, 128, 128, 8
        $region128: #{tpu_custom_call.1} parent=123 // pred_fallthru
          _
      $region124: #{tpu_custom_call.1} parent=5 // pred_fallthru
        _
      %p3001 = scmp.le.s32.totalorder 2, %s36
      // Predicated region
      $region129: #{tpu_custom_call.1} parent=5 // pred_check
        %p3002 = pneg %p3001
      $region130: #{tpu_custom_call.1} parent=5 // pred_check_branch
        %3004 = sbr.rel (%p3002) target = $region132
      $region131: #{tpu_custom_call.1} parent=5 // pred_region
        %s3005 = ssub.s32 %s36, 2
        // Predicated region
        $region133: #{tpu_custom_call.1} parent=131 // pred_check
          %p3006 = pneg %p616
        $region134: #{tpu_custom_call.1} parent=131 // pred_check_branch
          %3008 = sbr.rel (%p3006) target = $region136
        $region135: #{tpu_custom_call.1} parent=131 // pred_region
          %s3009 = sand.u32 %s601, 1
          %s3010 = scalar_lea.sflag [#allocation4], %s3009
          %s3011 = sand.u32 %s601, 1
          %s3012 = smul.addr %s3011, 16
          %s3013 = scalar_lea.vmem [#allocation3], %s3012
          %3014 = dma.done %s3010, 256
        $region136: #{tpu_custom_call.1} parent=131 // pred_fallthru
          _
      $region132: #{tpu_custom_call.1} parent=5 // pred_fallthru
        _
    $region6: #{tpu_custom_call.1} parent=1 // loop_footer
      %s40 = sadd.s32 1, %s36
    $region7: #{tpu_custom_call.1} parent=1 // loop_footer_branch
      %35 = sbr.rel target = $region3
    $region8: #{tpu_custom_call.1} parent=1 // loop_exit
      _
    %3015 = vsyncpa [#allocation4], 1
    %s3016 = scalar_lea.sflag [#allocation4], 1
    %3017 = vsyncpa %s3016, 1

</llo_original>
